<compile_context>
chip_gen: v7x
topology: tpu7x:2x2x1
jax: 0.10.0
libtpu: 0.0.40
codegen_flags: <defaults>
</compile_context>

<pallas_src>
import math
import jax
import jax.numpy as jnp
from jax.experimental import pallas as pl
from jax.experimental.pallas import tpu as pltpu

# ----------------------------- config (small, consistent with the module) ----
OUTPUT_DIM = 50
HID_DIM    = 32
N_LAYERS   = 2
N_HEADS    = 4
HEAD_DIM   = HID_DIM // N_HEADS
PF_DIM     = 64
MAX_LEN    = 700
BATCH      = 2
TRG_LEN    = 8
SRC_LEN    = 16
LN_EPS     = 1e-5
OUT_PAD    = ((OUTPUT_DIM + 127) // 128) * 128   # lane-dense fc_out width (128)


# ----------------------------- in-kernel helpers ------------------------------
def _layer_norm(z, g, b):
    # PyTorch LayerNorm: biased variance, eps=1e-5
    mean = jnp.mean(z, axis=-1, keepdims=True)
    var = jnp.mean((z - mean) ** 2, axis=-1, keepdims=True)
    return (z - mean) * jax.lax.rsqrt(var + LN_EPS) * g + b


def _mha_block(xq, xkv, wqkv, bqkv, mask_add, B, Lq, Lk, ctx_ref, attn_ref):
    """Multi-head attention (attention_type='general', no 1/sqrt(d) scaling).

    xq: [B*Lq, D], xkv: [B*Lk, D], wqkv: [D, 3D], bqkv: [1, 3D],
    mask_add: [B, Lq, Lk] additive mask (0 or -1e10).
    Writes per-head context into ctx_ref ([B*Lq, D] VMEM scratch) and returns its value.
    If attn_ref is not None, also stores attention probs into attn_ref [B, H, Lq, Lk].
    """
    D, H, Dh = HID_DIM, N_HEADS, HEAD_DIM
    f32 = jnp.float32

    if xq is xkv:
        # fused single matmul for Q,K,V (self-attention)
        qkv = jnp.dot(xq, wqkv, preferred_element_type=f32) + bqkv
        q, k, v = qkv[:, :D], qkv[:, D:2 * D], qkv[:, 2 * D:]
    else:
        q = jnp.dot(xq, wqkv[:, :D], preferred_element_type=f32) + bqkv[:, :D]
        kv = jnp.dot(xkv, wqkv[:, D:], preferred_element_type=f32) + bqkv[:, D:]
        k, v = kv[:, :D], kv[:, D:]

    # statically unrolled per-(batch, head) attention; all shapes are tiny and static
    for b in range(B):
        qb = q[b * Lq:(b + 1) * Lq, :]
        kb = k[b * Lk:(b + 1) * Lk, :]
        vb = v[b * Lk:(b + 1) * Lk, :]
        mb = mask_add[b]                          # [Lq, Lk]
        for h in range(H):
            qh = qb[:, h * Dh:(h + 1) * Dh]       # [Lq, Dh]
            kh = kb[:, h * Dh:(h + 1) * Dh]       # [Lk, Dh]
            vh = vb[:, h * Dh:(h + 1) * Dh]       # [Lk, Dh]
            # energy = Q @ K^T via dot_general with rhs contracting on its last dim
            e = jax.lax.dot_general(qh, kh, (((1,), (1,)), ((), ())),
                                    preferred_element_type=f32)
            e = e + mb
            e = e - jnp.max(e, axis=-1, keepdims=True)
            p = jnp.exp(e)
            p = p * pl.reciprocal(jnp.sum(p, axis=-1, keepdims=True), approx=True)
            if attn_ref is not None:
                attn_ref[b, h, :, :] = p
            ctx_ref[b * Lq:(b + 1) * Lq, h * Dh:(h + 1) * Dh] = jnp.dot(
                p, vh, preferred_element_type=f32)

    return ctx_ref[...]


# ----------------------------- fused decoder-layer kernel ---------------------
def _make_layer_kernel(B, Lt, Ls, last):
    """Builds a kernel computing one whole DecoderLayer.

    Inputs (22): x, enc, tmask_add, smask_add, and all layer weights.
    If last: +2 inputs (padded fc_out w/b); outputs (logits_padded, attention).
    Else: output is the updated trg activations [B*Lt, D].
    Scratch: ctx VMEM [B*Lt, D].
    """
    f32 = jnp.float32

    def kernel(*refs):
        (x_ref, enc_ref, tmask_ref, smask_ref,
         sa_wqkv, sa_bqkv, sa_wo, sa_bo, ln1_g, ln1_b,
         ea_wqkv, ea_bqkv, ea_wo, ea_bo, ln2_g, ln2_b,
         ff_w1, ff_b1, ff_w2, ff_b2, ln3_g, ln3_b) = refs[:22]
        if last:
            fo_w, fo_b = refs[22:24]
            logits_ref, attn_ref, ctx_ref = refs[24:]
            out_ref = None
        else:
            out_ref, ctx_ref = refs[22:]
            attn_ref = None

        x = x_ref[...]                 # [B*Lt, D]
        enc = enc_ref[...]             # [B*Ls, D]
        tmask = tmask_ref[...]         # [B, Lt, Lt] additive
        smask = smask_ref[...]         # [B, Lt, Ls] additive

        # ---- self attention + residual + LN1 (dropout = identity in eval) ----
        ctx = _mha_block(x, x, sa_wqkv[...], sa_bqkv[...], tmask, B, Lt, Lt,
                         ctx_ref, None)
        sa = jnp.dot(ctx, sa_wo[...], preferred_element_type=f32) + sa_bo[...]
        x = _layer_norm(x + sa, ln1_g[...], ln1_b[...])

        # ---- encoder attention + residual + LN2 ----
        ctx = _mha_block(x, enc, ea_wqkv[...], ea_bqkv[...], smask, B, Lt, Ls,
                         ctx_ref, attn_ref)
        ea = jnp.dot(ctx, ea_wo[...], preferred_element_type=f32) + ea_bo[...]
        x = _layer_norm(x + ea, ln2_g[...], ln2_b[...])

        # ---- feedforward + residual + LN3 ----
        h = jnp.maximum(
            jnp.dot(x, ff_w1[...], preferred_element_type=f32) + ff_b1[...], 0.0)
        ff = jnp.dot(h, ff_w2[...], preferred_element_type=f32) + ff_b2[...]
        x = _layer_norm(x + ff, ln3_g[...], ln3_b[...])

        if last:
            # fused fc_out, padded to 128 lanes for a lane-dense store
            logits_ref[...] = (jnp.dot(x, fo_w[...], preferred_element_type=f32)
                               + fo_b[...]).astype(logits_ref.dtype)
        else:
            out_ref[...] = x.astype(out_ref.dtype)

    return kernel


def _decoder_layer_call(lp, x2d, enc2d, tmask_add, smask_add, B, Lt, Ls, last,
                        fc_out_w=None, fc_out_b=None):
    kernel = _make_layer_kernel(B, Lt, Ls, last)
    inputs = [x2d, enc2d, tmask_add, smask_add,
              lp['sa_wqkv'], lp['sa_bqkv'], lp['sa_wo'], lp['sa_bo'],
              lp['ln1_g'], lp['ln1_b'],
              lp['ea_wqkv'], lp['ea_bqkv'], lp['ea_wo'], lp['ea_bo'],
              lp['ln2_g'], lp['ln2_b'],
              lp['ff_w1'], lp['ff_b1'], lp['ff_w2'], lp['ff_b2'],
              lp['ln3_g'], lp['ln3_b']]
    if last:
        inputs += [fc_out_w, fc_out_b]
        out_shape = (jax.ShapeDtypeStruct((B * Lt, OUT_PAD), jnp.float32),
                     jax.ShapeDtypeStruct((B, N_HEADS, Lt, Ls), jnp.float32))
    else:
        out_shape = jax.ShapeDtypeStruct((B * Lt, HID_DIM), jnp.float32)
    return pl.pallas_call(
        kernel,
        out_shape=out_shape,
        scratch_shapes=[pltpu.VMEM((B * Lt, HID_DIM), jnp.float32)],
    )(*inputs)


# ----------------------------- model forward (JAX glue) -----------------------
def decoder_forward(params, trg_tokens, enc_src, trg_mask, src_mask):
    B, Lt = trg_tokens.shape
    Ls = enc_src.shape[1]
    D = HID_DIM

    scale = jnp.sqrt(jnp.float32(D))
    pos = jnp.arange(Lt)[None, :]
    # TODO(synk): embedding gather kept in plain JAX (scalar-indexed gather, not a tiled hot path)
    x = params['tok_emb'][trg_tokens] * scale + params['pos_emb'][pos]
    x2d = x.reshape(B * Lt, D)
    enc2d = enc_src.reshape(B * Ls, D)

    # additive masks (0 where visible, -1e10 where masked), head-broadcast done in-kernel
    tmask_add = (trg_mask[:, 0].astype(jnp.float32) - 1.0) * 1e10            # [B, Lt, Lt]
    smask_add = jnp.broadcast_to(
        (src_mask[:, 0].astype(jnp.float32) - 1.0) * 1e10, (B, Lt, Ls))      # [B, Lt, Ls]

    attention = None
    logits_pad = None
    n = len(params['layers'])
    for i, lp in enumerate(params['layers']):
        if i == n - 1:
            logits_pad, attention = _decoder_layer_call(
                lp, x2d, enc2d, tmask_add, smask_add, B, Lt, Ls, True,
                params['fc_out_w_pad'], params['fc_out_b_pad'])
        else:
            x2d = _decoder_layer_call(lp, x2d, enc2d, tmask_add, smask_add,
                                      B, Lt, Ls, False)

    out = logits_pad[:, :OUTPUT_DIM].reshape(B, Lt, OUTPUT_DIM)
    return out, attention


# ----------------------------- deterministic init -----------------------------
def _init_linear(key, din, dout):
    k1, k2 = jax.random.split(key)
    lim = 1.0 / math.sqrt(din)
    w = jax.random.uniform(k1, (din, dout), jnp.float32, -lim, lim)
    b = jax.random.uniform(k2, (1, dout), jnp.float32, -lim, lim)
    return w, b


def _init_mha(key):
    ks = jax.random.split(key, 4)
    wq, bq = _init_linear(ks[0], HID_DIM, HID_DIM)
    wk, bk = _init_linear(ks[1], HID_DIM, HID_DIM)
    wv, bv = _init_linear(ks[2], HID_DIM, HID_DIM)
    wo, bo = _init_linear(ks[3], HID_DIM, HID_DIM)
    # note: v / W / U / W_mal from the reference module are only used for the
    # 'additive'/'multiplicative' attention types; attention_type='general' here.
    return dict(wqkv=jnp.concatenate([wq, wk, wv], axis=1),   # [D, 3D]
                bqkv=jnp.concatenate([bq, bk, bv], axis=1),   # [1, 3D]
                wo=wo, bo=bo)


def _init_layer(key):
    ks = jax.random.split(key, 4)
    sa = _init_mha(ks[0])
    ea = _init_mha(ks[1])
    w1, b1 = _init_linear(ks[2], HID_DIM, PF_DIM)
    w2, b2 = _init_linear(ks[3], PF_DIM, HID_DIM)
    ones = jnp.ones((1, HID_DIM), jnp.float32)
    zeros = jnp.zeros((1, HID_DIM), jnp.float32)
    return dict(
        sa_wqkv=sa['wqkv'], sa_bqkv=sa['bqkv'], sa_wo=sa['wo'], sa_bo=sa['bo'],
        ea_wqkv=ea['wqkv'], ea_bqkv=ea['bqkv'], ea_wo=ea['wo'], ea_bo=ea['bo'],
        ff_w1=w1, ff_b1=b1, ff_w2=w2, ff_b2=b2,
        ln1_g=ones, ln1_b=zeros, ln2_g=ones, ln2_b=zeros, ln3_g=ones, ln3_b=zeros,
    )


def init_params(key):
    ks = jax.random.split(key, N_LAYERS + 3)
    fc_out_w, fc_out_b = _init_linear(ks[2], HID_DIM, OUTPUT_DIM)
    pad = OUT_PAD - OUTPUT_DIM
    return dict(
        tok_emb=jax.random.normal(ks[0], (OUTPUT_DIM, HID_DIM), jnp.float32),
        pos_emb=jax.random.normal(ks[1], (MAX_LEN, HID_DIM), jnp.float32),
        fc_out_w_pad=jnp.pad(fc_out_w, ((0, 0), (0, pad))),   # [D, 128] lane-dense
        fc_out_b_pad=jnp.pad(fc_out_b, ((0, 0), (0, pad))),   # [1, 128]
        layers=[_init_layer(ks[3 + i]) for i in range(N_LAYERS)],
    )


# ----------------------------- main --------------------------------------------
if __name__ == "__main__":
    key = jax.random.PRNGKey(0)
    kp, kt, ke = jax.random.split(key, 3)

    params = init_params(kp)

    trg_tokens = jax.random.randint(kt, (BATCH, TRG_LEN), 0, OUTPUT_DIM, dtype=jnp.int32)
    enc_src = jax.random.normal(ke, (BATCH, SRC_LEN, HID_DIM), jnp.float32)

    # causal target mask [B, 1, Lt, Lt] and all-ones source mask [B, 1, 1, Ls]
    trg_mask = jnp.tril(jnp.ones((TRG_LEN, TRG_LEN), jnp.float32))[None, None, :, :]
    trg_mask = jnp.broadcast_to(trg_mask, (BATCH, 1, TRG_LEN, TRG_LEN))
    src_mask = jnp.ones((BATCH, 1, 1, SRC_LEN), jnp.float32)

    fwd = jax.jit(decoder_forward)
    output, attention = fwd(params, trg_tokens, enc_src, trg_mask, src_mask)
    jax.block_until_ready((output, attention))

    assert output.shape == (BATCH, TRG_LEN, OUTPUT_DIM)
    assert attention.shape == (BATCH, N_HEADS, TRG_LEN, SRC_LEN)
    assert bool(jnp.all(jnp.isfinite(output)))
    assert bool(jnp.all(jnp.isfinite(attention)))
    # softmax rows sum to ~1 (approx reciprocal on the EUP introduces <~1e-3 error)
    assert bool(jnp.allclose(attention.sum(-1), 1.0, atol=1e-2))

    print("KERNEL_OK")
</pallas_src>

<mosaic_0001>
module attributes {stable_mosaic.version = 11 : i64} {
  func.func @kernel(%arg0: memref<16x32xf32, #tpu.memory_space<vmem>>, %arg1: memref<32x32xf32, #tpu.memory_space<vmem>>, %arg2: memref<2x8x8xf32, #tpu.memory_space<vmem>>, %arg3: memref<2x8x16xf32, #tpu.memory_space<vmem>>, %arg4: memref<32x96xf32, #tpu.memory_space<vmem>>, %arg5: memref<1x96xf32, #tpu.memory_space<vmem>>, %arg6: memref<32x32xf32, #tpu.memory_space<vmem>>, %arg7: memref<1x32xf32, #tpu.memory_space<vmem>>, %arg8: memref<1x32xf32, #tpu.memory_space<vmem>>, %arg9: memref<1x32xf32, #tpu.memory_space<vmem>>, %arg10: memref<32x96xf32, #tpu.memory_space<vmem>>, %arg11: memref<1x96xf32, #tpu.memory_space<vmem>>, %arg12: memref<32x32xf32, #tpu.memory_space<vmem>>, %arg13: memref<1x32xf32, #tpu.memory_space<vmem>>, %arg14: memref<1x32xf32, #tpu.memory_space<vmem>>, %arg15: memref<1x32xf32, #tpu.memory_space<vmem>>, %arg16: memref<32x64xf32, #tpu.memory_space<vmem>>, %arg17: memref<1x64xf32, #tpu.memory_space<vmem>>, %arg18: memref<64x32xf32, #tpu.memory_space<vmem>>, %arg19: memref<1x32xf32, #tpu.memory_space<vmem>>, %arg20: memref<1x32xf32, #tpu.memory_space<vmem>>, %arg21: memref<1x32xf32, #tpu.memory_space<vmem>>, %arg22: memref<16x32xf32, #tpu.memory_space<vmem>>, %arg23: memref<16x32xf32, #tpu.memory_space<vmem>>) attributes {dimension_semantics = [], scalar_prefetch = 0 : i64, scratch_operands = 1 : i64, tpu.core_type = #tpu.core_type<tc>} {
    %c0 = arith.constant 0 : index
    %c0_0 = arith.constant 0 : index
    %0 = vector.load %arg0[%c0, %c0_0] : memref<16x32xf32, #tpu.memory_space<vmem>>, vector<16x32xf32>
    %c0_1 = arith.constant 0 : index
    %c0_2 = arith.constant 0 : index
    %1 = vector.load %arg1[%c0_1, %c0_2] : memref<32x32xf32, #tpu.memory_space<vmem>>, vector<32x32xf32>
    %c0_3 = arith.constant 0 : index
    %c0_4 = arith.constant 0 : index
    %c0_5 = arith.constant 0 : index
    %2 = vector.load %arg2[%c0_3, %c0_4, %c0_5] : memref<2x8x8xf32, #tpu.memory_space<vmem>>, vector<2x8x8xf32>
    %c0_6 = arith.constant 0 : index
    %c0_7 = arith.constant 0 : index
    %c0_8 = arith.constant 0 : index
    %3 = vector.load %arg3[%c0_6, %c0_7, %c0_8] : memref<2x8x16xf32, #tpu.memory_space<vmem>>, vector<2x8x16xf32>
    %c0_9 = arith.constant 0 : index
    %c0_10 = arith.constant 0 : index
    %4 = vector.load %arg4[%c0_9, %c0_10] : memref<32x96xf32, #tpu.memory_space<vmem>>, vector<32x96xf32>
    %c0_11 = arith.constant 0 : index
    %c0_12 = arith.constant 0 : index
    %5 = vector.load %arg5[%c0_11, %c0_12] : memref<1x96xf32, #tpu.memory_space<vmem>>, vector<1x96xf32>
    %cst = arith.constant dense<0.000000e+00> : vector<16x96xf32>
    %6 = tpu.matmul %0, %4, %cst {dimension_numbers = #tpu.dot_dimension_numbers<[1], [0], [0], [1], [0, 0, 1, 1], [], []>} : vector<16x32xf32>, vector<32x96xf32>, vector<16x96xf32> -> vector<16x96xf32>
    %7 = vector.broadcast %5 : vector<1x96xf32> to vector<16x96xf32>
    %8 = arith.addf %6, %7 : vector<16x96xf32>
    %9 = vector.extract_strided_slice %8 {offsets = [0, 0], sizes = [16, 32], strides = [1, 1]} : vector<16x96xf32> to vector<16x32xf32>
    %10 = vector.extract_strided_slice %8 {offsets = [0, 32], sizes = [16, 32], strides = [1, 1]} : vector<16x96xf32> to vector<16x32xf32>
    %11 = vector.extract_strided_slice %8 {offsets = [0, 64], sizes = [16, 32], strides = [1, 1]} : vector<16x96xf32> to vector<16x32xf32>
    %12 = vector.extract_strided_slice %9 {offsets = [0, 0], sizes = [8, 32], strides = [1, 1]} : vector<16x32xf32> to vector<8x32xf32>
    %13 = vector.extract_strided_slice %10 {offsets = [0, 0], sizes = [8, 32], strides = [1, 1]} : vector<16x32xf32> to vector<8x32xf32>
    %14 = vector.extract_strided_slice %11 {offsets = [0, 0], sizes = [8, 32], strides = [1, 1]} : vector<16x32xf32> to vector<8x32xf32>
    %15 = vector.extract_strided_slice %2 {offsets = [0, 0, 0], sizes = [1, 8, 8], strides = [1, 1, 1]} : vector<2x8x8xf32> to vector<1x8x8xf32>
    %16 = vector.shape_cast %15 : vector<1x8x8xf32> to vector<8x8xf32>
    %17 = vector.extract_strided_slice %12 {offsets = [0, 0], sizes = [8, 8], strides = [1, 1]} : vector<8x32xf32> to vector<8x8xf32>
    %18 = vector.extract_strided_slice %13 {offsets = [0, 0], sizes = [8, 8], strides = [1, 1]} : vector<8x32xf32> to vector<8x8xf32>
    %19 = vector.extract_strided_slice %14 {offsets = [0, 0], sizes = [8, 8], strides = [1, 1]} : vector<8x32xf32> to vector<8x8xf32>
    %cst_13 = arith.constant dense<0.000000e+00> : vector<8x8xf32>
    %20 = tpu.matmul %17, %18, %cst_13 {dimension_numbers = #tpu.dot_dimension_numbers<[1], [1], [0], [0], [0, 0, 1, 0], [], []>} : vector<8x8xf32>, vector<8x8xf32>, vector<8x8xf32> -> vector<8x8xf32>
    %21 = arith.addf %20, %16 : vector<8x8xf32>
    %cst_14 = arith.constant dense<0xFF800000> : vector<8xf32>
    %22 = vector.multi_reduction <maximumf>, %21, %cst_14 [1] : vector<8x8xf32> to vector<8xf32>
    %23 = vector.shape_cast %22 : vector<8xf32> to vector<8x1xf32>
    %24 = vector.broadcast %23 : vector<8x1xf32> to vector<8x8xf32>
    %25 = arith.subf %21, %24 : vector<8x8xf32>
    %26 = math.exp %25 : vector<8x8xf32>
    %cst_15 = arith.constant dense<0.000000e+00> : vector<8xf32>
    %27 = vector.multi_reduction <add>, %26, %cst_15 [1] : vector<8x8xf32> to vector<8xf32>
    %28 = vector.shape_cast %27 : vector<8xf32> to vector<8x1xf32>
    %29 = tpu.reciprocal %28 {approx = true} : vector<8x1xf32> -> vector<8x1xf32>
    %30 = vector.broadcast %29 : vector<8x1xf32> to vector<8x8xf32>
    %31 = arith.mulf %26, %30 : vector<8x8xf32>
    %cst_16 = arith.constant dense<0.000000e+00> : vector<8x8xf32>
    %32 = tpu.matmul %31, %19, %cst_16 {dimension_numbers = #tpu.dot_dimension_numbers<[1], [0], [0], [1], [0, 0, 1, 1], [], []>} : vector<8x8xf32>, vector<8x8xf32>, vector<8x8xf32> -> vector<8x8xf32>
    %c0_17 = arith.constant 0 : index
    %c0_18 = arith.constant 0 : index
    %33 = vector.load %arg23[%c0_17, %c0_18] : memref<16x32xf32, #tpu.memory_space<vmem>>, vector<8x8xf32>
    tpu.vector_store %arg23[%c0_17, %c0_18], %32 {strides = array<i32>} : memref<16x32xf32, #tpu.memory_space<vmem>>, vector<8x8xf32>,
    %34 = vector.extract_strided_slice %12 {offsets = [0, 8], sizes = [8, 8], strides = [1, 1]} : vector<8x32xf32> to vector<8x8xf32>
    %35 = vector.extract_strided_slice %13 {offsets = [0, 8], sizes = [8, 8], strides = [1, 1]} : vector<8x32xf32> to vector<8x8xf32>
    %36 = vector.extract_strided_slice %14 {offsets = [0, 8], sizes = [8, 8], strides = [1, 1]} : vector<8x32xf32> to vector<8x8xf32>
    %cst_19 = arith.constant dense<0.000000e+00> : vector<8x8xf32>
    %37 = tpu.matmul %34, %35, %cst_19 {dimension_numbers = #tpu.dot_dimension_numbers<[1], [1], [0], [0], [0, 0, 1, 0], [], []>} : vector<8x8xf32>, vector<8x8xf32>, vector<8x8xf32> -> vector<8x8xf32>
    %38 = arith.addf %37, %16 : vector<8x8xf32>
    %cst_20 = arith.constant dense<0xFF800000> : vector<8xf32>
    %39 = vector.multi_reduction <maximumf>, %38, %cst_20 [1] : vector<8x8xf32> to vector<8xf32>
    %40 = vector.shape_cast %39 : vector<8xf32> to vector<8x1xf32>
    %41 = vector.broadcast %40 : vector<8x1xf32> to vector<8x8xf32>
    %42 = arith.subf %38, %41 : vector<8x8xf32>
    %43 = math.exp %42 : vector<8x8xf32>
    %cst_21 = arith.constant dense<0.000000e+00> : vector<8xf32>
    %44 = vector.multi_reduction <add>, %43, %cst_21 [1] : vector<8x8xf32> to vector<8xf32>
    %45 = vector.shape_cast %44 : vector<8xf32> to vector<8x1xf32>
    %46 = tpu.reciprocal %45 {approx = true} : vector<8x1xf32> -> vector<8x1xf32>
    %47 = vector.broadcast %46 : vector<8x1xf32> to vector<8x8xf32>
    %48 = arith.mulf %43, %47 : vector<8x8xf32>
    %cst_22 = arith.constant dense<0.000000e+00> : vector<8x8xf32>
    %49 = tpu.matmul %48, %36, %cst_22 {dimension_numbers = #tpu.dot_dimension_numbers<[1], [0], [0], [1], [0, 0, 1, 1], [], []>} : vector<8x8xf32>, vector<8x8xf32>, vector<8x8xf32> -> vector<8x8xf32>
    %c0_23 = arith.constant 0 : index
    %c8 = arith.constant 8 : index
    %50 = vector.load %arg23[%c0_23, %c8] : memref<16x32xf32, #tpu.memory_space<vmem>>, vector<8x8xf32>
    tpu.vector_store %arg23[%c0_23, %c8], %49 {strides = array<i32>} : memref<16x32xf32, #tpu.memory_space<vmem>>, vector<8x8xf32>,
    %51 = vector.extract_strided_slice %12 {offsets = [0, 16], sizes = [8, 8], strides = [1, 1]} : vector<8x32xf32> to vector<8x8xf32>
    %52 = vector.extract_strided_slice %13 {offsets = [0, 16], sizes = [8, 8], strides = [1, 1]} : vector<8x32xf32> to vector<8x8xf32>
    %53 = vector.extract_strided_slice %14 {offsets = [0, 16], sizes = [8, 8], strides = [1, 1]} : vector<8x32xf32> to vector<8x8xf32>
    %cst_24 = arith.constant dense<0.000000e+00> : vector<8x8xf32>
    %54 = tpu.matmul %51, %52, %cst_24 {dimension_numbers = #tpu.dot_dimension_numbers<[1], [1], [0], [0], [0, 0, 1, 0], [], []>} : vector<8x8xf32>, vector<8x8xf32>, vector<8x8xf32> -> vector<8x8xf32>
    %55 = arith.addf %54, %16 : vector<8x8xf32>
    %cst_25 = arith.constant dense<0xFF800000> : vector<8xf32>
    %56 = vector.multi_reduction <maximumf>, %55, %cst_25 [1] : vector<8x8xf32> to vector<8xf32>
    %57 = vector.shape_cast %56 : vector<8xf32> to vector<8x1xf32>
    %58 = vector.broadcast %57 : vector<8x1xf32> to vector<8x8xf32>
    %59 = arith.subf %55, %58 : vector<8x8xf32>
    %60 = math.exp %59 : vector<8x8xf32>
    %cst_26 = arith.constant dense<0.000000e+00> : vector<8xf32>
    %61 = vector.multi_reduction <add>, %60, %cst_26 [1] : vector<8x8xf32> to vector<8xf32>
    %62 = vector.shape_cast %61 : vector<8xf32> to vector<8x1xf32>
    %63 = tpu.reciprocal %62 {approx = true} : vector<8x1xf32> -> vector<8x1xf32>
    %64 = vector.broadcast %63 : vector<8x1xf32> to vector<8x8xf32>
    %65 = arith.mulf %60, %64 : vector<8x8xf32>
    %cst_27 = arith.constant dense<0.000000e+00> : vector<8x8xf32>
    %66 = tpu.matmul %65, %53, %cst_27 {dimension_numbers = #tpu.dot_dimension_numbers<[1], [0], [0], [1], [0, 0, 1, 1], [], []>} : vector<8x8xf32>, vector<8x8xf32>, vector<8x8xf32> -> vector<8x8xf32>
    %c0_28 = arith.constant 0 : index
    %c16 = arith.constant 16 : index
    %67 = vector.load %arg23[%c0_28, %c16] : memref<16x32xf32, #tpu.memory_space<vmem>>, vector<8x8xf32>
    tpu.vector_store %arg23[%c0_28, %c16], %66 {strides = array<i32>} : memref<16x32xf32, #tpu.memory_space<vmem>>, vector<8x8xf32>,
    %68 = vector.extract_strided_slice %12 {offsets = [0, 24], sizes = [8, 8], strides = [1, 1]} : vector<8x32xf32> to vector<8x8xf32>
    %69 = vector.extract_strided_slice %13 {offsets = [0, 24], sizes = [8, 8], strides = [1, 1]} : vector<8x32xf32> to vector<8x8xf32>
    %70 = vector.extract_strided_slice %14 {offsets = [0, 24], sizes = [8, 8], strides = [1, 1]} : vector<8x32xf32> to vector<8x8xf32>
    %cst_29 = arith.constant dense<0.000000e+00> : vector<8x8xf32>
    %71 = tpu.matmul %68, %69, %cst_29 {dimension_numbers = #tpu.dot_dimension_numbers<[1], [1], [0], [0], [0, 0, 1, 0], [], []>} : vector<8x8xf32>, vector<8x8xf32>, vector<8x8xf32> -> vector<8x8xf32>
    %72 = arith.addf %71, %16 : vector<8x8xf32>
    %cst_30 = arith.constant dense<0xFF800000> : vector<8xf32>
    %73 = vector.multi_reduction <maximumf>, %72, %cst_30 [1] : vector<8x8xf32> to vector<8xf32>
    %74 = vector.shape_cast %73 : vector<8xf32> to vector<8x1xf32>
    %75 = vector.broadcast %74 : vector<8x1xf32> to vector<8x8xf32>
    %76 = arith.subf %72, %75 : vector<8x8xf32>
    %77 = math.exp %76 : vector<8x8xf32>
    %cst_31 = arith.constant dense<0.000000e+00> : vector<8xf32>
    %78 = vector.multi_reduction <add>, %77, %cst_31 [1] : vector<8x8xf32> to vector<8xf32>
    %79 = vector.shape_cast %78 : vector<8xf32> to vector<8x1xf32>
    %80 = tpu.reciprocal %79 {approx = true} : vector<8x1xf32> -> vector<8x1xf32>
    %81 = vector.broadcast %80 : vector<8x1xf32> to vector<8x8xf32>
    %82 = arith.mulf %77, %81 : vector<8x8xf32>
    %cst_32 = arith.constant dense<0.000000e+00> : vector<8x8xf32>
    %83 = tpu.matmul %82, %70, %cst_32 {dimension_numbers = #tpu.dot_dimension_numbers<[1], [0], [0], [1], [0, 0, 1, 1], [], []>} : vector<8x8xf32>, vector<8x8xf32>, vector<8x8xf32> -> vector<8x8xf32>
    %c0_33 = arith.constant 0 : index
    %c24 = arith.constant 24 : index
    %84 = vector.load %arg23[%c0_33, %c24] : memref<16x32xf32, #tpu.memory_space<vmem>>, vector<8x8xf32>
    tpu.vector_store %arg23[%c0_33, %c24], %83 {strides = array<i32>} : memref<16x32xf32, #tpu.memory_space<vmem>>, vector<8x8xf32>,
    %85 = vector.extract_strided_slice %9 {offsets = [8, 0], sizes = [8, 32], strides = [1, 1]} : vector<16x32xf32> to vector<8x32xf32>
    %86 = vector.extract_strided_slice %10 {offsets = [8, 0], sizes = [8, 32], strides = [1, 1]} : vector<16x32xf32> to vector<8x32xf32>
    %87 = vector.extract_strided_slice %11 {offsets = [8, 0], sizes = [8, 32], strides = [1, 1]} : vector<16x32xf32> to vector<8x32xf32>
    %88 = vector.extract_strided_slice %2 {offsets = [1, 0, 0], sizes = [1, 8, 8], strides = [1, 1, 1]} : vector<2x8x8xf32> to vector<1x8x8xf32>
    %89 = vector.shape_cast %88 : vector<1x8x8xf32> to vector<8x8xf32>
    %90 = vector.extract_strided_slice %85 {offsets = [0, 0], sizes = [8, 8], strides = [1, 1]} : vector<8x32xf32> to vector<8x8xf32>
    %91 = vector.extract_strided_slice %86 {offsets = [0, 0], sizes = [8, 8], strides = [1, 1]} : vector<8x32xf32> to vector<8x8xf32>
    %92 = vector.extract_strided_slice %87 {offsets = [0, 0], sizes = [8, 8], strides = [1, 1]} : vector<8x32xf32> to vector<8x8xf32>
    %cst_34 = arith.constant dense<0.000000e+00> : vector<8x8xf32>
    %93 = tpu.matmul %90, %91, %cst_34 {dimension_numbers = #tpu.dot_dimension_numbers<[1], [1], [0], [0], [0, 0, 1, 0], [], []>} : vector<8x8xf32>, vector<8x8xf32>, vector<8x8xf32> -> vector<8x8xf32>
    %94 = arith.addf %93, %89 : vector<8x8xf32>
    %cst_35 = arith.constant dense<0xFF800000> : vector<8xf32>
    %95 = vector.multi_reduction <maximumf>, %94, %cst_35 [1] : vector<8x8xf32> to vector<8xf32>
    %96 = vector.shape_cast %95 : vector<8xf32> to vector<8x1xf32>
    %97 = vector.broadcast %96 : vector<8x1xf32> to vector<8x8xf32>
    %98 = arith.subf %94, %97 : vector<8x8xf32>
    %99 = math.exp %98 : vector<8x8xf32>
    %cst_36 = arith.constant dense<0.000000e+00> : vector<8xf32>
    %100 = vector.multi_reduction <add>, %99, %cst_36 [1] : vector<8x8xf32> to vector<8xf32>
    %101 = vector.shape_cast %100 : vector<8xf32> to vector<8x1xf32>
    %102 = tpu.reciprocal %101 {approx = true} : vector<8x1xf32> -> vector<8x1xf32>
    %103 = vector.broadcast %102 : vector<8x1xf32> to vector<8x8xf32>
    %104 = arith.mulf %99, %103 : vector<8x8xf32>
    %cst_37 = arith.constant dense<0.000000e+00> : vector<8x8xf32>
    %105 = tpu.matmul %104, %92, %cst_37 {dimension_numbers = #tpu.dot_dimension_numbers<[1], [0], [0], [1], [0, 0, 1, 1], [], []>} : vector<8x8xf32>, vector<8x8xf32>, vector<8x8xf32> -> vector<8x8xf32>
    %c8_38 = arith.constant 8 : index
    %c0_39 = arith.constant 0 : index
    %106 = vector.load %arg23[%c8_38, %c0_39] : memref<16x32xf32, #tpu.memory_space<vmem>>, vector<8x8xf32>
    tpu.vector_store %arg23[%c8_38, %c0_39], %105 {strides = array<i32>} : memref<16x32xf32, #tpu.memory_space<vmem>>, vector<8x8xf32>,
    %107 = vector.extract_strided_slice %85 {offsets = [0, 8], sizes = [8, 8], strides = [1, 1]} : vector<8x32xf32> to vector<8x8xf32>
    %108 = vector.extract_strided_slice %86 {offsets = [0, 8], sizes = [8, 8], strides = [1, 1]} : vector<8x32xf32> to vector<8x8xf32>
    %109 = vector.extract_strided_slice %87 {offsets = [0, 8], sizes = [8, 8], strides = [1, 1]} : vector<8x32xf32> to vector<8x8xf32>
    %cst_40 = arith.constant dense<0.000000e+00> : vector<8x8xf32>
    %110 = tpu.matmul %107, %108, %cst_40 {dimension_numbers = #tpu.dot_dimension_numbers<[1], [1], [0], [0], [0, 0, 1, 0], [], []>} : vector<8x8xf32>, vector<8x8xf32>, vector<8x8xf32> -> vector<8x8xf32>
    %111 = arith.addf %110, %89 : vector<8x8xf32>
    %cst_41 = arith.constant dense<0xFF800000> : vector<8xf32>
    %112 = vector.multi_reduction <maximumf>, %111, %cst_41 [1] : vector<8x8xf32> to vector<8xf32>
    %113 = vector.shape_cast %112 : vector<8xf32> to vector<8x1xf32>
    %114 = vector.broadcast %113 : vector<8x1xf32> to vector<8x8xf32>
    %115 = arith.subf %111, %114 : vector<8x8xf32>
    %116 = math.exp %115 : vector<8x8xf32>
    %cst_42 = arith.constant dense<0.000000e+00> : vector<8xf32>
    %117 = vector.multi_reduction <add>, %116, %cst_42 [1] : vector<8x8xf32> to vector<8xf32>
    %118 = vector.shape_cast %117 : vector<8xf32> to vector<8x1xf32>
    %119 = tpu.reciprocal %118 {approx = true} : vector<8x1xf32> -> vector<8x1xf32>
    %120 = vector.broadcast %119 : vector<8x1xf32> to vector<8x8xf32>
    %121 = arith.mulf %116, %120 : vector<8x8xf32>
    %cst_43 = arith.constant dense<0.000000e+00> : vector<8x8xf32>
    %122 = tpu.matmul %121, %109, %cst_43 {dimension_numbers = #tpu.dot_dimension_numbers<[1], [0], [0], [1], [0, 0, 1, 1], [], []>} : vector<8x8xf32>, vector<8x8xf32>, vector<8x8xf32> -> vector<8x8xf32>
    %c8_44 = arith.constant 8 : index
    %c8_45 = arith.constant 8 : index
    %123 = vector.load %arg23[%c8_44, %c8_45] : memref<16x32xf32, #tpu.memory_space<vmem>>, vector<8x8xf32>
    tpu.vector_store %arg23[%c8_44, %c8_45], %122 {strides = array<i32>} : memref<16x32xf32, #tpu.memory_space<vmem>>, vector<8x8xf32>,
    %124 = vector.extract_strided_slice %85 {offsets = [0, 16], sizes = [8, 8], strides = [1, 1]} : vector<8x32xf32> to vector<8x8xf32>
    %125 = vector.extract_strided_slice %86 {offsets = [0, 16], sizes = [8, 8], strides = [1, 1]} : vector<8x32xf32> to vector<8x8xf32>
    %126 = vector.extract_strided_slice %87 {offsets = [0, 16], sizes = [8, 8], strides = [1, 1]} : vector<8x32xf32> to vector<8x8xf32>
    %cst_46 = arith.constant dense<0.000000e+00> : vector<8x8xf32>
    %127 = tpu.matmul %124, %125, %cst_46 {dimension_numbers = #tpu.dot_dimension_numbers<[1], [1], [0], [0], [0, 0, 1, 0], [], []>} : vector<8x8xf32>, vector<8x8xf32>, vector<8x8xf32> -> vector<8x8xf32>
    %128 = arith.addf %127, %89 : vector<8x8xf32>
    %cst_47 = arith.constant dense<0xFF800000> : vector<8xf32>
    %129 = vector.multi_reduction <maximumf>, %128, %cst_47 [1] : vector<8x8xf32> to vector<8xf32>
    %130 = vector.shape_cast %129 : vector<8xf32> to vector<8x1xf32>
    %131 = vector.broadcast %130 : vector<8x1xf32> to vector<8x8xf32>
    %132 = arith.subf %128, %131 : vector<8x8xf32>
    %133 = math.exp %132 : vector<8x8xf32>
    %cst_48 = arith.constant dense<0.000000e+00> : vector<8xf32>
    %134 = vector.multi_reduction <add>, %133, %cst_48 [1] : vector<8x8xf32> to vector<8xf32>
    %135 = vector.shape_cast %134 : vector<8xf32> to vector<8x1xf32>
    %136 = tpu.reciprocal %135 {approx = true} : vector<8x1xf32> -> vector<8x1xf32>
    %137 = vector.broadcast %136 : vector<8x1xf32> to vector<8x8xf32>
    %138 = arith.mulf %133, %137 : vector<8x8xf32>
    %cst_49 = arith.constant dense<0.000000e+00> : vector<8x8xf32>
    %139 = tpu.matmul %138, %126, %cst_49 {dimension_numbers = #tpu.dot_dimension_numbers<[1], [0], [0], [1], [0, 0, 1, 1], [], []>} : vector<8x8xf32>, vector<8x8xf32>, vector<8x8xf32> -> vector<8x8xf32>
    %c8_50 = arith.constant 8 : index
    %c16_51 = arith.constant 16 : index
    %140 = vector.load %arg23[%c8_50, %c16_51] : memref<16x32xf32, #tpu.memory_space<vmem>>, vector<8x8xf32>
    tpu.vector_store %arg23[%c8_50, %c16_51], %139 {strides = array<i32>} : memref<16x32xf32, #tpu.memory_space<vmem>>, vector<8x8xf32>,
    %141 = vector.extract_strided_slice %85 {offsets = [0, 24], sizes = [8, 8], strides = [1, 1]} : vector<8x32xf32> to vector<8x8xf32>
    %142 = vector.extract_strided_slice %86 {offsets = [0, 24], sizes = [8, 8], strides = [1, 1]} : vector<8x32xf32> to vector<8x8xf32>
    %143 = vector.extract_strided_slice %87 {offsets = [0, 24], sizes = [8, 8], strides = [1, 1]} : vector<8x32xf32> to vector<8x8xf32>
    %cst_52 = arith.constant dense<0.000000e+00> : vector<8x8xf32>
    %144 = tpu.matmul %141, %142, %cst_52 {dimension_numbers = #tpu.dot_dimension_numbers<[1], [1], [0], [0], [0, 0, 1, 0], [], []>} : vector<8x8xf32>, vector<8x8xf32>, vector<8x8xf32> -> vector<8x8xf32>
    %145 = arith.addf %144, %89 : vector<8x8xf32>
    %cst_53 = arith.constant dense<0xFF800000> : vector<8xf32>
    %146 = vector.multi_reduction <maximumf>, %145, %cst_53 [1] : vector<8x8xf32> to vector<8xf32>
    %147 = vector.shape_cast %146 : vector<8xf32> to vector<8x1xf32>
    %148 = vector.broadcast %147 : vector<8x1xf32> to vector<8x8xf32>
    %149 = arith.subf %145, %148 : vector<8x8xf32>
    %150 = math.exp %149 : vector<8x8xf32>
    %cst_54 = arith.constant dense<0.000000e+00> : vector<8xf32>
    %151 = vector.multi_reduction <add>, %150, %cst_54 [1] : vector<8x8xf32> to vector<8xf32>
    %152 = vector.shape_cast %151 : vector<8xf32> to vector<8x1xf32>
    %153 = tpu.reciprocal %152 {approx = true} : vector<8x1xf32> -> vector<8x1xf32>
    %154 = vector.broadcast %153 : vector<8x1xf32> to vector<8x8xf32>
    %155 = arith.mulf %150, %154 : vector<8x8xf32>
    %cst_55 = arith.constant dense<0.000000e+00> : vector<8x8xf32>
    %156 = tpu.matmul %155, %143, %cst_55 {dimension_numbers = #tpu.dot_dimension_numbers<[1], [0], [0], [1], [0, 0, 1, 1], [], []>} : vector<8x8xf32>, vector<8x8xf32>, vector<8x8xf32> -> vector<8x8xf32>
    %c8_56 = arith.constant 8 : index
    %c24_57 = arith.constant 24 : index
    %157 = vector.load %arg23[%c8_56, %c24_57] : memref<16x32xf32, #tpu.memory_space<vmem>>, vector<8x8xf32>
    tpu.vector_store %arg23[%c8_56, %c24_57], %156 {strides = array<i32>} : memref<16x32xf32, #tpu.memory_space<vmem>>, vector<8x8xf32>,
    %c0_58 = arith.constant 0 : index
    %c0_59 = arith.constant 0 : index
    %158 = vector.load %arg23[%c0_58, %c0_59] : memref<16x32xf32, #tpu.memory_space<vmem>>, vector<16x32xf32>
    %c0_60 = arith.constant 0 : index
    %c0_61 = arith.constant 0 : index
    %159 = vector.load %arg6[%c0_60, %c0_61] : memref<32x32xf32, #tpu.memory_space<vmem>>, vector<32x32xf32>
    %cst_62 = arith.constant dense<0.000000e+00> : vector<16x32xf32>
    %160 = tpu.matmul %158, %159, %cst_62 {dimension_numbers = #tpu.dot_dimension_numbers<[1], [0], [0], [1], [0, 0, 1, 1], [], []>} : vector<16x32xf32>, vector<32x32xf32>, vector<16x32xf32> -> vector<16x32xf32>
    %c0_63 = arith.constant 0 : index
    %c0_64 = arith.constant 0 : index
    %161 = vector.load %arg7[%c0_63, %c0_64] : memref<1x32xf32, #tpu.memory_space<vmem>>, vector<1x32xf32>
    %162 = vector.broadcast %161 : vector<1x32xf32> to vector<16x32xf32>
    %163 = arith.addf %160, %162 : vector<16x32xf32>
    %164 = arith.addf %0, %163 : vector<16x32xf32>
    %c0_65 = arith.constant 0 : index
    %c0_66 = arith.constant 0 : index
    %165 = vector.load %arg8[%c0_65, %c0_66] : memref<1x32xf32, #tpu.memory_space<vmem>>, vector<1x32xf32>
    %c0_67 = arith.constant 0 : index
    %c0_68 = arith.constant 0 : index
    %166 = vector.load %arg9[%c0_67, %c0_68] : memref<1x32xf32, #tpu.memory_space<vmem>>, vector<1x32xf32>
    %cst_69 = arith.constant dense<0.000000e+00> : vector<16xf32>
    %167 = vector.multi_reduction <add>, %164, %cst_69 [1] : vector<16x32xf32> to vector<16xf32>
    %168 = vector.shape_cast %167 : vector<16xf32> to vector<16x1xf32>
    %cst_70 = arith.constant 3.200000e+01 : f32
    %169 = vector.broadcast %cst_70 : f32 to vector<16x1xf32>
    %170 = arith.divf %168, %169 : vector<16x1xf32>
    %171 = vector.broadcast %170 : vector<16x1xf32> to vector<16x32xf32>
    %172 = arith.subf %164, %171 : vector<16x32xf32>
    %173 = arith.mulf %172, %172 : vector<16x32xf32>
    %cst_71 = arith.constant dense<0.000000e+00> : vector<16xf32>
    %174 = vector.multi_reduction <add>, %173, %cst_71 [1] : vector<16x32xf32> to vector<16xf32>
    %175 = vector.shape_cast %174 : vector<16xf32> to vector<16x1xf32>
    %cst_72 = arith.constant 3.200000e+01 : f32
    %176 = vector.broadcast %cst_72 : f32 to vector<16x1xf32>
    %177 = arith.divf %175, %176 : vector<16x1xf32>
    %178 = vector.broadcast %170 : vector<16x1xf32> to vector<16x32xf32>
    %179 = arith.subf %164, %178 : vector<16x32xf32>
    %cst_73 = arith.constant 9.99999974E-6 : f32
    %180 = vector.broadcast %cst_73 : f32 to vector<16x1xf32>
    %181 = arith.addf %177, %180 : vector<16x1xf32>
    %182 = math.rsqrt %181 : vector<16x1xf32>
    %183 = vector.broadcast %182 : vector<16x1xf32> to vector<16x32xf32>
    %184 = arith.mulf %179, %183 : vector<16x32xf32>
    %185 = vector.broadcast %165 : vector<1x32xf32> to vector<16x32xf32>
    %186 = arith.mulf %184, %185 : vector<16x32xf32>
    %187 = vector.broadcast %166 : vector<1x32xf32> to vector<16x32xf32>
    %188 = arith.addf %186, %187 : vector<16x32xf32>
    %c0_74 = arith.constant 0 : index
    %c0_75 = arith.constant 0 : index
    %189 = vector.load %arg10[%c0_74, %c0_75] : memref<32x96xf32, #tpu.memory_space<vmem>>, vector<32x96xf32>
    %c0_76 = arith.constant 0 : index
    %c0_77 = arith.constant 0 : index
    %190 = vector.load %arg11[%c0_76, %c0_77] : memref<1x96xf32, #tpu.memory_space<vmem>>, vector<1x96xf32>
    %191 = vector.extract_strided_slice %189 {offsets = [0, 0], sizes = [32, 32], strides = [1, 1]} : vector<32x96xf32> to vector<32x32xf32>
    %cst_78 = arith.constant dense<0.000000e+00> : vector<16x32xf32>
    %192 = tpu.matmul %188, %191, %cst_78 {dimension_numbers = #tpu.dot_dimension_numbers<[1], [0], [0], [1], [0, 0, 1, 1], [], []>} : vector<16x32xf32>, vector<32x32xf32>, vector<16x32xf32> -> vector<16x32xf32>
    %193 = vector.extract_strided_slice %190 {offsets = [0, 0], sizes = [1, 32], strides = [1, 1]} : vector<1x96xf32> to vector<1x32xf32>
    %194 = vector.broadcast %193 : vector<1x32xf32> to vector<16x32xf32>
    %195 = arith.addf %192, %194 : vector<16x32xf32>
    %196 = vector.extract_strided_slice %189 {offsets = [0, 32], sizes = [32, 64], strides = [1, 1]} : vector<32x96xf32> to vector<32x64xf32>
    %cst_79 = arith.constant dense<0.000000e+00> : vector<32x64xf32>
    %197 = tpu.matmul %1, %196, %cst_79 {dimension_numbers = #tpu.dot_dimension_numbers<[1], [0], [0], [1], [0, 0, 1, 1], [], []>} : vector<32x32xf32>, vector<32x64xf32>, vector<32x64xf32> -> vector<32x64xf32>
    %198 = vector.extract_strided_slice %190 {offsets = [0, 32], sizes = [1, 64], strides = [1, 1]} : vector<1x96xf32> to vector<1x64xf32>
    %199 = vector.broadcast %198 : vector<1x64xf32> to vector<32x64xf32>
    %200 = arith.addf %197, %199 : vector<32x64xf32>
    %201 = vector.extract_strided_slice %200 {offsets = [0, 0], sizes = [32, 32], strides = [1, 1]} : vector<32x64xf32> to vector<32x32xf32>
    %202 = vector.extract_strided_slice %200 {offsets = [0, 32], sizes = [32, 32], strides = [1, 1]} : vector<32x64xf32> to vector<32x32xf32>
    %203 = vector.extract_strided_slice %195 {offsets = [0, 0], sizes = [8, 32], strides = [1, 1]} : vector<16x32xf32> to vector<8x32xf32>
    %204 = vector.extract_strided_slice %201 {offsets = [0, 0], sizes = [16, 32], strides = [1, 1]} : vector<32x32xf32> to vector<16x32xf32>
    %205 = vector.extract_strided_slice %202 {offsets = [0, 0], sizes = [16, 32], strides = [1, 1]} : vector<32x32xf32> to vector<16x32xf32>
    %206 = vector.extract_strided_slice %3 {offsets = [0, 0, 0], sizes = [1, 8, 16], strides = [1, 1, 1]} : vector<2x8x16xf32> to vector<1x8x16xf32>
    %207 = vector.shape_cast %206 : vector<1x8x16xf32> to vector<8x16xf32>
    %208 = vector.extract_strided_slice %203 {offsets = [0, 0], sizes = [8, 8], strides = [1, 1]} : vector<8x32xf32> to vector<8x8xf32>
    %209 = vector.extract_strided_slice %204 {offsets = [0, 0], sizes = [16, 8], strides = [1, 1]} : vector<16x32xf32> to vector<16x8xf32>
    %210 = vector.extract_strided_slice %205 {offsets = [0, 0], sizes = [16, 8], strides = [1, 1]} : vector<16x32xf32> to vector<16x8xf32>
    %cst_80 = arith.constant dense<0.000000e+00> : vector<8x16xf32>
    %211 = tpu.matmul %208, %209, %cst_80 {dimension_numbers = #tpu.dot_dimension_numbers<[1], [1], [0], [0], [0, 0, 1, 0], [], []>} : vector<8x8xf32>, vector<16x8xf32>, vector<8x16xf32> -> vector<8x16xf32>
    %212 = arith.addf %211, %207 : vector<8x16xf32>
    %cst_81 = arith.constant dense<0xFF800000> : vector<8xf32>
    %213 = vector.multi_reduction <maximumf>, %212, %cst_81 [1] : vector<8x16xf32> to vector<8xf32>
    %214 = vector.shape_cast %213 : vector<8xf32> to vector<8x1xf32>
    %215 = vector.broadcast %214 : vector<8x1xf32> to vector<8x16xf32>
    %216 = arith.subf %212, %215 : vector<8x16xf32>
    %217 = math.exp %216 : vector<8x16xf32>
    %cst_82 = arith.constant dense<0.000000e+00> : vector<8xf32>
    %218 = vector.multi_reduction <add>, %217, %cst_82 [1] : vector<8x16xf32> to vector<8xf32>
    %219 = vector.shape_cast %218 : vector<8xf32> to vector<8x1xf32>
    %220 = tpu.reciprocal %219 {approx = true} : vector<8x1xf32> -> vector<8x1xf32>
    %221 = vector.broadcast %220 : vector<8x1xf32> to vector<8x16xf32>
    %222 = arith.mulf %217, %221 : vector<8x16xf32>
    %cst_83 = arith.constant dense<0.000000e+00> : vector<8x8xf32>
    %223 = tpu.matmul %222, %210, %cst_83 {dimension_numbers = #tpu.dot_dimension_numbers<[1], [0], [0], [1], [0, 0, 1, 1], [], []>} : vector<8x16xf32>, vector<16x8xf32>, vector<8x8xf32> -> vector<8x8xf32>
    %c0_84 = arith.constant 0 : index
    %c0_85 = arith.constant 0 : index
    %224 = vector.load %arg23[%c0_84, %c0_85] : memref<16x32xf32, #tpu.memory_space<vmem>>, vector<8x8xf32>
    tpu.vector_store %arg23[%c0_84, %c0_85], %223 {strides = array<i32>} : memref<16x32xf32, #tpu.memory_space<vmem>>, vector<8x8xf32>,
    %225 = vector.extract_strided_slice %203 {offsets = [0, 8], sizes = [8, 8], strides = [1, 1]} : vector<8x32xf32> to vector<8x8xf32>
    %226 = vector.extract_strided_slice %204 {offsets = [0, 8], sizes = [16, 8], strides = [1, 1]} : vector<16x32xf32> to vector<16x8xf32>
    %227 = vector.extract_strided_slice %205 {offsets = [0, 8], sizes = [16, 8], strides = [1, 1]} : vector<16x32xf32> to vector<16x8xf32>
    %cst_86 = arith.constant dense<0.000000e+00> : vector<8x16xf32>
    %228 = tpu.matmul %225, %226, %cst_86 {dimension_numbers = #tpu.dot_dimension_numbers<[1], [1], [0], [0], [0, 0, 1, 0], [], []>} : vector<8x8xf32>, vector<16x8xf32>, vector<8x16xf32> -> vector<8x16xf32>
    %229 = arith.addf %228, %207 : vector<8x16xf32>
    %cst_87 = arith.constant dense<0xFF800000> : vector<8xf32>
    %230 = vector.multi_reduction <maximumf>, %229, %cst_87 [1] : vector<8x16xf32> to vector<8xf32>
    %231 = vector.shape_cast %230 : vector<8xf32> to vector<8x1xf32>
    %232 = vector.broadcast %231 : vector<8x1xf32> to vector<8x16xf32>
    %233 = arith.subf %229, %232 : vector<8x16xf32>
    %234 = math.exp %233 : vector<8x16xf32>
    %cst_88 = arith.constant dense<0.000000e+00> : vector<8xf32>
    %235 = vector.multi_reduction <add>, %234, %cst_88 [1] : vector<8x16xf32> to vector<8xf32>
    %236 = vector.shape_cast %235 : vector<8xf32> to vector<8x1xf32>
    %237 = tpu.reciprocal %236 {approx = true} : vector<8x1xf32> -> vector<8x1xf32>
    %238 = vector.broadcast %237 : vector<8x1xf32> to vector<8x16xf32>
    %239 = arith.mulf %234, %238 : vector<8x16xf32>
    %cst_89 = arith.constant dense<0.000000e+00> : vector<8x8xf32>
    %240 = tpu.matmul %239, %227, %cst_89 {dimension_numbers = #tpu.dot_dimension_numbers<[1], [0], [0], [1], [0, 0, 1, 1], [], []>} : vector<8x16xf32>, vector<16x8xf32>, vector<8x8xf32> -> vector<8x8xf32>
    %c0_90 = arith.constant 0 : index
    %c8_91 = arith.constant 8 : index
    %241 = vector.load %arg23[%c0_90, %c8_91] : memref<16x32xf32, #tpu.memory_space<vmem>>, vector<8x8xf32>
    tpu.vector_store %arg23[%c0_90, %c8_91], %240 {strides = array<i32>} : memref<16x32xf32, #tpu.memory_space<vmem>>, vector<8x8xf32>,
    %242 = vector.extract_strided_slice %203 {offsets = [0, 16], sizes = [8, 8], strides = [1, 1]} : vector<8x32xf32> to vector<8x8xf32>
    %243 = vector.extract_strided_slice %204 {offsets = [0, 16], sizes = [16, 8], strides = [1, 1]} : vector<16x32xf32> to vector<16x8xf32>
    %244 = vector.extract_strided_slice %205 {offsets = [0, 16], sizes = [16, 8], strides = [1, 1]} : vector<16x32xf32> to vector<16x8xf32>
    %cst_92 = arith.constant dense<0.000000e+00> : vector<8x16xf32>
    %245 = tpu.matmul %242, %243, %cst_92 {dimension_numbers = #tpu.dot_dimension_numbers<[1], [1], [0], [0], [0, 0, 1, 0], [], []>} : vector<8x8xf32>, vector<16x8xf32>, vector<8x16xf32> -> vector<8x16xf32>
    %246 = arith.addf %245, %207 : vector<8x16xf32>
    %cst_93 = arith.constant dense<0xFF800000> : vector<8xf32>
    %247 = vector.multi_reduction <maximumf>, %246, %cst_93 [1] : vector<8x16xf32> to vector<8xf32>
    %248 = vector.shape_cast %247 : vector<8xf32> to vector<8x1xf32>
    %249 = vector.broadcast %248 : vector<8x1xf32> to vector<8x16xf32>
    %250 = arith.subf %246, %249 : vector<8x16xf32>
    %251 = math.exp %250 : vector<8x16xf32>
    %cst_94 = arith.constant dense<0.000000e+00> : vector<8xf32>
    %252 = vector.multi_reduction <add>, %251, %cst_94 [1] : vector<8x16xf32> to vector<8xf32>
    %253 = vector.shape_cast %252 : vector<8xf32> to vector<8x1xf32>
    %254 = tpu.reciprocal %253 {approx = true} : vector<8x1xf32> -> vector<8x1xf32>
    %255 = vector.broadcast %254 : vector<8x1xf32> to vector<8x16xf32>
    %256 = arith.mulf %251, %255 : vector<8x16xf32>
    %cst_95 = arith.constant dense<0.000000e+00> : vector<8x8xf32>
    %257 = tpu.matmul %256, %244, %cst_95 {dimension_numbers = #tpu.dot_dimension_numbers<[1], [0], [0], [1], [0, 0, 1, 1], [], []>} : vector<8x16xf32>, vector<16x8xf32>, vector<8x8xf32> -> vector<8x8xf32>
    %c0_96 = arith.constant 0 : index
    %c16_97 = arith.constant 16 : index
    %258 = vector.load %arg23[%c0_96, %c16_97] : memref<16x32xf32, #tpu.memory_space<vmem>>, vector<8x8xf32>
    tpu.vector_store %arg23[%c0_96, %c16_97], %257 {strides = array<i32>} : memref<16x32xf32, #tpu.memory_space<vmem>>, vector<8x8xf32>,
    %259 = vector.extract_strided_slice %203 {offsets = [0, 24], sizes = [8, 8], strides = [1, 1]} : vector<8x32xf32> to vector<8x8xf32>
    %260 = vector.extract_strided_slice %204 {offsets = [0, 24], sizes = [16, 8], strides = [1, 1]} : vector<16x32xf32> to vector<16x8xf32>
    %261 = vector.extract_strided_slice %205 {offsets = [0, 24], sizes = [16, 8], strides = [1, 1]} : vector<16x32xf32> to vector<16x8xf32>
    %cst_98 = arith.constant dense<0.000000e+00> : vector<8x16xf32>
    %262 = tpu.matmul %259, %260, %cst_98 {dimension_numbers = #tpu.dot_dimension_numbers<[1], [1], [0], [0], [0, 0, 1, 0], [], []>} : vector<8x8xf32>, vector<16x8xf32>, vector<8x16xf32> -> vector<8x16xf32>
    %263 = arith.addf %262, %207 : vector<8x16xf32>
    %cst_99 = arith.constant dense<0xFF800000> : vector<8xf32>
    %264 = vector.multi_reduction <maximumf>, %263, %cst_99 [1] : vector<8x16xf32> to vector<8xf32>
    %265 = vector.shape_cast %264 : vector<8xf32> to vector<8x1xf32>
    %266 = vector.broadcast %265 : vector<8x1xf32> to vector<8x16xf32>
    %267 = arith.subf %263, %266 : vector<8x16xf32>
    %268 = math.exp %267 : vector<8x16xf32>
    %cst_100 = arith.constant dense<0.000000e+00> : vector<8xf32>
    %269 = vector.multi_reduction <add>, %268, %cst_100 [1] : vector<8x16xf32> to vector<8xf32>
    %270 = vector.shape_cast %269 : vector<8xf32> to vector<8x1xf32>
    %271 = tpu.reciprocal %270 {approx = true} : vector<8x1xf32> -> vector<8x1xf32>
    %272 = vector.broadcast %271 : vector<8x1xf32> to vector<8x16xf32>
    %273 = arith.mulf %268, %272 : vector<8x16xf32>
    %cst_101 = arith.constant dense<0.000000e+00> : vector<8x8xf32>
    %274 = tpu.matmul %273, %261, %cst_101 {dimension_numbers = #tpu.dot_dimension_numbers<[1], [0], [0], [1], [0, 0, 1, 1], [], []>} : vector<8x16xf32>, vector<16x8xf32>, vector<8x8xf32> -> vector<8x8xf32>
    %c0_102 = arith.constant 0 : index
    %c24_103 = arith.constant 24 : index
    %275 = vector.load %arg23[%c0_102, %c24_103] : memref<16x32xf32, #tpu.memory_space<vmem>>, vector<8x8xf32>
    tpu.vector_store %arg23[%c0_102, %c24_103], %274 {strides = array<i32>} : memref<16x32xf32, #tpu.memory_space<vmem>>, vector<8x8xf32>,
    %276 = vector.extract_strided_slice %195 {offsets = [8, 0], sizes = [8, 32], strides = [1, 1]} : vector<16x32xf32> to vector<8x32xf32>
    %277 = vector.extract_strided_slice %201 {offsets = [16, 0], sizes = [16, 32], strides = [1, 1]} : vector<32x32xf32> to vector<16x32xf32>
    %278 = vector.extract_strided_slice %202 {offsets = [16, 0], sizes = [16, 32], strides = [1, 1]} : vector<32x32xf32> to vector<16x32xf32>
    %279 = vector.extract_strided_slice %3 {offsets = [1, 0, 0], sizes = [1, 8, 16], strides = [1, 1, 1]} : vector<2x8x16xf32> to vector<1x8x16xf32>
    %280 = vector.shape_cast %279 : vector<1x8x16xf32> to vector<8x16xf32>
    %281 = vector.extract_strided_slice %276 {offsets = [0, 0], sizes = [8, 8], strides = [1, 1]} : vector<8x32xf32> to vector<8x8xf32>
    %282 = vector.extract_strided_slice %277 {offsets = [0, 0], sizes = [16, 8], strides = [1, 1]} : vector<16x32xf32> to vector<16x8xf32>
    %283 = vector.extract_strided_slice %278 {offsets = [0, 0], sizes = [16, 8], strides = [1, 1]} : vector<16x32xf32> to vector<16x8xf32>
    %cst_104 = arith.constant dense<0.000000e+00> : vector<8x16xf32>
    %284 = tpu.matmul %281, %282, %cst_104 {dimension_numbers = #tpu.dot_dimension_numbers<[1], [1], [0], [0], [0, 0, 1, 0], [], []>} : vector<8x8xf32>, vector<16x8xf32>, vector<8x16xf32> -> vector<8x16xf32>
    %285 = arith.addf %284, %280 : vector<8x16xf32>
    %cst_105 = arith.constant dense<0xFF800000> : vector<8xf32>
    %286 = vector.multi_reduction <maximumf>, %285, %cst_105 [1] : vector<8x16xf32> to vector<8xf32>
    %287 = vector.shape_cast %286 : vector<8xf32> to vector<8x1xf32>
    %288 = vector.broadcast %287 : vector<8x1xf32> to vector<8x16xf32>
    %289 = arith.subf %285, %288 : vector<8x16xf32>
    %290 = math.exp %289 : vector<8x16xf32>
    %cst_106 = arith.constant dense<0.000000e+00> : vector<8xf32>
    %291 = vector.multi_reduction <add>, %290, %cst_106 [1] : vector<8x16xf32> to vector<8xf32>
    %292 = vector.shape_cast %291 : vector<8xf32> to vector<8x1xf32>
    %293 = tpu.reciprocal %292 {approx = true} : vector<8x1xf32> -> vector<8x1xf32>
    %294 = vector.broadcast %293 : vector<8x1xf32> to vector<8x16xf32>
    %295 = arith.mulf %290, %294 : vector<8x16xf32>
    %cst_107 = arith.constant dense<0.000000e+00> : vector<8x8xf32>
    %296 = tpu.matmul %295, %283, %cst_107 {dimension_numbers = #tpu.dot_dimension_numbers<[1], [0], [0], [1], [0, 0, 1, 1], [], []>} : vector<8x16xf32>, vector<16x8xf32>, vector<8x8xf32> -> vector<8x8xf32>
    %c8_108 = arith.constant 8 : index
    %c0_109 = arith.constant 0 : index
    %297 = vector.load %arg23[%c8_108, %c0_109] : memref<16x32xf32, #tpu.memory_space<vmem>>, vector<8x8xf32>
    tpu.vector_store %arg23[%c8_108, %c0_109], %296 {strides = array<i32>} : memref<16x32xf32, #tpu.memory_space<vmem>>, vector<8x8xf32>,
    %298 = vector.extract_strided_slice %276 {offsets = [0, 8], sizes = [8, 8], strides = [1, 1]} : vector<8x32xf32> to vector<8x8xf32>
    %299 = vector.extract_strided_slice %277 {offsets = [0, 8], sizes = [16, 8], strides = [1, 1]} : vector<16x32xf32> to vector<16x8xf32>
    %300 = vector.extract_strided_slice %278 {offsets = [0, 8], sizes = [16, 8], strides = [1, 1]} : vector<16x32xf32> to vector<16x8xf32>
    %cst_110 = arith.constant dense<0.000000e+00> : vector<8x16xf32>
    %301 = tpu.matmul %298, %299, %cst_110 {dimension_numbers = #tpu.dot_dimension_numbers<[1], [1], [0], [0], [0, 0, 1, 0], [], []>} : vector<8x8xf32>, vector<16x8xf32>, vector<8x16xf32> -> vector<8x16xf32>
    %302 = arith.addf %301, %280 : vector<8x16xf32>
    %cst_111 = arith.constant dense<0xFF800000> : vector<8xf32>
    %303 = vector.multi_reduction <maximumf>, %302, %cst_111 [1] : vector<8x16xf32> to vector<8xf32>
    %304 = vector.shape_cast %303 : vector<8xf32> to vector<8x1xf32>
    %305 = vector.broadcast %304 : vector<8x1xf32> to vector<8x16xf32>
    %306 = arith.subf %302, %305 : vector<8x16xf32>
    %307 = math.exp %306 : vector<8x16xf32>
    %cst_112 = arith.constant dense<0.000000e+00> : vector<8xf32>
    %308 = vector.multi_reduction <add>, %307, %cst_112 [1] : vector<8x16xf32> to vector<8xf32>
    %309 = vector.shape_cast %308 : vector<8xf32> to vector<8x1xf32>
    %310 = tpu.reciprocal %309 {approx = true} : vector<8x1xf32> -> vector<8x1xf32>
    %311 = vector.broadcast %310 : vector<8x1xf32> to vector<8x16xf32>
    %312 = arith.mulf %307, %311 : vector<8x16xf32>
    %cst_113 = arith.constant dense<0.000000e+00> : vector<8x8xf32>
    %313 = tpu.matmul %312, %300, %cst_113 {dimension_numbers = #tpu.dot_dimension_numbers<[1], [0], [0], [1], [0, 0, 1, 1], [], []>} : vector<8x16xf32>, vector<16x8xf32>, vector<8x8xf32> -> vector<8x8xf32>
    %c8_114 = arith.constant 8 : index
    %c8_115 = arith.constant 8 : index
    %314 = vector.load %arg23[%c8_114, %c8_115] : memref<16x32xf32, #tpu.memory_space<vmem>>, vector<8x8xf32>
    tpu.vector_store %arg23[%c8_114, %c8_115], %313 {strides = array<i32>} : memref<16x32xf32, #tpu.memory_space<vmem>>, vector<8x8xf32>,
    %315 = vector.extract_strided_slice %276 {offsets = [0, 16], sizes = [8, 8], strides = [1, 1]} : vector<8x32xf32> to vector<8x8xf32>
    %316 = vector.extract_strided_slice %277 {offsets = [0, 16], sizes = [16, 8], strides = [1, 1]} : vector<16x32xf32> to vector<16x8xf32>
    %317 = vector.extract_strided_slice %278 {offsets = [0, 16], sizes = [16, 8], strides = [1, 1]} : vector<16x32xf32> to vector<16x8xf32>
    %cst_116 = arith.constant dense<0.000000e+00> : vector<8x16xf32>
    %318 = tpu.matmul %315, %316, %cst_116 {dimension_numbers = #tpu.dot_dimension_numbers<[1], [1], [0], [0], [0, 0, 1, 0], [], []>} : vector<8x8xf32>, vector<16x8xf32>, vector<8x16xf32> -> vector<8x16xf32>
    %319 = arith.addf %318, %280 : vector<8x16xf32>
    %cst_117 = arith.constant dense<0xFF800000> : vector<8xf32>
    %320 = vector.multi_reduction <maximumf>, %319, %cst_117 [1] : vector<8x16xf32> to vector<8xf32>
    %321 = vector.shape_cast %320 : vector<8xf32> to vector<8x1xf32>
    %322 = vector.broadcast %321 : vector<8x1xf32> to vector<8x16xf32>
    %323 = arith.subf %319, %322 : vector<8x16xf32>
    %324 = math.exp %323 : vector<8x16xf32>
    %cst_118 = arith.constant dense<0.000000e+00> : vector<8xf32>
    %325 = vector.multi_reduction <add>, %324, %cst_118 [1] : vector<8x16xf32> to vector<8xf32>
    %326 = vector.shape_cast %325 : vector<8xf32> to vector<8x1xf32>
    %327 = tpu.reciprocal %326 {approx = true} : vector<8x1xf32> -> vector<8x1xf32>
    %328 = vector.broadcast %327 : vector<8x1xf32> to vector<8x16xf32>
    %329 = arith.mulf %324, %328 : vector<8x16xf32>
    %cst_119 = arith.constant dense<0.000000e+00> : vector<8x8xf32>
    %330 = tpu.matmul %329, %317, %cst_119 {dimension_numbers = #tpu.dot_dimension_numbers<[1], [0], [0], [1], [0, 0, 1, 1], [], []>} : vector<8x16xf32>, vector<16x8xf32>, vector<8x8xf32> -> vector<8x8xf32>
    %c8_120 = arith.constant 8 : index
    %c16_121 = arith.constant 16 : index
    %331 = vector.load %arg23[%c8_120, %c16_121] : memref<16x32xf32, #tpu.memory_space<vmem>>, vector<8x8xf32>
    tpu.vector_store %arg23[%c8_120, %c16_121], %330 {strides = array<i32>} : memref<16x32xf32, #tpu.memory_space<vmem>>, vector<8x8xf32>,
    %332 = vector.extract_strided_slice %276 {offsets = [0, 24], sizes = [8, 8], strides = [1, 1]} : vector<8x32xf32> to vector<8x8xf32>
    %333 = vector.extract_strided_slice %277 {offsets = [0, 24], sizes = [16, 8], strides = [1, 1]} : vector<16x32xf32> to vector<16x8xf32>
    %334 = vector.extract_strided_slice %278 {offsets = [0, 24], sizes = [16, 8], strides = [1, 1]} : vector<16x32xf32> to vector<16x8xf32>
    %cst_122 = arith.constant dense<0.000000e+00> : vector<8x16xf32>
    %335 = tpu.matmul %332, %333, %cst_122 {dimension_numbers = #tpu.dot_dimension_numbers<[1], [1], [0], [0], [0, 0, 1, 0], [], []>} : vector<8x8xf32>, vector<16x8xf32>, vector<8x16xf32> -> vector<8x16xf32>
    %336 = arith.addf %335, %280 : vector<8x16xf32>
    %cst_123 = arith.constant dense<0xFF800000> : vector<8xf32>
    %337 = vector.multi_reduction <maximumf>, %336, %cst_123 [1] : vector<8x16xf32> to vector<8xf32>
    %338 = vector.shape_cast %337 : vector<8xf32> to vector<8x1xf32>
    %339 = vector.broadcast %338 : vector<8x1xf32> to vector<8x16xf32>
    %340 = arith.subf %336, %339 : vector<8x16xf32>
    %341 = math.exp %340 : vector<8x16xf32>
    %cst_124 = arith.constant dense<0.000000e+00> : vector<8xf32>
    %342 = vector.multi_reduction <add>, %341, %cst_124 [1] : vector<8x16xf32> to vector<8xf32>
    %343 = vector.shape_cast %342 : vector<8xf32> to vector<8x1xf32>
    %344 = tpu.reciprocal %343 {approx = true} : vector<8x1xf32> -> vector<8x1xf32>
    %345 = vector.broadcast %344 : vector<8x1xf32> to vector<8x16xf32>
    %346 = arith.mulf %341, %345 : vector<8x16xf32>
    %cst_125 = arith.constant dense<0.000000e+00> : vector<8x8xf32>
    %347 = tpu.matmul %346, %334, %cst_125 {dimension_numbers = #tpu.dot_dimension_numbers<[1], [0], [0], [1], [0, 0, 1, 1], [], []>} : vector<8x16xf32>, vector<16x8xf32>, vector<8x8xf32> -> vector<8x8xf32>
    %c8_126 = arith.constant 8 : index
    %c24_127 = arith.constant 24 : index
    %348 = vector.load %arg23[%c8_126, %c24_127] : memref<16x32xf32, #tpu.memory_space<vmem>>, vector<8x8xf32>
    tpu.vector_store %arg23[%c8_126, %c24_127], %347 {strides = array<i32>} : memref<16x32xf32, #tpu.memory_space<vmem>>, vector<8x8xf32>,
    %c0_128 = arith.constant 0 : index
    %c0_129 = arith.constant 0 : index
    %349 = vector.load %arg23[%c0_128, %c0_129] : memref<16x32xf32, #tpu.memory_space<vmem>>, vector<16x32xf32>
    %c0_130 = arith.constant 0 : index
    %c0_131 = arith.constant 0 : index
    %350 = vector.load %arg12[%c0_130, %c0_131] : memref<32x32xf32, #tpu.memory_space<vmem>>, vector<32x32xf32>
    %cst_132 = arith.constant dense<0.000000e+00> : vector<16x32xf32>
    %351 = tpu.matmul %349, %350, %cst_132 {dimension_numbers = #tpu.dot_dimension_numbers<[1], [0], [0], [1], [0, 0, 1, 1], [], []>} : vector<16x32xf32>, vector<32x32xf32>, vector<16x32xf32> -> vector<16x32xf32>
    %c0_133 = arith.constant 0 : index
    %c0_134 = arith.constant 0 : index
    %352 = vector.load %arg13[%c0_133, %c0_134] : memref<1x32xf32, #tpu.memory_space<vmem>>, vector<1x32xf32>
    %353 = vector.broadcast %352 : vector<1x32xf32> to vector<16x32xf32>
    %354 = arith.addf %351, %353 : vector<16x32xf32>
    %355 = arith.addf %188, %354 : vector<16x32xf32>
    %c0_135 = arith.constant 0 : index
    %c0_136 = arith.constant 0 : index
    %356 = vector.load %arg14[%c0_135, %c0_136] : memref<1x32xf32, #tpu.memory_space<vmem>>, vector<1x32xf32>
    %c0_137 = arith.constant 0 : index
    %c0_138 = arith.constant 0 : index
    %357 = vector.load %arg15[%c0_137, %c0_138] : memref<1x32xf32, #tpu.memory_space<vmem>>, vector<1x32xf32>
    %cst_139 = arith.constant dense<0.000000e+00> : vector<16xf32>
    %358 = vector.multi_reduction <add>, %355, %cst_139 [1] : vector<16x32xf32> to vector<16xf32>
    %359 = vector.shape_cast %358 : vector<16xf32> to vector<16x1xf32>
    %cst_140 = arith.constant 3.200000e+01 : f32
    %360 = vector.broadcast %cst_140 : f32 to vector<16x1xf32>
    %361 = arith.divf %359, %360 : vector<16x1xf32>
    %362 = vector.broadcast %361 : vector<16x1xf32> to vector<16x32xf32>
    %363 = arith.subf %355, %362 : vector<16x32xf32>
    %364 = arith.mulf %363, %363 : vector<16x32xf32>
    %cst_141 = arith.constant dense<0.000000e+00> : vector<16xf32>
    %365 = vector.multi_reduction <add>, %364, %cst_141 [1] : vector<16x32xf32> to vector<16xf32>
    %366 = vector.shape_cast %365 : vector<16xf32> to vector<16x1xf32>
    %cst_142 = arith.constant 3.200000e+01 : f32
    %367 = vector.broadcast %cst_142 : f32 to vector<16x1xf32>
    %368 = arith.divf %366, %367 : vector<16x1xf32>
    %369 = vector.broadcast %361 : vector<16x1xf32> to vector<16x32xf32>
    %370 = arith.subf %355, %369 : vector<16x32xf32>
    %cst_143 = arith.constant 9.99999974E-6 : f32
    %371 = vector.broadcast %cst_143 : f32 to vector<16x1xf32>
    %372 = arith.addf %368, %371 : vector<16x1xf32>
    %373 = math.rsqrt %372 : vector<16x1xf32>
    %374 = vector.broadcast %373 : vector<16x1xf32> to vector<16x32xf32>
    %375 = arith.mulf %370, %374 : vector<16x32xf32>
    %376 = vector.broadcast %356 : vector<1x32xf32> to vector<16x32xf32>
    %377 = arith.mulf %375, %376 : vector<16x32xf32>
    %378 = vector.broadcast %357 : vector<1x32xf32> to vector<16x32xf32>
    %379 = arith.addf %377, %378 : vector<16x32xf32>
    %c0_144 = arith.constant 0 : index
    %c0_145 = arith.constant 0 : index
    %380 = vector.load %arg16[%c0_144, %c0_145] : memref<32x64xf32, #tpu.memory_space<vmem>>, vector<32x64xf32>
    %cst_146 = arith.constant dense<0.000000e+00> : vector<16x64xf32>
    %381 = tpu.matmul %379, %380, %cst_146 {dimension_numbers = #tpu.dot_dimension_numbers<[1], [0], [0], [1], [0, 0, 1, 1], [], []>} : vector<16x32xf32>, vector<32x64xf32>, vector<16x64xf32> -> vector<16x64xf32>
    %c0_147 = arith.constant 0 : index
    %c0_148 = arith.constant 0 : index
    %382 = vector.load %arg17[%c0_147, %c0_148] : memref<1x64xf32, #tpu.memory_space<vmem>>, vector<1x64xf32>
    %383 = vector.broadcast %382 : vector<1x64xf32> to vector<16x64xf32>
    %384 = arith.addf %381, %383 : vector<16x64xf32>
    %cst_149 = arith.constant 0.000000e+00 : f32
    %385 = vector.broadcast %cst_149 : f32 to vector<16x64xf32>
    %386 = arith.maximumf %384, %385 : vector<16x64xf32>
    %c0_150 = arith.constant 0 : index
    %c0_151 = arith.constant 0 : index
    %387 = vector.load %arg18[%c0_150, %c0_151] : memref<64x32xf32, #tpu.memory_space<vmem>>, vector<64x32xf32>
    %cst_152 = arith.constant dense<0.000000e+00> : vector<16x32xf32>
    %388 = tpu.matmul %386, %387, %cst_152 {dimension_numbers = #tpu.dot_dimension_numbers<[1], [0], [0], [1], [0, 0, 1, 1], [], []>} : vector<16x64xf32>, vector<64x32xf32>, vector<16x32xf32> -> vector<16x32xf32>
    %c0_153 = arith.constant 0 : index
    %c0_154 = arith.constant 0 : index
    %389 = vector.load %arg19[%c0_153, %c0_154] : memref<1x32xf32, #tpu.memory_space<vmem>>, vector<1x32xf32>
    %390 = vector.broadcast %389 : vector<1x32xf32> to vector<16x32xf32>
    %391 = arith.addf %388, %390 : vector<16x32xf32>
    %392 = arith.addf %379, %391 : vector<16x32xf32>
    %c0_155 = arith.constant 0 : index
    %c0_156 = arith.constant 0 : index
    %393 = vector.load %arg20[%c0_155, %c0_156] : memref<1x32xf32, #tpu.memory_space<vmem>>, vector<1x32xf32>
    %c0_157 = arith.constant 0 : index
    %c0_158 = arith.constant 0 : index
    %394 = vector.load %arg21[%c0_157, %c0_158] : memref<1x32xf32, #tpu.memory_space<vmem>>, vector<1x32xf32>
    %cst_159 = arith.constant dense<0.000000e+00> : vector<16xf32>
    %395 = vector.multi_reduction <add>, %392, %cst_159 [1] : vector<16x32xf32> to vector<16xf32>
    %396 = vector.shape_cast %395 : vector<16xf32> to vector<16x1xf32>
    %cst_160 = arith.constant 3.200000e+01 : f32
    %397 = vector.broadcast %cst_160 : f32 to vector<16x1xf32>
    %398 = arith.divf %396, %397 : vector<16x1xf32>
    %399 = vector.broadcast %398 : vector<16x1xf32> to vector<16x32xf32>
    %400 = arith.subf %392, %399 : vector<16x32xf32>
    %401 = arith.mulf %400, %400 : vector<16x32xf32>
    %cst_161 = arith.constant dense<0.000000e+00> : vector<16xf32>
    %402 = vector.multi_reduction <add>, %401, %cst_161 [1] : vector<16x32xf32> to vector<16xf32>
    %403 = vector.shape_cast %402 : vector<16xf32> to vector<16x1xf32>
    %cst_162 = arith.constant 3.200000e+01 : f32
    %404 = vector.broadcast %cst_162 : f32 to vector<16x1xf32>
    %405 = arith.divf %403, %404 : vector<16x1xf32>
    %406 = vector.broadcast %398 : vector<16x1xf32> to vector<16x32xf32>
    %407 = arith.subf %392, %406 : vector<16x32xf32>
    %cst_163 = arith.constant 9.99999974E-6 : f32
    %408 = vector.broadcast %cst_163 : f32 to vector<16x1xf32>
    %409 = arith.addf %405, %408 : vector<16x1xf32>
    %410 = math.rsqrt %409 : vector<16x1xf32>
    %411 = vector.broadcast %410 : vector<16x1xf32> to vector<16x32xf32>
    %412 = arith.mulf %407, %411 : vector<16x32xf32>
    %413 = vector.broadcast %393 : vector<1x32xf32> to vector<16x32xf32>
    %414 = arith.mulf %412, %413 : vector<16x32xf32>
    %415 = vector.broadcast %394 : vector<1x32xf32> to vector<16x32xf32>
    %416 = arith.addf %414, %415 : vector<16x32xf32>
    %c0_164 = arith.constant 0 : index
    %c0_165 = arith.constant 0 : index
    %417 = vector.load %arg22[%c0_164, %c0_165] : memref<16x32xf32, #tpu.memory_space<vmem>>, vector<16x32xf32>
    tpu.vector_store %arg22[%c0_164, %c0_165], %416 {strides = array<i32>} : memref<16x32xf32, #tpu.memory_space<vmem>>, vector<16x32xf32>,
    return
  }
}

module attributes {stable_mosaic.version = 11 : i64} {
  func.func @kernel(%arg0: memref<16x32xf32, #tpu.memory_space<vmem>>, %arg1: memref<32x32xf32, #tpu.memory_space<vmem>>, %arg2: memref<2x8x8xf32, #tpu.memory_space<vmem>>, %arg3: memref<2x8x16xf32, #tpu.memory_space<vmem>>, %arg4: memref<32x96xf32, #tpu.memory_space<vmem>>, %arg5: memref<1x96xf32, #tpu.memory_space<vmem>>, %arg6: memref<32x32xf32, #tpu.memory_space<vmem>>, %arg7: memref<1x32xf32, #tpu.memory_space<vmem>>, %arg8: memref<1x32xf32, #tpu.memory_space<vmem>>, %arg9: memref<1x32xf32, #tpu.memory_space<vmem>>, %arg10: memref<32x96xf32, #tpu.memory_space<vmem>>, %arg11: memref<1x96xf32, #tpu.memory_space<vmem>>, %arg12: memref<32x32xf32, #tpu.memory_space<vmem>>, %arg13: memref<1x32xf32, #tpu.memory_space<vmem>>, %arg14: memref<1x32xf32, #tpu.memory_space<vmem>>, %arg15: memref<1x32xf32, #tpu.memory_space<vmem>>, %arg16: memref<32x64xf32, #tpu.memory_space<vmem>>, %arg17: memref<1x64xf32, #tpu.memory_space<vmem>>, %arg18: memref<64x32xf32, #tpu.memory_space<vmem>>, %arg19: memref<1x32xf32, #tpu.memory_space<vmem>>, %arg20: memref<1x32xf32, #tpu.memory_space<vmem>>, %arg21: memref<1x32xf32, #tpu.memory_space<vmem>>, %arg22: memref<32x128xf32, #tpu.memory_space<vmem>>, %arg23: memref<1x128xf32, #tpu.memory_space<vmem>>, %arg24: memref<16x128xf32, #tpu.memory_space<vmem>>, %arg25: memref<2x4x8x16xf32, #tpu.memory_space<vmem>>, %arg26: memref<16x32xf32, #tpu.memory_space<vmem>>) attributes {dimension_semantics = [], scalar_prefetch = 0 : i64, scratch_operands = 1 : i64, tpu.core_type = #tpu.core_type<tc>} {
    %c0 = arith.constant 0 : index
    %c0_0 = arith.constant 0 : index
    %0 = vector.load %arg0[%c0, %c0_0] : memref<16x32xf32, #tpu.memory_space<vmem>>, vector<16x32xf32>
    %c0_1 = arith.constant 0 : index
    %c0_2 = arith.constant 0 : index
    %1 = vector.load %arg1[%c0_1, %c0_2] : memref<32x32xf32, #tpu.memory_space<vmem>>, vector<32x32xf32>
    %c0_3 = arith.constant 0 : index
    %c0_4 = arith.constant 0 : index
    %c0_5 = arith.constant 0 : index
    %2 = vector.load %arg2[%c0_3, %c0_4, %c0_5] : memref<2x8x8xf32, #tpu.memory_space<vmem>>, vector<2x8x8xf32>
    %c0_6 = arith.constant 0 : index
    %c0_7 = arith.constant 0 : index
    %c0_8 = arith.constant 0 : index
    %3 = vector.load %arg3[%c0_6, %c0_7, %c0_8] : memref<2x8x16xf32, #tpu.memory_space<vmem>>, vector<2x8x16xf32>
    %c0_9 = arith.constant 0 : index
    %c0_10 = arith.constant 0 : index
    %4 = vector.load %arg4[%c0_9, %c0_10] : memref<32x96xf32, #tpu.memory_space<vmem>>, vector<32x96xf32>
    %c0_11 = arith.constant 0 : index
    %c0_12 = arith.constant 0 : index
    %5 = vector.load %arg5[%c0_11, %c0_12] : memref<1x96xf32, #tpu.memory_space<vmem>>, vector<1x96xf32>
    %cst = arith.constant dense<0.000000e+00> : vector<16x96xf32>
    %6 = tpu.matmul %0, %4, %cst {dimension_numbers = #tpu.dot_dimension_numbers<[1], [0], [0], [1], [0, 0, 1, 1], [], []>} : vector<16x32xf32>, vector<32x96xf32>, vector<16x96xf32> -> vector<16x96xf32>
    %7 = vector.broadcast %5 : vector<1x96xf32> to vector<16x96xf32>
    %8 = arith.addf %6, %7 : vector<16x96xf32>
    %9 = vector.extract_strided_slice %8 {offsets = [0, 0], sizes = [16, 32], strides = [1, 1]} : vector<16x96xf32> to vector<16x32xf32>
    %10 = vector.extract_strided_slice %8 {offsets = [0, 32], sizes = [16, 32], strides = [1, 1]} : vector<16x96xf32> to vector<16x32xf32>
    %11 = vector.extract_strided_slice %8 {offsets = [0, 64], sizes = [16, 32], strides = [1, 1]} : vector<16x96xf32> to vector<16x32xf32>
    %12 = vector.extract_strided_slice %9 {offsets = [0, 0], sizes = [8, 32], strides = [1, 1]} : vector<16x32xf32> to vector<8x32xf32>
    %13 = vector.extract_strided_slice %10 {offsets = [0, 0], sizes = [8, 32], strides = [1, 1]} : vector<16x32xf32> to vector<8x32xf32>
    %14 = vector.extract_strided_slice %11 {offsets = [0, 0], sizes = [8, 32], strides = [1, 1]} : vector<16x32xf32> to vector<8x32xf32>
    %15 = vector.extract_strided_slice %2 {offsets = [0, 0, 0], sizes = [1, 8, 8], strides = [1, 1, 1]} : vector<2x8x8xf32> to vector<1x8x8xf32>
    %16 = vector.shape_cast %15 : vector<1x8x8xf32> to vector<8x8xf32>
    %17 = vector.extract_strided_slice %12 {offsets = [0, 0], sizes = [8, 8], strides = [1, 1]} : vector<8x32xf32> to vector<8x8xf32>
    %18 = vector.extract_strided_slice %13 {offsets = [0, 0], sizes = [8, 8], strides = [1, 1]} : vector<8x32xf32> to vector<8x8xf32>
    %19 = vector.extract_strided_slice %14 {offsets = [0, 0], sizes = [8, 8], strides = [1, 1]} : vector<8x32xf32> to vector<8x8xf32>
    %cst_13 = arith.constant dense<0.000000e+00> : vector<8x8xf32>
    %20 = tpu.matmul %17, %18, %cst_13 {dimension_numbers = #tpu.dot_dimension_numbers<[1], [1], [0], [0], [0, 0, 1, 0], [], []>} : vector<8x8xf32>, vector<8x8xf32>, vector<8x8xf32> -> vector<8x8xf32>
    %21 = arith.addf %20, %16 : vector<8x8xf32>
    %cst_14 = arith.constant dense<0xFF800000> : vector<8xf32>
    %22 = vector.multi_reduction <maximumf>, %21, %cst_14 [1] : vector<8x8xf32> to vector<8xf32>
    %23 = vector.shape_cast %22 : vector<8xf32> to vector<8x1xf32>
    %24 = vector.broadcast %23 : vector<8x1xf32> to vector<8x8xf32>
    %25 = arith.subf %21, %24 : vector<8x8xf32>
    %26 = math.exp %25 : vector<8x8xf32>
    %cst_15 = arith.constant dense<0.000000e+00> : vector<8xf32>
    %27 = vector.multi_reduction <add>, %26, %cst_15 [1] : vector<8x8xf32> to vector<8xf32>
    %28 = vector.shape_cast %27 : vector<8xf32> to vector<8x1xf32>
    %29 = tpu.reciprocal %28 {approx = true} : vector<8x1xf32> -> vector<8x1xf32>
    %30 = vector.broadcast %29 : vector<8x1xf32> to vector<8x8xf32>
    %31 = arith.mulf %26, %30 : vector<8x8xf32>
    %cst_16 = arith.constant dense<0.000000e+00> : vector<8x8xf32>
    %32 = tpu.matmul %31, %19, %cst_16 {dimension_numbers = #tpu.dot_dimension_numbers<[1], [0], [0], [1], [0, 0, 1, 1], [], []>} : vector<8x8xf32>, vector<8x8xf32>, vector<8x8xf32> -> vector<8x8xf32>
    %c0_17 = arith.constant 0 : index
    %c0_18 = arith.constant 0 : index
    %33 = vector.load %arg26[%c0_17, %c0_18] : memref<16x32xf32, #tpu.memory_space<vmem>>, vector<8x8xf32>
    tpu.vector_store %arg26[%c0_17, %c0_18], %32 {strides = array<i32>} : memref<16x32xf32, #tpu.memory_space<vmem>>, vector<8x8xf32>,
    %34 = vector.extract_strided_slice %12 {offsets = [0, 8], sizes = [8, 8], strides = [1, 1]} : vector<8x32xf32> to vector<8x8xf32>
    %35 = vector.extract_strided_slice %13 {offsets = [0, 8], sizes = [8, 8], strides = [1, 1]} : vector<8x32xf32> to vector<8x8xf32>
    %36 = vector.extract_strided_slice %14 {offsets = [0, 8], sizes = [8, 8], strides = [1, 1]} : vector<8x32xf32> to vector<8x8xf32>
    %cst_19 = arith.constant dense<0.000000e+00> : vector<8x8xf32>
    %37 = tpu.matmul %34, %35, %cst_19 {dimension_numbers = #tpu.dot_dimension_numbers<[1], [1], [0], [0], [0, 0, 1, 0], [], []>} : vector<8x8xf32>, vector<8x8xf32>, vector<8x8xf32> -> vector<8x8xf32>
    %38 = arith.addf %37, %16 : vector<8x8xf32>
    %cst_20 = arith.constant dense<0xFF800000> : vector<8xf32>
    %39 = vector.multi_reduction <maximumf>, %38, %cst_20 [1] : vector<8x8xf32> to vector<8xf32>
    %40 = vector.shape_cast %39 : vector<8xf32> to vector<8x1xf32>
    %41 = vector.broadcast %40 : vector<8x1xf32> to vector<8x8xf32>
    %42 = arith.subf %38, %41 : vector<8x8xf32>
    %43 = math.exp %42 : vector<8x8xf32>
    %cst_21 = arith.constant dense<0.000000e+00> : vector<8xf32>
    %44 = vector.multi_reduction <add>, %43, %cst_21 [1] : vector<8x8xf32> to vector<8xf32>
    %45 = vector.shape_cast %44 : vector<8xf32> to vector<8x1xf32>
    %46 = tpu.reciprocal %45 {approx = true} : vector<8x1xf32> -> vector<8x1xf32>
    %47 = vector.broadcast %46 : vector<8x1xf32> to vector<8x8xf32>
    %48 = arith.mulf %43, %47 : vector<8x8xf32>
    %cst_22 = arith.constant dense<0.000000e+00> : vector<8x8xf32>
    %49 = tpu.matmul %48, %36, %cst_22 {dimension_numbers = #tpu.dot_dimension_numbers<[1], [0], [0], [1], [0, 0, 1, 1], [], []>} : vector<8x8xf32>, vector<8x8xf32>, vector<8x8xf32> -> vector<8x8xf32>
    %c0_23 = arith.constant 0 : index
    %c8 = arith.constant 8 : index
    %50 = vector.load %arg26[%c0_23, %c8] : memref<16x32xf32, #tpu.memory_space<vmem>>, vector<8x8xf32>
    tpu.vector_store %arg26[%c0_23, %c8], %49 {strides = array<i32>} : memref<16x32xf32, #tpu.memory_space<vmem>>, vector<8x8xf32>,
    %51 = vector.extract_strided_slice %12 {offsets = [0, 16], sizes = [8, 8], strides = [1, 1]} : vector<8x32xf32> to vector<8x8xf32>
    %52 = vector.extract_strided_slice %13 {offsets = [0, 16], sizes = [8, 8], strides = [1, 1]} : vector<8x32xf32> to vector<8x8xf32>
    %53 = vector.extract_strided_slice %14 {offsets = [0, 16], sizes = [8, 8], strides = [1, 1]} : vector<8x32xf32> to vector<8x8xf32>
    %cst_24 = arith.constant dense<0.000000e+00> : vector<8x8xf32>
    %54 = tpu.matmul %51, %52, %cst_24 {dimension_numbers = #tpu.dot_dimension_numbers<[1], [1], [0], [0], [0, 0, 1, 0], [], []>} : vector<8x8xf32>, vector<8x8xf32>, vector<8x8xf32> -> vector<8x8xf32>
    %55 = arith.addf %54, %16 : vector<8x8xf32>
    %cst_25 = arith.constant dense<0xFF800000> : vector<8xf32>
    %56 = vector.multi_reduction <maximumf>, %55, %cst_25 [1] : vector<8x8xf32> to vector<8xf32>
    %57 = vector.shape_cast %56 : vector<8xf32> to vector<8x1xf32>
    %58 = vector.broadcast %57 : vector<8x1xf32> to vector<8x8xf32>
    %59 = arith.subf %55, %58 : vector<8x8xf32>
    %60 = math.exp %59 : vector<8x8xf32>
    %cst_26 = arith.constant dense<0.000000e+00> : vector<8xf32>
    %61 = vector.multi_reduction <add>, %60, %cst_26 [1] : vector<8x8xf32> to vector<8xf32>
    %62 = vector.shape_cast %61 : vector<8xf32> to vector<8x1xf32>
    %63 = tpu.reciprocal %62 {approx = true} : vector<8x1xf32> -> vector<8x1xf32>
    %64 = vector.broadcast %63 : vector<8x1xf32> to vector<8x8xf32>
    %65 = arith.mulf %60, %64 : vector<8x8xf32>
    %cst_27 = arith.constant dense<0.000000e+00> : vector<8x8xf32>
    %66 = tpu.matmul %65, %53, %cst_27 {dimension_numbers = #tpu.dot_dimension_numbers<[1], [0], [0], [1], [0, 0, 1, 1], [], []>} : vector<8x8xf32>, vector<8x8xf32>, vector<8x8xf32> -> vector<8x8xf32>
    %c0_28 = arith.constant 0 : index
    %c16 = arith.constant 16 : index
    %67 = vector.load %arg26[%c0_28, %c16] : memref<16x32xf32, #tpu.memory_space<vmem>>, vector<8x8xf32>
    tpu.vector_store %arg26[%c0_28, %c16], %66 {strides = array<i32>} : memref<16x32xf32, #tpu.memory_space<vmem>>, vector<8x8xf32>,
    %68 = vector.extract_strided_slice %12 {offsets = [0, 24], sizes = [8, 8], strides = [1, 1]} : vector<8x32xf32> to vector<8x8xf32>
    %69 = vector.extract_strided_slice %13 {offsets = [0, 24], sizes = [8, 8], strides = [1, 1]} : vector<8x32xf32> to vector<8x8xf32>
    %70 = vector.extract_strided_slice %14 {offsets = [0, 24], sizes = [8, 8], strides = [1, 1]} : vector<8x32xf32> to vector<8x8xf32>
    %cst_29 = arith.constant dense<0.000000e+00> : vector<8x8xf32>
    %71 = tpu.matmul %68, %69, %cst_29 {dimension_numbers = #tpu.dot_dimension_numbers<[1], [1], [0], [0], [0, 0, 1, 0], [], []>} : vector<8x8xf32>, vector<8x8xf32>, vector<8x8xf32> -> vector<8x8xf32>
    %72 = arith.addf %71, %16 : vector<8x8xf32>
    %cst_30 = arith.constant dense<0xFF800000> : vector<8xf32>
    %73 = vector.multi_reduction <maximumf>, %72, %cst_30 [1] : vector<8x8xf32> to vector<8xf32>
    %74 = vector.shape_cast %73 : vector<8xf32> to vector<8x1xf32>
    %75 = vector.broadcast %74 : vector<8x1xf32> to vector<8x8xf32>
    %76 = arith.subf %72, %75 : vector<8x8xf32>
    %77 = math.exp %76 : vector<8x8xf32>
    %cst_31 = arith.constant dense<0.000000e+00> : vector<8xf32>
    %78 = vector.multi_reduction <add>, %77, %cst_31 [1] : vector<8x8xf32> to vector<8xf32>
    %79 = vector.shape_cast %78 : vector<8xf32> to vector<8x1xf32>
    %80 = tpu.reciprocal %79 {approx = true} : vector<8x1xf32> -> vector<8x1xf32>
    %81 = vector.broadcast %80 : vector<8x1xf32> to vector<8x8xf32>
    %82 = arith.mulf %77, %81 : vector<8x8xf32>
    %cst_32 = arith.constant dense<0.000000e+00> : vector<8x8xf32>
    %83 = tpu.matmul %82, %70, %cst_32 {dimension_numbers = #tpu.dot_dimension_numbers<[1], [0], [0], [1], [0, 0, 1, 1], [], []>} : vector<8x8xf32>, vector<8x8xf32>, vector<8x8xf32> -> vector<8x8xf32>
    %c0_33 = arith.constant 0 : index
    %c24 = arith.constant 24 : index
    %84 = vector.load %arg26[%c0_33, %c24] : memref<16x32xf32, #tpu.memory_space<vmem>>, vector<8x8xf32>
    tpu.vector_store %arg26[%c0_33, %c24], %83 {strides = array<i32>} : memref<16x32xf32, #tpu.memory_space<vmem>>, vector<8x8xf32>,
    %85 = vector.extract_strided_slice %9 {offsets = [8, 0], sizes = [8, 32], strides = [1, 1]} : vector<16x32xf32> to vector<8x32xf32>
    %86 = vector.extract_strided_slice %10 {offsets = [8, 0], sizes = [8, 32], strides = [1, 1]} : vector<16x32xf32> to vector<8x32xf32>
    %87 = vector.extract_strided_slice %11 {offsets = [8, 0], sizes = [8, 32], strides = [1, 1]} : vector<16x32xf32> to vector<8x32xf32>
    %88 = vector.extract_strided_slice %2 {offsets = [1, 0, 0], sizes = [1, 8, 8], strides = [1, 1, 1]} : vector<2x8x8xf32> to vector<1x8x8xf32>
    %89 = vector.shape_cast %88 : vector<1x8x8xf32> to vector<8x8xf32>
    %90 = vector.extract_strided_slice %85 {offsets = [0, 0], sizes = [8, 8], strides = [1, 1]} : vector<8x32xf32> to vector<8x8xf32>
    %91 = vector.extract_strided_slice %86 {offsets = [0, 0], sizes = [8, 8], strides = [1, 1]} : vector<8x32xf32> to vector<8x8xf32>
    %92 = vector.extract_strided_slice %87 {offsets = [0, 0], sizes = [8, 8], strides = [1, 1]} : vector<8x32xf32> to vector<8x8xf32>
    %cst_34 = arith.constant dense<0.000000e+00> : vector<8x8xf32>
    %93 = tpu.matmul %90, %91, %cst_34 {dimension_numbers = #tpu.dot_dimension_numbers<[1], [1], [0], [0], [0, 0, 1, 0], [], []>} : vector<8x8xf32>, vector<8x8xf32>, vector<8x8xf32> -> vector<8x8xf32>
    %94 = arith.addf %93, %89 : vector<8x8xf32>
    %cst_35 = arith.constant dense<0xFF800000> : vector<8xf32>
    %95 = vector.multi_reduction <maximumf>, %94, %cst_35 [1] : vector<8x8xf32> to vector<8xf32>
    %96 = vector.shape_cast %95 : vector<8xf32> to vector<8x1xf32>
    %97 = vector.broadcast %96 : vector<8x1xf32> to vector<8x8xf32>
    %98 = arith.subf %94, %97 : vector<8x8xf32>
    %99 = math.exp %98 : vector<8x8xf32>
    %cst_36 = arith.constant dense<0.000000e+00> : vector<8xf32>
    %100 = vector.multi_reduction <add>, %99, %cst_36 [1] : vector<8x8xf32> to vector<8xf32>
    %101 = vector.shape_cast %100 : vector<8xf32> to vector<8x1xf32>
    %102 = tpu.reciprocal %101 {approx = true} : vector<8x1xf32> -> vector<8x1xf32>
    %103 = vector.broadcast %102 : vector<8x1xf32> to vector<8x8xf32>
    %104 = arith.mulf %99, %103 : vector<8x8xf32>
    %cst_37 = arith.constant dense<0.000000e+00> : vector<8x8xf32>
    %105 = tpu.matmul %104, %92, %cst_37 {dimension_numbers = #tpu.dot_dimension_numbers<[1], [0], [0], [1], [0, 0, 1, 1], [], []>} : vector<8x8xf32>, vector<8x8xf32>, vector<8x8xf32> -> vector<8x8xf32>
    %c8_38 = arith.constant 8 : index
    %c0_39 = arith.constant 0 : index
    %106 = vector.load %arg26[%c8_38, %c0_39] : memref<16x32xf32, #tpu.memory_space<vmem>>, vector<8x8xf32>
    tpu.vector_store %arg26[%c8_38, %c0_39], %105 {strides = array<i32>} : memref<16x32xf32, #tpu.memory_space<vmem>>, vector<8x8xf32>,
    %107 = vector.extract_strided_slice %85 {offsets = [0, 8], sizes = [8, 8], strides = [1, 1]} : vector<8x32xf32> to vector<8x8xf32>
    %108 = vector.extract_strided_slice %86 {offsets = [0, 8], sizes = [8, 8], strides = [1, 1]} : vector<8x32xf32> to vector<8x8xf32>
    %109 = vector.extract_strided_slice %87 {offsets = [0, 8], sizes = [8, 8], strides = [1, 1]} : vector<8x32xf32> to vector<8x8xf32>
    %cst_40 = arith.constant dense<0.000000e+00> : vector<8x8xf32>
    %110 = tpu.matmul %107, %108, %cst_40 {dimension_numbers = #tpu.dot_dimension_numbers<[1], [1], [0], [0], [0, 0, 1, 0], [], []>} : vector<8x8xf32>, vector<8x8xf32>, vector<8x8xf32> -> vector<8x8xf32>
    %111 = arith.addf %110, %89 : vector<8x8xf32>
    %cst_41 = arith.constant dense<0xFF800000> : vector<8xf32>
    %112 = vector.multi_reduction <maximumf>, %111, %cst_41 [1] : vector<8x8xf32> to vector<8xf32>
    %113 = vector.shape_cast %112 : vector<8xf32> to vector<8x1xf32>
    %114 = vector.broadcast %113 : vector<8x1xf32> to vector<8x8xf32>
    %115 = arith.subf %111, %114 : vector<8x8xf32>
    %116 = math.exp %115 : vector<8x8xf32>
    %cst_42 = arith.constant dense<0.000000e+00> : vector<8xf32>
    %117 = vector.multi_reduction <add>, %116, %cst_42 [1] : vector<8x8xf32> to vector<8xf32>
    %118 = vector.shape_cast %117 : vector<8xf32> to vector<8x1xf32>
    %119 = tpu.reciprocal %118 {approx = true} : vector<8x1xf32> -> vector<8x1xf32>
    %120 = vector.broadcast %119 : vector<8x1xf32> to vector<8x8xf32>
    %121 = arith.mulf %116, %120 : vector<8x8xf32>
    %cst_43 = arith.constant dense<0.000000e+00> : vector<8x8xf32>
    %122 = tpu.matmul %121, %109, %cst_43 {dimension_numbers = #tpu.dot_dimension_numbers<[1], [0], [0], [1], [0, 0, 1, 1], [], []>} : vector<8x8xf32>, vector<8x8xf32>, vector<8x8xf32> -> vector<8x8xf32>
    %c8_44 = arith.constant 8 : index
    %c8_45 = arith.constant 8 : index
    %123 = vector.load %arg26[%c8_44, %c8_45] : memref<16x32xf32, #tpu.memory_space<vmem>>, vector<8x8xf32>
    tpu.vector_store %arg26[%c8_44, %c8_45], %122 {strides = array<i32>} : memref<16x32xf32, #tpu.memory_space<vmem>>, vector<8x8xf32>,
    %124 = vector.extract_strided_slice %85 {offsets = [0, 16], sizes = [8, 8], strides = [1, 1]} : vector<8x32xf32> to vector<8x8xf32>
    %125 = vector.extract_strided_slice %86 {offsets = [0, 16], sizes = [8, 8], strides = [1, 1]} : vector<8x32xf32> to vector<8x8xf32>
    %126 = vector.extract_strided_slice %87 {offsets = [0, 16], sizes = [8, 8], strides = [1, 1]} : vector<8x32xf32> to vector<8x8xf32>
    %cst_46 = arith.constant dense<0.000000e+00> : vector<8x8xf32>
    %127 = tpu.matmul %124, %125, %cst_46 {dimension_numbers = #tpu.dot_dimension_numbers<[1], [1], [0], [0], [0, 0, 1, 0], [], []>} : vector<8x8xf32>, vector<8x8xf32>, vector<8x8xf32> -> vector<8x8xf32>
    %128 = arith.addf %127, %89 : vector<8x8xf32>
    %cst_47 = arith.constant dense<0xFF800000> : vector<8xf32>
    %129 = vector.multi_reduction <maximumf>, %128, %cst_47 [1] : vector<8x8xf32> to vector<8xf32>
    %130 = vector.shape_cast %129 : vector<8xf32> to vector<8x1xf32>
    %131 = vector.broadcast %130 : vector<8x1xf32> to vector<8x8xf32>
    %132 = arith.subf %128, %131 : vector<8x8xf32>
    %133 = math.exp %132 : vector<8x8xf32>
    %cst_48 = arith.constant dense<0.000000e+00> : vector<8xf32>
    %134 = vector.multi_reduction <add>, %133, %cst_48 [1] : vector<8x8xf32> to vector<8xf32>
    %135 = vector.shape_cast %134 : vector<8xf32> to vector<8x1xf32>
    %136 = tpu.reciprocal %135 {approx = true} : vector<8x1xf32> -> vector<8x1xf32>
    %137 = vector.broadcast %136 : vector<8x1xf32> to vector<8x8xf32>
    %138 = arith.mulf %133, %137 : vector<8x8xf32>
    %cst_49 = arith.constant dense<0.000000e+00> : vector<8x8xf32>
    %139 = tpu.matmul %138, %126, %cst_49 {dimension_numbers = #tpu.dot_dimension_numbers<[1], [0], [0], [1], [0, 0, 1, 1], [], []>} : vector<8x8xf32>, vector<8x8xf32>, vector<8x8xf32> -> vector<8x8xf32>
    %c8_50 = arith.constant 8 : index
    %c16_51 = arith.constant 16 : index
    %140 = vector.load %arg26[%c8_50, %c16_51] : memref<16x32xf32, #tpu.memory_space<vmem>>, vector<8x8xf32>
    tpu.vector_store %arg26[%c8_50, %c16_51], %139 {strides = array<i32>} : memref<16x32xf32, #tpu.memory_space<vmem>>, vector<8x8xf32>,
    %141 = vector.extract_strided_slice %85 {offsets = [0, 24], sizes = [8, 8], strides = [1, 1]} : vector<8x32xf32> to vector<8x8xf32>
    %142 = vector.extract_strided_slice %86 {offsets = [0, 24], sizes = [8, 8], strides = [1, 1]} : vector<8x32xf32> to vector<8x8xf32>
    %143 = vector.extract_strided_slice %87 {offsets = [0, 24], sizes = [8, 8], strides = [1, 1]} : vector<8x32xf32> to vector<8x8xf32>
    %cst_52 = arith.constant dense<0.000000e+00> : vector<8x8xf32>
    %144 = tpu.matmul %141, %142, %cst_52 {dimension_numbers = #tpu.dot_dimension_numbers<[1], [1], [0], [0], [0, 0, 1, 0], [], []>} : vector<8x8xf32>, vector<8x8xf32>, vector<8x8xf32> -> vector<8x8xf32>
    %145 = arith.addf %144, %89 : vector<8x8xf32>
    %cst_53 = arith.constant dense<0xFF800000> : vector<8xf32>
    %146 = vector.multi_reduction <maximumf>, %145, %cst_53 [1] : vector<8x8xf32> to vector<8xf32>
    %147 = vector.shape_cast %146 : vector<8xf32> to vector<8x1xf32>
    %148 = vector.broadcast %147 : vector<8x1xf32> to vector<8x8xf32>
    %149 = arith.subf %145, %148 : vector<8x8xf32>
    %150 = math.exp %149 : vector<8x8xf32>
    %cst_54 = arith.constant dense<0.000000e+00> : vector<8xf32>
    %151 = vector.multi_reduction <add>, %150, %cst_54 [1] : vector<8x8xf32> to vector<8xf32>
    %152 = vector.shape_cast %151 : vector<8xf32> to vector<8x1xf32>
    %153 = tpu.reciprocal %152 {approx = true} : vector<8x1xf32> -> vector<8x1xf32>
    %154 = vector.broadcast %153 : vector<8x1xf32> to vector<8x8xf32>
    %155 = arith.mulf %150, %154 : vector<8x8xf32>
    %cst_55 = arith.constant dense<0.000000e+00> : vector<8x8xf32>
    %156 = tpu.matmul %155, %143, %cst_55 {dimension_numbers = #tpu.dot_dimension_numbers<[1], [0], [0], [1], [0, 0, 1, 1], [], []>} : vector<8x8xf32>, vector<8x8xf32>, vector<8x8xf32> -> vector<8x8xf32>
    %c8_56 = arith.constant 8 : index
    %c24_57 = arith.constant 24 : index
    %157 = vector.load %arg26[%c8_56, %c24_57] : memref<16x32xf32, #tpu.memory_space<vmem>>, vector<8x8xf32>
    tpu.vector_store %arg26[%c8_56, %c24_57], %156 {strides = array<i32>} : memref<16x32xf32, #tpu.memory_space<vmem>>, vector<8x8xf32>,
    %c0_58 = arith.constant 0 : index
    %c0_59 = arith.constant 0 : index
    %158 = vector.load %arg26[%c0_58, %c0_59] : memref<16x32xf32, #tpu.memory_space<vmem>>, vector<16x32xf32>
    %c0_60 = arith.constant 0 : index
    %c0_61 = arith.constant 0 : index
    %159 = vector.load %arg6[%c0_60, %c0_61] : memref<32x32xf32, #tpu.memory_space<vmem>>, vector<32x32xf32>
    %cst_62 = arith.constant dense<0.000000e+00> : vector<16x32xf32>
    %160 = tpu.matmul %158, %159, %cst_62 {dimension_numbers = #tpu.dot_dimension_numbers<[1], [0], [0], [1], [0, 0, 1, 1], [], []>} : vector<16x32xf32>, vector<32x32xf32>, vector<16x32xf32> -> vector<16x32xf32>
    %c0_63 = arith.constant 0 : index
    %c0_64 = arith.constant 0 : index
    %161 = vector.load %arg7[%c0_63, %c0_64] : memref<1x32xf32, #tpu.memory_space<vmem>>, vector<1x32xf32>
    %162 = vector.broadcast %161 : vector<1x32xf32> to vector<16x32xf32>
    %163 = arith.addf %160, %162 : vector<16x32xf32>
    %164 = arith.addf %0, %163 : vector<16x32xf32>
    %c0_65 = arith.constant 0 : index
    %c0_66 = arith.constant 0 : index
    %165 = vector.load %arg8[%c0_65, %c0_66] : memref<1x32xf32, #tpu.memory_space<vmem>>, vector<1x32xf32>
    %c0_67 = arith.constant 0 : index
    %c0_68 = arith.constant 0 : index
    %166 = vector.load %arg9[%c0_67, %c0_68] : memref<1x32xf32, #tpu.memory_space<vmem>>, vector<1x32xf32>
    %cst_69 = arith.constant dense<0.000000e+00> : vector<16xf32>
    %167 = vector.multi_reduction <add>, %164, %cst_69 [1] : vector<16x32xf32> to vector<16xf32>
    %168 = vector.shape_cast %167 : vector<16xf32> to vector<16x1xf32>
    %cst_70 = arith.constant 3.200000e+01 : f32
    %169 = vector.broadcast %cst_70 : f32 to vector<16x1xf32>
    %170 = arith.divf %168, %169 : vector<16x1xf32>
    %171 = vector.broadcast %170 : vector<16x1xf32> to vector<16x32xf32>
    %172 = arith.subf %164, %171 : vector<16x32xf32>
    %173 = arith.mulf %172, %172 : vector<16x32xf32>
    %cst_71 = arith.constant dense<0.000000e+00> : vector<16xf32>
    %174 = vector.multi_reduction <add>, %173, %cst_71 [1] : vector<16x32xf32> to vector<16xf32>
    %175 = vector.shape_cast %174 : vector<16xf32> to vector<16x1xf32>
    %cst_72 = arith.constant 3.200000e+01 : f32
    %176 = vector.broadcast %cst_72 : f32 to vector<16x1xf32>
    %177 = arith.divf %175, %176 : vector<16x1xf32>
    %178 = vector.broadcast %170 : vector<16x1xf32> to vector<16x32xf32>
    %179 = arith.subf %164, %178 : vector<16x32xf32>
    %cst_73 = arith.constant 9.99999974E-6 : f32
    %180 = vector.broadcast %cst_73 : f32 to vector<16x1xf32>
    %181 = arith.addf %177, %180 : vector<16x1xf32>
    %182 = math.rsqrt %181 : vector<16x1xf32>
    %183 = vector.broadcast %182 : vector<16x1xf32> to vector<16x32xf32>
    %184 = arith.mulf %179, %183 : vector<16x32xf32>
    %185 = vector.broadcast %165 : vector<1x32xf32> to vector<16x32xf32>
    %186 = arith.mulf %184, %185 : vector<16x32xf32>
    %187 = vector.broadcast %166 : vector<1x32xf32> to vector<16x32xf32>
    %188 = arith.addf %186, %187 : vector<16x32xf32>
    %c0_74 = arith.constant 0 : index
    %c0_75 = arith.constant 0 : index
    %189 = vector.load %arg10[%c0_74, %c0_75] : memref<32x96xf32, #tpu.memory_space<vmem>>, vector<32x96xf32>
    %c0_76 = arith.constant 0 : index
    %c0_77 = arith.constant 0 : index
    %190 = vector.load %arg11[%c0_76, %c0_77] : memref<1x96xf32, #tpu.memory_space<vmem>>, vector<1x96xf32>
    %191 = vector.extract_strided_slice %189 {offsets = [0, 0], sizes = [32, 32], strides = [1, 1]} : vector<32x96xf32> to vector<32x32xf32>
    %cst_78 = arith.constant dense<0.000000e+00> : vector<16x32xf32>
    %192 = tpu.matmul %188, %191, %cst_78 {dimension_numbers = #tpu.dot_dimension_numbers<[1], [0], [0], [1], [0, 0, 1, 1], [], []>} : vector<16x32xf32>, vector<32x32xf32>, vector<16x32xf32> -> vector<16x32xf32>
    %193 = vector.extract_strided_slice %190 {offsets = [0, 0], sizes = [1, 32], strides = [1, 1]} : vector<1x96xf32> to vector<1x32xf32>
    %194 = vector.broadcast %193 : vector<1x32xf32> to vector<16x32xf32>
    %195 = arith.addf %192, %194 : vector<16x32xf32>
    %196 = vector.extract_strided_slice %189 {offsets = [0, 32], sizes = [32, 64], strides = [1, 1]} : vector<32x96xf32> to vector<32x64xf32>
    %cst_79 = arith.constant dense<0.000000e+00> : vector<32x64xf32>
    %197 = tpu.matmul %1, %196, %cst_79 {dimension_numbers = #tpu.dot_dimension_numbers<[1], [0], [0], [1], [0, 0, 1, 1], [], []>} : vector<32x32xf32>, vector<32x64xf32>, vector<32x64xf32> -> vector<32x64xf32>
    %198 = vector.extract_strided_slice %190 {offsets = [0, 32], sizes = [1, 64], strides = [1, 1]} : vector<1x96xf32> to vector<1x64xf32>
    %199 = vector.broadcast %198 : vector<1x64xf32> to vector<32x64xf32>
    %200 = arith.addf %197, %199 : vector<32x64xf32>
    %201 = vector.extract_strided_slice %200 {offsets = [0, 0], sizes = [32, 32], strides = [1, 1]} : vector<32x64xf32> to vector<32x32xf32>
    %202 = vector.extract_strided_slice %200 {offsets = [0, 32], sizes = [32, 32], strides = [1, 1]} : vector<32x64xf32> to vector<32x32xf32>
    %203 = vector.extract_strided_slice %195 {offsets = [0, 0], sizes = [8, 32], strides = [1, 1]} : vector<16x32xf32> to vector<8x32xf32>
    %204 = vector.extract_strided_slice %201 {offsets = [0, 0], sizes = [16, 32], strides = [1, 1]} : vector<32x32xf32> to vector<16x32xf32>
    %205 = vector.extract_strided_slice %202 {offsets = [0, 0], sizes = [16, 32], strides = [1, 1]} : vector<32x32xf32> to vector<16x32xf32>
    %206 = vector.extract_strided_slice %3 {offsets = [0, 0, 0], sizes = [1, 8, 16], strides = [1, 1, 1]} : vector<2x8x16xf32> to vector<1x8x16xf32>
    %207 = vector.shape_cast %206 : vector<1x8x16xf32> to vector<8x16xf32>
    %208 = vector.extract_strided_slice %203 {offsets = [0, 0], sizes = [8, 8], strides = [1, 1]} : vector<8x32xf32> to vector<8x8xf32>
    %209 = vector.extract_strided_slice %204 {offsets = [0, 0], sizes = [16, 8], strides = [1, 1]} : vector<16x32xf32> to vector<16x8xf32>
    %210 = vector.extract_strided_slice %205 {offsets = [0, 0], sizes = [16, 8], strides = [1, 1]} : vector<16x32xf32> to vector<16x8xf32>
    %cst_80 = arith.constant dense<0.000000e+00> : vector<8x16xf32>
    %211 = tpu.matmul %208, %209, %cst_80 {dimension_numbers = #tpu.dot_dimension_numbers<[1], [1], [0], [0], [0, 0, 1, 0], [], []>} : vector<8x8xf32>, vector<16x8xf32>, vector<8x16xf32> -> vector<8x16xf32>
    %212 = arith.addf %211, %207 : vector<8x16xf32>
    %cst_81 = arith.constant dense<0xFF800000> : vector<8xf32>
    %213 = vector.multi_reduction <maximumf>, %212, %cst_81 [1] : vector<8x16xf32> to vector<8xf32>
    %214 = vector.shape_cast %213 : vector<8xf32> to vector<8x1xf32>
    %215 = vector.broadcast %214 : vector<8x1xf32> to vector<8x16xf32>
    %216 = arith.subf %212, %215 : vector<8x16xf32>
    %217 = math.exp %216 : vector<8x16xf32>
    %cst_82 = arith.constant dense<0.000000e+00> : vector<8xf32>
    %218 = vector.multi_reduction <add>, %217, %cst_82 [1] : vector<8x16xf32> to vector<8xf32>
    %219 = vector.shape_cast %218 : vector<8xf32> to vector<8x1xf32>
    %220 = tpu.reciprocal %219 {approx = true} : vector<8x1xf32> -> vector<8x1xf32>
    %221 = vector.broadcast %220 : vector<8x1xf32> to vector<8x16xf32>
    %222 = arith.mulf %217, %221 : vector<8x16xf32>
    %c0_83 = arith.constant 0 : index
    %c0_84 = arith.constant 0 : index
    %c0_85 = arith.constant 0 : index
    %c0_86 = arith.constant 0 : index
    %223 = vector.load %arg25[%c0_83, %c0_84, %c0_85, %c0_86] : memref<2x4x8x16xf32, #tpu.memory_space<vmem>>, vector<1x1x8x16xf32>
    %224 = vector.shape_cast %223 : vector<1x1x8x16xf32> to vector<8x16xf32>
    %225 = vector.shape_cast %222 : vector<8x16xf32> to vector<1x1x8x16xf32>
    tpu.vector_store %arg25[%c0_83, %c0_84, %c0_85, %c0_86], %225 {strides = array<i32>} : memref<2x4x8x16xf32, #tpu.memory_space<vmem>>, vector<1x1x8x16xf32>,
    %cst_87 = arith.constant dense<0.000000e+00> : vector<8x8xf32>
    %226 = tpu.matmul %222, %210, %cst_87 {dimension_numbers = #tpu.dot_dimension_numbers<[1], [0], [0], [1], [0, 0, 1, 1], [], []>} : vector<8x16xf32>, vector<16x8xf32>, vector<8x8xf32> -> vector<8x8xf32>
    %c0_88 = arith.constant 0 : index
    %c0_89 = arith.constant 0 : index
    %227 = vector.load %arg26[%c0_88, %c0_89] : memref<16x32xf32, #tpu.memory_space<vmem>>, vector<8x8xf32>
    tpu.vector_store %arg26[%c0_88, %c0_89], %226 {strides = array<i32>} : memref<16x32xf32, #tpu.memory_space<vmem>>, vector<8x8xf32>,
    %228 = vector.extract_strided_slice %203 {offsets = [0, 8], sizes = [8, 8], strides = [1, 1]} : vector<8x32xf32> to vector<8x8xf32>
    %229 = vector.extract_strided_slice %204 {offsets = [0, 8], sizes = [16, 8], strides = [1, 1]} : vector<16x32xf32> to vector<16x8xf32>
    %230 = vector.extract_strided_slice %205 {offsets = [0, 8], sizes = [16, 8], strides = [1, 1]} : vector<16x32xf32> to vector<16x8xf32>
    %cst_90 = arith.constant dense<0.000000e+00> : vector<8x16xf32>
    %231 = tpu.matmul %228, %229, %cst_90 {dimension_numbers = #tpu.dot_dimension_numbers<[1], [1], [0], [0], [0, 0, 1, 0], [], []>} : vector<8x8xf32>, vector<16x8xf32>, vector<8x16xf32> -> vector<8x16xf32>
    %232 = arith.addf %231, %207 : vector<8x16xf32>
    %cst_91 = arith.constant dense<0xFF800000> : vector<8xf32>
    %233 = vector.multi_reduction <maximumf>, %232, %cst_91 [1] : vector<8x16xf32> to vector<8xf32>
    %234 = vector.shape_cast %233 : vector<8xf32> to vector<8x1xf32>
    %235 = vector.broadcast %234 : vector<8x1xf32> to vector<8x16xf32>
    %236 = arith.subf %232, %235 : vector<8x16xf32>
    %237 = math.exp %236 : vector<8x16xf32>
    %cst_92 = arith.constant dense<0.000000e+00> : vector<8xf32>
    %238 = vector.multi_reduction <add>, %237, %cst_92 [1] : vector<8x16xf32> to vector<8xf32>
    %239 = vector.shape_cast %238 : vector<8xf32> to vector<8x1xf32>
    %240 = tpu.reciprocal %239 {approx = true} : vector<8x1xf32> -> vector<8x1xf32>
    %241 = vector.broadcast %240 : vector<8x1xf32> to vector<8x16xf32>
    %242 = arith.mulf %237, %241 : vector<8x16xf32>
    %c0_93 = arith.constant 0 : index
    %c1 = arith.constant 1 : index
    %c0_94 = arith.constant 0 : index
    %c0_95 = arith.constant 0 : index
    %243 = vector.load %arg25[%c0_93, %c1, %c0_94, %c0_95] : memref<2x4x8x16xf32, #tpu.memory_space<vmem>>, vector<1x1x8x16xf32>
    %244 = vector.shape_cast %243 : vector<1x1x8x16xf32> to vector<8x16xf32>
    %245 = vector.shape_cast %242 : vector<8x16xf32> to vector<1x1x8x16xf32>
    tpu.vector_store %arg25[%c0_93, %c1, %c0_94, %c0_95], %245 {strides = array<i32>} : memref<2x4x8x16xf32, #tpu.memory_space<vmem>>, vector<1x1x8x16xf32>,
    %cst_96 = arith.constant dense<0.000000e+00> : vector<8x8xf32>
    %246 = tpu.matmul %242, %230, %cst_96 {dimension_numbers = #tpu.dot_dimension_numbers<[1], [0], [0], [1], [0, 0, 1, 1], [], []>} : vector<8x16xf32>, vector<16x8xf32>, vector<8x8xf32> -> vector<8x8xf32>
    %c0_97 = arith.constant 0 : index
    %c8_98 = arith.constant 8 : index
    %247 = vector.load %arg26[%c0_97, %c8_98] : memref<16x32xf32, #tpu.memory_space<vmem>>, vector<8x8xf32>
    tpu.vector_store %arg26[%c0_97, %c8_98], %246 {strides = array<i32>} : memref<16x32xf32, #tpu.memory_space<vmem>>, vector<8x8xf32>,
    %248 = vector.extract_strided_slice %203 {offsets = [0, 16], sizes = [8, 8], strides = [1, 1]} : vector<8x32xf32> to vector<8x8xf32>
    %249 = vector.extract_strided_slice %204 {offsets = [0, 16], sizes = [16, 8], strides = [1, 1]} : vector<16x32xf32> to vector<16x8xf32>
    %250 = vector.extract_strided_slice %205 {offsets = [0, 16], sizes = [16, 8], strides = [1, 1]} : vector<16x32xf32> to vector<16x8xf32>
    %cst_99 = arith.constant dense<0.000000e+00> : vector<8x16xf32>
    %251 = tpu.matmul %248, %249, %cst_99 {dimension_numbers = #tpu.dot_dimension_numbers<[1], [1], [0], [0], [0, 0, 1, 0], [], []>} : vector<8x8xf32>, vector<16x8xf32>, vector<8x16xf32> -> vector<8x16xf32>
    %252 = arith.addf %251, %207 : vector<8x16xf32>
    %cst_100 = arith.constant dense<0xFF800000> : vector<8xf32>
    %253 = vector.multi_reduction <maximumf>, %252, %cst_100 [1] : vector<8x16xf32> to vector<8xf32>
    %254 = vector.shape_cast %253 : vector<8xf32> to vector<8x1xf32>
    %255 = vector.broadcast %254 : vector<8x1xf32> to vector<8x16xf32>
    %256 = arith.subf %252, %255 : vector<8x16xf32>
    %257 = math.exp %256 : vector<8x16xf32>
    %cst_101 = arith.constant dense<0.000000e+00> : vector<8xf32>
    %258 = vector.multi_reduction <add>, %257, %cst_101 [1] : vector<8x16xf32> to vector<8xf32>
    %259 = vector.shape_cast %258 : vector<8xf32> to vector<8x1xf32>
    %260 = tpu.reciprocal %259 {approx = true} : vector<8x1xf32> -> vector<8x1xf32>
    %261 = vector.broadcast %260 : vector<8x1xf32> to vector<8x16xf32>
    %262 = arith.mulf %257, %261 : vector<8x16xf32>
    %c0_102 = arith.constant 0 : index
    %c2 = arith.constant 2 : index
    %c0_103 = arith.constant 0 : index
    %c0_104 = arith.constant 0 : index
    %263 = vector.load %arg25[%c0_102, %c2, %c0_103, %c0_104] : memref<2x4x8x16xf32, #tpu.memory_space<vmem>>, vector<1x1x8x16xf32>
    %264 = vector.shape_cast %263 : vector<1x1x8x16xf32> to vector<8x16xf32>
    %265 = vector.shape_cast %262 : vector<8x16xf32> to vector<1x1x8x16xf32>
    tpu.vector_store %arg25[%c0_102, %c2, %c0_103, %c0_104], %265 {strides = array<i32>} : memref<2x4x8x16xf32, #tpu.memory_space<vmem>>, vector<1x1x8x16xf32>,
    %cst_105 = arith.constant dense<0.000000e+00> : vector<8x8xf32>
    %266 = tpu.matmul %262, %250, %cst_105 {dimension_numbers = #tpu.dot_dimension_numbers<[1], [0], [0], [1], [0, 0, 1, 1], [], []>} : vector<8x16xf32>, vector<16x8xf32>, vector<8x8xf32> -> vector<8x8xf32>
    %c0_106 = arith.constant 0 : index
    %c16_107 = arith.constant 16 : index
    %267 = vector.load %arg26[%c0_106, %c16_107] : memref<16x32xf32, #tpu.memory_space<vmem>>, vector<8x8xf32>
    tpu.vector_store %arg26[%c0_106, %c16_107], %266 {strides = array<i32>} : memref<16x32xf32, #tpu.memory_space<vmem>>, vector<8x8xf32>,
    %268 = vector.extract_strided_slice %203 {offsets = [0, 24], sizes = [8, 8], strides = [1, 1]} : vector<8x32xf32> to vector<8x8xf32>
    %269 = vector.extract_strided_slice %204 {offsets = [0, 24], sizes = [16, 8], strides = [1, 1]} : vector<16x32xf32> to vector<16x8xf32>
    %270 = vector.extract_strided_slice %205 {offsets = [0, 24], sizes = [16, 8], strides = [1, 1]} : vector<16x32xf32> to vector<16x8xf32>
    %cst_108 = arith.constant dense<0.000000e+00> : vector<8x16xf32>
    %271 = tpu.matmul %268, %269, %cst_108 {dimension_numbers = #tpu.dot_dimension_numbers<[1], [1], [0], [0], [0, 0, 1, 0], [], []>} : vector<8x8xf32>, vector<16x8xf32>, vector<8x16xf32> -> vector<8x16xf32>
    %272 = arith.addf %271, %207 : vector<8x16xf32>
    %cst_109 = arith.constant dense<0xFF800000> : vector<8xf32>
    %273 = vector.multi_reduction <maximumf>, %272, %cst_109 [1] : vector<8x16xf32> to vector<8xf32>
    %274 = vector.shape_cast %273 : vector<8xf32> to vector<8x1xf32>
    %275 = vector.broadcast %274 : vector<8x1xf32> to vector<8x16xf32>
    %276 = arith.subf %272, %275 : vector<8x16xf32>
    %277 = math.exp %276 : vector<8x16xf32>
    %cst_110 = arith.constant dense<0.000000e+00> : vector<8xf32>
    %278 = vector.multi_reduction <add>, %277, %cst_110 [1] : vector<8x16xf32> to vector<8xf32>
    %279 = vector.shape_cast %278 : vector<8xf32> to vector<8x1xf32>
    %280 = tpu.reciprocal %279 {approx = true} : vector<8x1xf32> -> vector<8x1xf32>
    %281 = vector.broadcast %280 : vector<8x1xf32> to vector<8x16xf32>
    %282 = arith.mulf %277, %281 : vector<8x16xf32>
    %c0_111 = arith.constant 0 : index
    %c3 = arith.constant 3 : index
    %c0_112 = arith.constant 0 : index
    %c0_113 = arith.constant 0 : index
    %283 = vector.load %arg25[%c0_111, %c3, %c0_112, %c0_113] : memref<2x4x8x16xf32, #tpu.memory_space<vmem>>, vector<1x1x8x16xf32>
    %284 = vector.shape_cast %283 : vector<1x1x8x16xf32> to vector<8x16xf32>
    %285 = vector.shape_cast %282 : vector<8x16xf32> to vector<1x1x8x16xf32>
    tpu.vector_store %arg25[%c0_111, %c3, %c0_112, %c0_113], %285 {strides = array<i32>} : memref<2x4x8x16xf32, #tpu.memory_space<vmem>>, vector<1x1x8x16xf32>,
    %cst_114 = arith.constant dense<0.000000e+00> : vector<8x8xf32>
    %286 = tpu.matmul %282, %270, %cst_114 {dimension_numbers = #tpu.dot_dimension_numbers<[1], [0], [0], [1], [0, 0, 1, 1], [], []>} : vector<8x16xf32>, vector<16x8xf32>, vector<8x8xf32> -> vector<8x8xf32>
    %c0_115 = arith.constant 0 : index
    %c24_116 = arith.constant 24 : index
    %287 = vector.load %arg26[%c0_115, %c24_116] : memref<16x32xf32, #tpu.memory_space<vmem>>, vector<8x8xf32>
    tpu.vector_store %arg26[%c0_115, %c24_116], %286 {strides = array<i32>} : memref<16x32xf32, #tpu.memory_space<vmem>>, vector<8x8xf32>,
    %288 = vector.extract_strided_slice %195 {offsets = [8, 0], sizes = [8, 32], strides = [1, 1]} : vector<16x32xf32> to vector<8x32xf32>
    %289 = vector.extract_strided_slice %201 {offsets = [16, 0], sizes = [16, 32], strides = [1, 1]} : vector<32x32xf32> to vector<16x32xf32>
    %290 = vector.extract_strided_slice %202 {offsets = [16, 0], sizes = [16, 32], strides = [1, 1]} : vector<32x32xf32> to vector<16x32xf32>
    %291 = vector.extract_strided_slice %3 {offsets = [1, 0, 0], sizes = [1, 8, 16], strides = [1, 1, 1]} : vector<2x8x16xf32> to vector<1x8x16xf32>
    %292 = vector.shape_cast %291 : vector<1x8x16xf32> to vector<8x16xf32>
    %293 = vector.extract_strided_slice %288 {offsets = [0, 0], sizes = [8, 8], strides = [1, 1]} : vector<8x32xf32> to vector<8x8xf32>
    %294 = vector.extract_strided_slice %289 {offsets = [0, 0], sizes = [16, 8], strides = [1, 1]} : vector<16x32xf32> to vector<16x8xf32>
    %295 = vector.extract_strided_slice %290 {offsets = [0, 0], sizes = [16, 8], strides = [1, 1]} : vector<16x32xf32> to vector<16x8xf32>
    %cst_117 = arith.constant dense<0.000000e+00> : vector<8x16xf32>
    %296 = tpu.matmul %293, %294, %cst_117 {dimension_numbers = #tpu.dot_dimension_numbers<[1], [1], [0], [0], [0, 0, 1, 0], [], []>} : vector<8x8xf32>, vector<16x8xf32>, vector<8x16xf32> -> vector<8x16xf32>
    %297 = arith.addf %296, %292 : vector<8x16xf32>
    %cst_118 = arith.constant dense<0xFF800000> : vector<8xf32>
    %298 = vector.multi_reduction <maximumf>, %297, %cst_118 [1] : vector<8x16xf32> to vector<8xf32>
    %299 = vector.shape_cast %298 : vector<8xf32> to vector<8x1xf32>
    %300 = vector.broadcast %299 : vector<8x1xf32> to vector<8x16xf32>
    %301 = arith.subf %297, %300 : vector<8x16xf32>
    %302 = math.exp %301 : vector<8x16xf32>
    %cst_119 = arith.constant dense<0.000000e+00> : vector<8xf32>
    %303 = vector.multi_reduction <add>, %302, %cst_119 [1] : vector<8x16xf32> to vector<8xf32>
    %304 = vector.shape_cast %303 : vector<8xf32> to vector<8x1xf32>
    %305 = tpu.reciprocal %304 {approx = true} : vector<8x1xf32> -> vector<8x1xf32>
    %306 = vector.broadcast %305 : vector<8x1xf32> to vector<8x16xf32>
    %307 = arith.mulf %302, %306 : vector<8x16xf32>
    %c1_120 = arith.constant 1 : index
    %c0_121 = arith.constant 0 : index
    %c0_122 = arith.constant 0 : index
    %c0_123 = arith.constant 0 : index
    %308 = vector.load %arg25[%c1_120, %c0_121, %c0_122, %c0_123] : memref<2x4x8x16xf32, #tpu.memory_space<vmem>>, vector<1x1x8x16xf32>
    %309 = vector.shape_cast %308 : vector<1x1x8x16xf32> to vector<8x16xf32>
    %310 = vector.shape_cast %307 : vector<8x16xf32> to vector<1x1x8x16xf32>
    tpu.vector_store %arg25[%c1_120, %c0_121, %c0_122, %c0_123], %310 {strides = array<i32>} : memref<2x4x8x16xf32, #tpu.memory_space<vmem>>, vector<1x1x8x16xf32>,
    %cst_124 = arith.constant dense<0.000000e+00> : vector<8x8xf32>
    %311 = tpu.matmul %307, %295, %cst_124 {dimension_numbers = #tpu.dot_dimension_numbers<[1], [0], [0], [1], [0, 0, 1, 1], [], []>} : vector<8x16xf32>, vector<16x8xf32>, vector<8x8xf32> -> vector<8x8xf32>
    %c8_125 = arith.constant 8 : index
    %c0_126 = arith.constant 0 : index
    %312 = vector.load %arg26[%c8_125, %c0_126] : memref<16x32xf32, #tpu.memory_space<vmem>>, vector<8x8xf32>
    tpu.vector_store %arg26[%c8_125, %c0_126], %311 {strides = array<i32>} : memref<16x32xf32, #tpu.memory_space<vmem>>, vector<8x8xf32>,
    %313 = vector.extract_strided_slice %288 {offsets = [0, 8], sizes = [8, 8], strides = [1, 1]} : vector<8x32xf32> to vector<8x8xf32>
    %314 = vector.extract_strided_slice %289 {offsets = [0, 8], sizes = [16, 8], strides = [1, 1]} : vector<16x32xf32> to vector<16x8xf32>
    %315 = vector.extract_strided_slice %290 {offsets = [0, 8], sizes = [16, 8], strides = [1, 1]} : vector<16x32xf32> to vector<16x8xf32>
    %cst_127 = arith.constant dense<0.000000e+00> : vector<8x16xf32>
    %316 = tpu.matmul %313, %314, %cst_127 {dimension_numbers = #tpu.dot_dimension_numbers<[1], [1], [0], [0], [0, 0, 1, 0], [], []>} : vector<8x8xf32>, vector<16x8xf32>, vector<8x16xf32> -> vector<8x16xf32>
    %317 = arith.addf %316, %292 : vector<8x16xf32>
    %cst_128 = arith.constant dense<0xFF800000> : vector<8xf32>
    %318 = vector.multi_reduction <maximumf>, %317, %cst_128 [1] : vector<8x16xf32> to vector<8xf32>
    %319 = vector.shape_cast %318 : vector<8xf32> to vector<8x1xf32>
    %320 = vector.broadcast %319 : vector<8x1xf32> to vector<8x16xf32>
    %321 = arith.subf %317, %320 : vector<8x16xf32>
    %322 = math.exp %321 : vector<8x16xf32>
    %cst_129 = arith.constant dense<0.000000e+00> : vector<8xf32>
    %323 = vector.multi_reduction <add>, %322, %cst_129 [1] : vector<8x16xf32> to vector<8xf32>
    %324 = vector.shape_cast %323 : vector<8xf32> to vector<8x1xf32>
    %325 = tpu.reciprocal %324 {approx = true} : vector<8x1xf32> -> vector<8x1xf32>
    %326 = vector.broadcast %325 : vector<8x1xf32> to vector<8x16xf32>
    %327 = arith.mulf %322, %326 : vector<8x16xf32>
    %c1_130 = arith.constant 1 : index
    %c1_131 = arith.constant 1 : index
    %c0_132 = arith.constant 0 : index
    %c0_133 = arith.constant 0 : index
    %328 = vector.load %arg25[%c1_130, %c1_131, %c0_132, %c0_133] : memref<2x4x8x16xf32, #tpu.memory_space<vmem>>, vector<1x1x8x16xf32>
    %329 = vector.shape_cast %328 : vector<1x1x8x16xf32> to vector<8x16xf32>
    %330 = vector.shape_cast %327 : vector<8x16xf32> to vector<1x1x8x16xf32>
    tpu.vector_store %arg25[%c1_130, %c1_131, %c0_132, %c0_133], %330 {strides = array<i32>} : memref<2x4x8x16xf32, #tpu.memory_space<vmem>>, vector<1x1x8x16xf32>,
    %cst_134 = arith.constant dense<0.000000e+00> : vector<8x8xf32>
    %331 = tpu.matmul %327, %315, %cst_134 {dimension_numbers = #tpu.dot_dimension_numbers<[1], [0], [0], [1], [0, 0, 1, 1], [], []>} : vector<8x16xf32>, vector<16x8xf32>, vector<8x8xf32> -> vector<8x8xf32>
    %c8_135 = arith.constant 8 : index
    %c8_136 = arith.constant 8 : index
    %332 = vector.load %arg26[%c8_135, %c8_136] : memref<16x32xf32, #tpu.memory_space<vmem>>, vector<8x8xf32>
    tpu.vector_store %arg26[%c8_135, %c8_136], %331 {strides = array<i32>} : memref<16x32xf32, #tpu.memory_space<vmem>>, vector<8x8xf32>,
    %333 = vector.extract_strided_slice %288 {offsets = [0, 16], sizes = [8, 8], strides = [1, 1]} : vector<8x32xf32> to vector<8x8xf32>
    %334 = vector.extract_strided_slice %289 {offsets = [0, 16], sizes = [16, 8], strides = [1, 1]} : vector<16x32xf32> to vector<16x8xf32>
    %335 = vector.extract_strided_slice %290 {offsets = [0, 16], sizes = [16, 8], strides = [1, 1]} : vector<16x32xf32> to vector<16x8xf32>
    %cst_137 = arith.constant dense<0.000000e+00> : vector<8x16xf32>
    %336 = tpu.matmul %333, %334, %cst_137 {dimension_numbers = #tpu.dot_dimension_numbers<[1], [1], [0], [0], [0, 0, 1, 0], [], []>} : vector<8x8xf32>, vector<16x8xf32>, vector<8x16xf32> -> vector<8x16xf32>
    %337 = arith.addf %336, %292 : vector<8x16xf32>
    %cst_138 = arith.constant dense<0xFF800000> : vector<8xf32>
    %338 = vector.multi_reduction <maximumf>, %337, %cst_138 [1] : vector<8x16xf32> to vector<8xf32>
    %339 = vector.shape_cast %338 : vector<8xf32> to vector<8x1xf32>
    %340 = vector.broadcast %339 : vector<8x1xf32> to vector<8x16xf32>
    %341 = arith.subf %337, %340 : vector<8x16xf32>
    %342 = math.exp %341 : vector<8x16xf32>
    %cst_139 = arith.constant dense<0.000000e+00> : vector<8xf32>
    %343 = vector.multi_reduction <add>, %342, %cst_139 [1] : vector<8x16xf32> to vector<8xf32>
    %344 = vector.shape_cast %343 : vector<8xf32> to vector<8x1xf32>
    %345 = tpu.reciprocal %344 {approx = true} : vector<8x1xf32> -> vector<8x1xf32>
    %346 = vector.broadcast %345 : vector<8x1xf32> to vector<8x16xf32>
    %347 = arith.mulf %342, %346 : vector<8x16xf32>
    %c1_140 = arith.constant 1 : index
    %c2_141 = arith.constant 2 : index
    %c0_142 = arith.constant 0 : index
    %c0_143 = arith.constant 0 : index
    %348 = vector.load %arg25[%c1_140, %c2_141, %c0_142, %c0_143] : memref<2x4x8x16xf32, #tpu.memory_space<vmem>>, vector<1x1x8x16xf32>
    %349 = vector.shape_cast %348 : vector<1x1x8x16xf32> to vector<8x16xf32>
    %350 = vector.shape_cast %347 : vector<8x16xf32> to vector<1x1x8x16xf32>
    tpu.vector_store %arg25[%c1_140, %c2_141, %c0_142, %c0_143], %350 {strides = array<i32>} : memref<2x4x8x16xf32, #tpu.memory_space<vmem>>, vector<1x1x8x16xf32>,
    %cst_144 = arith.constant dense<0.000000e+00> : vector<8x8xf32>
    %351 = tpu.matmul %347, %335, %cst_144 {dimension_numbers = #tpu.dot_dimension_numbers<[1], [0], [0], [1], [0, 0, 1, 1], [], []>} : vector<8x16xf32>, vector<16x8xf32>, vector<8x8xf32> -> vector<8x8xf32>
    %c8_145 = arith.constant 8 : index
    %c16_146 = arith.constant 16 : index
    %352 = vector.load %arg26[%c8_145, %c16_146] : memref<16x32xf32, #tpu.memory_space<vmem>>, vector<8x8xf32>
    tpu.vector_store %arg26[%c8_145, %c16_146], %351 {strides = array<i32>} : memref<16x32xf32, #tpu.memory_space<vmem>>, vector<8x8xf32>,
    %353 = vector.extract_strided_slice %288 {offsets = [0, 24], sizes = [8, 8], strides = [1, 1]} : vector<8x32xf32> to vector<8x8xf32>
    %354 = vector.extract_strided_slice %289 {offsets = [0, 24], sizes = [16, 8], strides = [1, 1]} : vector<16x32xf32> to vector<16x8xf32>
    %355 = vector.extract_strided_slice %290 {offsets = [0, 24], sizes = [16, 8], strides = [1, 1]} : vector<16x32xf32> to vector<16x8xf32>
    %cst_147 = arith.constant dense<0.000000e+00> : vector<8x16xf32>
    %356 = tpu.matmul %353, %354, %cst_147 {dimension_numbers = #tpu.dot_dimension_numbers<[1], [1], [0], [0], [0, 0, 1, 0], [], []>} : vector<8x8xf32>, vector<16x8xf32>, vector<8x16xf32> -> vector<8x16xf32>
    %357 = arith.addf %356, %292 : vector<8x16xf32>
    %cst_148 = arith.constant dense<0xFF800000> : vector<8xf32>
    %358 = vector.multi_reduction <maximumf>, %357, %cst_148 [1] : vector<8x16xf32> to vector<8xf32>
    %359 = vector.shape_cast %358 : vector<8xf32> to vector<8x1xf32>
    %360 = vector.broadcast %359 : vector<8x1xf32> to vector<8x16xf32>
    %361 = arith.subf %357, %360 : vector<8x16xf32>
    %362 = math.exp %361 : vector<8x16xf32>
    %cst_149 = arith.constant dense<0.000000e+00> : vector<8xf32>
    %363 = vector.multi_reduction <add>, %362, %cst_149 [1] : vector<8x16xf32> to vector<8xf32>
    %364 = vector.shape_cast %363 : vector<8xf32> to vector<8x1xf32>
    %365 = tpu.reciprocal %364 {approx = true} : vector<8x1xf32> -> vector<8x1xf32>
    %366 = vector.broadcast %365 : vector<8x1xf32> to vector<8x16xf32>
    %367 = arith.mulf %362, %366 : vector<8x16xf32>
    %c1_150 = arith.constant 1 : index
    %c3_151 = arith.constant 3 : index
    %c0_152 = arith.constant 0 : index
    %c0_153 = arith.constant 0 : index
    %368 = vector.load %arg25[%c1_150, %c3_151, %c0_152, %c0_153] : memref<2x4x8x16xf32, #tpu.memory_space<vmem>>, vector<1x1x8x16xf32>
    %369 = vector.shape_cast %368 : vector<1x1x8x16xf32> to vector<8x16xf32>
    %370 = vector.shape_cast %367 : vector<8x16xf32> to vector<1x1x8x16xf32>
    tpu.vector_store %arg25[%c1_150, %c3_151, %c0_152, %c0_153], %370 {strides = array<i32>} : memref<2x4x8x16xf32, #tpu.memory_space<vmem>>, vector<1x1x8x16xf32>,
    %cst_154 = arith.constant dense<0.000000e+00> : vector<8x8xf32>
    %371 = tpu.matmul %367, %355, %cst_154 {dimension_numbers = #tpu.dot_dimension_numbers<[1], [0], [0], [1], [0, 0, 1, 1], [], []>} : vector<8x16xf32>, vector<16x8xf32>, vector<8x8xf32> -> vector<8x8xf32>
    %c8_155 = arith.constant 8 : index
    %c24_156 = arith.constant 24 : index
    %372 = vector.load %arg26[%c8_155, %c24_156] : memref<16x32xf32, #tpu.memory_space<vmem>>, vector<8x8xf32>
    tpu.vector_store %arg26[%c8_155, %c24_156], %371 {strides = array<i32>} : memref<16x32xf32, #tpu.memory_space<vmem>>, vector<8x8xf32>,
    %c0_157 = arith.constant 0 : index
    %c0_158 = arith.constant 0 : index
    %373 = vector.load %arg26[%c0_157, %c0_158] : memref<16x32xf32, #tpu.memory_space<vmem>>, vector<16x32xf32>
    %c0_159 = arith.constant 0 : index
    %c0_160 = arith.constant 0 : index
    %374 = vector.load %arg12[%c0_159, %c0_160] : memref<32x32xf32, #tpu.memory_space<vmem>>, vector<32x32xf32>
    %cst_161 = arith.constant dense<0.000000e+00> : vector<16x32xf32>
    %375 = tpu.matmul %373, %374, %cst_161 {dimension_numbers = #tpu.dot_dimension_numbers<[1], [0], [0], [1], [0, 0, 1, 1], [], []>} : vector<16x32xf32>, vector<32x32xf32>, vector<16x32xf32> -> vector<16x32xf32>
    %c0_162 = arith.constant 0 : index
    %c0_163 = arith.constant 0 : index
    %376 = vector.load %arg13[%c0_162, %c0_163] : memref<1x32xf32, #tpu.memory_space<vmem>>, vector<1x32xf32>
    %377 = vector.broadcast %376 : vector<1x32xf32> to vector<16x32xf32>
    %378 = arith.addf %375, %377 : vector<16x32xf32>
    %379 = arith.addf %188, %378 : vector<16x32xf32>
    %c0_164 = arith.constant 0 : index
    %c0_165 = arith.constant 0 : index
    %380 = vector.load %arg14[%c0_164, %c0_165] : memref<1x32xf32, #tpu.memory_space<vmem>>, vector<1x32xf32>
    %c0_166 = arith.constant 0 : index
    %c0_167 = arith.constant 0 : index
    %381 = vector.load %arg15[%c0_166, %c0_167] : memref<1x32xf32, #tpu.memory_space<vmem>>, vector<1x32xf32>
    %cst_168 = arith.constant dense<0.000000e+00> : vector<16xf32>
    %382 = vector.multi_reduction <add>, %379, %cst_168 [1] : vector<16x32xf32> to vector<16xf32>
    %383 = vector.shape_cast %382 : vector<16xf32> to vector<16x1xf32>
    %cst_169 = arith.constant 3.200000e+01 : f32
    %384 = vector.broadcast %cst_169 : f32 to vector<16x1xf32>
    %385 = arith.divf %383, %384 : vector<16x1xf32>
    %386 = vector.broadcast %385 : vector<16x1xf32> to vector<16x32xf32>
    %387 = arith.subf %379, %386 : vector<16x32xf32>
    %388 = arith.mulf %387, %387 : vector<16x32xf32>
    %cst_170 = arith.constant dense<0.000000e+00> : vector<16xf32>
    %389 = vector.multi_reduction <add>, %388, %cst_170 [1] : vector<16x32xf32> to vector<16xf32>
    %390 = vector.shape_cast %389 : vector<16xf32> to vector<16x1xf32>
    %cst_171 = arith.constant 3.200000e+01 : f32
    %391 = vector.broadcast %cst_171 : f32 to vector<16x1xf32>
    %392 = arith.divf %390, %391 : vector<16x1xf32>
    %393 = vector.broadcast %385 : vector<16x1xf32> to vector<16x32xf32>
    %394 = arith.subf %379, %393 : vector<16x32xf32>
    %cst_172 = arith.constant 9.99999974E-6 : f32
    %395 = vector.broadcast %cst_172 : f32 to vector<16x1xf32>
    %396 = arith.addf %392, %395 : vector<16x1xf32>
    %397 = math.rsqrt %396 : vector<16x1xf32>
    %398 = vector.broadcast %397 : vector<16x1xf32> to vector<16x32xf32>
    %399 = arith.mulf %394, %398 : vector<16x32xf32>
    %400 = vector.broadcast %380 : vector<1x32xf32> to vector<16x32xf32>
    %401 = arith.mulf %399, %400 : vector<16x32xf32>
    %402 = vector.broadcast %381 : vector<1x32xf32> to vector<16x32xf32>
    %403 = arith.addf %401, %402 : vector<16x32xf32>
    %c0_173 = arith.constant 0 : index
    %c0_174 = arith.constant 0 : index
    %404 = vector.load %arg16[%c0_173, %c0_174] : memref<32x64xf32, #tpu.memory_space<vmem>>, vector<32x64xf32>
    %cst_175 = arith.constant dense<0.000000e+00> : vector<16x64xf32>
    %405 = tpu.matmul %403, %404, %cst_175 {dimension_numbers = #tpu.dot_dimension_numbers<[1], [0], [0], [1], [0, 0, 1, 1], [], []>} : vector<16x32xf32>, vector<32x64xf32>, vector<16x64xf32> -> vector<16x64xf32>
    %c0_176 = arith.constant 0 : index
    %c0_177 = arith.constant 0 : index
    %406 = vector.load %arg17[%c0_176, %c0_177] : memref<1x64xf32, #tpu.memory_space<vmem>>, vector<1x64xf32>
    %407 = vector.broadcast %406 : vector<1x64xf32> to vector<16x64xf32>
    %408 = arith.addf %405, %407 : vector<16x64xf32>
    %cst_178 = arith.constant 0.000000e+00 : f32
    %409 = vector.broadcast %cst_178 : f32 to vector<16x64xf32>
    %410 = arith.maximumf %408, %409 : vector<16x64xf32>
    %c0_179 = arith.constant 0 : index
    %c0_180 = arith.constant 0 : index
    %411 = vector.load %arg18[%c0_179, %c0_180] : memref<64x32xf32, #tpu.memory_space<vmem>>, vector<64x32xf32>
    %cst_181 = arith.constant dense<0.000000e+00> : vector<16x32xf32>
    %412 = tpu.matmul %410, %411, %cst_181 {dimension_numbers = #tpu.dot_dimension_numbers<[1], [0], [0], [1], [0, 0, 1, 1], [], []>} : vector<16x64xf32>, vector<64x32xf32>, vector<16x32xf32> -> vector<16x32xf32>
    %c0_182 = arith.constant 0 : index
    %c0_183 = arith.constant 0 : index
    %413 = vector.load %arg19[%c0_182, %c0_183] : memref<1x32xf32, #tpu.memory_space<vmem>>, vector<1x32xf32>
    %414 = vector.broadcast %413 : vector<1x32xf32> to vector<16x32xf32>
    %415 = arith.addf %412, %414 : vector<16x32xf32>
    %416 = arith.addf %403, %415 : vector<16x32xf32>
    %c0_184 = arith.constant 0 : index
    %c0_185 = arith.constant 0 : index
    %417 = vector.load %arg20[%c0_184, %c0_185] : memref<1x32xf32, #tpu.memory_space<vmem>>, vector<1x32xf32>
    %c0_186 = arith.constant 0 : index
    %c0_187 = arith.constant 0 : index
    %418 = vector.load %arg21[%c0_186, %c0_187] : memref<1x32xf32, #tpu.memory_space<vmem>>, vector<1x32xf32>
    %cst_188 = arith.constant dense<0.000000e+00> : vector<16xf32>
    %419 = vector.multi_reduction <add>, %416, %cst_188 [1] : vector<16x32xf32> to vector<16xf32>
    %420 = vector.shape_cast %419 : vector<16xf32> to vector<16x1xf32>
    %cst_189 = arith.constant 3.200000e+01 : f32
    %421 = vector.broadcast %cst_189 : f32 to vector<16x1xf32>
    %422 = arith.divf %420, %421 : vector<16x1xf32>
    %423 = vector.broadcast %422 : vector<16x1xf32> to vector<16x32xf32>
    %424 = arith.subf %416, %423 : vector<16x32xf32>
    %425 = arith.mulf %424, %424 : vector<16x32xf32>
    %cst_190 = arith.constant dense<0.000000e+00> : vector<16xf32>
    %426 = vector.multi_reduction <add>, %425, %cst_190 [1] : vector<16x32xf32> to vector<16xf32>
    %427 = vector.shape_cast %426 : vector<16xf32> to vector<16x1xf32>
    %cst_191 = arith.constant 3.200000e+01 : f32
    %428 = vector.broadcast %cst_191 : f32 to vector<16x1xf32>
    %429 = arith.divf %427, %428 : vector<16x1xf32>
    %430 = vector.broadcast %422 : vector<16x1xf32> to vector<16x32xf32>
    %431 = arith.subf %416, %430 : vector<16x32xf32>
    %cst_192 = arith.constant 9.99999974E-6 : f32
    %432 = vector.broadcast %cst_192 : f32 to vector<16x1xf32>
    %433 = arith.addf %429, %432 : vector<16x1xf32>
    %434 = math.rsqrt %433 : vector<16x1xf32>
    %435 = vector.broadcast %434 : vector<16x1xf32> to vector<16x32xf32>
    %436 = arith.mulf %431, %435 : vector<16x32xf32>
    %437 = vector.broadcast %417 : vector<1x32xf32> to vector<16x32xf32>
    %438 = arith.mulf %436, %437 : vector<16x32xf32>
    %439 = vector.broadcast %418 : vector<1x32xf32> to vector<16x32xf32>
    %440 = arith.addf %438, %439 : vector<16x32xf32>
    %c0_193 = arith.constant 0 : index
    %c0_194 = arith.constant 0 : index
    %441 = vector.load %arg22[%c0_193, %c0_194] : memref<32x128xf32, #tpu.memory_space<vmem>>, vector<32x128xf32>
    %cst_195 = arith.constant dense<0.000000e+00> : vector<16x128xf32>
    %442 = tpu.matmul %440, %441, %cst_195 {dimension_numbers = #tpu.dot_dimension_numbers<[1], [0], [0], [1], [0, 0, 1, 1], [], []>} : vector<16x32xf32>, vector<32x128xf32>, vector<16x128xf32> -> vector<16x128xf32>
    %c0_196 = arith.constant 0 : index
    %c0_197 = arith.constant 0 : index
    %443 = vector.load %arg23[%c0_196, %c0_197] : memref<1x128xf32, #tpu.memory_space<vmem>>, vector<1x128xf32>
    %444 = vector.broadcast %443 : vector<1x128xf32> to vector<16x128xf32>
    %445 = arith.addf %442, %444 : vector<16x128xf32>
    %c0_198 = arith.constant 0 : index
    %c0_199 = arith.constant 0 : index
    %446 = vector.load %arg24[%c0_198, %c0_199] : memref<16x128xf32, #tpu.memory_space<vmem>>, vector<16x128xf32>
    tpu.vector_store %arg24[%c0_198, %c0_199], %445 {strides = array<i32>} : memref<16x128xf32, #tpu.memory_space<vmem>>, vector<16x128xf32>,
    return
  }
}

</mosaic_0001>

<llo_original>
// kernel: decoder_forward.3
$region0: #{decoder_forward.3}
  #allocation0 [shape = 'u32[]', space=smem, size = 0x4, offset = 0x4, fixed_abs, tag = 'smem constant byte address 0x4 - core index']
  #allocation1 [shape = 'u32[144,128]{1,0:T(1,128)}', space=vmem, size = 0x12000, scoped, tag = 'internal scratch']
  #allocation2 [shape = 'f32[16,32]{1,0:T(8,128)}', space=vmem, size = 0x2000, scoped, tag = 'scratch operand']
  %s0 = inlined_call_operand.vmem [shape: f32[16,32], index: 0, kind: input, shape index: {}]
  %s1 = inlined_call_operand.vmem [shape: f32[32,32], index: 1, kind: input, shape index: {}]
  %s2 = inlined_call_operand.vmem [shape: f32[2,8,8], index: 2, kind: input, shape index: {}]
  %s3 = inlined_call_operand.vmem [shape: f32[2,8,16], index: 3, kind: input, shape index: {}]
  %s4 = inlined_call_operand.vmem [shape: f32[32,96], index: 4, kind: input, shape index: {}]
  %s5 = inlined_call_operand.vmem [shape: f32[1,96], index: 5, kind: input, shape index: {}]
  %s6 = inlined_call_operand.vmem [shape: f32[32,32], index: 6, kind: input, shape index: {}]
  %s7 = inlined_call_operand.vmem [shape: f32[1,32], index: 7, kind: input, shape index: {}]
  %s8 = inlined_call_operand.vmem [shape: f32[1,32], index: 8, kind: input, shape index: {}]
  %s9 = inlined_call_operand.vmem [shape: f32[1,32], index: 9, kind: input, shape index: {}]
  %s10 = inlined_call_operand.vmem [shape: f32[32,96], index: 10, kind: input, shape index: {}]
  %s11 = inlined_call_operand.vmem [shape: f32[1,96], index: 11, kind: input, shape index: {}]
  %s12 = inlined_call_operand.vmem [shape: f32[32,32], index: 12, kind: input, shape index: {}]
  %s13 = inlined_call_operand.vmem [shape: f32[1,32], index: 13, kind: input, shape index: {}]
  %s14 = inlined_call_operand.vmem [shape: f32[1,32], index: 14, kind: input, shape index: {}]
  %s15 = inlined_call_operand.vmem [shape: f32[1,32], index: 15, kind: input, shape index: {}]
  %s16 = inlined_call_operand.vmem [shape: f32[32,64], index: 16, kind: input, shape index: {}]
  %s17 = inlined_call_operand.vmem [shape: f32[1,64], index: 17, kind: input, shape index: {}]
  %s18 = inlined_call_operand.vmem [shape: f32[64,32], index: 18, kind: input, shape index: {}]
  %s19 = inlined_call_operand.vmem [shape: f32[1,32], index: 19, kind: input, shape index: {}]
  %s20 = inlined_call_operand.vmem [shape: f32[1,32], index: 20, kind: input, shape index: {}]
  %s21 = inlined_call_operand.vmem [shape: f32[1,32], index: 21, kind: input, shape index: {}]
  %s22 = inlined_call_operand.vmem [shape: f32[32,128], index: 22, kind: input, shape index: {}]
  %s23 = inlined_call_operand.vmem [shape: f32[1,128], index: 23, kind: input, shape index: {}]
  %s24 = inlined_call_operand.vmem [shape: f32[16,128], index: 24, kind: output, shape index: {0}]
  %s25 = inlined_call_operand.hbm [shape: f32[2,4,8,16], index: 25, kind: output, shape index: {1}]
  %26 = xla_tuple %s24, %s25
  %s27 = sld [smem:[#allocation0]]
  $region114: #{decoder_forward.3} parent=0
    _
  %s29 = ssub.s32 1, %s27
  %s30 = scalar_select 0, %s29, %s27
  $region1: #{decoder_forward.3} parent=0
    #allocation3 [shape = 'u8[32768]{0}', space=vmem, size = 0x8000, scoped, tag = 'output window, operand 1, single buffered']
    #allocation4 [shape = 's32[1]{0}', space=sflag, size = 0x4, scoped, tag = 'scoped memory for decoder_forward.3']
    %31 = vsyncpa [#allocation4], 0
    // Predicated region
    $region2: #{decoder_forward.3} parent=1 // pred_check
      _
    $region3: #{decoder_forward.3} parent=1 // pred_check_branch
      %33 = sbr.rel (0) target = $region5
    $region4: #{decoder_forward.3} parent=1 // pred_region
      _
    $region5: #{decoder_forward.3} parent=1 // pred_fallthru
      _
    // Predicated region
    $region6: #{decoder_forward.3} parent=1 // pred_check
      _
    $region7: #{decoder_forward.3} parent=1 // pred_check_branch
      %35 = sbr.rel (0) target = $region9
    $region8: #{decoder_forward.3} parent=1 // pred_region
      _
    $region9: #{decoder_forward.3} parent=1 // pred_fallthru
      _
    // Predicated region
    $region10: #{decoder_forward.3} parent=1 // pred_check
      _
    $region11: #{decoder_forward.3} parent=1 // pred_check_branch
      %37 = sbr.rel (0) target = $region13
    $region12: #{decoder_forward.3} parent=1 // pred_region
      _
    $region13: #{decoder_forward.3} parent=1 // pred_fallthru
      _
    // Predicated region
    $region14: #{decoder_forward.3} parent=1 // pred_check
      _
    $region15: #{decoder_forward.3} parent=1 // pred_check_branch
      %39 = sbr.rel (0) target = $region17
    $region16: #{decoder_forward.3} parent=1 // pred_region
      _
    $region17: #{decoder_forward.3} parent=1 // pred_fallthru
      _
    // Predicated region
    $region18: #{decoder_forward.3} parent=1 // pred_check
      _
    $region19: #{decoder_forward.3} parent=1 // pred_check_branch
      %41 = sbr.rel (0) target = $region21
    $region20: #{decoder_forward.3} parent=1 // pred_region
      _
    $region21: #{decoder_forward.3} parent=1 // pred_fallthru
      _
    // Predicated region
    $region22: #{decoder_forward.3} parent=1 // pred_check
      _
    $region23: #{decoder_forward.3} parent=1 // pred_check_branch
      %43 = sbr.rel (0) target = $region25
    $region24: #{decoder_forward.3} parent=1 // pred_region
      _
    $region25: #{decoder_forward.3} parent=1 // pred_fallthru
      _
    // Predicated region
    $region26: #{decoder_forward.3} parent=1 // pred_check
      _
    $region27: #{decoder_forward.3} parent=1 // pred_check_branch
      %45 = sbr.rel (0) target = $region29
    $region28: #{decoder_forward.3} parent=1 // pred_region
      _
    $region29: #{decoder_forward.3} parent=1 // pred_fallthru
      _
    // Predicated region
    $region30: #{decoder_forward.3} parent=1 // pred_check
      _
    $region31: #{decoder_forward.3} parent=1 // pred_check_branch
      %47 = sbr.rel (0) target = $region33
    $region32: #{decoder_forward.3} parent=1 // pred_region
      _
    $region33: #{decoder_forward.3} parent=1 // pred_fallthru
      _
    // Predicated region
    $region34: #{decoder_forward.3} parent=1 // pred_check
      _
    $region35: #{decoder_forward.3} parent=1 // pred_check_branch
      %49 = sbr.rel (0) target = $region37
    $region36: #{decoder_forward.3} parent=1 // pred_region
      _
    $region37: #{decoder_forward.3} parent=1 // pred_fallthru
      _
    // Predicated region
    $region38: #{decoder_forward.3} parent=1 // pred_check
      _
    $region39: #{decoder_forward.3} parent=1 // pred_check_branch
      %51 = sbr.rel (0) target = $region41
    $region40: #{decoder_forward.3} parent=1 // pred_region
      _
    $region41: #{decoder_forward.3} parent=1 // pred_fallthru
      _
    // Predicated region
    $region42: #{decoder_forward.3} parent=1 // pred_check
      _
    $region43: #{decoder_forward.3} parent=1 // pred_check_branch
      %53 = sbr.rel (0) target = $region45
    $region44: #{decoder_forward.3} parent=1 // pred_region
      _
    $region45: #{decoder_forward.3} parent=1 // pred_fallthru
      _
    // Predicated region
    $region46: #{decoder_forward.3} parent=1 // pred_check
      _
    $region47: #{decoder_forward.3} parent=1 // pred_check_branch
      %55 = sbr.rel (0) target = $region49
    $region48: #{decoder_forward.3} parent=1 // pred_region
      _
    $region49: #{decoder_forward.3} parent=1 // pred_fallthru
      _
    // Predicated region
    $region50: #{decoder_forward.3} parent=1 // pred_check
      _
    $region51: #{decoder_forward.3} parent=1 // pred_check_branch
      %57 = sbr.rel (0) target = $region53
    $region52: #{decoder_forward.3} parent=1 // pred_region
      _
    $region53: #{decoder_forward.3} parent=1 // pred_fallthru
      _
    // Predicated region
    $region54: #{decoder_forward.3} parent=1 // pred_check
      _
    $region55: #{decoder_forward.3} parent=1 // pred_check_branch
      %59 = sbr.rel (0) target = $region57
    $region56: #{decoder_forward.3} parent=1 // pred_region
      _
    $region57: #{decoder_forward.3} parent=1 // pred_fallthru
      _
    // Predicated region
    $region58: #{decoder_forward.3} parent=1 // pred_check
      _
    $region59: #{decoder_forward.3} parent=1 // pred_check_branch
      %61 = sbr.rel (0) target = $region61
    $region60: #{decoder_forward.3} parent=1 // pred_region
      _
    $region61: #{decoder_forward.3} parent=1 // pred_fallthru
      _
    // Predicated region
    $region62: #{decoder_forward.3} parent=1 // pred_check
      _
    $region63: #{decoder_forward.3} parent=1 // pred_check_branch
      %63 = sbr.rel (0) target = $region65
    $region64: #{decoder_forward.3} parent=1 // pred_region
      _
    $region65: #{decoder_forward.3} parent=1 // pred_fallthru
      _
    // Predicated region
    $region66: #{decoder_forward.3} parent=1 // pred_check
      _
    $region67: #{decoder_forward.3} parent=1 // pred_check_branch
      %65 = sbr.rel (0) target = $region69
    $region68: #{decoder_forward.3} parent=1 // pred_region
      _
    $region69: #{decoder_forward.3} parent=1 // pred_fallthru
      _
    // Predicated region
    $region70: #{decoder_forward.3} parent=1 // pred_check
      _
    $region71: #{decoder_forward.3} parent=1 // pred_check_branch
      %67 = sbr.rel (0) target = $region73
    $region72: #{decoder_forward.3} parent=1 // pred_region
      _
    $region73: #{decoder_forward.3} parent=1 // pred_fallthru
      _
    // Predicated region
    $region74: #{decoder_forward.3} parent=1 // pred_check
      _
    $region75: #{decoder_forward.3} parent=1 // pred_check_branch
      %69 = sbr.rel (0) target = $region77
    $region76: #{decoder_forward.3} parent=1 // pred_region
      _
    $region77: #{decoder_forward.3} parent=1 // pred_fallthru
      _
    // Predicated region
    $region78: #{decoder_forward.3} parent=1 // pred_check
      _
    $region79: #{decoder_forward.3} parent=1 // pred_check_branch
      %71 = sbr.rel (0) target = $region81
    $region80: #{decoder_forward.3} parent=1 // pred_region
      _
    $region81: #{decoder_forward.3} parent=1 // pred_fallthru
      _
    // Predicated region
    $region82: #{decoder_forward.3} parent=1 // pred_check
      _
    $region83: #{decoder_forward.3} parent=1 // pred_check_branch
      %73 = sbr.rel (0) target = $region85
    $region84: #{decoder_forward.3} parent=1 // pred_region
      _
    $region85: #{decoder_forward.3} parent=1 // pred_fallthru
      _
    // Predicated region
    $region86: #{decoder_forward.3} parent=1 // pred_check
      _
    $region87: #{decoder_forward.3} parent=1 // pred_check_branch
      %75 = sbr.rel (0) target = $region89
    $region88: #{decoder_forward.3} parent=1 // pred_region
      _
    $region89: #{decoder_forward.3} parent=1 // pred_fallthru
      _
    // Predicated region
    $region90: #{decoder_forward.3} parent=1 // pred_check
      _
    $region91: #{decoder_forward.3} parent=1 // pred_check_branch
      %77 = sbr.rel (0) target = $region93
    $region92: #{decoder_forward.3} parent=1 // pred_region
      _
    $region93: #{decoder_forward.3} parent=1 // pred_fallthru
      _
    // Predicated region
    $region94: #{decoder_forward.3} parent=1 // pred_check
      _
    $region95: #{decoder_forward.3} parent=1 // pred_check_branch
      %79 = sbr.rel (0) target = $region97
    $region96: #{decoder_forward.3} parent=1 // pred_region
      _
    $region97: #{decoder_forward.3} parent=1 // pred_fallthru
      _
    %v80 = vld [vmem:[%s0] sm:$0xff]
    %v81 = vld [vmem:[%s0 + $0x8] sm:$0xff]
    %v82 = vld [vmem:[%s1] sm:$0xff]
    %v83 = vld [vmem:[%s1 + $0x8] sm:$0xff]
    %v84 = vld [vmem:[%s1 + $0x10] sm:$0xff]
    %v85 = vld [vmem:[%s1 + $0x18] sm:$0xff]
    %v86 = vld [vmem:[%s2] sm:$0xff]
    %v87 = vld [vmem:[%s2 + $0x8] sm:$0xff]
    %v88 = vld [vmem:[%s3] sm:$0xff]
    %v89 = vld [vmem:[%s3 + $0x8] sm:$0xff]
    %v90 = vld [vmem:[%s4] sm:$0xff]
    %v91 = vld [vmem:[%s4 + $0x8] sm:$0xff]
    %v92 = vld [vmem:[%s4 + $0x10] sm:$0xff]
    %v93 = vld [vmem:[%s4 + $0x18] sm:$0xff]
    %v94 = vld [vmem:[%s5] sm:$0x1]
    %v96 = vlaneseq
    %v97 = vshrl.u32 %v96, 7
    %v98 = vsub.s32 0, %v97
    %v99 = vrot.slane %v94, %v98
    %vm101 = vcmask 261120
    %v103 = vsel %vm101, %v80, 0
    %v106 = vsel %vm101, %v81, 0
    %108 = vmatprep.subr.mxu0 0.0
    %109 = vmatpush1.msra.mxu0 %v90
    %110 = vmatprep.subr.mxu0 0.0
    %111 = vmatpush1.msra.mxu0 %v91
    %112 = vmatprep.subr.mxu0 0.0
    %113 = vmatpush1.msra.mxu0 %v92
    %114 = vmatprep.subr.mxu0 0.0
    %115 = vmatpush1.msra.mxu0 %v93
    %116 = vmatprep.subr.mxu0 0.0
    %117 = vmatpush1.msra.mxu0 0.0
    %118 = vmatprep.subr.mxu0 0.0
    %119 = vmatpush1.msra.mxu0 0.0
    %120 = vmatprep.subr.mxu0 0.0
    %121 = vmatpush1.msra.mxu0 0.0
    %122 = vmatprep.subr.mxu0 0.0
    %123 = vmatpush1.msra.mxu0 0.0
    %124 = vmatprep.subr.mxu0 0.0
    %125 = vmatpush1.msra.mxu0 0.0
    %126 = vmatprep.subr.mxu0 0.0
    %127 = vmatpush1.msra.mxu0 0.0
    %128 = vmatprep.subr.mxu0 0.0
    %129 = vmatpush1.msra.mxu0 0.0
    %130 = vmatprep.subr.mxu0 0.0
    %131 = vmatpush1.msra.mxu0 0.0
    %132 = vmatprep.subr.mxu0 0.0
    %133 = vmatpush1.msra.mxu0 0.0
    %134 = vmatprep.subr.mxu0 0.0
    %135 = vmatpush1.msra.mxu0 0.0
    %136 = vmatprep.subr.mxu0 0.0
    %137 = vmatpush1.msra.mxu0 0.0
    %138 = vmatprep.subr.mxu0 0.0
    %139 = vmatpush1.msra.mxu0 0.0
    %140 = vmatprep.subr.mxu0 0.0
    %141 = vmatpush1.msra.mxu0 0.0
    %142 = vmatprep.subr.mxu0 0.0
    %143 = vmatpush1.msra.mxu0 0.0
    %144 = vmatprep.subr.mxu0 0.0
    %145 = vmatpush1.msra.mxu0 0.0
    %146 = vmatprep.subr.mxu0 0.0
    %147 = vmatpush1.msra.mxu0 0.0
    %148 = vmatprep.subr.mxu0 0.0
    %149 = vmatpush1.msra.mxu0 0.0
    %150 = vmatprep.subr.mxu0 0.0
    %151 = vmatpush1.msra.mxu0 0.0
    %152 = vmatprep.subr.mxu0 0.0
    %153 = vmatpush1.msra.mxu0 0.0
    %154 = vmatprep.subr.mxu0 0.0
    %155 = vmatpush1.msra.mxu0 0.0
    %156 = vmatprep.subr.mxu0 0.0
    %157 = vmatpush1.msra.mxu0 0.0
    %158 = vmatprep.subr.mxu0 0.0
    %159 = vmatpush1.msra.mxu0 0.0
    %160 = vmatprep.subr.mxu0 0.0
    %161 = vmatpush1.msra.mxu0 0.0
    %162 = vmatprep.subr.mxu0 0.0
    %163 = vmatpush1.msra.mxu0 0.0
    %164 = vmatprep.subr.mxu0 0.0
    %165 = vmatpush1.msra.mxu0 0.0
    %166 = vmatprep.subr.mxu0 0.0
    %167 = vmatpush1.msra.mxu0 0.0
    %168 = vmatprep.subr.mxu0 0.0
    %169 = vmatpush1.msra.mxu0 0.0
    %170 = vmatprep.subr.mxu0 0.0
    %171 = vmatpush1.msra.mxu0 0.0
    %172 = vmatprep.mubr.f32.mxu0 0.0
    %173 = vmatmul.mubr.f32.gmra.mrb[0].mxu0 %v103
    %v174 = vpop.f32.mrb[0].mxu0
    %v175 = vadd.f32 %v99, %v174
    %v176 = vpop.f32.mrb[0].mxu0
    %177 = vmatprep.mubr.f32.mxu0 0.0
    %178 = vmatmul.mubr.f32.gmra.mrb[0].mxu0 %v106
    %v179 = vpop.f32.mrb[0].mxu0
    %v180 = vadd.f32 %v99, %v179
    %v181 = vpop.f32.mrb[0].mxu0
    %182 = vdwg.mxu0
    %184 = vrot.lane.b32.xlu0 %v175, 96
    %v185 = vpop.permute.xlu0 %184
    %vm186 = vcmask 64512
    %v187 = vsel %vm186, %v175, 0
    %v189 = vsel %vm186, %v185, 0
    %191 = vmatprep.subr.mxu0 0.0
    %192 = vmatpush1.xpose.msra.mxu0 %v189
    %193 = vmatprep.subr.mxu0 0.0
    %194 = vmatpush1.xpose.msra.mxu0 0.0
    %195 = vmatprep.subr.mxu0 0.0
    %196 = vmatpush1.xpose.msra.mxu0 0.0
    %197 = vmatprep.subr.mxu0 0.0
    %198 = vmatpush1.xpose.msra.mxu0 0.0
    %199 = vmatprep.subr.mxu0 0.0
    %200 = vmatpush1.xpose.msra.mxu0 0.0
    %201 = vmatprep.subr.mxu0 0.0
    %202 = vmatpush1.xpose.msra.mxu0 0.0
    %203 = vmatprep.subr.mxu0 0.0
    %204 = vmatpush1.xpose.msra.mxu0 0.0
    %205 = vmatprep.subr.mxu0 0.0
    %206 = vmatpush1.xpose.msra.mxu0 0.0
    %207 = vmatprep.subr.mxu0 0.0
    %208 = vmatpush1.xpose.msra.mxu0 0.0
    %209 = vmatprep.subr.mxu0 0.0
    %210 = vmatpush1.xpose.msra.mxu0 0.0
    %211 = vmatprep.subr.mxu0 0.0
    %212 = vmatpush1.xpose.msra.mxu0 0.0
    %213 = vmatprep.subr.mxu0 0.0
    %214 = vmatpush1.xpose.msra.mxu0 0.0
    %215 = vmatprep.subr.mxu0 0.0
    %216 = vmatpush1.xpose.msra.mxu0 0.0
    %217 = vmatprep.subr.mxu0 0.0
    %218 = vmatpush1.xpose.msra.mxu0 0.0
    %219 = vmatprep.subr.mxu0 0.0
    %220 = vmatpush1.xpose.msra.mxu0 0.0
    %221 = vmatprep.subr.mxu0 0.0
    %222 = vmatpush1.xpose.msra.mxu0 0.0
    %223 = vmatprep.subr.mxu0 0.0
    %224 = vmatpush1.xpose.msra.mxu0 0.0
    %225 = vmatprep.subr.mxu0 0.0
    %226 = vmatpush1.xpose.msra.mxu0 0.0
    %227 = vmatprep.subr.mxu0 0.0
    %228 = vmatpush1.xpose.msra.mxu0 0.0
    %229 = vmatprep.subr.mxu0 0.0
    %230 = vmatpush1.xpose.msra.mxu0 0.0
    %231 = vmatprep.subr.mxu0 0.0
    %232 = vmatpush1.xpose.msra.mxu0 0.0
    %233 = vmatprep.subr.mxu0 0.0
    %234 = vmatpush1.xpose.msra.mxu0 0.0
    %235 = vmatprep.subr.mxu0 0.0
    %236 = vmatpush1.xpose.msra.mxu0 0.0
    %237 = vmatprep.subr.mxu0 0.0
    %238 = vmatpush1.xpose.msra.mxu0 0.0
    %239 = vmatprep.subr.mxu0 0.0
    %240 = vmatpush1.xpose.msra.mxu0 0.0
    %241 = vmatprep.subr.mxu0 0.0
    %242 = vmatpush1.xpose.msra.mxu0 0.0
    %243 = vmatprep.subr.mxu0 0.0
    %244 = vmatpush1.xpose.msra.mxu0 0.0
    %245 = vmatprep.subr.mxu0 0.0
    %246 = vmatpush1.xpose.msra.mxu0 0.0
    %247 = vmatprep.subr.mxu0 0.0
    %248 = vmatpush1.xpose.msra.mxu0 0.0
    %249 = vmatprep.subr.mxu0 0.0
    %250 = vmatpush1.xpose.msra.mxu0 0.0
    %251 = vmatprep.subr.mxu0 0.0
    %252 = vmatpush1.xpose.msra.mxu0 0.0
    %253 = vmatprep.subr.mxu0 0.0
    %254 = vmatpush1.xpose.msra.mxu0 0.0
    %255 = vmatprep.mubr.f32.mxu0 0.0
    %256 = vmatmul.mubr.f32.gmra.mrb[0].mxu0 %v187
    %v257 = vpop.f32.mrb[0].mxu0
    %v258 = vadd.f32 %v86, %v257
    %v259 = vpop.f32.mrb[0].mxu0
    %260 = vdwg.mxu0
    %v261 = vsel %vm186, %v258, -inf
    %262 = vmax.xlane.f32.xlu0 %v261
    %v263 = vpop.xlane.xlu0 %262
    %v264 = vsub.f32 %v258, %v263
    %v265 = vmul.f32 %v264, 1.442695
    %v266 = vpow.pop %v265
    %v267 = vsel %vm186, %v266, 0.0
    %268 = vadd.xlane.f32.xlu0 %v267
    %v269 = vpop.xlane.xlu0 %268
    %v270 = vrcp.pop %v269
    %v271 = vmul.f32 %v266, %v270
    %272 = vrot.lane.b32.xlu0 %v175, 64
    %v273 = vpop.permute.xlu0 %272
    %v276 = vsel %vm186, %v271, 0
    %278 = vmatprep.subr.mxu0 0.0
    %279 = vmatpush1.msra.mxu0 %v273
    %280 = vmatprep.subr.mxu0 0.0
    %281 = vmatpush1.msra.mxu0 0.0
    %282 = vmatprep.subr.mxu0 0.0
    %283 = vmatpush1.msra.mxu0 0.0
    %284 = vmatprep.subr.mxu0 0.0
    %285 = vmatpush1.msra.mxu0 0.0
    %286 = vmatprep.subr.mxu0 0.0
    %287 = vmatpush1.msra.mxu0 0.0
    %288 = vmatprep.subr.mxu0 0.0
    %289 = vmatpush1.msra.mxu0 0.0
    %290 = vmatprep.subr.mxu0 0.0
    %291 = vmatpush1.msra.mxu0 0.0
    %292 = vmatprep.subr.mxu0 0.0
    %293 = vmatpush1.msra.mxu0 0.0
    %294 = vmatprep.subr.mxu0 0.0
    %295 = vmatpush1.msra.mxu0 0.0
    %296 = vmatprep.subr.mxu0 0.0
    %297 = vmatpush1.msra.mxu0 0.0
    %298 = vmatprep.subr.mxu0 0.0
    %299 = vmatpush1.msra.mxu0 0.0
    %300 = vmatprep.subr.mxu0 0.0
    %301 = vmatpush1.msra.mxu0 0.0
    %302 = vmatprep.subr.mxu0 0.0
    %303 = vmatpush1.msra.mxu0 0.0
    %304 = vmatprep.subr.mxu0 0.0
    %305 = vmatpush1.msra.mxu0 0.0
    %306 = vmatprep.subr.mxu0 0.0
    %307 = vmatpush1.msra.mxu0 0.0
    %308 = vmatprep.subr.mxu0 0.0
    %309 = vmatpush1.msra.mxu0 0.0
    %310 = vmatprep.subr.mxu0 0.0
    %311 = vmatpush1.msra.mxu0 0.0
    %312 = vmatprep.subr.mxu0 0.0
    %313 = vmatpush1.msra.mxu0 0.0
    %314 = vmatprep.subr.mxu0 0.0
    %315 = vmatpush1.msra.mxu0 0.0
    %316 = vmatprep.subr.mxu0 0.0
    %317 = vmatpush1.msra.mxu0 0.0
    %318 = vmatprep.subr.mxu0 0.0
    %319 = vmatpush1.msra.mxu0 0.0
    %320 = vmatprep.subr.mxu0 0.0
    %321 = vmatpush1.msra.mxu0 0.0
    %322 = vmatprep.subr.mxu0 0.0
    %323 = vmatpush1.msra.mxu0 0.0
    %324 = vmatprep.subr.mxu0 0.0
    %325 = vmatpush1.msra.mxu0 0.0
    %326 = vmatprep.subr.mxu0 0.0
    %327 = vmatpush1.msra.mxu0 0.0
    %328 = vmatprep.subr.mxu0 0.0
    %329 = vmatpush1.msra.mxu0 0.0
    %330 = vmatprep.subr.mxu0 0.0
    %331 = vmatpush1.msra.mxu0 0.0
    %332 = vmatprep.subr.mxu0 0.0
    %333 = vmatpush1.msra.mxu0 0.0
    %334 = vmatprep.subr.mxu0 0.0
    %335 = vmatpush1.msra.mxu0 0.0
    %336 = vmatprep.subr.mxu0 0.0
    %337 = vmatpush1.msra.mxu0 0.0
    %338 = vmatprep.subr.mxu0 0.0
    %339 = vmatpush1.msra.mxu0 0.0
    %340 = vmatprep.subr.mxu0 0.0
    %341 = vmatpush1.msra.mxu0 0.0
    %342 = vmatprep.mubr.f32.mxu0 0.0
    %343 = vmatmul.mubr.f32.gmra.mrb[0].mxu0 %v276
    %v344 = vpop.f32.mrb[0].mxu0
    %v345 = vadd.f32 0.0, %v344
    %v346 = vpop.f32.mrb[0].mxu0
    %347 = vdwg.mxu0
    %348 = vst.msk [vmem:[#allocation2] sm:$0xff] %vm186, %v345
    %349 = vrot.lane.b32.xlu0 %v175, 120
    %v350 = vpop.permute.xlu0 %349
    %351 = vrot.lane.b32.xlu0 %v175, 88
    %v352 = vpop.permute.xlu0 %351
    %v353 = vsel %vm186, %v350, 0
    %v355 = vsel %vm186, %v352, 0
    %357 = vmatprep.subr.mxu0 0.0
    %358 = vmatpush1.xpose.msra.mxu0 %v355
    %359 = vmatprep.subr.mxu0 0.0
    %360 = vmatpush1.xpose.msra.mxu0 0.0
    %361 = vmatprep.subr.mxu0 0.0
    %362 = vmatpush1.xpose.msra.mxu0 0.0
    %363 = vmatprep.subr.mxu0 0.0
    %364 = vmatpush1.xpose.msra.mxu0 0.0
    %365 = vmatprep.subr.mxu0 0.0
    %366 = vmatpush1.xpose.msra.mxu0 0.0
    %367 = vmatprep.subr.mxu0 0.0
    %368 = vmatpush1.xpose.msra.mxu0 0.0
    %369 = vmatprep.subr.mxu0 0.0
    %370 = vmatpush1.xpose.msra.mxu0 0.0
    %371 = vmatprep.subr.mxu0 0.0
    %372 = vmatpush1.xpose.msra.mxu0 0.0
    %373 = vmatprep.subr.mxu0 0.0
    %374 = vmatpush1.xpose.msra.mxu0 0.0
    %375 = vmatprep.subr.mxu0 0.0
    %376 = vmatpush1.xpose.msra.mxu0 0.0
    %377 = vmatprep.subr.mxu0 0.0
    %378 = vmatpush1.xpose.msra.mxu0 0.0
    %379 = vmatprep.subr.mxu0 0.0
    %380 = vmatpush1.xpose.msra.mxu0 0.0
    %381 = vmatprep.subr.mxu0 0.0
    %382 = vmatpush1.xpose.msra.mxu0 0.0
    %383 = vmatprep.subr.mxu0 0.0
    %384 = vmatpush1.xpose.msra.mxu0 0.0
    %385 = vmatprep.subr.mxu0 0.0
    %386 = vmatpush1.xpose.msra.mxu0 0.0
    %387 = vmatprep.subr.mxu0 0.0
    %388 = vmatpush1.xpose.msra.mxu0 0.0
    %389 = vmatprep.subr.mxu0 0.0
    %390 = vmatpush1.xpose.msra.mxu0 0.0
    %391 = vmatprep.subr.mxu0 0.0
    %392 = vmatpush1.xpose.msra.mxu0 0.0
    %393 = vmatprep.subr.mxu0 0.0
    %394 = vmatpush1.xpose.msra.mxu0 0.0
    %395 = vmatprep.subr.mxu0 0.0
    %396 = vmatpush1.xpose.msra.mxu0 0.0
    %397 = vmatprep.subr.mxu0 0.0
    %398 = vmatpush1.xpose.msra.mxu0 0.0
    %399 = vmatprep.subr.mxu0 0.0
    %400 = vmatpush1.xpose.msra.mxu0 0.0
    %401 = vmatprep.subr.mxu0 0.0
    %402 = vmatpush1.xpose.msra.mxu0 0.0
    %403 = vmatprep.subr.mxu0 0.0
    %404 = vmatpush1.xpose.msra.mxu0 0.0
    %405 = vmatprep.subr.mxu0 0.0
    %406 = vmatpush1.xpose.msra.mxu0 0.0
    %407 = vmatprep.subr.mxu0 0.0
    %408 = vmatpush1.xpose.msra.mxu0 0.0
    %409 = vmatprep.subr.mxu0 0.0
    %410 = vmatpush1.xpose.msra.mxu0 0.0
    %411 = vmatprep.subr.mxu0 0.0
    %412 = vmatpush1.xpose.msra.mxu0 0.0
    %413 = vmatprep.subr.mxu0 0.0
    %414 = vmatpush1.xpose.msra.mxu0 0.0
    %415 = vmatprep.subr.mxu0 0.0
    %416 = vmatpush1.xpose.msra.mxu0 0.0
    %417 = vmatprep.subr.mxu0 0.0
    %418 = vmatpush1.xpose.msra.mxu0 0.0
    %419 = vmatprep.subr.mxu0 0.0
    %420 = vmatpush1.xpose.msra.mxu0 0.0
    %421 = vmatprep.mubr.f32.mxu0 0.0
    %422 = vmatmul.mubr.f32.gmra.mrb[0].mxu0 %v353
    %v423 = vpop.f32.mrb[0].mxu0
    %v424 = vadd.f32 %v86, %v423
    %v425 = vpop.f32.mrb[0].mxu0
    %426 = vdwg.mxu0
    %v427 = vsel %vm186, %v424, -inf
    %428 = vmax.xlane.f32.xlu0 %v427
    %v429 = vpop.xlane.xlu0 %428
    %v430 = vsub.f32 %v424, %v429
    %v431 = vmul.f32 %v430, 1.442695
    %v432 = vpow.pop %v431
    %v433 = vsel %vm186, %v432, 0.0
    %434 = vadd.xlane.f32.xlu0 %v433
    %v435 = vpop.xlane.xlu0 %434
    %v436 = vrcp.pop %v435
    %v437 = vmul.f32 %v432, %v436
    %438 = vrot.lane.b32.xlu0 %v175, 56
    %v439 = vpop.permute.xlu0 %438
    %v442 = vsel %vm186, %v437, 0
    %444 = vmatprep.subr.mxu0 0.0
    %445 = vmatpush1.msra.mxu0 %v439
    %446 = vmatprep.subr.mxu0 0.0
    %447 = vmatpush1.msra.mxu0 0.0
    %448 = vmatprep.subr.mxu0 0.0
    %449 = vmatpush1.msra.mxu0 0.0
    %450 = vmatprep.subr.mxu0 0.0
    %451 = vmatpush1.msra.mxu0 0.0
    %452 = vmatprep.subr.mxu0 0.0
    %453 = vmatpush1.msra.mxu0 0.0
    %454 = vmatprep.subr.mxu0 0.0
    %455 = vmatpush1.msra.mxu0 0.0
    %456 = vmatprep.subr.mxu0 0.0
    %457 = vmatpush1.msra.mxu0 0.0
    %458 = vmatprep.subr.mxu0 0.0
    %459 = vmatpush1.msra.mxu0 0.0
    %460 = vmatprep.subr.mxu0 0.0
    %461 = vmatpush1.msra.mxu0 0.0
    %462 = vmatprep.subr.mxu0 0.0
    %463 = vmatpush1.msra.mxu0 0.0
    %464 = vmatprep.subr.mxu0 0.0
    %465 = vmatpush1.msra.mxu0 0.0
    %466 = vmatprep.subr.mxu0 0.0
    %467 = vmatpush1.msra.mxu0 0.0
    %468 = vmatprep.subr.mxu0 0.0
    %469 = vmatpush1.msra.mxu0 0.0
    %470 = vmatprep.subr.mxu0 0.0
    %471 = vmatpush1.msra.mxu0 0.0
    %472 = vmatprep.subr.mxu0 0.0
    %473 = vmatpush1.msra.mxu0 0.0
    %474 = vmatprep.subr.mxu0 0.0
    %475 = vmatpush1.msra.mxu0 0.0
    %476 = vmatprep.subr.mxu0 0.0
    %477 = vmatpush1.msra.mxu0 0.0
    %478 = vmatprep.subr.mxu0 0.0
    %479 = vmatpush1.msra.mxu0 0.0
    %480 = vmatprep.subr.mxu0 0.0
    %481 = vmatpush1.msra.mxu0 0.0
    %482 = vmatprep.subr.mxu0 0.0
    %483 = vmatpush1.msra.mxu0 0.0
    %484 = vmatprep.subr.mxu0 0.0
    %485 = vmatpush1.msra.mxu0 0.0
    %486 = vmatprep.subr.mxu0 0.0
    %487 = vmatpush1.msra.mxu0 0.0
    %488 = vmatprep.subr.mxu0 0.0
    %489 = vmatpush1.msra.mxu0 0.0
    %490 = vmatprep.subr.mxu0 0.0
    %491 = vmatpush1.msra.mxu0 0.0
    %492 = vmatprep.subr.mxu0 0.0
    %493 = vmatpush1.msra.mxu0 0.0
    %494 = vmatprep.subr.mxu0 0.0
    %495 = vmatpush1.msra.mxu0 0.0
    %496 = vmatprep.subr.mxu0 0.0
    %497 = vmatpush1.msra.mxu0 0.0
    %498 = vmatprep.subr.mxu0 0.0
    %499 = vmatpush1.msra.mxu0 0.0
    %500 = vmatprep.subr.mxu0 0.0
    %501 = vmatpush1.msra.mxu0 0.0
    %502 = vmatprep.subr.mxu0 0.0
    %503 = vmatpush1.msra.mxu0 0.0
    %504 = vmatprep.subr.mxu0 0.0
    %505 = vmatpush1.msra.mxu0 0.0
    %506 = vmatprep.subr.mxu0 0.0
    %507 = vmatpush1.msra.mxu0 0.0
    %508 = vmatprep.mubr.f32.mxu0 0.0
    %509 = vmatmul.mubr.f32.gmra.mrb[0].mxu0 %v442
    %v510 = vpop.f32.mrb[0].mxu0
    %v511 = vadd.f32 0.0, %v510
    %v512 = vpop.f32.mrb[0].mxu0
    %513 = vdwg.mxu0
    %515 = vrot.lane.b32.xlu0 %v511, 8
    %v516 = vpop.permute.xlu0 %515
    %vm518 = vcmask 130112
    %519 = vst.msk [vmem:[#allocation2] sm:$0xff] %vm518, %v516
    %520 = vrot.lane.b32.xlu0 %v175, 112
    %v521 = vpop.permute.xlu0 %520
    %522 = vrot.lane.b32.xlu0 %v175, 80
    %v523 = vpop.permute.xlu0 %522
    %v524 = vsel %vm186, %v521, 0
    %v526 = vsel %vm186, %v523, 0
    %528 = vmatprep.subr.mxu0 0.0
    %529 = vmatpush1.xpose.msra.mxu0 %v526
    %530 = vmatprep.subr.mxu0 0.0
    %531 = vmatpush1.xpose.msra.mxu0 0.0
    %532 = vmatprep.subr.mxu0 0.0
    %533 = vmatpush1.xpose.msra.mxu0 0.0
    %534 = vmatprep.subr.mxu0 0.0
    %535 = vmatpush1.xpose.msra.mxu0 0.0
    %536 = vmatprep.subr.mxu0 0.0
    %537 = vmatpush1.xpose.msra.mxu0 0.0
    %538 = vmatprep.subr.mxu0 0.0
    %539 = vmatpush1.xpose.msra.mxu0 0.0
    %540 = vmatprep.subr.mxu0 0.0
    %541 = vmatpush1.xpose.msra.mxu0 0.0
    %542 = vmatprep.subr.mxu0 0.0
    %543 = vmatpush1.xpose.msra.mxu0 0.0
    %544 = vmatprep.subr.mxu0 0.0
    %545 = vmatpush1.xpose.msra.mxu0 0.0
    %546 = vmatprep.subr.mxu0 0.0
    %547 = vmatpush1.xpose.msra.mxu0 0.0
    %548 = vmatprep.subr.mxu0 0.0
    %549 = vmatpush1.xpose.msra.mxu0 0.0
    %550 = vmatprep.subr.mxu0 0.0
    %551 = vmatpush1.xpose.msra.mxu0 0.0
    %552 = vmatprep.subr.mxu0 0.0
    %553 = vmatpush1.xpose.msra.mxu0 0.0
    %554 = vmatprep.subr.mxu0 0.0
    %555 = vmatpush1.xpose.msra.mxu0 0.0
    %556 = vmatprep.subr.mxu0 0.0
    %557 = vmatpush1.xpose.msra.mxu0 0.0
    %558 = vmatprep.subr.mxu0 0.0
    %559 = vmatpush1.xpose.msra.mxu0 0.0
    %560 = vmatprep.subr.mxu0 0.0
    %561 = vmatpush1.xpose.msra.mxu0 0.0
    %562 = vmatprep.subr.mxu0 0.0
    %563 = vmatpush1.xpose.msra.mxu0 0.0
    %564 = vmatprep.subr.mxu0 0.0
    %565 = vmatpush1.xpose.msra.mxu0 0.0
    %566 = vmatprep.subr.mxu0 0.0
    %567 = vmatpush1.xpose.msra.mxu0 0.0
    %568 = vmatprep.subr.mxu0 0.0
    %569 = vmatpush1.xpose.msra.mxu0 0.0
    %570 = vmatprep.subr.mxu0 0.0
    %571 = vmatpush1.xpose.msra.mxu0 0.0
    %572 = vmatprep.subr.mxu0 0.0
    %573 = vmatpush1.xpose.msra.mxu0 0.0
    %574 = vmatprep.subr.mxu0 0.0
    %575 = vmatpush1.xpose.msra.mxu0 0.0
    %576 = vmatprep.subr.mxu0 0.0
    %577 = vmatpush1.xpose.msra.mxu0 0.0
    %578 = vmatprep.subr.mxu0 0.0
    %579 = vmatpush1.xpose.msra.mxu0 0.0
    %580 = vmatprep.subr.mxu0 0.0
    %581 = vmatpush1.xpose.msra.mxu0 0.0
    %582 = vmatprep.subr.mxu0 0.0
    %583 = vmatpush1.xpose.msra.mxu0 0.0
    %584 = vmatprep.subr.mxu0 0.0
    %585 = vmatpush1.xpose.msra.mxu0 0.0
    %586 = vmatprep.subr.mxu0 0.0
    %587 = vmatpush1.xpose.msra.mxu0 0.0
    %588 = vmatprep.subr.mxu0 0.0
    %589 = vmatpush1.xpose.msra.mxu0 0.0
    %590 = vmatprep.subr.mxu0 0.0
    %591 = vmatpush1.xpose.msra.mxu0 0.0
    %592 = vmatprep.mubr.f32.mxu0 0.0
    %593 = vmatmul.mubr.f32.gmra.mrb[0].mxu0 %v524
    %v594 = vpop.f32.mrb[0].mxu0
    %v595 = vadd.f32 %v86, %v594
    %v596 = vpop.f32.mrb[0].mxu0
    %597 = vdwg.mxu0
    %v598 = vsel %vm186, %v595, -inf
    %599 = vmax.xlane.f32.xlu0 %v598
    %v600 = vpop.xlane.xlu0 %599
    %v601 = vsub.f32 %v595, %v600
    %v602 = vmul.f32 %v601, 1.442695
    %v603 = vpow.pop %v602
    %v604 = vsel %vm186, %v603, 0.0
    %605 = vadd.xlane.f32.xlu0 %v604
    %v606 = vpop.xlane.xlu0 %605
    %v607 = vrcp.pop %v606
    %v608 = vmul.f32 %v603, %v607
    %609 = vrot.lane.b32.xlu0 %v175, 48
    %v610 = vpop.permute.xlu0 %609
    %v613 = vsel %vm186, %v608, 0
    %615 = vmatprep.subr.mxu0 0.0
    %616 = vmatpush1.msra.mxu0 %v610
    %617 = vmatprep.subr.mxu0 0.0
    %618 = vmatpush1.msra.mxu0 0.0
    %619 = vmatprep.subr.mxu0 0.0
    %620 = vmatpush1.msra.mxu0 0.0
    %621 = vmatprep.subr.mxu0 0.0
    %622 = vmatpush1.msra.mxu0 0.0
    %623 = vmatprep.subr.mxu0 0.0
    %624 = vmatpush1.msra.mxu0 0.0
    %625 = vmatprep.subr.mxu0 0.0
    %626 = vmatpush1.msra.mxu0 0.0
    %627 = vmatprep.subr.mxu0 0.0
    %628 = vmatpush1.msra.mxu0 0.0
    %629 = vmatprep.subr.mxu0 0.0
    %630 = vmatpush1.msra.mxu0 0.0
    %631 = vmatprep.subr.mxu0 0.0
    %632 = vmatpush1.msra.mxu0 0.0
    %633 = vmatprep.subr.mxu0 0.0
    %634 = vmatpush1.msra.mxu0 0.0
    %635 = vmatprep.subr.mxu0 0.0
    %636 = vmatpush1.msra.mxu0 0.0
    %637 = vmatprep.subr.mxu0 0.0
    %638 = vmatpush1.msra.mxu0 0.0
    %639 = vmatprep.subr.mxu0 0.0
    %640 = vmatpush1.msra.mxu0 0.0
    %641 = vmatprep.subr.mxu0 0.0
    %642 = vmatpush1.msra.mxu0 0.0
    %643 = vmatprep.subr.mxu0 0.0
    %644 = vmatpush1.msra.mxu0 0.0
    %645 = vmatprep.subr.mxu0 0.0
    %646 = vmatpush1.msra.mxu0 0.0
    %647 = vmatprep.subr.mxu0 0.0
    %648 = vmatpush1.msra.mxu0 0.0
    %649 = vmatprep.subr.mxu0 0.0
    %650 = vmatpush1.msra.mxu0 0.0
    %651 = vmatprep.subr.mxu0 0.0
    %652 = vmatpush1.msra.mxu0 0.0
    %653 = vmatprep.subr.mxu0 0.0
    %654 = vmatpush1.msra.mxu0 0.0
    %655 = vmatprep.subr.mxu0 0.0
    %656 = vmatpush1.msra.mxu0 0.0
    %657 = vmatprep.subr.mxu0 0.0
    %658 = vmatpush1.msra.mxu0 0.0
    %659 = vmatprep.subr.mxu0 0.0
    %660 = vmatpush1.msra.mxu0 0.0
    %661 = vmatprep.subr.mxu0 0.0
    %662 = vmatpush1.msra.mxu0 0.0
    %663 = vmatprep.subr.mxu0 0.0
    %664 = vmatpush1.msra.mxu0 0.0
    %665 = vmatprep.subr.mxu0 0.0
    %666 = vmatpush1.msra.mxu0 0.0
    %667 = vmatprep.subr.mxu0 0.0
    %668 = vmatpush1.msra.mxu0 0.0
    %669 = vmatprep.subr.mxu0 0.0
    %670 = vmatpush1.msra.mxu0 0.0
    %671 = vmatprep.subr.mxu0 0.0
    %672 = vmatpush1.msra.mxu0 0.0
    %673 = vmatprep.subr.mxu0 0.0
    %674 = vmatpush1.msra.mxu0 0.0
    %675 = vmatprep.subr.mxu0 0.0
    %676 = vmatpush1.msra.mxu0 0.0
    %677 = vmatprep.subr.mxu0 0.0
    %678 = vmatpush1.msra.mxu0 0.0
    %679 = vmatprep.mubr.f32.mxu0 0.0
    %680 = vmatmul.mubr.f32.gmra.mrb[0].mxu0 %v613
    %v681 = vpop.f32.mrb[0].mxu0
    %v682 = vadd.f32 0.0, %v681
    %v683 = vpop.f32.mrb[0].mxu0
    %684 = vdwg.mxu0
    %686 = vrot.lane.b32.xlu0 %v682, 16
    %v687 = vpop.permute.xlu0 %686
    %vm689 = vcmask 195712
    %690 = vst.msk [vmem:[#allocation2] sm:$0xff] %vm689, %v687
    %691 = vrot.lane.b32.xlu0 %v175, 104
    %v692 = vpop.permute.xlu0 %691
    %693 = vrot.lane.b32.xlu0 %v175, 72
    %v694 = vpop.permute.xlu0 %693
    %v695 = vsel %vm186, %v692, 0
    %v697 = vsel %vm186, %v694, 0
    %699 = vmatprep.subr.mxu0 0.0
    %700 = vmatpush1.xpose.msra.mxu0 %v697
    %701 = vmatprep.subr.mxu0 0.0
    %702 = vmatpush1.xpose.msra.mxu0 0.0
    %703 = vmatprep.subr.mxu0 0.0
    %704 = vmatpush1.xpose.msra.mxu0 0.0
    %705 = vmatprep.subr.mxu0 0.0
    %706 = vmatpush1.xpose.msra.mxu0 0.0
    %707 = vmatprep.subr.mxu0 0.0
    %708 = vmatpush1.xpose.msra.mxu0 0.0
    %709 = vmatprep.subr.mxu0 0.0
    %710 = vmatpush1.xpose.msra.mxu0 0.0
    %711 = vmatprep.subr.mxu0 0.0
    %712 = vmatpush1.xpose.msra.mxu0 0.0
    %713 = vmatprep.subr.mxu0 0.0
    %714 = vmatpush1.xpose.msra.mxu0 0.0
    %715 = vmatprep.subr.mxu0 0.0
    %716 = vmatpush1.xpose.msra.mxu0 0.0
    %717 = vmatprep.subr.mxu0 0.0
    %718 = vmatpush1.xpose.msra.mxu0 0.0
    %719 = vmatprep.subr.mxu0 0.0
    %720 = vmatpush1.xpose.msra.mxu0 0.0
    %721 = vmatprep.subr.mxu0 0.0
    %722 = vmatpush1.xpose.msra.mxu0 0.0
    %723 = vmatprep.subr.mxu0 0.0
    %724 = vmatpush1.xpose.msra.mxu0 0.0
    %725 = vmatprep.subr.mxu0 0.0
    %726 = vmatpush1.xpose.msra.mxu0 0.0
    %727 = vmatprep.subr.mxu0 0.0
    %728 = vmatpush1.xpose.msra.mxu0 0.0
    %729 = vmatprep.subr.mxu0 0.0
    %730 = vmatpush1.xpose.msra.mxu0 0.0
    %731 = vmatprep.subr.mxu0 0.0
    %732 = vmatpush1.xpose.msra.mxu0 0.0
    %733 = vmatprep.subr.mxu0 0.0
    %734 = vmatpush1.xpose.msra.mxu0 0.0
    %735 = vmatprep.subr.mxu0 0.0
    %736 = vmatpush1.xpose.msra.mxu0 0.0
    %737 = vmatprep.subr.mxu0 0.0
    %738 = vmatpush1.xpose.msra.mxu0 0.0
    %739 = vmatprep.subr.mxu0 0.0
    %740 = vmatpush1.xpose.msra.mxu0 0.0
    %741 = vmatprep.subr.mxu0 0.0
    %742 = vmatpush1.xpose.msra.mxu0 0.0
    %743 = vmatprep.subr.mxu0 0.0
    %744 = vmatpush1.xpose.msra.mxu0 0.0
    %745 = vmatprep.subr.mxu0 0.0
    %746 = vmatpush1.xpose.msra.mxu0 0.0
    %747 = vmatprep.subr.mxu0 0.0
    %748 = vmatpush1.xpose.msra.mxu0 0.0
    %749 = vmatprep.subr.mxu0 0.0
    %750 = vmatpush1.xpose.msra.mxu0 0.0
    %751 = vmatprep.subr.mxu0 0.0
    %752 = vmatpush1.xpose.msra.mxu0 0.0
    %753 = vmatprep.subr.mxu0 0.0
    %754 = vmatpush1.xpose.msra.mxu0 0.0
    %755 = vmatprep.subr.mxu0 0.0
    %756 = vmatpush1.xpose.msra.mxu0 0.0
    %757 = vmatprep.subr.mxu0 0.0
    %758 = vmatpush1.xpose.msra.mxu0 0.0
    %759 = vmatprep.subr.mxu0 0.0
    %760 = vmatpush1.xpose.msra.mxu0 0.0
    %761 = vmatprep.subr.mxu0 0.0
    %762 = vmatpush1.xpose.msra.mxu0 0.0
    %763 = vmatprep.mubr.f32.mxu0 0.0
    %764 = vmatmul.mubr.f32.gmra.mrb[0].mxu0 %v695
    %v765 = vpop.f32.mrb[0].mxu0
    %v766 = vadd.f32 %v86, %v765
    %v767 = vpop.f32.mrb[0].mxu0
    %768 = vdwg.mxu0
    %v769 = vsel %vm186, %v766, -inf
    %770 = vmax.xlane.f32.xlu0 %v769
    %v771 = vpop.xlane.xlu0 %770
    %v772 = vsub.f32 %v766, %v771
    %v773 = vmul.f32 %v772, 1.442695
    %v774 = vpow.pop %v773
    %v775 = vsel %vm186, %v774, 0.0
    %776 = vadd.xlane.f32.xlu0 %v775
    %v777 = vpop.xlane.xlu0 %776
    %v778 = vrcp.pop %v777
    %v779 = vmul.f32 %v774, %v778
    %780 = vrot.lane.b32.xlu0 %v175, 40
    %v781 = vpop.permute.xlu0 %780
    %v784 = vsel %vm186, %v779, 0
    %786 = vmatprep.subr.mxu0 0.0
    %787 = vmatpush1.msra.mxu0 %v781
    %788 = vmatprep.subr.mxu0 0.0
    %789 = vmatpush1.msra.mxu0 0.0
    %790 = vmatprep.subr.mxu0 0.0
    %791 = vmatpush1.msra.mxu0 0.0
    %792 = vmatprep.subr.mxu0 0.0
    %793 = vmatpush1.msra.mxu0 0.0
    %794 = vmatprep.subr.mxu0 0.0
    %795 = vmatpush1.msra.mxu0 0.0
    %796 = vmatprep.subr.mxu0 0.0
    %797 = vmatpush1.msra.mxu0 0.0
    %798 = vmatprep.subr.mxu0 0.0
    %799 = vmatpush1.msra.mxu0 0.0
    %800 = vmatprep.subr.mxu0 0.0
    %801 = vmatpush1.msra.mxu0 0.0
    %802 = vmatprep.subr.mxu0 0.0
    %803 = vmatpush1.msra.mxu0 0.0
    %804 = vmatprep.subr.mxu0 0.0
    %805 = vmatpush1.msra.mxu0 0.0
    %806 = vmatprep.subr.mxu0 0.0
    %807 = vmatpush1.msra.mxu0 0.0
    %808 = vmatprep.subr.mxu0 0.0
    %809 = vmatpush1.msra.mxu0 0.0
    %810 = vmatprep.subr.mxu0 0.0
    %811 = vmatpush1.msra.mxu0 0.0
    %812 = vmatprep.subr.mxu0 0.0
    %813 = vmatpush1.msra.mxu0 0.0
    %814 = vmatprep.subr.mxu0 0.0
    %815 = vmatpush1.msra.mxu0 0.0
    %816 = vmatprep.subr.mxu0 0.0
    %817 = vmatpush1.msra.mxu0 0.0
    %818 = vmatprep.subr.mxu0 0.0
    %819 = vmatpush1.msra.mxu0 0.0
    %820 = vmatprep.subr.mxu0 0.0
    %821 = vmatpush1.msra.mxu0 0.0
    %822 = vmatprep.subr.mxu0 0.0
    %823 = vmatpush1.msra.mxu0 0.0
    %824 = vmatprep.subr.mxu0 0.0
    %825 = vmatpush1.msra.mxu0 0.0
    %826 = vmatprep.subr.mxu0 0.0
    %827 = vmatpush1.msra.mxu0 0.0
    %828 = vmatprep.subr.mxu0 0.0
    %829 = vmatpush1.msra.mxu0 0.0
    %830 = vmatprep.subr.mxu0 0.0
    %831 = vmatpush1.msra.mxu0 0.0
    %832 = vmatprep.subr.mxu0 0.0
    %833 = vmatpush1.msra.mxu0 0.0
    %834 = vmatprep.subr.mxu0 0.0
    %835 = vmatpush1.msra.mxu0 0.0
    %836 = vmatprep.subr.mxu0 0.0
    %837 = vmatpush1.msra.mxu0 0.0
    %838 = vmatprep.subr.mxu0 0.0
    %839 = vmatpush1.msra.mxu0 0.0
    %840 = vmatprep.subr.mxu0 0.0
    %841 = vmatpush1.msra.mxu0 0.0
    %842 = vmatprep.subr.mxu0 0.0
    %843 = vmatpush1.msra.mxu0 0.0
    %844 = vmatprep.subr.mxu0 0.0
    %845 = vmatpush1.msra.mxu0 0.0
    %846 = vmatprep.subr.mxu0 0.0
    %847 = vmatpush1.msra.mxu0 0.0
    %848 = vmatprep.subr.mxu0 0.0
    %849 = vmatpush1.msra.mxu0 0.0
    %850 = vmatprep.mubr.f32.mxu0 0.0
    %851 = vmatmul.mubr.f32.gmra.mrb[0].mxu0 %v784
    %v852 = vpop.f32.mrb[0].mxu0
    %v853 = vadd.f32 0.0, %v852
    %v854 = vpop.f32.mrb[0].mxu0
    %855 = vdwg.mxu0
    %857 = vrot.lane.b32.xlu0 %v853, 24
    %v858 = vpop.permute.xlu0 %857
    %vm860 = vcmask 261312
    %861 = vst.msk [vmem:[#allocation2] sm:$0xff] %vm860, %v858
    %863 = vrot.lane.b32.xlu0 %v180, 96
    %v864 = vpop.permute.xlu0 %863
    %v865 = vsel %vm186, %v180, 0
    %v867 = vsel %vm186, %v864, 0
    %869 = vmatprep.subr.mxu0 0.0
    %870 = vmatpush1.xpose.msra.mxu0 %v867
    %871 = vmatprep.subr.mxu0 0.0
    %872 = vmatpush1.xpose.msra.mxu0 0.0
    %873 = vmatprep.subr.mxu0 0.0
    %874 = vmatpush1.xpose.msra.mxu0 0.0
    %875 = vmatprep.subr.mxu0 0.0
    %876 = vmatpush1.xpose.msra.mxu0 0.0
    %877 = vmatprep.subr.mxu0 0.0
    %878 = vmatpush1.xpose.msra.mxu0 0.0
    %879 = vmatprep.subr.mxu0 0.0
    %880 = vmatpush1.xpose.msra.mxu0 0.0
    %881 = vmatprep.subr.mxu0 0.0
    %882 = vmatpush1.xpose.msra.mxu0 0.0
    %883 = vmatprep.subr.mxu0 0.0
    %884 = vmatpush1.xpose.msra.mxu0 0.0
    %885 = vmatprep.subr.mxu0 0.0
    %886 = vmatpush1.xpose.msra.mxu0 0.0
    %887 = vmatprep.subr.mxu0 0.0
    %888 = vmatpush1.xpose.msra.mxu0 0.0
    %889 = vmatprep.subr.mxu0 0.0
    %890 = vmatpush1.xpose.msra.mxu0 0.0
    %891 = vmatprep.subr.mxu0 0.0
    %892 = vmatpush1.xpose.msra.mxu0 0.0
    %893 = vmatprep.subr.mxu0 0.0
    %894 = vmatpush1.xpose.msra.mxu0 0.0
    %895 = vmatprep.subr.mxu0 0.0
    %896 = vmatpush1.xpose.msra.mxu0 0.0
    %897 = vmatprep.subr.mxu0 0.0
    %898 = vmatpush1.xpose.msra.mxu0 0.0
    %899 = vmatprep.subr.mxu0 0.0
    %900 = vmatpush1.xpose.msra.mxu0 0.0
    %901 = vmatprep.subr.mxu0 0.0
    %902 = vmatpush1.xpose.msra.mxu0 0.0
    %903 = vmatprep.subr.mxu0 0.0
    %904 = vmatpush1.xpose.msra.mxu0 0.0
    %905 = vmatprep.subr.mxu0 0.0
    %906 = vmatpush1.xpose.msra.mxu0 0.0
    %907 = vmatprep.subr.mxu0 0.0
    %908 = vmatpush1.xpose.msra.mxu0 0.0
    %909 = vmatprep.subr.mxu0 0.0
    %910 = vmatpush1.xpose.msra.mxu0 0.0
    %911 = vmatprep.subr.mxu0 0.0
    %912 = vmatpush1.xpose.msra.mxu0 0.0
    %913 = vmatprep.subr.mxu0 0.0
    %914 = vmatpush1.xpose.msra.mxu0 0.0
    %915 = vmatprep.subr.mxu0 0.0
    %916 = vmatpush1.xpose.msra.mxu0 0.0
    %917 = vmatprep.subr.mxu0 0.0
    %918 = vmatpush1.xpose.msra.mxu0 0.0
    %919 = vmatprep.subr.mxu0 0.0
    %920 = vmatpush1.xpose.msra.mxu0 0.0
    %921 = vmatprep.subr.mxu0 0.0
    %922 = vmatpush1.xpose.msra.mxu0 0.0
    %923 = vmatprep.subr.mxu0 0.0
    %924 = vmatpush1.xpose.msra.mxu0 0.0
    %925 = vmatprep.subr.mxu0 0.0
    %926 = vmatpush1.xpose.msra.mxu0 0.0
    %927 = vmatprep.subr.mxu0 0.0
    %928 = vmatpush1.xpose.msra.mxu0 0.0
    %929 = vmatprep.subr.mxu0 0.0
    %930 = vmatpush1.xpose.msra.mxu0 0.0
    %931 = vmatprep.subr.mxu0 0.0
    %932 = vmatpush1.xpose.msra.mxu0 0.0
    %933 = vmatprep.mubr.f32.mxu0 0.0
    %934 = vmatmul.mubr.f32.gmra.mrb[0].mxu0 %v865
    %v935 = vpop.f32.mrb[0].mxu0
    %v936 = vadd.f32 %v87, %v935
    %v937 = vpop.f32.mrb[0].mxu0
    %938 = vdwg.mxu0
    %v939 = vsel %vm186, %v936, -inf
    %940 = vmax.xlane.f32.xlu0 %v939
    %v941 = vpop.xlane.xlu0 %940
    %v942 = vsub.f32 %v936, %v941
    %v943 = vmul.f32 %v942, 1.442695
    %v944 = vpow.pop %v943
    %v945 = vsel %vm186, %v944, 0.0
    %946 = vadd.xlane.f32.xlu0 %v945
    %v947 = vpop.xlane.xlu0 %946
    %v948 = vrcp.pop %v947
    %v949 = vmul.f32 %v944, %v948
    %950 = vrot.lane.b32.xlu0 %v180, 64
    %v951 = vpop.permute.xlu0 %950
    %v954 = vsel %vm186, %v949, 0
    %956 = vmatprep.subr.mxu0 0.0
    %957 = vmatpush1.msra.mxu0 %v951
    %958 = vmatprep.subr.mxu0 0.0
    %959 = vmatpush1.msra.mxu0 0.0
    %960 = vmatprep.subr.mxu0 0.0
    %961 = vmatpush1.msra.mxu0 0.0
    %962 = vmatprep.subr.mxu0 0.0
    %963 = vmatpush1.msra.mxu0 0.0
    %964 = vmatprep.subr.mxu0 0.0
    %965 = vmatpush1.msra.mxu0 0.0
    %966 = vmatprep.subr.mxu0 0.0
    %967 = vmatpush1.msra.mxu0 0.0
    %968 = vmatprep.subr.mxu0 0.0
    %969 = vmatpush1.msra.mxu0 0.0
    %970 = vmatprep.subr.mxu0 0.0
    %971 = vmatpush1.msra.mxu0 0.0
    %972 = vmatprep.subr.mxu0 0.0
    %973 = vmatpush1.msra.mxu0 0.0
    %974 = vmatprep.subr.mxu0 0.0
    %975 = vmatpush1.msra.mxu0 0.0
    %976 = vmatprep.subr.mxu0 0.0
    %977 = vmatpush1.msra.mxu0 0.0
    %978 = vmatprep.subr.mxu0 0.0
    %979 = vmatpush1.msra.mxu0 0.0
    %980 = vmatprep.subr.mxu0 0.0
    %981 = vmatpush1.msra.mxu0 0.0
    %982 = vmatprep.subr.mxu0 0.0
    %983 = vmatpush1.msra.mxu0 0.0
    %984 = vmatprep.subr.mxu0 0.0
    %985 = vmatpush1.msra.mxu0 0.0
    %986 = vmatprep.subr.mxu0 0.0
    %987 = vmatpush1.msra.mxu0 0.0
    %988 = vmatprep.subr.mxu0 0.0
    %989 = vmatpush1.msra.mxu0 0.0
    %990 = vmatprep.subr.mxu0 0.0
    %991 = vmatpush1.msra.mxu0 0.0
    %992 = vmatprep.subr.mxu0 0.0
    %993 = vmatpush1.msra.mxu0 0.0
    %994 = vmatprep.subr.mxu0 0.0
    %995 = vmatpush1.msra.mxu0 0.0
    %996 = vmatprep.subr.mxu0 0.0
    %997 = vmatpush1.msra.mxu0 0.0
    %998 = vmatprep.subr.mxu0 0.0
    %999 = vmatpush1.msra.mxu0 0.0
    %1000 = vmatprep.subr.mxu0 0.0
    %1001 = vmatpush1.msra.mxu0 0.0
    %1002 = vmatprep.subr.mxu0 0.0
    %1003 = vmatpush1.msra.mxu0 0.0
    %1004 = vmatprep.subr.mxu0 0.0
    %1005 = vmatpush1.msra.mxu0 0.0
    %1006 = vmatprep.subr.mxu0 0.0
    %1007 = vmatpush1.msra.mxu0 0.0
    %1008 = vmatprep.subr.mxu0 0.0
    %1009 = vmatpush1.msra.mxu0 0.0
    %1010 = vmatprep.subr.mxu0 0.0
    %1011 = vmatpush1.msra.mxu0 0.0
    %1012 = vmatprep.subr.mxu0 0.0
    %1013 = vmatpush1.msra.mxu0 0.0
    %1014 = vmatprep.subr.mxu0 0.0
    %1015 = vmatpush1.msra.mxu0 0.0
    %1016 = vmatprep.subr.mxu0 0.0
    %1017 = vmatpush1.msra.mxu0 0.0
    %1018 = vmatprep.subr.mxu0 0.0
    %1019 = vmatpush1.msra.mxu0 0.0
    %1020 = vmatprep.mubr.f32.mxu0 0.0
    %1021 = vmatmul.mubr.f32.gmra.mrb[0].mxu0 %v954
    %v1022 = vpop.f32.mrb[0].mxu0
    %v1023 = vadd.f32 0.0, %v1022
    %v1024 = vpop.f32.mrb[0].mxu0
    %1025 = vdwg.mxu0
    %1026 = vst.msk [vmem:[#allocation2 + $0x8] sm:$0xff] %vm186, %v1023
    %1027 = vrot.lane.b32.xlu0 %v180, 120
    %v1028 = vpop.permute.xlu0 %1027
    %1029 = vrot.lane.b32.xlu0 %v180, 88
    %v1030 = vpop.permute.xlu0 %1029
    %v1031 = vsel %vm186, %v1028, 0
    %v1033 = vsel %vm186, %v1030, 0
    %1035 = vmatprep.subr.mxu0 0.0
    %1036 = vmatpush1.xpose.msra.mxu0 %v1033
    %1037 = vmatprep.subr.mxu0 0.0
    %1038 = vmatpush1.xpose.msra.mxu0 0.0
    %1039 = vmatprep.subr.mxu0 0.0
    %1040 = vmatpush1.xpose.msra.mxu0 0.0
    %1041 = vmatprep.subr.mxu0 0.0
    %1042 = vmatpush1.xpose.msra.mxu0 0.0
    %1043 = vmatprep.subr.mxu0 0.0
    %1044 = vmatpush1.xpose.msra.mxu0 0.0
    %1045 = vmatprep.subr.mxu0 0.0
    %1046 = vmatpush1.xpose.msra.mxu0 0.0
    %1047 = vmatprep.subr.mxu0 0.0
    %1048 = vmatpush1.xpose.msra.mxu0 0.0
    %1049 = vmatprep.subr.mxu0 0.0
    %1050 = vmatpush1.xpose.msra.mxu0 0.0
    %1051 = vmatprep.subr.mxu0 0.0
    %1052 = vmatpush1.xpose.msra.mxu0 0.0
    %1053 = vmatprep.subr.mxu0 0.0
    %1054 = vmatpush1.xpose.msra.mxu0 0.0
    %1055 = vmatprep.subr.mxu0 0.0
    %1056 = vmatpush1.xpose.msra.mxu0 0.0
    %1057 = vmatprep.subr.mxu0 0.0
    %1058 = vmatpush1.xpose.msra.mxu0 0.0
    %1059 = vmatprep.subr.mxu0 0.0
    %1060 = vmatpush1.xpose.msra.mxu0 0.0
    %1061 = vmatprep.subr.mxu0 0.0
    %1062 = vmatpush1.xpose.msra.mxu0 0.0
    %1063 = vmatprep.subr.mxu0 0.0
    %1064 = vmatpush1.xpose.msra.mxu0 0.0
    %1065 = vmatprep.subr.mxu0 0.0
    %1066 = vmatpush1.xpose.msra.mxu0 0.0
    %1067 = vmatprep.subr.mxu0 0.0
    %1068 = vmatpush1.xpose.msra.mxu0 0.0
    %1069 = vmatprep.subr.mxu0 0.0
    %1070 = vmatpush1.xpose.msra.mxu0 0.0
    %1071 = vmatprep.subr.mxu0 0.0
    %1072 = vmatpush1.xpose.msra.mxu0 0.0
    %1073 = vmatprep.subr.mxu0 0.0
    %1074 = vmatpush1.xpose.msra.mxu0 0.0
    %1075 = vmatprep.subr.mxu0 0.0
    %1076 = vmatpush1.xpose.msra.mxu0 0.0
    %1077 = vmatprep.subr.mxu0 0.0
    %1078 = vmatpush1.xpose.msra.mxu0 0.0
    %1079 = vmatprep.subr.mxu0 0.0
    %1080 = vmatpush1.xpose.msra.mxu0 0.0
    %1081 = vmatprep.subr.mxu0 0.0
    %1082 = vmatpush1.xpose.msra.mxu0 0.0
    %1083 = vmatprep.subr.mxu0 0.0
    %1084 = vmatpush1.xpose.msra.mxu0 0.0
    %1085 = vmatprep.subr.mxu0 0.0
    %1086 = vmatpush1.xpose.msra.mxu0 0.0
    %1087 = vmatprep.subr.mxu0 0.0
    %1088 = vmatpush1.xpose.msra.mxu0 0.0
    %1089 = vmatprep.subr.mxu0 0.0
    %1090 = vmatpush1.xpose.msra.mxu0 0.0
    %1091 = vmatprep.subr.mxu0 0.0
    %1092 = vmatpush1.xpose.msra.mxu0 0.0
    %1093 = vmatprep.subr.mxu0 0.0
    %1094 = vmatpush1.xpose.msra.mxu0 0.0
    %1095 = vmatprep.subr.mxu0 0.0
    %1096 = vmatpush1.xpose.msra.mxu0 0.0
    %1097 = vmatprep.subr.mxu0 0.0
    %1098 = vmatpush1.xpose.msra.mxu0 0.0
    %1099 = vmatprep.mubr.f32.mxu0 0.0
    %1100 = vmatmul.mubr.f32.gmra.mrb[0].mxu0 %v1031
    %v1101 = vpop.f32.mrb[0].mxu0
    %v1102 = vadd.f32 %v87, %v1101
    %v1103 = vpop.f32.mrb[0].mxu0
    %1104 = vdwg.mxu0
    %v1105 = vsel %vm186, %v1102, -inf
    %1106 = vmax.xlane.f32.xlu0 %v1105
    %v1107 = vpop.xlane.xlu0 %1106
    %v1108 = vsub.f32 %v1102, %v1107
    %v1109 = vmul.f32 %v1108, 1.442695
    %v1110 = vpow.pop %v1109
    %v1111 = vsel %vm186, %v1110, 0.0
    %1112 = vadd.xlane.f32.xlu0 %v1111
    %v1113 = vpop.xlane.xlu0 %1112
    %v1114 = vrcp.pop %v1113
    %v1115 = vmul.f32 %v1110, %v1114
    %1116 = vrot.lane.b32.xlu0 %v180, 56
    %v1117 = vpop.permute.xlu0 %1116
    %v1120 = vsel %vm186, %v1115, 0
    %1122 = vmatprep.subr.mxu0 0.0
    %1123 = vmatpush1.msra.mxu0 %v1117
    %1124 = vmatprep.subr.mxu0 0.0
    %1125 = vmatpush1.msra.mxu0 0.0
    %1126 = vmatprep.subr.mxu0 0.0
    %1127 = vmatpush1.msra.mxu0 0.0
    %1128 = vmatprep.subr.mxu0 0.0
    %1129 = vmatpush1.msra.mxu0 0.0
    %1130 = vmatprep.subr.mxu0 0.0
    %1131 = vmatpush1.msra.mxu0 0.0
    %1132 = vmatprep.subr.mxu0 0.0
    %1133 = vmatpush1.msra.mxu0 0.0
    %1134 = vmatprep.subr.mxu0 0.0
    %1135 = vmatpush1.msra.mxu0 0.0
    %1136 = vmatprep.subr.mxu0 0.0
    %1137 = vmatpush1.msra.mxu0 0.0
    %1138 = vmatprep.subr.mxu0 0.0
    %1139 = vmatpush1.msra.mxu0 0.0
    %1140 = vmatprep.subr.mxu0 0.0
    %1141 = vmatpush1.msra.mxu0 0.0
    %1142 = vmatprep.subr.mxu0 0.0
    %1143 = vmatpush1.msra.mxu0 0.0
    %1144 = vmatprep.subr.mxu0 0.0
    %1145 = vmatpush1.msra.mxu0 0.0
    %1146 = vmatprep.subr.mxu0 0.0
    %1147 = vmatpush1.msra.mxu0 0.0
    %1148 = vmatprep.subr.mxu0 0.0
    %1149 = vmatpush1.msra.mxu0 0.0
    %1150 = vmatprep.subr.mxu0 0.0
    %1151 = vmatpush1.msra.mxu0 0.0
    %1152 = vmatprep.subr.mxu0 0.0
    %1153 = vmatpush1.msra.mxu0 0.0
    %1154 = vmatprep.subr.mxu0 0.0
    %1155 = vmatpush1.msra.mxu0 0.0
    %1156 = vmatprep.subr.mxu0 0.0
    %1157 = vmatpush1.msra.mxu0 0.0
    %1158 = vmatprep.subr.mxu0 0.0
    %1159 = vmatpush1.msra.mxu0 0.0
    %1160 = vmatprep.subr.mxu0 0.0
    %1161 = vmatpush1.msra.mxu0 0.0
    %1162 = vmatprep.subr.mxu0 0.0
    %1163 = vmatpush1.msra.mxu0 0.0
    %1164 = vmatprep.subr.mxu0 0.0
    %1165 = vmatpush1.msra.mxu0 0.0
    %1166 = vmatprep.subr.mxu0 0.0
    %1167 = vmatpush1.msra.mxu0 0.0
    %1168 = vmatprep.subr.mxu0 0.0
    %1169 = vmatpush1.msra.mxu0 0.0
    %1170 = vmatprep.subr.mxu0 0.0
    %1171 = vmatpush1.msra.mxu0 0.0
    %1172 = vmatprep.subr.mxu0 0.0
    %1173 = vmatpush1.msra.mxu0 0.0
    %1174 = vmatprep.subr.mxu0 0.0
    %1175 = vmatpush1.msra.mxu0 0.0
    %1176 = vmatprep.subr.mxu0 0.0
    %1177 = vmatpush1.msra.mxu0 0.0
    %1178 = vmatprep.subr.mxu0 0.0
    %1179 = vmatpush1.msra.mxu0 0.0
    %1180 = vmatprep.subr.mxu0 0.0
    %1181 = vmatpush1.msra.mxu0 0.0
    %1182 = vmatprep.subr.mxu0 0.0
    %1183 = vmatpush1.msra.mxu0 0.0
    %1184 = vmatprep.subr.mxu0 0.0
    %1185 = vmatpush1.msra.mxu0 0.0
    %1186 = vmatprep.mubr.f32.mxu0 0.0
    %1187 = vmatmul.mubr.f32.gmra.mrb[0].mxu0 %v1120
    %v1188 = vpop.f32.mrb[0].mxu0
    %v1189 = vadd.f32 0.0, %v1188
    %v1190 = vpop.f32.mrb[0].mxu0
    %1191 = vdwg.mxu0
    %1193 = vrot.lane.b32.xlu0 %v1189, 8
    %v1194 = vpop.permute.xlu0 %1193
    %1196 = vst.msk [vmem:[#allocation2 + $0x8] sm:$0xff] %vm518, %v1194
    %1197 = vrot.lane.b32.xlu0 %v180, 112
    %v1198 = vpop.permute.xlu0 %1197
    %1199 = vrot.lane.b32.xlu0 %v180, 80
    %v1200 = vpop.permute.xlu0 %1199
    %v1201 = vsel %vm186, %v1198, 0
    %v1203 = vsel %vm186, %v1200, 0
    %1205 = vmatprep.subr.mxu0 0.0
    %1206 = vmatpush1.xpose.msra.mxu0 %v1203
    %1207 = vmatprep.subr.mxu0 0.0
    %1208 = vmatpush1.xpose.msra.mxu0 0.0
    %1209 = vmatprep.subr.mxu0 0.0
    %1210 = vmatpush1.xpose.msra.mxu0 0.0
    %1211 = vmatprep.subr.mxu0 0.0
    %1212 = vmatpush1.xpose.msra.mxu0 0.0
    %1213 = vmatprep.subr.mxu0 0.0
    %1214 = vmatpush1.xpose.msra.mxu0 0.0
    %1215 = vmatprep.subr.mxu0 0.0
    %1216 = vmatpush1.xpose.msra.mxu0 0.0
    %1217 = vmatprep.subr.mxu0 0.0
    %1218 = vmatpush1.xpose.msra.mxu0 0.0
    %1219 = vmatprep.subr.mxu0 0.0
    %1220 = vmatpush1.xpose.msra.mxu0 0.0
    %1221 = vmatprep.subr.mxu0 0.0
    %1222 = vmatpush1.xpose.msra.mxu0 0.0
    %1223 = vmatprep.subr.mxu0 0.0
    %1224 = vmatpush1.xpose.msra.mxu0 0.0
    %1225 = vmatprep.subr.mxu0 0.0
    %1226 = vmatpush1.xpose.msra.mxu0 0.0
    %1227 = vmatprep.subr.mxu0 0.0
    %1228 = vmatpush1.xpose.msra.mxu0 0.0
    %1229 = vmatprep.subr.mxu0 0.0
    %1230 = vmatpush1.xpose.msra.mxu0 0.0
    %1231 = vmatprep.subr.mxu0 0.0
    %1232 = vmatpush1.xpose.msra.mxu0 0.0
    %1233 = vmatprep.subr.mxu0 0.0
    %1234 = vmatpush1.xpose.msra.mxu0 0.0
    %1235 = vmatprep.subr.mxu0 0.0
    %1236 = vmatpush1.xpose.msra.mxu0 0.0
    %1237 = vmatprep.subr.mxu0 0.0
    %1238 = vmatpush1.xpose.msra.mxu0 0.0
    %1239 = vmatprep.subr.mxu0 0.0
    %1240 = vmatpush1.xpose.msra.mxu0 0.0
    %1241 = vmatprep.subr.mxu0 0.0
    %1242 = vmatpush1.xpose.msra.mxu0 0.0
    %1243 = vmatprep.subr.mxu0 0.0
    %1244 = vmatpush1.xpose.msra.mxu0 0.0
    %1245 = vmatprep.subr.mxu0 0.0
    %1246 = vmatpush1.xpose.msra.mxu0 0.0
    %1247 = vmatprep.subr.mxu0 0.0
    %1248 = vmatpush1.xpose.msra.mxu0 0.0
    %1249 = vmatprep.subr.mxu0 0.0
    %1250 = vmatpush1.xpose.msra.mxu0 0.0
    %1251 = vmatprep.subr.mxu0 0.0
    %1252 = vmatpush1.xpose.msra.mxu0 0.0
    %1253 = vmatprep.subr.mxu0 0.0
    %1254 = vmatpush1.xpose.msra.mxu0 0.0
    %1255 = vmatprep.subr.mxu0 0.0
    %1256 = vmatpush1.xpose.msra.mxu0 0.0
    %1257 = vmatprep.subr.mxu0 0.0
    %1258 = vmatpush1.xpose.msra.mxu0 0.0
    %1259 = vmatprep.subr.mxu0 0.0
    %1260 = vmatpush1.xpose.msra.mxu0 0.0
    %1261 = vmatprep.subr.mxu0 0.0
    %1262 = vmatpush1.xpose.msra.mxu0 0.0
    %1263 = vmatprep.subr.mxu0 0.0
    %1264 = vmatpush1.xpose.msra.mxu0 0.0
    %1265 = vmatprep.subr.mxu0 0.0
    %1266 = vmatpush1.xpose.msra.mxu0 0.0
    %1267 = vmatprep.subr.mxu0 0.0
    %1268 = vmatpush1.xpose.msra.mxu0 0.0
    %1269 = vmatprep.mubr.f32.mxu0 0.0
    %1270 = vmatmul.mubr.f32.gmra.mrb[0].mxu0 %v1201
    %v1271 = vpop.f32.mrb[0].mxu0
    %v1272 = vadd.f32 %v87, %v1271
    %v1273 = vpop.f32.mrb[0].mxu0
    %1274 = vdwg.mxu0
    %v1275 = vsel %vm186, %v1272, -inf
    %1276 = vmax.xlane.f32.xlu0 %v1275
    %v1277 = vpop.xlane.xlu0 %1276
    %v1278 = vsub.f32 %v1272, %v1277
    %v1279 = vmul.f32 %v1278, 1.442695
    %v1280 = vpow.pop %v1279
    %v1281 = vsel %vm186, %v1280, 0.0
    %1282 = vadd.xlane.f32.xlu0 %v1281
    %v1283 = vpop.xlane.xlu0 %1282
    %v1284 = vrcp.pop %v1283
    %v1285 = vmul.f32 %v1280, %v1284
    %1286 = vrot.lane.b32.xlu0 %v180, 48
    %v1287 = vpop.permute.xlu0 %1286
    %v1290 = vsel %vm186, %v1285, 0
    %1292 = vmatprep.subr.mxu0 0.0
    %1293 = vmatpush1.msra.mxu0 %v1287
    %1294 = vmatprep.subr.mxu0 0.0
    %1295 = vmatpush1.msra.mxu0 0.0
    %1296 = vmatprep.subr.mxu0 0.0
    %1297 = vmatpush1.msra.mxu0 0.0
    %1298 = vmatprep.subr.mxu0 0.0
    %1299 = vmatpush1.msra.mxu0 0.0
    %1300 = vmatprep.subr.mxu0 0.0
    %1301 = vmatpush1.msra.mxu0 0.0
    %1302 = vmatprep.subr.mxu0 0.0
    %1303 = vmatpush1.msra.mxu0 0.0
    %1304 = vmatprep.subr.mxu0 0.0
    %1305 = vmatpush1.msra.mxu0 0.0
    %1306 = vmatprep.subr.mxu0 0.0
    %1307 = vmatpush1.msra.mxu0 0.0
    %1308 = vmatprep.subr.mxu0 0.0
    %1309 = vmatpush1.msra.mxu0 0.0
    %1310 = vmatprep.subr.mxu0 0.0
    %1311 = vmatpush1.msra.mxu0 0.0
    %1312 = vmatprep.subr.mxu0 0.0
    %1313 = vmatpush1.msra.mxu0 0.0
    %1314 = vmatprep.subr.mxu0 0.0
    %1315 = vmatpush1.msra.mxu0 0.0
    %1316 = vmatprep.subr.mxu0 0.0
    %1317 = vmatpush1.msra.mxu0 0.0
    %1318 = vmatprep.subr.mxu0 0.0
    %1319 = vmatpush1.msra.mxu0 0.0
    %1320 = vmatprep.subr.mxu0 0.0
    %1321 = vmatpush1.msra.mxu0 0.0
    %1322 = vmatprep.subr.mxu0 0.0
    %1323 = vmatpush1.msra.mxu0 0.0
    %1324 = vmatprep.subr.mxu0 0.0
    %1325 = vmatpush1.msra.mxu0 0.0
    %1326 = vmatprep.subr.mxu0 0.0
    %1327 = vmatpush1.msra.mxu0 0.0
    %1328 = vmatprep.subr.mxu0 0.0
    %1329 = vmatpush1.msra.mxu0 0.0
    %1330 = vmatprep.subr.mxu0 0.0
    %1331 = vmatpush1.msra.mxu0 0.0
    %1332 = vmatprep.subr.mxu0 0.0
    %1333 = vmatpush1.msra.mxu0 0.0
    %1334 = vmatprep.subr.mxu0 0.0
    %1335 = vmatpush1.msra.mxu0 0.0
    %1336 = vmatprep.subr.mxu0 0.0
    %1337 = vmatpush1.msra.mxu0 0.0
    %1338 = vmatprep.subr.mxu0 0.0
    %1339 = vmatpush1.msra.mxu0 0.0
    %1340 = vmatprep.subr.mxu0 0.0
    %1341 = vmatpush1.msra.mxu0 0.0
    %1342 = vmatprep.subr.mxu0 0.0
    %1343 = vmatpush1.msra.mxu0 0.0
    %1344 = vmatprep.subr.mxu0 0.0
    %1345 = vmatpush1.msra.mxu0 0.0
    %1346 = vmatprep.subr.mxu0 0.0
    %1347 = vmatpush1.msra.mxu0 0.0
    %1348 = vmatprep.subr.mxu0 0.0
    %1349 = vmatpush1.msra.mxu0 0.0
    %1350 = vmatprep.subr.mxu0 0.0
    %1351 = vmatpush1.msra.mxu0 0.0
    %1352 = vmatprep.subr.mxu0 0.0
    %1353 = vmatpush1.msra.mxu0 0.0
    %1354 = vmatprep.subr.mxu0 0.0
    %1355 = vmatpush1.msra.mxu0 0.0
    %1356 = vmatprep.mubr.f32.mxu0 0.0
    %1357 = vmatmul.mubr.f32.gmra.mrb[0].mxu0 %v1290
    %v1358 = vpop.f32.mrb[0].mxu0
    %v1359 = vadd.f32 0.0, %v1358
    %v1360 = vpop.f32.mrb[0].mxu0
    %1361 = vdwg.mxu0
    %1363 = vrot.lane.b32.xlu0 %v1359, 16
    %v1364 = vpop.permute.xlu0 %1363
    %1366 = vst.msk [vmem:[#allocation2 + $0x8] sm:$0xff] %vm689, %v1364
    %1367 = vrot.lane.b32.xlu0 %v180, 104
    %v1368 = vpop.permute.xlu0 %1367
    %1369 = vrot.lane.b32.xlu0 %v180, 72
    %v1370 = vpop.permute.xlu0 %1369
    %v1371 = vsel %vm186, %v1368, 0
    %v1373 = vsel %vm186, %v1370, 0
    %1375 = vmatprep.subr.mxu0 0.0
    %1376 = vmatpush1.xpose.msra.mxu0 %v1373
    %1377 = vmatprep.subr.mxu0 0.0
    %1378 = vmatpush1.xpose.msra.mxu0 0.0
    %1379 = vmatprep.subr.mxu0 0.0
    %1380 = vmatpush1.xpose.msra.mxu0 0.0
    %1381 = vmatprep.subr.mxu0 0.0
    %1382 = vmatpush1.xpose.msra.mxu0 0.0
    %1383 = vmatprep.subr.mxu0 0.0
    %1384 = vmatpush1.xpose.msra.mxu0 0.0
    %1385 = vmatprep.subr.mxu0 0.0
    %1386 = vmatpush1.xpose.msra.mxu0 0.0
    %1387 = vmatprep.subr.mxu0 0.0
    %1388 = vmatpush1.xpose.msra.mxu0 0.0
    %1389 = vmatprep.subr.mxu0 0.0
    %1390 = vmatpush1.xpose.msra.mxu0 0.0
    %1391 = vmatprep.subr.mxu0 0.0
    %1392 = vmatpush1.xpose.msra.mxu0 0.0
    %1393 = vmatprep.subr.mxu0 0.0
    %1394 = vmatpush1.xpose.msra.mxu0 0.0
    %1395 = vmatprep.subr.mxu0 0.0
    %1396 = vmatpush1.xpose.msra.mxu0 0.0
    %1397 = vmatprep.subr.mxu0 0.0
    %1398 = vmatpush1.xpose.msra.mxu0 0.0
    %1399 = vmatprep.subr.mxu0 0.0
    %1400 = vmatpush1.xpose.msra.mxu0 0.0
    %1401 = vmatprep.subr.mxu0 0.0
    %1402 = vmatpush1.xpose.msra.mxu0 0.0
    %1403 = vmatprep.subr.mxu0 0.0
    %1404 = vmatpush1.xpose.msra.mxu0 0.0
    %1405 = vmatprep.subr.mxu0 0.0
    %1406 = vmatpush1.xpose.msra.mxu0 0.0
    %1407 = vmatprep.subr.mxu0 0.0
    %1408 = vmatpush1.xpose.msra.mxu0 0.0
    %1409 = vmatprep.subr.mxu0 0.0
    %1410 = vmatpush1.xpose.msra.mxu0 0.0
    %1411 = vmatprep.subr.mxu0 0.0
    %1412 = vmatpush1.xpose.msra.mxu0 0.0
    %1413 = vmatprep.subr.mxu0 0.0
    %1414 = vmatpush1.xpose.msra.mxu0 0.0
    %1415 = vmatprep.subr.mxu0 0.0
    %1416 = vmatpush1.xpose.msra.mxu0 0.0
    %1417 = vmatprep.subr.mxu0 0.0
    %1418 = vmatpush1.xpose.msra.mxu0 0.0
    %1419 = vmatprep.subr.mxu0 0.0
    %1420 = vmatpush1.xpose.msra.mxu0 0.0
    %1421 = vmatprep.subr.mxu0 0.0
    %1422 = vmatpush1.xpose.msra.mxu0 0.0
    %1423 = vmatprep.subr.mxu0 0.0
    %1424 = vmatpush1.xpose.msra.mxu0 0.0
    %1425 = vmatprep.subr.mxu0 0.0
    %1426 = vmatpush1.xpose.msra.mxu0 0.0
    %1427 = vmatprep.subr.mxu0 0.0
    %1428 = vmatpush1.xpose.msra.mxu0 0.0
    %1429 = vmatprep.subr.mxu0 0.0
    %1430 = vmatpush1.xpose.msra.mxu0 0.0
    %1431 = vmatprep.subr.mxu0 0.0
    %1432 = vmatpush1.xpose.msra.mxu0 0.0
    %1433 = vmatprep.subr.mxu0 0.0
    %1434 = vmatpush1.xpose.msra.mxu0 0.0
    %1435 = vmatprep.subr.mxu0 0.0
    %1436 = vmatpush1.xpose.msra.mxu0 0.0
    %1437 = vmatprep.subr.mxu0 0.0
    %1438 = vmatpush1.xpose.msra.mxu0 0.0
    %1439 = vmatprep.mubr.f32.mxu0 0.0
    %1440 = vmatmul.mubr.f32.gmra.mrb[0].mxu0 %v1371
    %v1441 = vpop.f32.mrb[0].mxu0
    %v1442 = vadd.f32 %v87, %v1441
    %v1443 = vpop.f32.mrb[0].mxu0
    %1444 = vdwg.mxu0
    %v1445 = vsel %vm186, %v1442, -inf
    %1446 = vmax.xlane.f32.xlu0 %v1445
    %v1447 = vpop.xlane.xlu0 %1446
    %v1448 = vsub.f32 %v1442, %v1447
    %v1449 = vmul.f32 %v1448, 1.442695
    %v1450 = vpow.pop %v1449
    %v1451 = vsel %vm186, %v1450, 0.0
    %1452 = vadd.xlane.f32.xlu0 %v1451
    %v1453 = vpop.xlane.xlu0 %1452
    %v1454 = vrcp.pop %v1453
    %v1455 = vmul.f32 %v1450, %v1454
    %1456 = vrot.lane.b32.xlu0 %v180, 40
    %v1457 = vpop.permute.xlu0 %1456
    %v1460 = vsel %vm186, %v1455, 0
    %1462 = vmatprep.subr.mxu0 0.0
    %1463 = vmatpush1.msra.mxu0 %v1457
    %1464 = vmatprep.subr.mxu0 0.0
    %1465 = vmatpush1.msra.mxu0 0.0
    %1466 = vmatprep.subr.mxu0 0.0
    %1467 = vmatpush1.msra.mxu0 0.0
    %1468 = vmatprep.subr.mxu0 0.0
    %1469 = vmatpush1.msra.mxu0 0.0
    %1470 = vmatprep.subr.mxu0 0.0
    %1471 = vmatpush1.msra.mxu0 0.0
    %1472 = vmatprep.subr.mxu0 0.0
    %1473 = vmatpush1.msra.mxu0 0.0
    %1474 = vmatprep.subr.mxu0 0.0
    %1475 = vmatpush1.msra.mxu0 0.0
    %1476 = vmatprep.subr.mxu0 0.0
    %1477 = vmatpush1.msra.mxu0 0.0
    %1478 = vmatprep.subr.mxu0 0.0
    %1479 = vmatpush1.msra.mxu0 0.0
    %1480 = vmatprep.subr.mxu0 0.0
    %1481 = vmatpush1.msra.mxu0 0.0
    %1482 = vmatprep.subr.mxu0 0.0
    %1483 = vmatpush1.msra.mxu0 0.0
    %1484 = vmatprep.subr.mxu0 0.0
    %1485 = vmatpush1.msra.mxu0 0.0
    %1486 = vmatprep.subr.mxu0 0.0
    %1487 = vmatpush1.msra.mxu0 0.0
    %1488 = vmatprep.subr.mxu0 0.0
    %1489 = vmatpush1.msra.mxu0 0.0
    %1490 = vmatprep.subr.mxu0 0.0
    %1491 = vmatpush1.msra.mxu0 0.0
    %1492 = vmatprep.subr.mxu0 0.0
    %1493 = vmatpush1.msra.mxu0 0.0
    %1494 = vmatprep.subr.mxu0 0.0
    %1495 = vmatpush1.msra.mxu0 0.0
    %1496 = vmatprep.subr.mxu0 0.0
    %1497 = vmatpush1.msra.mxu0 0.0
    %1498 = vmatprep.subr.mxu0 0.0
    %1499 = vmatpush1.msra.mxu0 0.0
    %1500 = vmatprep.subr.mxu0 0.0
    %1501 = vmatpush1.msra.mxu0 0.0
    %1502 = vmatprep.subr.mxu0 0.0
    %1503 = vmatpush1.msra.mxu0 0.0
    %1504 = vmatprep.subr.mxu0 0.0
    %1505 = vmatpush1.msra.mxu0 0.0
    %1506 = vmatprep.subr.mxu0 0.0
    %1507 = vmatpush1.msra.mxu0 0.0
    %1508 = vmatprep.subr.mxu0 0.0
    %1509 = vmatpush1.msra.mxu0 0.0
    %1510 = vmatprep.subr.mxu0 0.0
    %1511 = vmatpush1.msra.mxu0 0.0
    %1512 = vmatprep.subr.mxu0 0.0
    %1513 = vmatpush1.msra.mxu0 0.0
    %1514 = vmatprep.subr.mxu0 0.0
    %1515 = vmatpush1.msra.mxu0 0.0
    %1516 = vmatprep.subr.mxu0 0.0
    %1517 = vmatpush1.msra.mxu0 0.0
    %1518 = vmatprep.subr.mxu0 0.0
    %1519 = vmatpush1.msra.mxu0 0.0
    %1520 = vmatprep.subr.mxu0 0.0
    %1521 = vmatpush1.msra.mxu0 0.0
    %1522 = vmatprep.subr.mxu0 0.0
    %1523 = vmatpush1.msra.mxu0 0.0
    %1524 = vmatprep.subr.mxu0 0.0
    %1525 = vmatpush1.msra.mxu0 0.0
    %1526 = vmatprep.mubr.f32.mxu0 0.0
    %1527 = vmatmul.mubr.f32.gmra.mrb[0].mxu0 %v1460
    %v1528 = vpop.f32.mrb[0].mxu0
    %v1529 = vadd.f32 0.0, %v1528
    %v1530 = vpop.f32.mrb[0].mxu0
    %1531 = vdwg.mxu0
    %1533 = vrot.lane.b32.xlu0 %v1529, 24
    %v1534 = vpop.permute.xlu0 %1533
    %1536 = vst.msk [vmem:[#allocation2 + $0x8] sm:$0xff] %vm860, %v1534
    %v1537 = vld [vmem:[#allocation2] sm:$0xff]
    %v1538 = vld [vmem:[#allocation2 + $0x8] sm:$0xff]
    %v1539 = vld [vmem:[%s6] sm:$0xff]
    %v1540 = vld [vmem:[%s6 + $0x8] sm:$0xff]
    %v1541 = vld [vmem:[%s6 + $0x10] sm:$0xff]
    %v1542 = vld [vmem:[%s6 + $0x18] sm:$0xff]
    %v1543 = vld [vmem:[%s7] sm:$0x1]
    %v1545 = vlaneseq
    %v1546 = vshrl.u32 %v1545, 7
    %v1547 = vsub.s32 0, %v1546
    %v1548 = vrot.slane %v1543, %v1547
    %v1551 = vsel %vm101, %v1537, 0
    %v1554 = vsel %vm101, %v1538, 0
    %1556 = vmatprep.subr.mxu0 0.0
    %1557 = vmatpush1.msra.mxu0 %v1539
    %1558 = vmatprep.subr.mxu0 0.0
    %1559 = vmatpush1.msra.mxu0 %v1540
    %1560 = vmatprep.subr.mxu0 0.0
    %1561 = vmatpush1.msra.mxu0 %v1541
    %1562 = vmatprep.subr.mxu0 0.0
    %1563 = vmatpush1.msra.mxu0 %v1542
    %1564 = vmatprep.subr.mxu0 0.0
    %1565 = vmatpush1.msra.mxu0 0.0
    %1566 = vmatprep.subr.mxu0 0.0
    %1567 = vmatpush1.msra.mxu0 0.0
    %1568 = vmatprep.subr.mxu0 0.0
    %1569 = vmatpush1.msra.mxu0 0.0
    %1570 = vmatprep.subr.mxu0 0.0
    %1571 = vmatpush1.msra.mxu0 0.0
    %1572 = vmatprep.subr.mxu0 0.0
    %1573 = vmatpush1.msra.mxu0 0.0
    %1574 = vmatprep.subr.mxu0 0.0
    %1575 = vmatpush1.msra.mxu0 0.0
    %1576 = vmatprep.subr.mxu0 0.0
    %1577 = vmatpush1.msra.mxu0 0.0
    %1578 = vmatprep.subr.mxu0 0.0
    %1579 = vmatpush1.msra.mxu0 0.0
    %1580 = vmatprep.subr.mxu0 0.0
    %1581 = vmatpush1.msra.mxu0 0.0
    %1582 = vmatprep.subr.mxu0 0.0
    %1583 = vmatpush1.msra.mxu0 0.0
    %1584 = vmatprep.subr.mxu0 0.0
    %1585 = vmatpush1.msra.mxu0 0.0
    %1586 = vmatprep.subr.mxu0 0.0
    %1587 = vmatpush1.msra.mxu0 0.0
    %1588 = vmatprep.subr.mxu0 0.0
    %1589 = vmatpush1.msra.mxu0 0.0
    %1590 = vmatprep.subr.mxu0 0.0
    %1591 = vmatpush1.msra.mxu0 0.0
    %1592 = vmatprep.subr.mxu0 0.0
    %1593 = vmatpush1.msra.mxu0 0.0
    %1594 = vmatprep.subr.mxu0 0.0
    %1595 = vmatpush1.msra.mxu0 0.0
    %1596 = vmatprep.subr.mxu0 0.0
    %1597 = vmatpush1.msra.mxu0 0.0
    %1598 = vmatprep.subr.mxu0 0.0
    %1599 = vmatpush1.msra.mxu0 0.0
    %1600 = vmatprep.subr.mxu0 0.0
    %1601 = vmatpush1.msra.mxu0 0.0
    %1602 = vmatprep.subr.mxu0 0.0
    %1603 = vmatpush1.msra.mxu0 0.0
    %1604 = vmatprep.subr.mxu0 0.0
    %1605 = vmatpush1.msra.mxu0 0.0
    %1606 = vmatprep.subr.mxu0 0.0
    %1607 = vmatpush1.msra.mxu0 0.0
    %1608 = vmatprep.subr.mxu0 0.0
    %1609 = vmatpush1.msra.mxu0 0.0
    %1610 = vmatprep.subr.mxu0 0.0
    %1611 = vmatpush1.msra.mxu0 0.0
    %1612 = vmatprep.subr.mxu0 0.0
    %1613 = vmatpush1.msra.mxu0 0.0
    %1614 = vmatprep.subr.mxu0 0.0
    %1615 = vmatpush1.msra.mxu0 0.0
    %1616 = vmatprep.subr.mxu0 0.0
    %1617 = vmatpush1.msra.mxu0 0.0
    %1618 = vmatprep.subr.mxu0 0.0
    %1619 = vmatpush1.msra.mxu0 0.0
    %1620 = vmatprep.mubr.f32.mxu0 0.0
    %1621 = vmatmul.mubr.f32.gmra.mrb[0].mxu0 %v1551
    %v1622 = vpop.f32.mrb[0].mxu0
    %v1623 = vadd.f32 %v1548, %v1622
    %v1624 = vpop.f32.mrb[0].mxu0
    %1625 = vmatprep.mubr.f32.mxu0 0.0
    %1626 = vmatmul.mubr.f32.gmra.mrb[0].mxu0 %v1554
    %v1627 = vpop.f32.mrb[0].mxu0
    %v1628 = vadd.f32 %v1548, %v1627
    %v1629 = vpop.f32.mrb[0].mxu0
    %1630 = vdwg.mxu0
    %v1631 = vadd.f32 %v80, %v1623
    %v1632 = vadd.f32 %v81, %v1628
    %v1633 = vld [vmem:[%s8] sm:$0x1]
    %v1634 = vld [vmem:[%s9] sm:$0x1]
    %v1635 = vsel %vm101, %v1631, 0.0
    %1636 = vadd.xlane.f32.xlu0 %v1635
    %v1637 = vpop.xlane.xlu0 %1636
    %v1638 = vsel %vm101, %v1632, 0.0
    %1639 = vadd.xlane.f32.xlu0 %v1638
    %v1640 = vpop.xlane.xlu0 %1639
    %v1641 = vrcp.pop 32.0
    %v1642 = vmul.f32 %v1637, %v1641
    %v1643 = vmul.f32 %v1640, %v1641
    %v1644 = vsub.f32 %v1631, %v1642
    %v1645 = vsub.f32 %v1632, %v1643
    %v1646 = vmul.f32 %v1644, %v1644
    %v1647 = vmul.f32 %v1645, %v1645
    %v1648 = vsel %vm101, %v1646, 0.0
    %1649 = vadd.xlane.f32.xlu0 %v1648
    %v1650 = vpop.xlane.xlu0 %1649
    %v1651 = vsel %vm101, %v1647, 0.0
    %1652 = vadd.xlane.f32.xlu0 %v1651
    %v1653 = vpop.xlane.xlu0 %1652
    %v1654 = vmul.f32 %v1650, %v1641
    %v1655 = vmul.f32 %v1653, %v1641
    %v1656 = vadd.f32 %v1654, 1e-05
    %v1657 = vadd.f32 %v1655, 1e-05
    %v1658 = vrsqrt.pop %v1656
    %v1659 = vrsqrt.pop %v1657
    %v1660 = vmul.f32 %v1644, %v1658
    %v1661 = vmul.f32 %v1645, %v1659
    %v1663 = vlaneseq
    %v1664 = vshrl.u32 %v1663, 7
    %v1665 = vsub.s32 0, %v1664
    %v1666 = vrot.slane %v1633, %v1665
    %v1668 = vmul.f32 %v1660, %v1666
    %v1669 = vmul.f32 %v1661, %v1666
    %v1671 = vlaneseq
    %v1672 = vshrl.u32 %v1671, 7
    %v1673 = vsub.s32 0, %v1672
    %v1674 = vrot.slane %v1634, %v1673
    %v1676 = vadd.f32 %v1668, %v1674
    %v1677 = vadd.f32 %v1669, %v1674
    %v1678 = vld [vmem:[%s10] sm:$0xff]
    %v1679 = vld [vmem:[%s10 + $0x8] sm:$0xff]
    %v1680 = vld [vmem:[%s10 + $0x10] sm:$0xff]
    %v1681 = vld [vmem:[%s10 + $0x18] sm:$0xff]
    %v1682 = vld [vmem:[%s11] sm:$0x1]
    %v1684 = vlaneseq
    %v1685 = vshrl.u32 %v1684, 7
    %v1686 = vsub.s32 0, %v1685
    %v1687 = vrot.slane %v1682, %v1686
    %v1690 = vsel %vm101, %v1676, 0
    %v1693 = vsel %vm101, %v1677, 0
    %1695 = vmatprep.subr.mxu0 0.0
    %1696 = vmatpush1.msra.mxu0 %v1678
    %1697 = vmatprep.subr.mxu0 0.0
    %1698 = vmatpush1.msra.mxu0 %v1679
    %1699 = vmatprep.subr.mxu0 0.0
    %1700 = vmatpush1.msra.mxu0 %v1680
    %1701 = vmatprep.subr.mxu0 0.0
    %1702 = vmatpush1.msra.mxu0 %v1681
    %1703 = vmatprep.subr.mxu0 0.0
    %1704 = vmatpush1.msra.mxu0 0.0
    %1705 = vmatprep.subr.mxu0 0.0
    %1706 = vmatpush1.msra.mxu0 0.0
    %1707 = vmatprep.subr.mxu0 0.0
    %1708 = vmatpush1.msra.mxu0 0.0
    %1709 = vmatprep.subr.mxu0 0.0
    %1710 = vmatpush1.msra.mxu0 0.0
    %1711 = vmatprep.subr.mxu0 0.0
    %1712 = vmatpush1.msra.mxu0 0.0
    %1713 = vmatprep.subr.mxu0 0.0
    %1714 = vmatpush1.msra.mxu0 0.0
    %1715 = vmatprep.subr.mxu0 0.0
    %1716 = vmatpush1.msra.mxu0 0.0
    %1717 = vmatprep.subr.mxu0 0.0
    %1718 = vmatpush1.msra.mxu0 0.0
    %1719 = vmatprep.subr.mxu0 0.0
    %1720 = vmatpush1.msra.mxu0 0.0
    %1721 = vmatprep.subr.mxu0 0.0
    %1722 = vmatpush1.msra.mxu0 0.0
    %1723 = vmatprep.subr.mxu0 0.0
    %1724 = vmatpush1.msra.mxu0 0.0
    %1725 = vmatprep.subr.mxu0 0.0
    %1726 = vmatpush1.msra.mxu0 0.0
    %1727 = vmatprep.subr.mxu0 0.0
    %1728 = vmatpush1.msra.mxu0 0.0
    %1729 = vmatprep.subr.mxu0 0.0
    %1730 = vmatpush1.msra.mxu0 0.0
    %1731 = vmatprep.subr.mxu0 0.0
    %1732 = vmatpush1.msra.mxu0 0.0
    %1733 = vmatprep.subr.mxu0 0.0
    %1734 = vmatpush1.msra.mxu0 0.0
    %1735 = vmatprep.subr.mxu0 0.0
    %1736 = vmatpush1.msra.mxu0 0.0
    %1737 = vmatprep.subr.mxu0 0.0
    %1738 = vmatpush1.msra.mxu0 0.0
    %1739 = vmatprep.subr.mxu0 0.0
    %1740 = vmatpush1.msra.mxu0 0.0
    %1741 = vmatprep.subr.mxu0 0.0
    %1742 = vmatpush1.msra.mxu0 0.0
    %1743 = vmatprep.subr.mxu0 0.0
    %1744 = vmatpush1.msra.mxu0 0.0
    %1745 = vmatprep.subr.mxu0 0.0
    %1746 = vmatpush1.msra.mxu0 0.0
    %1747 = vmatprep.subr.mxu0 0.0
    %1748 = vmatpush1.msra.mxu0 0.0
    %1749 = vmatprep.subr.mxu0 0.0
    %1750 = vmatpush1.msra.mxu0 0.0
    %1751 = vmatprep.subr.mxu0 0.0
    %1752 = vmatpush1.msra.mxu0 0.0
    %1753 = vmatprep.subr.mxu0 0.0
    %1754 = vmatpush1.msra.mxu0 0.0
    %1755 = vmatprep.subr.mxu0 0.0
    %1756 = vmatpush1.msra.mxu0 0.0
    %1757 = vmatprep.subr.mxu0 0.0
    %1758 = vmatpush1.msra.mxu0 0.0
    %1759 = vmatprep.mubr.f32.mxu0 0.0
    %1760 = vmatmul.mubr.f32.gmra.mrb[0].mxu0 %v1690
    %v1761 = vpop.f32.mrb[0].mxu0
    %v1762 = vadd.f32 %v1687, %v1761
    %v1763 = vpop.f32.mrb[0].mxu0
    %1764 = vmatprep.mubr.f32.mxu0 0.0
    %1765 = vmatmul.mubr.f32.gmra.mrb[0].mxu0 %v1693
    %v1766 = vpop.f32.mrb[0].mxu0
    %v1767 = vadd.f32 %v1687, %v1766
    %v1768 = vpop.f32.mrb[0].mxu0
    %1769 = vdwg.mxu0
    %1774 = vrot.lane.b32.xlu0 %v1678, 96
    %v1775 = vpop.permute.xlu0 %1774
    %1776 = vrot.lane.b32.xlu0 %v1679, 96
    %v1777 = vpop.permute.xlu0 %1776
    %1778 = vrot.lane.b32.xlu0 %v1680, 96
    %v1779 = vpop.permute.xlu0 %1778
    %1780 = vrot.lane.b32.xlu0 %v1681, 96
    %v1781 = vpop.permute.xlu0 %1780
    %1786 = vrot.lane.b32.xlu0 %v1687, 96
    %v1787 = vpop.permute.xlu0 %1786
    %v1790 = vsel %vm101, %v82, 0
    %v1793 = vsel %vm101, %v83, 0
    %v1796 = vsel %vm101, %v84, 0
    %v1799 = vsel %vm101, %v85, 0
    %1801 = vmatprep.subr.mxu0 0.0
    %1802 = vmatpush1.msra.mxu0 %v1775
    %1803 = vmatprep.subr.mxu0 0.0
    %1804 = vmatpush1.msra.mxu0 %v1777
    %1805 = vmatprep.subr.mxu0 0.0
    %1806 = vmatpush1.msra.mxu0 %v1779
    %1807 = vmatprep.subr.mxu0 0.0
    %1808 = vmatpush1.msra.mxu0 %v1781
    %1809 = vmatprep.subr.mxu0 0.0
    %1810 = vmatpush1.msra.mxu0 0.0
    %1811 = vmatprep.subr.mxu0 0.0
    %1812 = vmatpush1.msra.mxu0 0.0
    %1813 = vmatprep.subr.mxu0 0.0
    %1814 = vmatpush1.msra.mxu0 0.0
    %1815 = vmatprep.subr.mxu0 0.0
    %1816 = vmatpush1.msra.mxu0 0.0
    %1817 = vmatprep.subr.mxu0 0.0
    %1818 = vmatpush1.msra.mxu0 0.0
    %1819 = vmatprep.subr.mxu0 0.0
    %1820 = vmatpush1.msra.mxu0 0.0
    %1821 = vmatprep.subr.mxu0 0.0
    %1822 = vmatpush1.msra.mxu0 0.0
    %1823 = vmatprep.subr.mxu0 0.0
    %1824 = vmatpush1.msra.mxu0 0.0
    %1825 = vmatprep.subr.mxu0 0.0
    %1826 = vmatpush1.msra.mxu0 0.0
    %1827 = vmatprep.subr.mxu0 0.0
    %1828 = vmatpush1.msra.mxu0 0.0
    %1829 = vmatprep.subr.mxu0 0.0
    %1830 = vmatpush1.msra.mxu0 0.0
    %1831 = vmatprep.subr.mxu0 0.0
    %1832 = vmatpush1.msra.mxu0 0.0
    %1833 = vmatprep.subr.mxu0 0.0
    %1834 = vmatpush1.msra.mxu0 0.0
    %1835 = vmatprep.subr.mxu0 0.0
    %1836 = vmatpush1.msra.mxu0 0.0
    %1837 = vmatprep.subr.mxu0 0.0
    %1838 = vmatpush1.msra.mxu0 0.0
    %1839 = vmatprep.subr.mxu0 0.0
    %1840 = vmatpush1.msra.mxu0 0.0
    %1841 = vmatprep.subr.mxu0 0.0
    %1842 = vmatpush1.msra.mxu0 0.0
    %1843 = vmatprep.subr.mxu0 0.0
    %1844 = vmatpush1.msra.mxu0 0.0
    %1845 = vmatprep.subr.mxu0 0.0
    %1846 = vmatpush1.msra.mxu0 0.0
    %1847 = vmatprep.subr.mxu0 0.0
    %1848 = vmatpush1.msra.mxu0 0.0
    %1849 = vmatprep.subr.mxu0 0.0
    %1850 = vmatpush1.msra.mxu0 0.0
    %1851 = vmatprep.subr.mxu0 0.0
    %1852 = vmatpush1.msra.mxu0 0.0
    %1853 = vmatprep.subr.mxu0 0.0
    %1854 = vmatpush1.msra.mxu0 0.0
    %1855 = vmatprep.subr.mxu0 0.0
    %1856 = vmatpush1.msra.mxu0 0.0
    %1857 = vmatprep.subr.mxu0 0.0
    %1858 = vmatpush1.msra.mxu0 0.0
    %1859 = vmatprep.subr.mxu0 0.0
    %1860 = vmatpush1.msra.mxu0 0.0
    %1861 = vmatprep.subr.mxu0 0.0
    %1862 = vmatpush1.msra.mxu0 0.0
    %1863 = vmatprep.subr.mxu0 0.0
    %1864 = vmatpush1.msra.mxu0 0.0
    %1865 = vmatprep.mubr.f32.mxu0 0.0
    %1866 = vmatmul.mubr.f32.gmra.mrb[0].mxu0 %v1790
    %v1867 = vpop.f32.mrb[0].mxu0
    %v1868 = vadd.f32 %v1787, %v1867
    %v1869 = vpop.f32.mrb[0].mxu0
    %1870 = vmatprep.mubr.f32.mxu0 0.0
    %1871 = vmatmul.mubr.f32.gmra.mrb[0].mxu0 %v1793
    %v1872 = vpop.f32.mrb[0].mxu0
    %v1873 = vadd.f32 %v1787, %v1872
    %v1874 = vpop.f32.mrb[0].mxu0
    %1875 = vmatprep.mubr.f32.mxu0 0.0
    %1876 = vmatmul.mubr.f32.gmra.mrb[0].mxu0 %v1796
    %v1877 = vpop.f32.mrb[0].mxu0
    %v1878 = vadd.f32 %v1787, %v1877
    %v1879 = vpop.f32.mrb[0].mxu0
    %1880 = vmatprep.mubr.f32.mxu0 0.0
    %1881 = vmatmul.mubr.f32.gmra.mrb[0].mxu0 %v1799
    %v1882 = vpop.f32.mrb[0].mxu0
    %v1883 = vadd.f32 %v1787, %v1882
    %v1884 = vpop.f32.mrb[0].mxu0
    %1885 = vdwg.mxu0
    %v1887 = vsel %vm186, %v1762, 0
    %v1890 = vsel %vm186, %v1868, 0
    %v1893 = vsel %vm186, %v1873, 0
    %1895 = vmatprep.subr.mxu0 0.0
    %1896 = vmatpush1.xpose.msra.mxu0 %v1890
    %1897 = vmatprep.subr.mxu0 0.0
    %1898 = vmatpush1.xpose.msra.mxu0 %v1893
    %1899 = vmatprep.subr.mxu0 0.0
    %1900 = vmatpush1.xpose.msra.mxu0 0.0
    %1901 = vmatprep.subr.mxu0 0.0
    %1902 = vmatpush1.xpose.msra.mxu0 0.0
    %1903 = vmatprep.subr.mxu0 0.0
    %1904 = vmatpush1.xpose.msra.mxu0 0.0
    %1905 = vmatprep.subr.mxu0 0.0
    %1906 = vmatpush1.xpose.msra.mxu0 0.0
    %1907 = vmatprep.subr.mxu0 0.0
    %1908 = vmatpush1.xpose.msra.mxu0 0.0
    %1909 = vmatprep.subr.mxu0 0.0
    %1910 = vmatpush1.xpose.msra.mxu0 0.0
    %1911 = vmatprep.subr.mxu0 0.0
    %1912 = vmatpush1.xpose.msra.mxu0 0.0
    %1913 = vmatprep.subr.mxu0 0.0
    %1914 = vmatpush1.xpose.msra.mxu0 0.0
    %1915 = vmatprep.subr.mxu0 0.0
    %1916 = vmatpush1.xpose.msra.mxu0 0.0
    %1917 = vmatprep.subr.mxu0 0.0
    %1918 = vmatpush1.xpose.msra.mxu0 0.0
    %1919 = vmatprep.subr.mxu0 0.0
    %1920 = vmatpush1.xpose.msra.mxu0 0.0
    %1921 = vmatprep.subr.mxu0 0.0
    %1922 = vmatpush1.xpose.msra.mxu0 0.0
    %1923 = vmatprep.subr.mxu0 0.0
    %1924 = vmatpush1.xpose.msra.mxu0 0.0
    %1925 = vmatprep.subr.mxu0 0.0
    %1926 = vmatpush1.xpose.msra.mxu0 0.0
    %1927 = vmatprep.subr.mxu0 0.0
    %1928 = vmatpush1.xpose.msra.mxu0 0.0
    %1929 = vmatprep.subr.mxu0 0.0
    %1930 = vmatpush1.xpose.msra.mxu0 0.0
    %1931 = vmatprep.subr.mxu0 0.0
    %1932 = vmatpush1.xpose.msra.mxu0 0.0
    %1933 = vmatprep.subr.mxu0 0.0
    %1934 = vmatpush1.xpose.msra.mxu0 0.0
    %1935 = vmatprep.subr.mxu0 0.0
    %1936 = vmatpush1.xpose.msra.mxu0 0.0
    %1937 = vmatprep.subr.mxu0 0.0
    %1938 = vmatpush1.xpose.msra.mxu0 0.0
    %1939 = vmatprep.subr.mxu0 0.0
    %1940 = vmatpush1.xpose.msra.mxu0 0.0
    %1941 = vmatprep.subr.mxu0 0.0
    %1942 = vmatpush1.xpose.msra.mxu0 0.0
    %1943 = vmatprep.subr.mxu0 0.0
    %1944 = vmatpush1.xpose.msra.mxu0 0.0
    %1945 = vmatprep.subr.mxu0 0.0
    %1946 = vmatpush1.xpose.msra.mxu0 0.0
    %1947 = vmatprep.subr.mxu0 0.0
    %1948 = vmatpush1.xpose.msra.mxu0 0.0
    %1949 = vmatprep.subr.mxu0 0.0
    %1950 = vmatpush1.xpose.msra.mxu0 0.0
    %1951 = vmatprep.subr.mxu0 0.0
    %1952 = vmatpush1.xpose.msra.mxu0 0.0
    %1953 = vmatprep.subr.mxu0 0.0
    %1954 = vmatpush1.xpose.msra.mxu0 0.0
    %1955 = vmatprep.subr.mxu0 0.0
    %1956 = vmatpush1.xpose.msra.mxu0 0.0
    %1957 = vmatprep.subr.mxu0 0.0
    %1958 = vmatpush1.xpose.msra.mxu0 0.0
    %1959 = vmatprep.mubr.f32.mxu0 0.0
    %1960 = vmatmul.mubr.f32.gmra.mrb[0].mxu0 %v1887
    %v1961 = vpop.f32.mrb[0].mxu0
    %v1962 = vadd.f32 %v88, %v1961
    %v1963 = vpop.f32.mrb[0].mxu0
    %1964 = vdwg.mxu0
    %vm1965 = vcmask 130048
    %v1966 = vsel %vm1965, %v1962, -inf
    %1967 = vmax.xlane.f32.xlu0 %v1966
    %v1968 = vpop.xlane.xlu0 %1967
    %v1969 = vsub.f32 %v1962, %v1968
    %v1970 = vmul.f32 %v1969, 1.442695
    %v1971 = vpow.pop %v1970
    %v1972 = vsel %vm1965, %v1971, 0.0
    %1973 = vadd.xlane.f32.xlu0 %v1972
    %v1974 = vpop.xlane.xlu0 %1973
    %v1975 = vrcp.pop %v1974
    %v1976 = vmul.f32 %v1971, %v1975
    %1977 = vst.msk [vmem:[#allocation3] sm:$0xff] %vm1965, %v1976
    %1978 = vrot.lane.b32.xlu0 %v1868, 96
    %v1979 = vpop.permute.xlu0 %1978
    %1980 = vrot.lane.b32.xlu0 %v1873, 96
    %v1981 = vpop.permute.xlu0 %1980
    %v1985 = vsel %vm1965, %v1976, 0
    %1987 = vmatprep.subr.mxu0 0.0
    %1988 = vmatpush1.msra.mxu0 %v1979
    %1989 = vmatprep.subr.mxu0 0.0
    %1990 = vmatpush1.msra.mxu0 %v1981
    %1991 = vmatprep.subr.mxu0 0.0
    %1992 = vmatpush1.msra.mxu0 0.0
    %1993 = vmatprep.subr.mxu0 0.0
    %1994 = vmatpush1.msra.mxu0 0.0
    %1995 = vmatprep.subr.mxu0 0.0
    %1996 = vmatpush1.msra.mxu0 0.0
    %1997 = vmatprep.subr.mxu0 0.0
    %1998 = vmatpush1.msra.mxu0 0.0
    %1999 = vmatprep.subr.mxu0 0.0
    %2000 = vmatpush1.msra.mxu0 0.0
    %2001 = vmatprep.subr.mxu0 0.0
    %2002 = vmatpush1.msra.mxu0 0.0
    %2003 = vmatprep.subr.mxu0 0.0
    %2004 = vmatpush1.msra.mxu0 0.0
    %2005 = vmatprep.subr.mxu0 0.0
    %2006 = vmatpush1.msra.mxu0 0.0
    %2007 = vmatprep.subr.mxu0 0.0
    %2008 = vmatpush1.msra.mxu0 0.0
    %2009 = vmatprep.subr.mxu0 0.0
    %2010 = vmatpush1.msra.mxu0 0.0
    %2011 = vmatprep.subr.mxu0 0.0
    %2012 = vmatpush1.msra.mxu0 0.0
    %2013 = vmatprep.subr.mxu0 0.0
    %2014 = vmatpush1.msra.mxu0 0.0
    %2015 = vmatprep.subr.mxu0 0.0
    %2016 = vmatpush1.msra.mxu0 0.0
    %2017 = vmatprep.subr.mxu0 0.0
    %2018 = vmatpush1.msra.mxu0 0.0
    %2019 = vmatprep.subr.mxu0 0.0
    %2020 = vmatpush1.msra.mxu0 0.0
    %2021 = vmatprep.subr.mxu0 0.0
    %2022 = vmatpush1.msra.mxu0 0.0
    %2023 = vmatprep.subr.mxu0 0.0
    %2024 = vmatpush1.msra.mxu0 0.0
    %2025 = vmatprep.subr.mxu0 0.0
    %2026 = vmatpush1.msra.mxu0 0.0
    %2027 = vmatprep.subr.mxu0 0.0
    %2028 = vmatpush1.msra.mxu0 0.0
    %2029 = vmatprep.subr.mxu0 0.0
    %2030 = vmatpush1.msra.mxu0 0.0
    %2031 = vmatprep.subr.mxu0 0.0
    %2032 = vmatpush1.msra.mxu0 0.0
    %2033 = vmatprep.subr.mxu0 0.0
    %2034 = vmatpush1.msra.mxu0 0.0
    %2035 = vmatprep.subr.mxu0 0.0
    %2036 = vmatpush1.msra.mxu0 0.0
    %2037 = vmatprep.subr.mxu0 0.0
    %2038 = vmatpush1.msra.mxu0 0.0
    %2039 = vmatprep.subr.mxu0 0.0
    %2040 = vmatpush1.msra.mxu0 0.0
    %2041 = vmatprep.subr.mxu0 0.0
    %2042 = vmatpush1.msra.mxu0 0.0
    %2043 = vmatprep.subr.mxu0 0.0
    %2044 = vmatpush1.msra.mxu0 0.0
    %2045 = vmatprep.subr.mxu0 0.0
    %2046 = vmatpush1.msra.mxu0 0.0
    %2047 = vmatprep.subr.mxu0 0.0
    %2048 = vmatpush1.msra.mxu0 0.0
    %2049 = vmatprep.subr.mxu0 0.0
    %2050 = vmatpush1.msra.mxu0 0.0
    %2051 = vmatprep.mubr.f32.mxu0 0.0
    %2052 = vmatmul.mubr.f32.gmra.mrb[0].mxu0 %v1985
    %v2053 = vpop.f32.mrb[0].mxu0
    %v2054 = vadd.f32 0.0, %v2053
    %v2055 = vpop.f32.mrb[0].mxu0
    %2056 = vdwg.mxu0
    %2057 = vst.msk [vmem:[#allocation2] sm:$0xff] %vm186, %v2054
    %2058 = vrot.lane.b32.xlu0 %v1762, 120
    %v2059 = vpop.permute.xlu0 %2058
    %2060 = vrot.lane.b32.xlu0 %v1868, 120
    %v2061 = vpop.permute.xlu0 %2060
    %2062 = vrot.lane.b32.xlu0 %v1873, 120
    %v2063 = vpop.permute.xlu0 %2062
    %v2064 = vsel %vm186, %v2059, 0
    %v2066 = vsel %vm186, %v2061, 0
    %v2068 = vsel %vm186, %v2063, 0
    %2070 = vmatprep.subr.mxu0 0.0
    %2071 = vmatpush1.xpose.msra.mxu0 %v2066
    %2072 = vmatprep.subr.mxu0 0.0
    %2073 = vmatpush1.xpose.msra.mxu0 %v2068
    %2074 = vmatprep.subr.mxu0 0.0
    %2075 = vmatpush1.xpose.msra.mxu0 0.0
    %2076 = vmatprep.subr.mxu0 0.0
    %2077 = vmatpush1.xpose.msra.mxu0 0.0
    %2078 = vmatprep.subr.mxu0 0.0
    %2079 = vmatpush1.xpose.msra.mxu0 0.0
    %2080 = vmatprep.subr.mxu0 0.0
    %2081 = vmatpush1.xpose.msra.mxu0 0.0
    %2082 = vmatprep.subr.mxu0 0.0
    %2083 = vmatpush1.xpose.msra.mxu0 0.0
    %2084 = vmatprep.subr.mxu0 0.0
    %2085 = vmatpush1.xpose.msra.mxu0 0.0
    %2086 = vmatprep.subr.mxu0 0.0
    %2087 = vmatpush1.xpose.msra.mxu0 0.0
    %2088 = vmatprep.subr.mxu0 0.0
    %2089 = vmatpush1.xpose.msra.mxu0 0.0
    %2090 = vmatprep.subr.mxu0 0.0
    %2091 = vmatpush1.xpose.msra.mxu0 0.0
    %2092 = vmatprep.subr.mxu0 0.0
    %2093 = vmatpush1.xpose.msra.mxu0 0.0
    %2094 = vmatprep.subr.mxu0 0.0
    %2095 = vmatpush1.xpose.msra.mxu0 0.0
    %2096 = vmatprep.subr.mxu0 0.0
    %2097 = vmatpush1.xpose.msra.mxu0 0.0
    %2098 = vmatprep.subr.mxu0 0.0
    %2099 = vmatpush1.xpose.msra.mxu0 0.0
    %2100 = vmatprep.subr.mxu0 0.0
    %2101 = vmatpush1.xpose.msra.mxu0 0.0
    %2102 = vmatprep.subr.mxu0 0.0
    %2103 = vmatpush1.xpose.msra.mxu0 0.0
    %2104 = vmatprep.subr.mxu0 0.0
    %2105 = vmatpush1.xpose.msra.mxu0 0.0
    %2106 = vmatprep.subr.mxu0 0.0
    %2107 = vmatpush1.xpose.msra.mxu0 0.0
    %2108 = vmatprep.subr.mxu0 0.0
    %2109 = vmatpush1.xpose.msra.mxu0 0.0
    %2110 = vmatprep.subr.mxu0 0.0
    %2111 = vmatpush1.xpose.msra.mxu0 0.0
    %2112 = vmatprep.subr.mxu0 0.0
    %2113 = vmatpush1.xpose.msra.mxu0 0.0
    %2114 = vmatprep.subr.mxu0 0.0
    %2115 = vmatpush1.xpose.msra.mxu0 0.0
    %2116 = vmatprep.subr.mxu0 0.0
    %2117 = vmatpush1.xpose.msra.mxu0 0.0
    %2118 = vmatprep.subr.mxu0 0.0
    %2119 = vmatpush1.xpose.msra.mxu0 0.0
    %2120 = vmatprep.subr.mxu0 0.0
    %2121 = vmatpush1.xpose.msra.mxu0 0.0
    %2122 = vmatprep.subr.mxu0 0.0
    %2123 = vmatpush1.xpose.msra.mxu0 0.0
    %2124 = vmatprep.subr.mxu0 0.0
    %2125 = vmatpush1.xpose.msra.mxu0 0.0
    %2126 = vmatprep.subr.mxu0 0.0
    %2127 = vmatpush1.xpose.msra.mxu0 0.0
    %2128 = vmatprep.subr.mxu0 0.0
    %2129 = vmatpush1.xpose.msra.mxu0 0.0
    %2130 = vmatprep.subr.mxu0 0.0
    %2131 = vmatpush1.xpose.msra.mxu0 0.0
    %2132 = vmatprep.subr.mxu0 0.0
    %2133 = vmatpush1.xpose.msra.mxu0 0.0
    %2134 = vmatprep.mubr.f32.mxu0 0.0
    %2135 = vmatmul.mubr.f32.gmra.mrb[0].mxu0 %v2064
    %v2136 = vpop.f32.mrb[0].mxu0
    %v2137 = vadd.f32 %v88, %v2136
    %v2138 = vpop.f32.mrb[0].mxu0
    %2139 = vdwg.mxu0
    %v2140 = vsel %vm1965, %v2137, -inf
    %2141 = vmax.xlane.f32.xlu0 %v2140
    %v2142 = vpop.xlane.xlu0 %2141
    %v2143 = vsub.f32 %v2137, %v2142
    %v2144 = vmul.f32 %v2143, 1.442695
    %v2145 = vpow.pop %v2144
    %v2146 = vsel %vm1965, %v2145, 0.0
    %2147 = vadd.xlane.f32.xlu0 %v2146
    %v2148 = vpop.xlane.xlu0 %2147
    %v2149 = vrcp.pop %v2148
    %v2150 = vmul.f32 %v2145, %v2149
    %s2151 = scalar_lea.vmem [#allocation3], 8
    %2152 = vst.msk [vmem:[%s2151] sm:$0xff] %vm1965, %v2150
    %2153 = vrot.lane.b32.xlu0 %v1868, 88
    %v2154 = vpop.permute.xlu0 %2153
    %2155 = vrot.lane.b32.xlu0 %v1873, 88
    %v2156 = vpop.permute.xlu0 %2155
    %v2160 = vsel %vm1965, %v2150, 0
    %2162 = vmatprep.subr.mxu0 0.0
    %2163 = vmatpush1.msra.mxu0 %v2154
    %2164 = vmatprep.subr.mxu0 0.0
    %2165 = vmatpush1.msra.mxu0 %v2156
    %2166 = vmatprep.subr.mxu0 0.0
    %2167 = vmatpush1.msra.mxu0 0.0
    %2168 = vmatprep.subr.mxu0 0.0
    %2169 = vmatpush1.msra.mxu0 0.0
    %2170 = vmatprep.subr.mxu0 0.0
    %2171 = vmatpush1.msra.mxu0 0.0
    %2172 = vmatprep.subr.mxu0 0.0
    %2173 = vmatpush1.msra.mxu0 0.0
    %2174 = vmatprep.subr.mxu0 0.0
    %2175 = vmatpush1.msra.mxu0 0.0
    %2176 = vmatprep.subr.mxu0 0.0
    %2177 = vmatpush1.msra.mxu0 0.0
    %2178 = vmatprep.subr.mxu0 0.0
    %2179 = vmatpush1.msra.mxu0 0.0
    %2180 = vmatprep.subr.mxu0 0.0
    %2181 = vmatpush1.msra.mxu0 0.0
    %2182 = vmatprep.subr.mxu0 0.0
    %2183 = vmatpush1.msra.mxu0 0.0
    %2184 = vmatprep.subr.mxu0 0.0
    %2185 = vmatpush1.msra.mxu0 0.0
    %2186 = vmatprep.subr.mxu0 0.0
    %2187 = vmatpush1.msra.mxu0 0.0
    %2188 = vmatprep.subr.mxu0 0.0
    %2189 = vmatpush1.msra.mxu0 0.0
    %2190 = vmatprep.subr.mxu0 0.0
    %2191 = vmatpush1.msra.mxu0 0.0
    %2192 = vmatprep.subr.mxu0 0.0
    %2193 = vmatpush1.msra.mxu0 0.0
    %2194 = vmatprep.subr.mxu0 0.0
    %2195 = vmatpush1.msra.mxu0 0.0
    %2196 = vmatprep.subr.mxu0 0.0
    %2197 = vmatpush1.msra.mxu0 0.0
    %2198 = vmatprep.subr.mxu0 0.0
    %2199 = vmatpush1.msra.mxu0 0.0
    %2200 = vmatprep.subr.mxu0 0.0
    %2201 = vmatpush1.msra.mxu0 0.0
    %2202 = vmatprep.subr.mxu0 0.0
    %2203 = vmatpush1.msra.mxu0 0.0
    %2204 = vmatprep.subr.mxu0 0.0
    %2205 = vmatpush1.msra.mxu0 0.0
    %2206 = vmatprep.subr.mxu0 0.0
    %2207 = vmatpush1.msra.mxu0 0.0
    %2208 = vmatprep.subr.mxu0 0.0
    %2209 = vmatpush1.msra.mxu0 0.0
    %2210 = vmatprep.subr.mxu0 0.0
    %2211 = vmatpush1.msra.mxu0 0.0
    %2212 = vmatprep.subr.mxu0 0.0
    %2213 = vmatpush1.msra.mxu0 0.0
    %2214 = vmatprep.subr.mxu0 0.0
    %2215 = vmatpush1.msra.mxu0 0.0
    %2216 = vmatprep.subr.mxu0 0.0
    %2217 = vmatpush1.msra.mxu0 0.0
    %2218 = vmatprep.subr.mxu0 0.0
    %2219 = vmatpush1.msra.mxu0 0.0
    %2220 = vmatprep.subr.mxu0 0.0
    %2221 = vmatpush1.msra.mxu0 0.0
    %2222 = vmatprep.subr.mxu0 0.0
    %2223 = vmatpush1.msra.mxu0 0.0
    %2224 = vmatprep.subr.mxu0 0.0
    %2225 = vmatpush1.msra.mxu0 0.0
    %2226 = vmatprep.mubr.f32.mxu0 0.0
    %2227 = vmatmul.mubr.f32.gmra.mrb[0].mxu0 %v2160
    %v2228 = vpop.f32.mrb[0].mxu0
    %v2229 = vadd.f32 0.0, %v2228
    %v2230 = vpop.f32.mrb[0].mxu0
    %2231 = vdwg.mxu0
    %2233 = vrot.lane.b32.xlu0 %v2229, 8
    %v2234 = vpop.permute.xlu0 %2233
    %2236 = vst.msk [vmem:[#allocation2] sm:$0xff] %vm518, %v2234
    %2237 = vrot.lane.b32.xlu0 %v1762, 112
    %v2238 = vpop.permute.xlu0 %2237
    %2239 = vrot.lane.b32.xlu0 %v1868, 112
    %v2240 = vpop.permute.xlu0 %2239
    %2241 = vrot.lane.b32.xlu0 %v1873, 112
    %v2242 = vpop.permute.xlu0 %2241
    %v2243 = vsel %vm186, %v2238, 0
    %v2245 = vsel %vm186, %v2240, 0
    %v2247 = vsel %vm186, %v2242, 0
    %2249 = vmatprep.subr.mxu0 0.0
    %2250 = vmatpush1.xpose.msra.mxu0 %v2245
    %2251 = vmatprep.subr.mxu0 0.0
    %2252 = vmatpush1.xpose.msra.mxu0 %v2247
    %2253 = vmatprep.subr.mxu0 0.0
    %2254 = vmatpush1.xpose.msra.mxu0 0.0
    %2255 = vmatprep.subr.mxu0 0.0
    %2256 = vmatpush1.xpose.msra.mxu0 0.0
    %2257 = vmatprep.subr.mxu0 0.0
    %2258 = vmatpush1.xpose.msra.mxu0 0.0
    %2259 = vmatprep.subr.mxu0 0.0
    %2260 = vmatpush1.xpose.msra.mxu0 0.0
    %2261 = vmatprep.subr.mxu0 0.0
    %2262 = vmatpush1.xpose.msra.mxu0 0.0
    %2263 = vmatprep.subr.mxu0 0.0
    %2264 = vmatpush1.xpose.msra.mxu0 0.0
    %2265 = vmatprep.subr.mxu0 0.0
    %2266 = vmatpush1.xpose.msra.mxu0 0.0
    %2267 = vmatprep.subr.mxu0 0.0
    %2268 = vmatpush1.xpose.msra.mxu0 0.0
    %2269 = vmatprep.subr.mxu0 0.0
    %2270 = vmatpush1.xpose.msra.mxu0 0.0
    %2271 = vmatprep.subr.mxu0 0.0
    %2272 = vmatpush1.xpose.msra.mxu0 0.0
    %2273 = vmatprep.subr.mxu0 0.0
    %2274 = vmatpush1.xpose.msra.mxu0 0.0
    %2275 = vmatprep.subr.mxu0 0.0
    %2276 = vmatpush1.xpose.msra.mxu0 0.0
    %2277 = vmatprep.subr.mxu0 0.0
    %2278 = vmatpush1.xpose.msra.mxu0 0.0
    %2279 = vmatprep.subr.mxu0 0.0
    %2280 = vmatpush1.xpose.msra.mxu0 0.0
    %2281 = vmatprep.subr.mxu0 0.0
    %2282 = vmatpush1.xpose.msra.mxu0 0.0
    %2283 = vmatprep.subr.mxu0 0.0
    %2284 = vmatpush1.xpose.msra.mxu0 0.0
    %2285 = vmatprep.subr.mxu0 0.0
    %2286 = vmatpush1.xpose.msra.mxu0 0.0
    %2287 = vmatprep.subr.mxu0 0.0
    %2288 = vmatpush1.xpose.msra.mxu0 0.0
    %2289 = vmatprep.subr.mxu0 0.0
    %2290 = vmatpush1.xpose.msra.mxu0 0.0
    %2291 = vmatprep.subr.mxu0 0.0
    %2292 = vmatpush1.xpose.msra.mxu0 0.0
    %2293 = vmatprep.subr.mxu0 0.0
    %2294 = vmatpush1.xpose.msra.mxu0 0.0
    %2295 = vmatprep.subr.mxu0 0.0
    %2296 = vmatpush1.xpose.msra.mxu0 0.0
    %2297 = vmatprep.subr.mxu0 0.0
    %2298 = vmatpush1.xpose.msra.mxu0 0.0
    %2299 = vmatprep.subr.mxu0 0.0
    %2300 = vmatpush1.xpose.msra.mxu0 0.0
    %2301 = vmatprep.subr.mxu0 0.0
    %2302 = vmatpush1.xpose.msra.mxu0 0.0
    %2303 = vmatprep.subr.mxu0 0.0
    %2304 = vmatpush1.xpose.msra.mxu0 0.0
    %2305 = vmatprep.subr.mxu0 0.0
    %2306 = vmatpush1.xpose.msra.mxu0 0.0
    %2307 = vmatprep.subr.mxu0 0.0
    %2308 = vmatpush1.xpose.msra.mxu0 0.0
    %2309 = vmatprep.subr.mxu0 0.0
    %2310 = vmatpush1.xpose.msra.mxu0 0.0
    %2311 = vmatprep.subr.mxu0 0.0
    %2312 = vmatpush1.xpose.msra.mxu0 0.0
    %2313 = vmatprep.mubr.f32.mxu0 0.0
    %2314 = vmatmul.mubr.f32.gmra.mrb[0].mxu0 %v2243
    %v2315 = vpop.f32.mrb[0].mxu0
    %v2316 = vadd.f32 %v88, %v2315
    %v2317 = vpop.f32.mrb[0].mxu0
    %2318 = vdwg.mxu0
    %v2319 = vsel %vm1965, %v2316, -inf
    %2320 = vmax.xlane.f32.xlu0 %v2319
    %v2321 = vpop.xlane.xlu0 %2320
    %v2322 = vsub.f32 %v2316, %v2321
    %v2323 = vmul.f32 %v2322, 1.442695
    %v2324 = vpow.pop %v2323
    %v2325 = vsel %vm1965, %v2324, 0.0
    %2326 = vadd.xlane.f32.xlu0 %v2325
    %v2327 = vpop.xlane.xlu0 %2326
    %v2328 = vrcp.pop %v2327
    %v2329 = vmul.f32 %v2324, %v2328
    %s2330 = scalar_lea.vmem [#allocation3], 16
    %2331 = vst.msk [vmem:[%s2330] sm:$0xff] %vm1965, %v2329
    %2332 = vrot.lane.b32.xlu0 %v1868, 80
    %v2333 = vpop.permute.xlu0 %2332
    %2334 = vrot.lane.b32.xlu0 %v1873, 80
    %v2335 = vpop.permute.xlu0 %2334
    %v2339 = vsel %vm1965, %v2329, 0
    %2341 = vmatprep.subr.mxu0 0.0
    %2342 = vmatpush1.msra.mxu0 %v2333
    %2343 = vmatprep.subr.mxu0 0.0
    %2344 = vmatpush1.msra.mxu0 %v2335
    %2345 = vmatprep.subr.mxu0 0.0
    %2346 = vmatpush1.msra.mxu0 0.0
    %2347 = vmatprep.subr.mxu0 0.0
    %2348 = vmatpush1.msra.mxu0 0.0
    %2349 = vmatprep.subr.mxu0 0.0
    %2350 = vmatpush1.msra.mxu0 0.0
    %2351 = vmatprep.subr.mxu0 0.0
    %2352 = vmatpush1.msra.mxu0 0.0
    %2353 = vmatprep.subr.mxu0 0.0
    %2354 = vmatpush1.msra.mxu0 0.0
    %2355 = vmatprep.subr.mxu0 0.0
    %2356 = vmatpush1.msra.mxu0 0.0
    %2357 = vmatprep.subr.mxu0 0.0
    %2358 = vmatpush1.msra.mxu0 0.0
    %2359 = vmatprep.subr.mxu0 0.0
    %2360 = vmatpush1.msra.mxu0 0.0
    %2361 = vmatprep.subr.mxu0 0.0
    %2362 = vmatpush1.msra.mxu0 0.0
    %2363 = vmatprep.subr.mxu0 0.0
    %2364 = vmatpush1.msra.mxu0 0.0
    %2365 = vmatprep.subr.mxu0 0.0
    %2366 = vmatpush1.msra.mxu0 0.0
    %2367 = vmatprep.subr.mxu0 0.0
    %2368 = vmatpush1.msra.mxu0 0.0
    %2369 = vmatprep.subr.mxu0 0.0
    %2370 = vmatpush1.msra.mxu0 0.0
    %2371 = vmatprep.subr.mxu0 0.0
    %2372 = vmatpush1.msra.mxu0 0.0
    %2373 = vmatprep.subr.mxu0 0.0
    %2374 = vmatpush1.msra.mxu0 0.0
    %2375 = vmatprep.subr.mxu0 0.0
    %2376 = vmatpush1.msra.mxu0 0.0
    %2377 = vmatprep.subr.mxu0 0.0
    %2378 = vmatpush1.msra.mxu0 0.0
    %2379 = vmatprep.subr.mxu0 0.0
    %2380 = vmatpush1.msra.mxu0 0.0
    %2381 = vmatprep.subr.mxu0 0.0
    %2382 = vmatpush1.msra.mxu0 0.0
    %2383 = vmatprep.subr.mxu0 0.0
    %2384 = vmatpush1.msra.mxu0 0.0
    %2385 = vmatprep.subr.mxu0 0.0
    %2386 = vmatpush1.msra.mxu0 0.0
    %2387 = vmatprep.subr.mxu0 0.0
    %2388 = vmatpush1.msra.mxu0 0.0
    %2389 = vmatprep.subr.mxu0 0.0
    %2390 = vmatpush1.msra.mxu0 0.0
    %2391 = vmatprep.subr.mxu0 0.0
    %2392 = vmatpush1.msra.mxu0 0.0
    %2393 = vmatprep.subr.mxu0 0.0
    %2394 = vmatpush1.msra.mxu0 0.0
    %2395 = vmatprep.subr.mxu0 0.0
    %2396 = vmatpush1.msra.mxu0 0.0
    %2397 = vmatprep.subr.mxu0 0.0
    %2398 = vmatpush1.msra.mxu0 0.0
    %2399 = vmatprep.subr.mxu0 0.0
    %2400 = vmatpush1.msra.mxu0 0.0
    %2401 = vmatprep.subr.mxu0 0.0
    %2402 = vmatpush1.msra.mxu0 0.0
    %2403 = vmatprep.subr.mxu0 0.0
    %2404 = vmatpush1.msra.mxu0 0.0
    %2405 = vmatprep.mubr.f32.mxu0 0.0
    %2406 = vmatmul.mubr.f32.gmra.mrb[0].mxu0 %v2339
    %v2407 = vpop.f32.mrb[0].mxu0
    %v2408 = vadd.f32 0.0, %v2407
    %v2409 = vpop.f32.mrb[0].mxu0
    %2410 = vdwg.mxu0
    %2412 = vrot.lane.b32.xlu0 %v2408, 16
    %v2413 = vpop.permute.xlu0 %2412
    %2415 = vst.msk [vmem:[#allocation2] sm:$0xff] %vm689, %v2413
    %2416 = vrot.lane.b32.xlu0 %v1762, 104
    %v2417 = vpop.permute.xlu0 %2416
    %2418 = vrot.lane.b32.xlu0 %v1868, 104
    %v2419 = vpop.permute.xlu0 %2418
    %2420 = vrot.lane.b32.xlu0 %v1873, 104
    %v2421 = vpop.permute.xlu0 %2420
    %v2422 = vsel %vm186, %v2417, 0
    %v2424 = vsel %vm186, %v2419, 0
    %v2426 = vsel %vm186, %v2421, 0
    %2428 = vmatprep.subr.mxu0 0.0
    %2429 = vmatpush1.xpose.msra.mxu0 %v2424
    %2430 = vmatprep.subr.mxu0 0.0
    %2431 = vmatpush1.xpose.msra.mxu0 %v2426
    %2432 = vmatprep.subr.mxu0 0.0
    %2433 = vmatpush1.xpose.msra.mxu0 0.0
    %2434 = vmatprep.subr.mxu0 0.0
    %2435 = vmatpush1.xpose.msra.mxu0 0.0
    %2436 = vmatprep.subr.mxu0 0.0
    %2437 = vmatpush1.xpose.msra.mxu0 0.0
    %2438 = vmatprep.subr.mxu0 0.0
    %2439 = vmatpush1.xpose.msra.mxu0 0.0
    %2440 = vmatprep.subr.mxu0 0.0
    %2441 = vmatpush1.xpose.msra.mxu0 0.0
    %2442 = vmatprep.subr.mxu0 0.0
    %2443 = vmatpush1.xpose.msra.mxu0 0.0
    %2444 = vmatprep.subr.mxu0 0.0
    %2445 = vmatpush1.xpose.msra.mxu0 0.0
    %2446 = vmatprep.subr.mxu0 0.0
    %2447 = vmatpush1.xpose.msra.mxu0 0.0
    %2448 = vmatprep.subr.mxu0 0.0
    %2449 = vmatpush1.xpose.msra.mxu0 0.0
    %2450 = vmatprep.subr.mxu0 0.0
    %2451 = vmatpush1.xpose.msra.mxu0 0.0
    %2452 = vmatprep.subr.mxu0 0.0
    %2453 = vmatpush1.xpose.msra.mxu0 0.0
    %2454 = vmatprep.subr.mxu0 0.0
    %2455 = vmatpush1.xpose.msra.mxu0 0.0
    %2456 = vmatprep.subr.mxu0 0.0
    %2457 = vmatpush1.xpose.msra.mxu0 0.0
    %2458 = vmatprep.subr.mxu0 0.0
    %2459 = vmatpush1.xpose.msra.mxu0 0.0
    %2460 = vmatprep.subr.mxu0 0.0
    %2461 = vmatpush1.xpose.msra.mxu0 0.0
    %2462 = vmatprep.subr.mxu0 0.0
    %2463 = vmatpush1.xpose.msra.mxu0 0.0
    %2464 = vmatprep.subr.mxu0 0.0
    %2465 = vmatpush1.xpose.msra.mxu0 0.0
    %2466 = vmatprep.subr.mxu0 0.0
    %2467 = vmatpush1.xpose.msra.mxu0 0.0
    %2468 = vmatprep.subr.mxu0 0.0
    %2469 = vmatpush1.xpose.msra.mxu0 0.0
    %2470 = vmatprep.subr.mxu0 0.0
    %2471 = vmatpush1.xpose.msra.mxu0 0.0
    %2472 = vmatprep.subr.mxu0 0.0
    %2473 = vmatpush1.xpose.msra.mxu0 0.0
    %2474 = vmatprep.subr.mxu0 0.0
    %2475 = vmatpush1.xpose.msra.mxu0 0.0
    %2476 = vmatprep.subr.mxu0 0.0
    %2477 = vmatpush1.xpose.msra.mxu0 0.0
    %2478 = vmatprep.subr.mxu0 0.0
    %2479 = vmatpush1.xpose.msra.mxu0 0.0
    %2480 = vmatprep.subr.mxu0 0.0
    %2481 = vmatpush1.xpose.msra.mxu0 0.0
    %2482 = vmatprep.subr.mxu0 0.0
    %2483 = vmatpush1.xpose.msra.mxu0 0.0
    %2484 = vmatprep.subr.mxu0 0.0
    %2485 = vmatpush1.xpose.msra.mxu0 0.0
    %2486 = vmatprep.subr.mxu0 0.0
    %2487 = vmatpush1.xpose.msra.mxu0 0.0
    %2488 = vmatprep.subr.mxu0 0.0
    %2489 = vmatpush1.xpose.msra.mxu0 0.0
    %2490 = vmatprep.subr.mxu0 0.0
    %2491 = vmatpush1.xpose.msra.mxu0 0.0
    %2492 = vmatprep.mubr.f32.mxu0 0.0
    %2493 = vmatmul.mubr.f32.gmra.mrb[0].mxu0 %v2422
    %v2494 = vpop.f32.mrb[0].mxu0
    %v2495 = vadd.f32 %v88, %v2494
    %v2496 = vpop.f32.mrb[0].mxu0
    %2497 = vdwg.mxu0
    %v2498 = vsel %vm1965, %v2495, -inf
    %2499 = vmax.xlane.f32.xlu0 %v2498
    %v2500 = vpop.xlane.xlu0 %2499
    %v2501 = vsub.f32 %v2495, %v2500
    %v2502 = vmul.f32 %v2501, 1.442695
    %v2503 = vpow.pop %v2502
    %v2504 = vsel %vm1965, %v2503, 0.0
    %2505 = vadd.xlane.f32.xlu0 %v2504
    %v2506 = vpop.xlane.xlu0 %2505
    %v2507 = vrcp.pop %v2506
    %v2508 = vmul.f32 %v2503, %v2507
    %s2509 = scalar_lea.vmem [#allocation3], 24
    %2510 = vst.msk [vmem:[%s2509] sm:$0xff] %vm1965, %v2508
    %2511 = vrot.lane.b32.xlu0 %v1868, 72
    %v2512 = vpop.permute.xlu0 %2511
    %2513 = vrot.lane.b32.xlu0 %v1873, 72
    %v2514 = vpop.permute.xlu0 %2513
    %v2518 = vsel %vm1965, %v2508, 0
    %2520 = vmatprep.subr.mxu0 0.0
    %2521 = vmatpush1.msra.mxu0 %v2512
    %2522 = vmatprep.subr.mxu0 0.0
    %2523 = vmatpush1.msra.mxu0 %v2514
    %2524 = vmatprep.subr.mxu0 0.0
    %2525 = vmatpush1.msra.mxu0 0.0
    %2526 = vmatprep.subr.mxu0 0.0
    %2527 = vmatpush1.msra.mxu0 0.0
    %2528 = vmatprep.subr.mxu0 0.0
    %2529 = vmatpush1.msra.mxu0 0.0
    %2530 = vmatprep.subr.mxu0 0.0
    %2531 = vmatpush1.msra.mxu0 0.0
    %2532 = vmatprep.subr.mxu0 0.0
    %2533 = vmatpush1.msra.mxu0 0.0
    %2534 = vmatprep.subr.mxu0 0.0
    %2535 = vmatpush1.msra.mxu0 0.0
    %2536 = vmatprep.subr.mxu0 0.0
    %2537 = vmatpush1.msra.mxu0 0.0
    %2538 = vmatprep.subr.mxu0 0.0
    %2539 = vmatpush1.msra.mxu0 0.0
    %2540 = vmatprep.subr.mxu0 0.0
    %2541 = vmatpush1.msra.mxu0 0.0
    %2542 = vmatprep.subr.mxu0 0.0
    %2543 = vmatpush1.msra.mxu0 0.0
    %2544 = vmatprep.subr.mxu0 0.0
    %2545 = vmatpush1.msra.mxu0 0.0
    %2546 = vmatprep.subr.mxu0 0.0
    %2547 = vmatpush1.msra.mxu0 0.0
    %2548 = vmatprep.subr.mxu0 0.0
    %2549 = vmatpush1.msra.mxu0 0.0
    %2550 = vmatprep.subr.mxu0 0.0
    %2551 = vmatpush1.msra.mxu0 0.0
    %2552 = vmatprep.subr.mxu0 0.0
    %2553 = vmatpush1.msra.mxu0 0.0
    %2554 = vmatprep.subr.mxu0 0.0
    %2555 = vmatpush1.msra.mxu0 0.0
    %2556 = vmatprep.subr.mxu0 0.0
    %2557 = vmatpush1.msra.mxu0 0.0
    %2558 = vmatprep.subr.mxu0 0.0
    %2559 = vmatpush1.msra.mxu0 0.0
    %2560 = vmatprep.subr.mxu0 0.0
    %2561 = vmatpush1.msra.mxu0 0.0
    %2562 = vmatprep.subr.mxu0 0.0
    %2563 = vmatpush1.msra.mxu0 0.0
    %2564 = vmatprep.subr.mxu0 0.0
    %2565 = vmatpush1.msra.mxu0 0.0
    %2566 = vmatprep.subr.mxu0 0.0
    %2567 = vmatpush1.msra.mxu0 0.0
    %2568 = vmatprep.subr.mxu0 0.0
    %2569 = vmatpush1.msra.mxu0 0.0
    %2570 = vmatprep.subr.mxu0 0.0
    %2571 = vmatpush1.msra.mxu0 0.0
    %2572 = vmatprep.subr.mxu0 0.0
    %2573 = vmatpush1.msra.mxu0 0.0
    %2574 = vmatprep.subr.mxu0 0.0
    %2575 = vmatpush1.msra.mxu0 0.0
    %2576 = vmatprep.subr.mxu0 0.0
    %2577 = vmatpush1.msra.mxu0 0.0
    %2578 = vmatprep.subr.mxu0 0.0
    %2579 = vmatpush1.msra.mxu0 0.0
    %2580 = vmatprep.subr.mxu0 0.0
    %2581 = vmatpush1.msra.mxu0 0.0
    %2582 = vmatprep.subr.mxu0 0.0
    %2583 = vmatpush1.msra.mxu0 0.0
    %2584 = vmatprep.mubr.f32.mxu0 0.0
    %2585 = vmatmul.mubr.f32.gmra.mrb[0].mxu0 %v2518
    %v2586 = vpop.f32.mrb[0].mxu0
    %v2587 = vadd.f32 0.0, %v2586
    %v2588 = vpop.f32.mrb[0].mxu0
    %2589 = vdwg.mxu0
    %2591 = vrot.lane.b32.xlu0 %v2587, 24
    %v2592 = vpop.permute.xlu0 %2591
    %2594 = vst.msk [vmem:[#allocation2] sm:$0xff] %vm860, %v2592
    %v2596 = vsel %vm186, %v1767, 0
    %v2599 = vsel %vm186, %v1878, 0
    %v2602 = vsel %vm186, %v1883, 0
    %2604 = vmatprep.subr.mxu0 0.0
    %2605 = vmatpush1.xpose.msra.mxu0 %v2599
    %2606 = vmatprep.subr.mxu0 0.0
    %2607 = vmatpush1.xpose.msra.mxu0 %v2602
    %2608 = vmatprep.subr.mxu0 0.0
    %2609 = vmatpush1.xpose.msra.mxu0 0.0
    %2610 = vmatprep.subr.mxu0 0.0
    %2611 = vmatpush1.xpose.msra.mxu0 0.0
    %2612 = vmatprep.subr.mxu0 0.0
    %2613 = vmatpush1.xpose.msra.mxu0 0.0
    %2614 = vmatprep.subr.mxu0 0.0
    %2615 = vmatpush1.xpose.msra.mxu0 0.0
    %2616 = vmatprep.subr.mxu0 0.0
    %2617 = vmatpush1.xpose.msra.mxu0 0.0
    %2618 = vmatprep.subr.mxu0 0.0
    %2619 = vmatpush1.xpose.msra.mxu0 0.0
    %2620 = vmatprep.subr.mxu0 0.0
    %2621 = vmatpush1.xpose.msra.mxu0 0.0
    %2622 = vmatprep.subr.mxu0 0.0
    %2623 = vmatpush1.xpose.msra.mxu0 0.0
    %2624 = vmatprep.subr.mxu0 0.0
    %2625 = vmatpush1.xpose.msra.mxu0 0.0
    %2626 = vmatprep.subr.mxu0 0.0
    %2627 = vmatpush1.xpose.msra.mxu0 0.0
    %2628 = vmatprep.subr.mxu0 0.0
    %2629 = vmatpush1.xpose.msra.mxu0 0.0
    %2630 = vmatprep.subr.mxu0 0.0
    %2631 = vmatpush1.xpose.msra.mxu0 0.0
    %2632 = vmatprep.subr.mxu0 0.0
    %2633 = vmatpush1.xpose.msra.mxu0 0.0
    %2634 = vmatprep.subr.mxu0 0.0
    %2635 = vmatpush1.xpose.msra.mxu0 0.0
    %2636 = vmatprep.subr.mxu0 0.0
    %2637 = vmatpush1.xpose.msra.mxu0 0.0
    %2638 = vmatprep.subr.mxu0 0.0
    %2639 = vmatpush1.xpose.msra.mxu0 0.0
    %2640 = vmatprep.subr.mxu0 0.0
    %2641 = vmatpush1.xpose.msra.mxu0 0.0
    %2642 = vmatprep.subr.mxu0 0.0
    %2643 = vmatpush1.xpose.msra.mxu0 0.0
    %2644 = vmatprep.subr.mxu0 0.0
    %2645 = vmatpush1.xpose.msra.mxu0 0.0
    %2646 = vmatprep.subr.mxu0 0.0
    %2647 = vmatpush1.xpose.msra.mxu0 0.0
    %2648 = vmatprep.subr.mxu0 0.0
    %2649 = vmatpush1.xpose.msra.mxu0 0.0
    %2650 = vmatprep.subr.mxu0 0.0
    %2651 = vmatpush1.xpose.msra.mxu0 0.0
    %2652 = vmatprep.subr.mxu0 0.0
    %2653 = vmatpush1.xpose.msra.mxu0 0.0
    %2654 = vmatprep.subr.mxu0 0.0
    %2655 = vmatpush1.xpose.msra.mxu0 0.0
    %2656 = vmatprep.subr.mxu0 0.0
    %2657 = vmatpush1.xpose.msra.mxu0 0.0
    %2658 = vmatprep.subr.mxu0 0.0
    %2659 = vmatpush1.xpose.msra.mxu0 0.0
    %2660 = vmatprep.subr.mxu0 0.0
    %2661 = vmatpush1.xpose.msra.mxu0 0.0
    %2662 = vmatprep.subr.mxu0 0.0
    %2663 = vmatpush1.xpose.msra.mxu0 0.0
    %2664 = vmatprep.subr.mxu0 0.0
    %2665 = vmatpush1.xpose.msra.mxu0 0.0
    %2666 = vmatprep.subr.mxu0 0.0
    %2667 = vmatpush1.xpose.msra.mxu0 0.0
    %2668 = vmatprep.mubr.f32.mxu0 0.0
    %2669 = vmatmul.mubr.f32.gmra.mrb[0].mxu0 %v2596
    %v2670 = vpop.f32.mrb[0].mxu0
    %v2671 = vadd.f32 %v89, %v2670
    %v2672 = vpop.f32.mrb[0].mxu0
    %2673 = vdwg.mxu0
    %v2674 = vsel %vm1965, %v2671, -inf
    %2675 = vmax.xlane.f32.xlu0 %v2674
    %v2676 = vpop.xlane.xlu0 %2675
    %v2677 = vsub.f32 %v2671, %v2676
    %v2678 = vmul.f32 %v2677, 1.442695
    %v2679 = vpow.pop %v2678
    %v2680 = vsel %vm1965, %v2679, 0.0
    %2681 = vadd.xlane.f32.xlu0 %v2680
    %v2682 = vpop.xlane.xlu0 %2681
    %v2683 = vrcp.pop %v2682
    %v2684 = vmul.f32 %v2679, %v2683
    %s2685 = scalar_lea.vmem [#allocation3], 32
    %2686 = vst.msk [vmem:[%s2685] sm:$0xff] %vm1965, %v2684
    %2687 = vrot.lane.b32.xlu0 %v1878, 96
    %v2688 = vpop.permute.xlu0 %2687
    %2689 = vrot.lane.b32.xlu0 %v1883, 96
    %v2690 = vpop.permute.xlu0 %2689
    %v2694 = vsel %vm1965, %v2684, 0
    %2696 = vmatprep.subr.mxu0 0.0
    %2697 = vmatpush1.msra.mxu0 %v2688
    %2698 = vmatprep.subr.mxu0 0.0
    %2699 = vmatpush1.msra.mxu0 %v2690
    %2700 = vmatprep.subr.mxu0 0.0
    %2701 = vmatpush1.msra.mxu0 0.0
    %2702 = vmatprep.subr.mxu0 0.0
    %2703 = vmatpush1.msra.mxu0 0.0
    %2704 = vmatprep.subr.mxu0 0.0
    %2705 = vmatpush1.msra.mxu0 0.0
    %2706 = vmatprep.subr.mxu0 0.0
    %2707 = vmatpush1.msra.mxu0 0.0
    %2708 = vmatprep.subr.mxu0 0.0
    %2709 = vmatpush1.msra.mxu0 0.0
    %2710 = vmatprep.subr.mxu0 0.0
    %2711 = vmatpush1.msra.mxu0 0.0
    %2712 = vmatprep.subr.mxu0 0.0
    %2713 = vmatpush1.msra.mxu0 0.0
    %2714 = vmatprep.subr.mxu0 0.0
    %2715 = vmatpush1.msra.mxu0 0.0
    %2716 = vmatprep.subr.mxu0 0.0
    %2717 = vmatpush1.msra.mxu0 0.0
    %2718 = vmatprep.subr.mxu0 0.0
    %2719 = vmatpush1.msra.mxu0 0.0
    %2720 = vmatprep.subr.mxu0 0.0
    %2721 = vmatpush1.msra.mxu0 0.0
    %2722 = vmatprep.subr.mxu0 0.0
    %2723 = vmatpush1.msra.mxu0 0.0
    %2724 = vmatprep.subr.mxu0 0.0
    %2725 = vmatpush1.msra.mxu0 0.0
    %2726 = vmatprep.subr.mxu0 0.0
    %2727 = vmatpush1.msra.mxu0 0.0
    %2728 = vmatprep.subr.mxu0 0.0
    %2729 = vmatpush1.msra.mxu0 0.0
    %2730 = vmatprep.subr.mxu0 0.0
    %2731 = vmatpush1.msra.mxu0 0.0
    %2732 = vmatprep.subr.mxu0 0.0
    %2733 = vmatpush1.msra.mxu0 0.0
    %2734 = vmatprep.subr.mxu0 0.0
    %2735 = vmatpush1.msra.mxu0 0.0
    %2736 = vmatprep.subr.mxu0 0.0
    %2737 = vmatpush1.msra.mxu0 0.0
    %2738 = vmatprep.subr.mxu0 0.0
    %2739 = vmatpush1.msra.mxu0 0.0
    %2740 = vmatprep.subr.mxu0 0.0
    %2741 = vmatpush1.msra.mxu0 0.0
    %2742 = vmatprep.subr.mxu0 0.0
    %2743 = vmatpush1.msra.mxu0 0.0
    %2744 = vmatprep.subr.mxu0 0.0
    %2745 = vmatpush1.msra.mxu0 0.0
    %2746 = vmatprep.subr.mxu0 0.0
    %2747 = vmatpush1.msra.mxu0 0.0
    %2748 = vmatprep.subr.mxu0 0.0
    %2749 = vmatpush1.msra.mxu0 0.0
    %2750 = vmatprep.subr.mxu0 0.0
    %2751 = vmatpush1.msra.mxu0 0.0
    %2752 = vmatprep.subr.mxu0 0.0
    %2753 = vmatpush1.msra.mxu0 0.0
    %2754 = vmatprep.subr.mxu0 0.0
    %2755 = vmatpush1.msra.mxu0 0.0
    %2756 = vmatprep.subr.mxu0 0.0
    %2757 = vmatpush1.msra.mxu0 0.0
    %2758 = vmatprep.subr.mxu0 0.0
    %2759 = vmatpush1.msra.mxu0 0.0
    %2760 = vmatprep.mubr.f32.mxu0 0.0
    %2761 = vmatmul.mubr.f32.gmra.mrb[0].mxu0 %v2694
    %v2762 = vpop.f32.mrb[0].mxu0
    %v2763 = vadd.f32 0.0, %v2762
    %v2764 = vpop.f32.mrb[0].mxu0
    %2765 = vdwg.mxu0
    %2766 = vst.msk [vmem:[#allocation2 + $0x8] sm:$0xff] %vm186, %v2763
    %2767 = vrot.lane.b32.xlu0 %v1767, 120
    %v2768 = vpop.permute.xlu0 %2767
    %2769 = vrot.lane.b32.xlu0 %v1878, 120
    %v2770 = vpop.permute.xlu0 %2769
    %2771 = vrot.lane.b32.xlu0 %v1883, 120
    %v2772 = vpop.permute.xlu0 %2771
    %v2773 = vsel %vm186, %v2768, 0
    %v2775 = vsel %vm186, %v2770, 0
    %v2777 = vsel %vm186, %v2772, 0
    %2779 = vmatprep.subr.mxu0 0.0
    %2780 = vmatpush1.xpose.msra.mxu0 %v2775
    %2781 = vmatprep.subr.mxu0 0.0
    %2782 = vmatpush1.xpose.msra.mxu0 %v2777
    %2783 = vmatprep.subr.mxu0 0.0
    %2784 = vmatpush1.xpose.msra.mxu0 0.0
    %2785 = vmatprep.subr.mxu0 0.0
    %2786 = vmatpush1.xpose.msra.mxu0 0.0
    %2787 = vmatprep.subr.mxu0 0.0
    %2788 = vmatpush1.xpose.msra.mxu0 0.0
    %2789 = vmatprep.subr.mxu0 0.0
    %2790 = vmatpush1.xpose.msra.mxu0 0.0
    %2791 = vmatprep.subr.mxu0 0.0
    %2792 = vmatpush1.xpose.msra.mxu0 0.0
    %2793 = vmatprep.subr.mxu0 0.0
    %2794 = vmatpush1.xpose.msra.mxu0 0.0
    %2795 = vmatprep.subr.mxu0 0.0
    %2796 = vmatpush1.xpose.msra.mxu0 0.0
    %2797 = vmatprep.subr.mxu0 0.0
    %2798 = vmatpush1.xpose.msra.mxu0 0.0
    %2799 = vmatprep.subr.mxu0 0.0
    %2800 = vmatpush1.xpose.msra.mxu0 0.0
    %2801 = vmatprep.subr.mxu0 0.0
    %2802 = vmatpush1.xpose.msra.mxu0 0.0
    %2803 = vmatprep.subr.mxu0 0.0
    %2804 = vmatpush1.xpose.msra.mxu0 0.0
    %2805 = vmatprep.subr.mxu0 0.0
    %2806 = vmatpush1.xpose.msra.mxu0 0.0
    %2807 = vmatprep.subr.mxu0 0.0
    %2808 = vmatpush1.xpose.msra.mxu0 0.0
    %2809 = vmatprep.subr.mxu0 0.0
    %2810 = vmatpush1.xpose.msra.mxu0 0.0
    %2811 = vmatprep.subr.mxu0 0.0
    %2812 = vmatpush1.xpose.msra.mxu0 0.0
    %2813 = vmatprep.subr.mxu0 0.0
    %2814 = vmatpush1.xpose.msra.mxu0 0.0
    %2815 = vmatprep.subr.mxu0 0.0
    %2816 = vmatpush1.xpose.msra.mxu0 0.0
    %2817 = vmatprep.subr.mxu0 0.0
    %2818 = vmatpush1.xpose.msra.mxu0 0.0
    %2819 = vmatprep.subr.mxu0 0.0
    %2820 = vmatpush1.xpose.msra.mxu0 0.0
    %2821 = vmatprep.subr.mxu0 0.0
    %2822 = vmatpush1.xpose.msra.mxu0 0.0
    %2823 = vmatprep.subr.mxu0 0.0
    %2824 = vmatpush1.xpose.msra.mxu0 0.0
    %2825 = vmatprep.subr.mxu0 0.0
    %2826 = vmatpush1.xpose.msra.mxu0 0.0
    %2827 = vmatprep.subr.mxu0 0.0
    %2828 = vmatpush1.xpose.msra.mxu0 0.0
    %2829 = vmatprep.subr.mxu0 0.0
    %2830 = vmatpush1.xpose.msra.mxu0 0.0
    %2831 = vmatprep.subr.mxu0 0.0
    %2832 = vmatpush1.xpose.msra.mxu0 0.0
    %2833 = vmatprep.subr.mxu0 0.0
    %2834 = vmatpush1.xpose.msra.mxu0 0.0
    %2835 = vmatprep.subr.mxu0 0.0
    %2836 = vmatpush1.xpose.msra.mxu0 0.0
    %2837 = vmatprep.subr.mxu0 0.0
    %2838 = vmatpush1.xpose.msra.mxu0 0.0
    %2839 = vmatprep.subr.mxu0 0.0
    %2840 = vmatpush1.xpose.msra.mxu0 0.0
    %2841 = vmatprep.subr.mxu0 0.0
    %2842 = vmatpush1.xpose.msra.mxu0 0.0
    %2843 = vmatprep.mubr.f32.mxu0 0.0
    %2844 = vmatmul.mubr.f32.gmra.mrb[0].mxu0 %v2773
    %v2845 = vpop.f32.mrb[0].mxu0
    %v2846 = vadd.f32 %v89, %v2845
    %v2847 = vpop.f32.mrb[0].mxu0
    %2848 = vdwg.mxu0
    %v2849 = vsel %vm1965, %v2846, -inf
    %2850 = vmax.xlane.f32.xlu0 %v2849
    %v2851 = vpop.xlane.xlu0 %2850
    %v2852 = vsub.f32 %v2846, %v2851
    %v2853 = vmul.f32 %v2852, 1.442695
    %v2854 = vpow.pop %v2853
    %v2855 = vsel %vm1965, %v2854, 0.0
    %2856 = vadd.xlane.f32.xlu0 %v2855
    %v2857 = vpop.xlane.xlu0 %2856
    %v2858 = vrcp.pop %v2857
    %v2859 = vmul.f32 %v2854, %v2858
    %s2860 = scalar_lea.vmem [#allocation3], 40
    %2861 = vst.msk [vmem:[%s2860] sm:$0xff] %vm1965, %v2859
    %2862 = vrot.lane.b32.xlu0 %v1878, 88
    %v2863 = vpop.permute.xlu0 %2862
    %2864 = vrot.lane.b32.xlu0 %v1883, 88
    %v2865 = vpop.permute.xlu0 %2864
    %v2869 = vsel %vm1965, %v2859, 0
    %2871 = vmatprep.subr.mxu0 0.0
    %2872 = vmatpush1.msra.mxu0 %v2863
    %2873 = vmatprep.subr.mxu0 0.0
    %2874 = vmatpush1.msra.mxu0 %v2865
    %2875 = vmatprep.subr.mxu0 0.0
    %2876 = vmatpush1.msra.mxu0 0.0
    %2877 = vmatprep.subr.mxu0 0.0
    %2878 = vmatpush1.msra.mxu0 0.0
    %2879 = vmatprep.subr.mxu0 0.0
    %2880 = vmatpush1.msra.mxu0 0.0
    %2881 = vmatprep.subr.mxu0 0.0
    %2882 = vmatpush1.msra.mxu0 0.0
    %2883 = vmatprep.subr.mxu0 0.0
    %2884 = vmatpush1.msra.mxu0 0.0
    %2885 = vmatprep.subr.mxu0 0.0
    %2886 = vmatpush1.msra.mxu0 0.0
    %2887 = vmatprep.subr.mxu0 0.0
    %2888 = vmatpush1.msra.mxu0 0.0
    %2889 = vmatprep.subr.mxu0 0.0
    %2890 = vmatpush1.msra.mxu0 0.0
    %2891 = vmatprep.subr.mxu0 0.0
    %2892 = vmatpush1.msra.mxu0 0.0
    %2893 = vmatprep.subr.mxu0 0.0
    %2894 = vmatpush1.msra.mxu0 0.0
    %2895 = vmatprep.subr.mxu0 0.0
    %2896 = vmatpush1.msra.mxu0 0.0
    %2897 = vmatprep.subr.mxu0 0.0
    %2898 = vmatpush1.msra.mxu0 0.0
    %2899 = vmatprep.subr.mxu0 0.0
    %2900 = vmatpush1.msra.mxu0 0.0
    %2901 = vmatprep.subr.mxu0 0.0
    %2902 = vmatpush1.msra.mxu0 0.0
    %2903 = vmatprep.subr.mxu0 0.0
    %2904 = vmatpush1.msra.mxu0 0.0
    %2905 = vmatprep.subr.mxu0 0.0
    %2906 = vmatpush1.msra.mxu0 0.0
    %2907 = vmatprep.subr.mxu0 0.0
    %2908 = vmatpush1.msra.mxu0 0.0
    %2909 = vmatprep.subr.mxu0 0.0
    %2910 = vmatpush1.msra.mxu0 0.0
    %2911 = vmatprep.subr.mxu0 0.0
    %2912 = vmatpush1.msra.mxu0 0.0
    %2913 = vmatprep.subr.mxu0 0.0
    %2914 = vmatpush1.msra.mxu0 0.0
    %2915 = vmatprep.subr.mxu0 0.0
    %2916 = vmatpush1.msra.mxu0 0.0
    %2917 = vmatprep.subr.mxu0 0.0
    %2918 = vmatpush1.msra.mxu0 0.0
    %2919 = vmatprep.subr.mxu0 0.0
    %2920 = vmatpush1.msra.mxu0 0.0
    %2921 = vmatprep.subr.mxu0 0.0
    %2922 = vmatpush1.msra.mxu0 0.0
    %2923 = vmatprep.subr.mxu0 0.0
    %2924 = vmatpush1.msra.mxu0 0.0
    %2925 = vmatprep.subr.mxu0 0.0
    %2926 = vmatpush1.msra.mxu0 0.0
    %2927 = vmatprep.subr.mxu0 0.0
    %2928 = vmatpush1.msra.mxu0 0.0
    %2929 = vmatprep.subr.mxu0 0.0
    %2930 = vmatpush1.msra.mxu0 0.0
    %2931 = vmatprep.subr.mxu0 0.0
    %2932 = vmatpush1.msra.mxu0 0.0
    %2933 = vmatprep.subr.mxu0 0.0
    %2934 = vmatpush1.msra.mxu0 0.0
    %2935 = vmatprep.mubr.f32.mxu0 0.0
    %2936 = vmatmul.mubr.f32.gmra.mrb[0].mxu0 %v2869
    %v2937 = vpop.f32.mrb[0].mxu0
    %v2938 = vadd.f32 0.0, %v2937
    %v2939 = vpop.f32.mrb[0].mxu0
    %2940 = vdwg.mxu0
    %2942 = vrot.lane.b32.xlu0 %v2938, 8
    %v2943 = vpop.permute.xlu0 %2942
    %2945 = vst.msk [vmem:[#allocation2 + $0x8] sm:$0xff] %vm518, %v2943
    %2946 = vrot.lane.b32.xlu0 %v1767, 112
    %v2947 = vpop.permute.xlu0 %2946
    %2948 = vrot.lane.b32.xlu0 %v1878, 112
    %v2949 = vpop.permute.xlu0 %2948
    %2950 = vrot.lane.b32.xlu0 %v1883, 112
    %v2951 = vpop.permute.xlu0 %2950
    %v2952 = vsel %vm186, %v2947, 0
    %v2954 = vsel %vm186, %v2949, 0
    %v2956 = vsel %vm186, %v2951, 0
    %2958 = vmatprep.subr.mxu0 0.0
    %2959 = vmatpush1.xpose.msra.mxu0 %v2954
    %2960 = vmatprep.subr.mxu0 0.0
    %2961 = vmatpush1.xpose.msra.mxu0 %v2956
    %2962 = vmatprep.subr.mxu0 0.0
    %2963 = vmatpush1.xpose.msra.mxu0 0.0
    %2964 = vmatprep.subr.mxu0 0.0
    %2965 = vmatpush1.xpose.msra.mxu0 0.0
    %2966 = vmatprep.subr.mxu0 0.0
    %2967 = vmatpush1.xpose.msra.mxu0 0.0
    %2968 = vmatprep.subr.mxu0 0.0
    %2969 = vmatpush1.xpose.msra.mxu0 0.0
    %2970 = vmatprep.subr.mxu0 0.0
    %2971 = vmatpush1.xpose.msra.mxu0 0.0
    %2972 = vmatprep.subr.mxu0 0.0
    %2973 = vmatpush1.xpose.msra.mxu0 0.0
    %2974 = vmatprep.subr.mxu0 0.0
    %2975 = vmatpush1.xpose.msra.mxu0 0.0
    %2976 = vmatprep.subr.mxu0 0.0
    %2977 = vmatpush1.xpose.msra.mxu0 0.0
    %2978 = vmatprep.subr.mxu0 0.0
    %2979 = vmatpush1.xpose.msra.mxu0 0.0
    %2980 = vmatprep.subr.mxu0 0.0
    %2981 = vmatpush1.xpose.msra.mxu0 0.0
    %2982 = vmatprep.subr.mxu0 0.0
    %2983 = vmatpush1.xpose.msra.mxu0 0.0
    %2984 = vmatprep.subr.mxu0 0.0
    %2985 = vmatpush1.xpose.msra.mxu0 0.0
    %2986 = vmatprep.subr.mxu0 0.0
    %2987 = vmatpush1.xpose.msra.mxu0 0.0
    %2988 = vmatprep.subr.mxu0 0.0
    %2989 = vmatpush1.xpose.msra.mxu0 0.0
    %2990 = vmatprep.subr.mxu0 0.0
    %2991 = vmatpush1.xpose.msra.mxu0 0.0
    %2992 = vmatprep.subr.mxu0 0.0
    %2993 = vmatpush1.xpose.msra.mxu0 0.0
    %2994 = vmatprep.subr.mxu0 0.0
    %2995 = vmatpush1.xpose.msra.mxu0 0.0
    %2996 = vmatprep.subr.mxu0 0.0
    %2997 = vmatpush1.xpose.msra.mxu0 0.0
    %2998 = vmatprep.subr.mxu0 0.0
    %2999 = vmatpush1.xpose.msra.mxu0 0.0
    %3000 = vmatprep.subr.mxu0 0.0
    %3001 = vmatpush1.xpose.msra.mxu0 0.0
    %3002 = vmatprep.subr.mxu0 0.0
    %3003 = vmatpush1.xpose.msra.mxu0 0.0
    %3004 = vmatprep.subr.mxu0 0.0
    %3005 = vmatpush1.xpose.msra.mxu0 0.0
    %3006 = vmatprep.subr.mxu0 0.0
    %3007 = vmatpush1.xpose.msra.mxu0 0.0
    %3008 = vmatprep.subr.mxu0 0.0
    %3009 = vmatpush1.xpose.msra.mxu0 0.0
    %3010 = vmatprep.subr.mxu0 0.0
    %3011 = vmatpush1.xpose.msra.mxu0 0.0
    %3012 = vmatprep.subr.mxu0 0.0
    %3013 = vmatpush1.xpose.msra.mxu0 0.0
    %3014 = vmatprep.subr.mxu0 0.0
    %3015 = vmatpush1.xpose.msra.mxu0 0.0
    %3016 = vmatprep.subr.mxu0 0.0
    %3017 = vmatpush1.xpose.msra.mxu0 0.0
    %3018 = vmatprep.subr.mxu0 0.0
    %3019 = vmatpush1.xpose.msra.mxu0 0.0
    %3020 = vmatprep.subr.mxu0 0.0
    %3021 = vmatpush1.xpose.msra.mxu0 0.0
    %3022 = vmatprep.mubr.f32.mxu0 0.0
    %3023 = vmatmul.mubr.f32.gmra.mrb[0].mxu0 %v2952
    %v3024 = vpop.f32.mrb[0].mxu0
    %v3025 = vadd.f32 %v89, %v3024
    %v3026 = vpop.f32.mrb[0].mxu0
    %3027 = vdwg.mxu0
    %v3028 = vsel %vm1965, %v3025, -inf
    %3029 = vmax.xlane.f32.xlu0 %v3028
    %v3030 = vpop.xlane.xlu0 %3029
    %v3031 = vsub.f32 %v3025, %v3030
    %v3032 = vmul.f32 %v3031, 1.442695
    %v3033 = vpow.pop %v3032
    %v3034 = vsel %vm1965, %v3033, 0.0
    %3035 = vadd.xlane.f32.xlu0 %v3034
    %v3036 = vpop.xlane.xlu0 %3035
    %v3037 = vrcp.pop %v3036
    %v3038 = vmul.f32 %v3033, %v3037
    %s3039 = scalar_lea.vmem [#allocation3], 48
    %3040 = vst.msk [vmem:[%s3039] sm:$0xff] %vm1965, %v3038
    %3041 = vrot.lane.b32.xlu0 %v1878, 80
    %v3042 = vpop.permute.xlu0 %3041
    %3043 = vrot.lane.b32.xlu0 %v1883, 80
    %v3044 = vpop.permute.xlu0 %3043
    %v3048 = vsel %vm1965, %v3038, 0
    %3050 = vmatprep.subr.mxu0 0.0
    %3051 = vmatpush1.msra.mxu0 %v3042
    %3052 = vmatprep.subr.mxu0 0.0
    %3053 = vmatpush1.msra.mxu0 %v3044
    %3054 = vmatprep.subr.mxu0 0.0
    %3055 = vmatpush1.msra.mxu0 0.0
    %3056 = vmatprep.subr.mxu0 0.0
    %3057 = vmatpush1.msra.mxu0 0.0
    %3058 = vmatprep.subr.mxu0 0.0
    %3059 = vmatpush1.msra.mxu0 0.0
    %3060 = vmatprep.subr.mxu0 0.0
    %3061 = vmatpush1.msra.mxu0 0.0
    %3062 = vmatprep.subr.mxu0 0.0
    %3063 = vmatpush1.msra.mxu0 0.0
    %3064 = vmatprep.subr.mxu0 0.0
    %3065 = vmatpush1.msra.mxu0 0.0
    %3066 = vmatprep.subr.mxu0 0.0
    %3067 = vmatpush1.msra.mxu0 0.0
    %3068 = vmatprep.subr.mxu0 0.0
    %3069 = vmatpush1.msra.mxu0 0.0
    %3070 = vmatprep.subr.mxu0 0.0
    %3071 = vmatpush1.msra.mxu0 0.0
    %3072 = vmatprep.subr.mxu0 0.0
    %3073 = vmatpush1.msra.mxu0 0.0
    %3074 = vmatprep.subr.mxu0 0.0
    %3075 = vmatpush1.msra.mxu0 0.0
    %3076 = vmatprep.subr.mxu0 0.0
    %3077 = vmatpush1.msra.mxu0 0.0
    %3078 = vmatprep.subr.mxu0 0.0
    %3079 = vmatpush1.msra.mxu0 0.0
    %3080 = vmatprep.subr.mxu0 0.0
    %3081 = vmatpush1.msra.mxu0 0.0
    %3082 = vmatprep.subr.mxu0 0.0
    %3083 = vmatpush1.msra.mxu0 0.0
    %3084 = vmatprep.subr.mxu0 0.0
    %3085 = vmatpush1.msra.mxu0 0.0
    %3086 = vmatprep.subr.mxu0 0.0
    %3087 = vmatpush1.msra.mxu0 0.0
    %3088 = vmatprep.subr.mxu0 0.0
    %3089 = vmatpush1.msra.mxu0 0.0
    %3090 = vmatprep.subr.mxu0 0.0
    %3091 = vmatpush1.msra.mxu0 0.0
    %3092 = vmatprep.subr.mxu0 0.0
    %3093 = vmatpush1.msra.mxu0 0.0
    %3094 = vmatprep.subr.mxu0 0.0
    %3095 = vmatpush1.msra.mxu0 0.0
    %3096 = vmatprep.subr.mxu0 0.0
    %3097 = vmatpush1.msra.mxu0 0.0
    %3098 = vmatprep.subr.mxu0 0.0
    %3099 = vmatpush1.msra.mxu0 0.0
    %3100 = vmatprep.subr.mxu0 0.0
    %3101 = vmatpush1.msra.mxu0 0.0
    %3102 = vmatprep.subr.mxu0 0.0
    %3103 = vmatpush1.msra.mxu0 0.0
    %3104 = vmatprep.subr.mxu0 0.0
    %3105 = vmatpush1.msra.mxu0 0.0
    %3106 = vmatprep.subr.mxu0 0.0
    %3107 = vmatpush1.msra.mxu0 0.0
    %3108 = vmatprep.subr.mxu0 0.0
    %3109 = vmatpush1.msra.mxu0 0.0
    %3110 = vmatprep.subr.mxu0 0.0
    %3111 = vmatpush1.msra.mxu0 0.0
    %3112 = vmatprep.subr.mxu0 0.0
    %3113 = vmatpush1.msra.mxu0 0.0
    %3114 = vmatprep.mubr.f32.mxu0 0.0
    %3115 = vmatmul.mubr.f32.gmra.mrb[0].mxu0 %v3048
    %v3116 = vpop.f32.mrb[0].mxu0
    %v3117 = vadd.f32 0.0, %v3116
    %v3118 = vpop.f32.mrb[0].mxu0
    %3119 = vdwg.mxu0
    %3121 = vrot.lane.b32.xlu0 %v3117, 16
    %v3122 = vpop.permute.xlu0 %3121
    %3124 = vst.msk [vmem:[#allocation2 + $0x8] sm:$0xff] %vm689, %v3122
    %3125 = vrot.lane.b32.xlu0 %v1767, 104
    %v3126 = vpop.permute.xlu0 %3125
    %3127 = vrot.lane.b32.xlu0 %v1878, 104
    %v3128 = vpop.permute.xlu0 %3127
    %3129 = vrot.lane.b32.xlu0 %v1883, 104
    %v3130 = vpop.permute.xlu0 %3129
    %v3131 = vsel %vm186, %v3126, 0
    %v3133 = vsel %vm186, %v3128, 0
    %v3135 = vsel %vm186, %v3130, 0
    %3137 = vmatprep.subr.mxu0 0.0
    %3138 = vmatpush1.xpose.msra.mxu0 %v3133
    %3139 = vmatprep.subr.mxu0 0.0
    %3140 = vmatpush1.xpose.msra.mxu0 %v3135
    %3141 = vmatprep.subr.mxu0 0.0
    %3142 = vmatpush1.xpose.msra.mxu0 0.0
    %3143 = vmatprep.subr.mxu0 0.0
    %3144 = vmatpush1.xpose.msra.mxu0 0.0
    %3145 = vmatprep.subr.mxu0 0.0
    %3146 = vmatpush1.xpose.msra.mxu0 0.0
    %3147 = vmatprep.subr.mxu0 0.0
    %3148 = vmatpush1.xpose.msra.mxu0 0.0
    %3149 = vmatprep.subr.mxu0 0.0
    %3150 = vmatpush1.xpose.msra.mxu0 0.0
    %3151 = vmatprep.subr.mxu0 0.0
    %3152 = vmatpush1.xpose.msra.mxu0 0.0
    %3153 = vmatprep.subr.mxu0 0.0
    %3154 = vmatpush1.xpose.msra.mxu0 0.0
    %3155 = vmatprep.subr.mxu0 0.0
    %3156 = vmatpush1.xpose.msra.mxu0 0.0
    %3157 = vmatprep.subr.mxu0 0.0
    %3158 = vmatpush1.xpose.msra.mxu0 0.0
    %3159 = vmatprep.subr.mxu0 0.0
    %3160 = vmatpush1.xpose.msra.mxu0 0.0
    %3161 = vmatprep.subr.mxu0 0.0
    %3162 = vmatpush1.xpose.msra.mxu0 0.0
    %3163 = vmatprep.subr.mxu0 0.0
    %3164 = vmatpush1.xpose.msra.mxu0 0.0
    %3165 = vmatprep.subr.mxu0 0.0
    %3166 = vmatpush1.xpose.msra.mxu0 0.0
    %3167 = vmatprep.subr.mxu0 0.0
    %3168 = vmatpush1.xpose.msra.mxu0 0.0
    %3169 = vmatprep.subr.mxu0 0.0
    %3170 = vmatpush1.xpose.msra.mxu0 0.0
    %3171 = vmatprep.subr.mxu0 0.0
    %3172 = vmatpush1.xpose.msra.mxu0 0.0
    %3173 = vmatprep.subr.mxu0 0.0
    %3174 = vmatpush1.xpose.msra.mxu0 0.0
    %3175 = vmatprep.subr.mxu0 0.0
    %3176 = vmatpush1.xpose.msra.mxu0 0.0
    %3177 = vmatprep.subr.mxu0 0.0
    %3178 = vmatpush1.xpose.msra.mxu0 0.0
    %3179 = vmatprep.subr.mxu0 0.0
    %3180 = vmatpush1.xpose.msra.mxu0 0.0
    %3181 = vmatprep.subr.mxu0 0.0
    %3182 = vmatpush1.xpose.msra.mxu0 0.0
    %3183 = vmatprep.subr.mxu0 0.0
    %3184 = vmatpush1.xpose.msra.mxu0 0.0
    %3185 = vmatprep.subr.mxu0 0.0
    %3186 = vmatpush1.xpose.msra.mxu0 0.0
    %3187 = vmatprep.subr.mxu0 0.0
    %3188 = vmatpush1.xpose.msra.mxu0 0.0
    %3189 = vmatprep.subr.mxu0 0.0
    %3190 = vmatpush1.xpose.msra.mxu0 0.0
    %3191 = vmatprep.subr.mxu0 0.0
    %3192 = vmatpush1.xpose.msra.mxu0 0.0
    %3193 = vmatprep.subr.mxu0 0.0
    %3194 = vmatpush1.xpose.msra.mxu0 0.0
    %3195 = vmatprep.subr.mxu0 0.0
    %3196 = vmatpush1.xpose.msra.mxu0 0.0
    %3197 = vmatprep.subr.mxu0 0.0
    %3198 = vmatpush1.xpose.msra.mxu0 0.0
    %3199 = vmatprep.subr.mxu0 0.0
    %3200 = vmatpush1.xpose.msra.mxu0 0.0
    %3201 = vmatprep.mubr.f32.mxu0 0.0
    %3202 = vmatmul.mubr.f32.gmra.mrb[0].mxu0 %v3131
    %v3203 = vpop.f32.mrb[0].mxu0
    %v3204 = vadd.f32 %v89, %v3203
    %v3205 = vpop.f32.mrb[0].mxu0
    %3206 = vdwg.mxu0
    %v3207 = vsel %vm1965, %v3204, -inf
    %3208 = vmax.xlane.f32.xlu0 %v3207
    %v3209 = vpop.xlane.xlu0 %3208
    %v3210 = vsub.f32 %v3204, %v3209
    %v3211 = vmul.f32 %v3210, 1.442695
    %v3212 = vpow.pop %v3211
    %v3213 = vsel %vm1965, %v3212, 0.0
    %3214 = vadd.xlane.f32.xlu0 %v3213
    %v3215 = vpop.xlane.xlu0 %3214
    %v3216 = vrcp.pop %v3215
    %v3217 = vmul.f32 %v3212, %v3216
    %s3218 = scalar_lea.vmem [#allocation3], 56
    %3219 = vst.msk [vmem:[%s3218] sm:$0xff] %vm1965, %v3217
    %3220 = vrot.lane.b32.xlu0 %v1878, 72
    %v3221 = vpop.permute.xlu0 %3220
    %3222 = vrot.lane.b32.xlu0 %v1883, 72
    %v3223 = vpop.permute.xlu0 %3222
    %v3227 = vsel %vm1965, %v3217, 0
    %3229 = vmatprep.subr.mxu0 0.0
    %3230 = vmatpush1.msra.mxu0 %v3221
    %3231 = vmatprep.subr.mxu0 0.0
    %3232 = vmatpush1.msra.mxu0 %v3223
    %3233 = vmatprep.subr.mxu0 0.0
    %3234 = vmatpush1.msra.mxu0 0.0
    %3235 = vmatprep.subr.mxu0 0.0
    %3236 = vmatpush1.msra.mxu0 0.0
    %3237 = vmatprep.subr.mxu0 0.0
    %3238 = vmatpush1.msra.mxu0 0.0
    %3239 = vmatprep.subr.mxu0 0.0
    %3240 = vmatpush1.msra.mxu0 0.0
    %3241 = vmatprep.subr.mxu0 0.0
    %3242 = vmatpush1.msra.mxu0 0.0
    %3243 = vmatprep.subr.mxu0 0.0
    %3244 = vmatpush1.msra.mxu0 0.0
    %3245 = vmatprep.subr.mxu0 0.0
    %3246 = vmatpush1.msra.mxu0 0.0
    %3247 = vmatprep.subr.mxu0 0.0
    %3248 = vmatpush1.msra.mxu0 0.0
    %3249 = vmatprep.subr.mxu0 0.0
    %3250 = vmatpush1.msra.mxu0 0.0
    %3251 = vmatprep.subr.mxu0 0.0
    %3252 = vmatpush1.msra.mxu0 0.0
    %3253 = vmatprep.subr.mxu0 0.0
    %3254 = vmatpush1.msra.mxu0 0.0
    %3255 = vmatprep.subr.mxu0 0.0
    %3256 = vmatpush1.msra.mxu0 0.0
    %3257 = vmatprep.subr.mxu0 0.0
    %3258 = vmatpush1.msra.mxu0 0.0
    %3259 = vmatprep.subr.mxu0 0.0
    %3260 = vmatpush1.msra.mxu0 0.0
    %3261 = vmatprep.subr.mxu0 0.0
    %3262 = vmatpush1.msra.mxu0 0.0
    %3263 = vmatprep.subr.mxu0 0.0
    %3264 = vmatpush1.msra.mxu0 0.0
    %3265 = vmatprep.subr.mxu0 0.0
    %3266 = vmatpush1.msra.mxu0 0.0
    %3267 = vmatprep.subr.mxu0 0.0
    %3268 = vmatpush1.msra.mxu0 0.0
    %3269 = vmatprep.subr.mxu0 0.0
    %3270 = vmatpush1.msra.mxu0 0.0
    %3271 = vmatprep.subr.mxu0 0.0
    %3272 = vmatpush1.msra.mxu0 0.0
    %3273 = vmatprep.subr.mxu0 0.0
    %3274 = vmatpush1.msra.mxu0 0.0
    %3275 = vmatprep.subr.mxu0 0.0
    %3276 = vmatpush1.msra.mxu0 0.0
    %3277 = vmatprep.subr.mxu0 0.0
    %3278 = vmatpush1.msra.mxu0 0.0
    %3279 = vmatprep.subr.mxu0 0.0
    %3280 = vmatpush1.msra.mxu0 0.0
    %3281 = vmatprep.subr.mxu0 0.0
    %3282 = vmatpush1.msra.mxu0 0.0
    %3283 = vmatprep.subr.mxu0 0.0
    %3284 = vmatpush1.msra.mxu0 0.0
    %3285 = vmatprep.subr.mxu0 0.0
    %3286 = vmatpush1.msra.mxu0 0.0
    %3287 = vmatprep.subr.mxu0 0.0
    %3288 = vmatpush1.msra.mxu0 0.0
    %3289 = vmatprep.subr.mxu0 0.0
    %3290 = vmatpush1.msra.mxu0 0.0
    %3291 = vmatprep.subr.mxu0 0.0
    %3292 = vmatpush1.msra.mxu0 0.0
    %3293 = vmatprep.mubr.f32.mxu0 0.0
    %3294 = vmatmul.mubr.f32.gmra.mrb[0].mxu0 %v3227
    %v3295 = vpop.f32.mrb[0].mxu0
    %v3296 = vadd.f32 0.0, %v3295
    %v3297 = vpop.f32.mrb[0].mxu0
    %3298 = vdwg.mxu0
    %3300 = vrot.lane.b32.xlu0 %v3296, 24
    %v3301 = vpop.permute.xlu0 %3300
    %3303 = vst.msk [vmem:[#allocation2 + $0x8] sm:$0xff] %vm860, %v3301
    %v3304 = vld [vmem:[#allocation2] sm:$0xff]
    %v3305 = vld [vmem:[#allocation2 + $0x8] sm:$0xff]
    %v3306 = vld [vmem:[%s12] sm:$0xff]
    %v3307 = vld [vmem:[%s12 + $0x8] sm:$0xff]
    %v3308 = vld [vmem:[%s12 + $0x10] sm:$0xff]
    %v3309 = vld [vmem:[%s12 + $0x18] sm:$0xff]
    %v3310 = vld [vmem:[%s13] sm:$0x1]
    %v3312 = vlaneseq
    %v3313 = vshrl.u32 %v3312, 7
    %v3314 = vsub.s32 0, %v3313
    %v3315 = vrot.slane %v3310, %v3314
    %v3318 = vsel %vm101, %v3304, 0
    %v3321 = vsel %vm101, %v3305, 0
    %3323 = vmatprep.subr.mxu0 0.0
    %3324 = vmatpush1.msra.mxu0 %v3306
    %3325 = vmatprep.subr.mxu0 0.0
    %3326 = vmatpush1.msra.mxu0 %v3307
    %3327 = vmatprep.subr.mxu0 0.0
    %3328 = vmatpush1.msra.mxu0 %v3308
    %3329 = vmatprep.subr.mxu0 0.0
    %3330 = vmatpush1.msra.mxu0 %v3309
    %3331 = vmatprep.subr.mxu0 0.0
    %3332 = vmatpush1.msra.mxu0 0.0
    %3333 = vmatprep.subr.mxu0 0.0
    %3334 = vmatpush1.msra.mxu0 0.0
    %3335 = vmatprep.subr.mxu0 0.0
    %3336 = vmatpush1.msra.mxu0 0.0
    %3337 = vmatprep.subr.mxu0 0.0
    %3338 = vmatpush1.msra.mxu0 0.0
    %3339 = vmatprep.subr.mxu0 0.0
    %3340 = vmatpush1.msra.mxu0 0.0
    %3341 = vmatprep.subr.mxu0 0.0
    %3342 = vmatpush1.msra.mxu0 0.0
    %3343 = vmatprep.subr.mxu0 0.0
    %3344 = vmatpush1.msra.mxu0 0.0
    %3345 = vmatprep.subr.mxu0 0.0
    %3346 = vmatpush1.msra.mxu0 0.0
    %3347 = vmatprep.subr.mxu0 0.0
    %3348 = vmatpush1.msra.mxu0 0.0
    %3349 = vmatprep.subr.mxu0 0.0
    %3350 = vmatpush1.msra.mxu0 0.0
    %3351 = vmatprep.subr.mxu0 0.0
    %3352 = vmatpush1.msra.mxu0 0.0
    %3353 = vmatprep.subr.mxu0 0.0
    %3354 = vmatpush1.msra.mxu0 0.0
    %3355 = vmatprep.subr.mxu0 0.0
    %3356 = vmatpush1.msra.mxu0 0.0
    %3357 = vmatprep.subr.mxu0 0.0
    %3358 = vmatpush1.msra.mxu0 0.0
    %3359 = vmatprep.subr.mxu0 0.0
    %3360 = vmatpush1.msra.mxu0 0.0
    %3361 = vmatprep.subr.mxu0 0.0
    %3362 = vmatpush1.msra.mxu0 0.0
    %3363 = vmatprep.subr.mxu0 0.0
    %3364 = vmatpush1.msra.mxu0 0.0
    %3365 = vmatprep.subr.mxu0 0.0
    %3366 = vmatpush1.msra.mxu0 0.0
    %3367 = vmatprep.subr.mxu0 0.0
    %3368 = vmatpush1.msra.mxu0 0.0
    %3369 = vmatprep.subr.mxu0 0.0
    %3370 = vmatpush1.msra.mxu0 0.0
    %3371 = vmatprep.subr.mxu0 0.0
    %3372 = vmatpush1.msra.mxu0 0.0
    %3373 = vmatprep.subr.mxu0 0.0
    %3374 = vmatpush1.msra.mxu0 0.0
    %3375 = vmatprep.subr.mxu0 0.0
    %3376 = vmatpush1.msra.mxu0 0.0
    %3377 = vmatprep.subr.mxu0 0.0
    %3378 = vmatpush1.msra.mxu0 0.0
    %3379 = vmatprep.subr.mxu0 0.0
    %3380 = vmatpush1.msra.mxu0 0.0
    %3381 = vmatprep.subr.mxu0 0.0
    %3382 = vmatpush1.msra.mxu0 0.0
    %3383 = vmatprep.subr.mxu0 0.0
    %3384 = vmatpush1.msra.mxu0 0.0
    %3385 = vmatprep.subr.mxu0 0.0
    %3386 = vmatpush1.msra.mxu0 0.0
    %3387 = vmatprep.mubr.f32.mxu0 0.0
    %3388 = vmatmul.mubr.f32.gmra.mrb[0].mxu0 %v3318
    %v3389 = vpop.f32.mrb[0].mxu0
    %v3390 = vadd.f32 %v3315, %v3389
    %v3391 = vpop.f32.mrb[0].mxu0
    %3392 = vmatprep.mubr.f32.mxu0 0.0
    %3393 = vmatmul.mubr.f32.gmra.mrb[0].mxu0 %v3321
    %v3394 = vpop.f32.mrb[0].mxu0
    %v3395 = vadd.f32 %v3315, %v3394
    %v3396 = vpop.f32.mrb[0].mxu0
    %3397 = vdwg.mxu0
    %v3398 = vadd.f32 %v1676, %v3390
    %v3399 = vadd.f32 %v1677, %v3395
    %v3400 = vld [vmem:[%s14] sm:$0x1]
    %v3401 = vld [vmem:[%s15] sm:$0x1]
    %v3402 = vsel %vm101, %v3398, 0.0
    %3403 = vadd.xlane.f32.xlu0 %v3402
    %v3404 = vpop.xlane.xlu0 %3403
    %v3405 = vsel %vm101, %v3399, 0.0
    %3406 = vadd.xlane.f32.xlu0 %v3405
    %v3407 = vpop.xlane.xlu0 %3406
    %v3408 = vmul.f32 %v3404, %v1641
    %v3409 = vmul.f32 %v3407, %v1641
    %v3410 = vsub.f32 %v3398, %v3408
    %v3411 = vsub.f32 %v3399, %v3409
    %v3412 = vmul.f32 %v3410, %v3410
    %v3413 = vmul.f32 %v3411, %v3411
    %v3414 = vsel %vm101, %v3412, 0.0
    %3415 = vadd.xlane.f32.xlu0 %v3414
    %v3416 = vpop.xlane.xlu0 %3415
    %v3417 = vsel %vm101, %v3413, 0.0
    %3418 = vadd.xlane.f32.xlu0 %v3417
    %v3419 = vpop.xlane.xlu0 %3418
    %v3420 = vmul.f32 %v3416, %v1641
    %v3421 = vmul.f32 %v3419, %v1641
    %v3422 = vadd.f32 %v3420, 1e-05
    %v3423 = vadd.f32 %v3421, 1e-05
    %v3424 = vrsqrt.pop %v3422
    %v3425 = vrsqrt.pop %v3423
    %v3426 = vmul.f32 %v3410, %v3424
    %v3427 = vmul.f32 %v3411, %v3425
    %v3429 = vlaneseq
    %v3430 = vshrl.u32 %v3429, 7
    %v3431 = vsub.s32 0, %v3430
    %v3432 = vrot.slane %v3400, %v3431
    %v3434 = vmul.f32 %v3426, %v3432
    %v3435 = vmul.f32 %v3427, %v3432
    %v3437 = vlaneseq
    %v3438 = vshrl.u32 %v3437, 7
    %v3439 = vsub.s32 0, %v3438
    %v3440 = vrot.slane %v3401, %v3439
    %v3442 = vadd.f32 %v3434, %v3440
    %v3443 = vadd.f32 %v3435, %v3440
    %v3444 = vld [vmem:[%s16] sm:$0xff]
    %v3445 = vld [vmem:[%s16 + $0x8] sm:$0xff]
    %v3446 = vld [vmem:[%s16 + $0x10] sm:$0xff]
    %v3447 = vld [vmem:[%s16 + $0x18] sm:$0xff]
    %v3448 = vld [vmem:[%s17] sm:$0x1]
    %v3450 = vlaneseq
    %v3451 = vshrl.u32 %v3450, 7
    %v3452 = vsub.s32 0, %v3451
    %v3453 = vrot.slane %v3448, %v3452
    %v3456 = vsel %vm101, %v3442, 0
    %v3459 = vsel %vm101, %v3443, 0
    %3461 = vmatprep.subr.mxu0 0.0
    %3462 = vmatpush1.msra.mxu0 %v3444
    %3463 = vmatprep.subr.mxu0 0.0
    %3464 = vmatpush1.msra.mxu0 %v3445
    %3465 = vmatprep.subr.mxu0 0.0
    %3466 = vmatpush1.msra.mxu0 %v3446
    %3467 = vmatprep.subr.mxu0 0.0
    %3468 = vmatpush1.msra.mxu0 %v3447
    %3469 = vmatprep.subr.mxu0 0.0
    %3470 = vmatpush1.msra.mxu0 0.0
    %3471 = vmatprep.subr.mxu0 0.0
    %3472 = vmatpush1.msra.mxu0 0.0
    %3473 = vmatprep.subr.mxu0 0.0
    %3474 = vmatpush1.msra.mxu0 0.0
    %3475 = vmatprep.subr.mxu0 0.0
    %3476 = vmatpush1.msra.mxu0 0.0
    %3477 = vmatprep.subr.mxu0 0.0
    %3478 = vmatpush1.msra.mxu0 0.0
    %3479 = vmatprep.subr.mxu0 0.0
    %3480 = vmatpush1.msra.mxu0 0.0
    %3481 = vmatprep.subr.mxu0 0.0
    %3482 = vmatpush1.msra.mxu0 0.0
    %3483 = vmatprep.subr.mxu0 0.0
    %3484 = vmatpush1.msra.mxu0 0.0
    %3485 = vmatprep.subr.mxu0 0.0
    %3486 = vmatpush1.msra.mxu0 0.0
    %3487 = vmatprep.subr.mxu0 0.0
    %3488 = vmatpush1.msra.mxu0 0.0
    %3489 = vmatprep.subr.mxu0 0.0
    %3490 = vmatpush1.msra.mxu0 0.0
    %3491 = vmatprep.subr.mxu0 0.0
    %3492 = vmatpush1.msra.mxu0 0.0
    %3493 = vmatprep.subr.mxu0 0.0
    %3494 = vmatpush1.msra.mxu0 0.0
    %3495 = vmatprep.subr.mxu0 0.0
    %3496 = vmatpush1.msra.mxu0 0.0
    %3497 = vmatprep.subr.mxu0 0.0
    %3498 = vmatpush1.msra.mxu0 0.0
    %3499 = vmatprep.subr.mxu0 0.0
    %3500 = vmatpush1.msra.mxu0 0.0
    %3501 = vmatprep.subr.mxu0 0.0
    %3502 = vmatpush1.msra.mxu0 0.0
    %3503 = vmatprep.subr.mxu0 0.0
    %3504 = vmatpush1.msra.mxu0 0.0
    %3505 = vmatprep.subr.mxu0 0.0
    %3506 = vmatpush1.msra.mxu0 0.0
    %3507 = vmatprep.subr.mxu0 0.0
    %3508 = vmatpush1.msra.mxu0 0.0
    %3509 = vmatprep.subr.mxu0 0.0
    %3510 = vmatpush1.msra.mxu0 0.0
    %3511 = vmatprep.subr.mxu0 0.0
    %3512 = vmatpush1.msra.mxu0 0.0
    %3513 = vmatprep.subr.mxu0 0.0
    %3514 = vmatpush1.msra.mxu0 0.0
    %3515 = vmatprep.subr.mxu0 0.0
    %3516 = vmatpush1.msra.mxu0 0.0
    %3517 = vmatprep.subr.mxu0 0.0
    %3518 = vmatpush1.msra.mxu0 0.0
    %3519 = vmatprep.subr.mxu0 0.0
    %3520 = vmatpush1.msra.mxu0 0.0
    %3521 = vmatprep.subr.mxu0 0.0
    %3522 = vmatpush1.msra.mxu0 0.0
    %3523 = vmatprep.subr.mxu0 0.0
    %3524 = vmatpush1.msra.mxu0 0.0
    %3525 = vmatprep.mubr.f32.mxu0 0.0
    %3526 = vmatmul.mubr.f32.gmra.mrb[0].mxu0 %v3456
    %v3527 = vpop.f32.mrb[0].mxu0
    %v3528 = vadd.f32 %v3453, %v3527
    %v3529 = vpop.f32.mrb[0].mxu0
    %3530 = vmatprep.mubr.f32.mxu0 0.0
    %3531 = vmatmul.mubr.f32.gmra.mrb[0].mxu0 %v3459
    %v3532 = vpop.f32.mrb[0].mxu0
    %v3533 = vadd.f32 %v3453, %v3532
    %v3534 = vpop.f32.mrb[0].mxu0
    %3535 = vdwg.mxu0
    %v3536 = vmax.f32 %v3528, 0.0
    %v3537 = vmax.f32 %v3533, 0.0
    %v3538 = vld [vmem:[%s18] sm:$0xff]
    %v3539 = vld [vmem:[%s18 + $0x8] sm:$0xff]
    %v3540 = vld [vmem:[%s18 + $0x10] sm:$0xff]
    %v3541 = vld [vmem:[%s18 + $0x18] sm:$0xff]
    %v3542 = vld [vmem:[%s18 + $0x20] sm:$0xff]
    %v3543 = vld [vmem:[%s18 + $0x28] sm:$0xff]
    %v3544 = vld [vmem:[%s18 + $0x30] sm:$0xff]
    %v3545 = vld [vmem:[%s18 + $0x38] sm:$0xff]
    %v3546 = vld [vmem:[%s19] sm:$0x1]
    %v3548 = vlaneseq
    %v3549 = vshrl.u32 %v3548, 7
    %v3550 = vsub.s32 0, %v3549
    %v3551 = vrot.slane %v3546, %v3550
    %vm3553 = vcmask 523264
    %v3555 = vsel %vm3553, %v3536, 0
    %v3558 = vsel %vm3553, %v3537, 0
    %3560 = vmatprep.subr.mxu0 0.0
    %3561 = vmatpush1.msra.mxu0 %v3538
    %3562 = vmatprep.subr.mxu0 0.0
    %3563 = vmatpush1.msra.mxu0 %v3539
    %3564 = vmatprep.subr.mxu0 0.0
    %3565 = vmatpush1.msra.mxu0 %v3540
    %3566 = vmatprep.subr.mxu0 0.0
    %3567 = vmatpush1.msra.mxu0 %v3541
    %3568 = vmatprep.subr.mxu0 0.0
    %3569 = vmatpush1.msra.mxu0 %v3542
    %3570 = vmatprep.subr.mxu0 0.0
    %3571 = vmatpush1.msra.mxu0 %v3543
    %3572 = vmatprep.subr.mxu0 0.0
    %3573 = vmatpush1.msra.mxu0 %v3544
    %3574 = vmatprep.subr.mxu0 0.0
    %3575 = vmatpush1.msra.mxu0 %v3545
    %3576 = vmatprep.subr.mxu0 0.0
    %3577 = vmatpush1.msra.mxu0 0.0
    %3578 = vmatprep.subr.mxu0 0.0
    %3579 = vmatpush1.msra.mxu0 0.0
    %3580 = vmatprep.subr.mxu0 0.0
    %3581 = vmatpush1.msra.mxu0 0.0
    %3582 = vmatprep.subr.mxu0 0.0
    %3583 = vmatpush1.msra.mxu0 0.0
    %3584 = vmatprep.subr.mxu0 0.0
    %3585 = vmatpush1.msra.mxu0 0.0
    %3586 = vmatprep.subr.mxu0 0.0
    %3587 = vmatpush1.msra.mxu0 0.0
    %3588 = vmatprep.subr.mxu0 0.0
    %3589 = vmatpush1.msra.mxu0 0.0
    %3590 = vmatprep.subr.mxu0 0.0
    %3591 = vmatpush1.msra.mxu0 0.0
    %3592 = vmatprep.subr.mxu0 0.0
    %3593 = vmatpush1.msra.mxu0 0.0
    %3594 = vmatprep.subr.mxu0 0.0
    %3595 = vmatpush1.msra.mxu0 0.0
    %3596 = vmatprep.subr.mxu0 0.0
    %3597 = vmatpush1.msra.mxu0 0.0
    %3598 = vmatprep.subr.mxu0 0.0
    %3599 = vmatpush1.msra.mxu0 0.0
    %3600 = vmatprep.subr.mxu0 0.0
    %3601 = vmatpush1.msra.mxu0 0.0
    %3602 = vmatprep.subr.mxu0 0.0
    %3603 = vmatpush1.msra.mxu0 0.0
    %3604 = vmatprep.subr.mxu0 0.0
    %3605 = vmatpush1.msra.mxu0 0.0
    %3606 = vmatprep.subr.mxu0 0.0
    %3607 = vmatpush1.msra.mxu0 0.0
    %3608 = vmatprep.subr.mxu0 0.0
    %3609 = vmatpush1.msra.mxu0 0.0
    %3610 = vmatprep.subr.mxu0 0.0
    %3611 = vmatpush1.msra.mxu0 0.0
    %3612 = vmatprep.subr.mxu0 0.0
    %3613 = vmatpush1.msra.mxu0 0.0
    %3614 = vmatprep.subr.mxu0 0.0
    %3615 = vmatpush1.msra.mxu0 0.0
    %3616 = vmatprep.subr.mxu0 0.0
    %3617 = vmatpush1.msra.mxu0 0.0
    %3618 = vmatprep.subr.mxu0 0.0
    %3619 = vmatpush1.msra.mxu0 0.0
    %3620 = vmatprep.subr.mxu0 0.0
    %3621 = vmatpush1.msra.mxu0 0.0
    %3622 = vmatprep.subr.mxu0 0.0
    %3623 = vmatpush1.msra.mxu0 0.0
    %3624 = vmatprep.mubr.f32.mxu0 0.0
    %3625 = vmatmul.mubr.f32.gmra.mrb[0].mxu0 %v3555
    %v3626 = vpop.f32.mrb[0].mxu0
    %v3627 = vadd.f32 %v3551, %v3626
    %v3628 = vpop.f32.mrb[0].mxu0
    %3629 = vmatprep.mubr.f32.mxu0 0.0
    %3630 = vmatmul.mubr.f32.gmra.mrb[0].mxu0 %v3558
    %v3631 = vpop.f32.mrb[0].mxu0
    %v3632 = vadd.f32 %v3551, %v3631
    %v3633 = vpop.f32.mrb[0].mxu0
    %3634 = vdwg.mxu0
    %v3635 = vadd.f32 %v3442, %v3627
    %v3636 = vadd.f32 %v3443, %v3632
    %v3637 = vld [vmem:[%s20] sm:$0x1]
    %v3638 = vld [vmem:[%s21] sm:$0x1]
    %v3639 = vsel %vm101, %v3635, 0.0
    %3640 = vadd.xlane.f32.xlu0 %v3639
    %v3641 = vpop.xlane.xlu0 %3640
    %v3642 = vsel %vm101, %v3636, 0.0
    %3643 = vadd.xlane.f32.xlu0 %v3642
    %v3644 = vpop.xlane.xlu0 %3643
    %v3645 = vmul.f32 %v3641, %v1641
    %v3646 = vmul.f32 %v3644, %v1641
    %v3647 = vsub.f32 %v3635, %v3645
    %v3648 = vsub.f32 %v3636, %v3646
    %v3649 = vmul.f32 %v3647, %v3647
    %v3650 = vmul.f32 %v3648, %v3648
    %v3651 = vsel %vm101, %v3649, 0.0
    %3652 = vadd.xlane.f32.xlu0 %v3651
    %v3653 = vpop.xlane.xlu0 %3652
    %v3654 = vsel %vm101, %v3650, 0.0
    %3655 = vadd.xlane.f32.xlu0 %v3654
    %v3656 = vpop.xlane.xlu0 %3655
    %v3657 = vmul.f32 %v3653, %v1641
    %v3658 = vmul.f32 %v3656, %v1641
    %v3659 = vadd.f32 %v3657, 1e-05
    %v3660 = vadd.f32 %v3658, 1e-05
    %v3661 = vrsqrt.pop %v3659
    %v3662 = vrsqrt.pop %v3660
    %v3663 = vmul.f32 %v3647, %v3661
    %v3664 = vmul.f32 %v3648, %v3662
    %v3666 = vlaneseq
    %v3667 = vshrl.u32 %v3666, 7
    %v3668 = vsub.s32 0, %v3667
    %v3669 = vrot.slane %v3637, %v3668
    %v3671 = vmul.f32 %v3663, %v3669
    %v3672 = vmul.f32 %v3664, %v3669
    %v3674 = vlaneseq
    %v3675 = vshrl.u32 %v3674, 7
    %v3676 = vsub.s32 0, %v3675
    %v3677 = vrot.slane %v3638, %v3676
    %v3679 = vadd.f32 %v3671, %v3677
    %v3680 = vadd.f32 %v3672, %v3677
    %v3681 = vld [vmem:[%s22] sm:$0xff]
    %v3682 = vld [vmem:[%s22 + $0x8] sm:$0xff]
    %v3683 = vld [vmem:[%s22 + $0x10] sm:$0xff]
    %v3684 = vld [vmem:[%s22 + $0x18] sm:$0xff]
    %v3685 = vld [vmem:[%s23] sm:$0x1]
    %v3687 = vlaneseq
    %v3688 = vshrl.u32 %v3687, 7
    %v3689 = vsub.s32 0, %v3688
    %v3690 = vrot.slane %v3685, %v3689
    %v3693 = vsel %vm101, %v3679, 0
    %v3696 = vsel %vm101, %v3680, 0
    %3698 = vmatprep.subr.mxu0 0.0
    %3699 = vmatpush1.msra.mxu0 %v3681
    %3700 = vmatprep.subr.mxu0 0.0
    %3701 = vmatpush1.msra.mxu0 %v3682
    %3702 = vmatprep.subr.mxu0 0.0
    %3703 = vmatpush1.msra.mxu0 %v3683
    %3704 = vmatprep.subr.mxu0 0.0
    %3705 = vmatpush1.msra.mxu0 %v3684
    %3706 = vmatprep.subr.mxu0 0.0
    %3707 = vmatpush1.msra.mxu0 0.0
    %3708 = vmatprep.subr.mxu0 0.0
    %3709 = vmatpush1.msra.mxu0 0.0
    %3710 = vmatprep.subr.mxu0 0.0
    %3711 = vmatpush1.msra.mxu0 0.0
    %3712 = vmatprep.subr.mxu0 0.0
    %3713 = vmatpush1.msra.mxu0 0.0
    %3714 = vmatprep.subr.mxu0 0.0
    %3715 = vmatpush1.msra.mxu0 0.0
    %3716 = vmatprep.subr.mxu0 0.0
    %3717 = vmatpush1.msra.mxu0 0.0
    %3718 = vmatprep.subr.mxu0 0.0
    %3719 = vmatpush1.msra.mxu0 0.0
    %3720 = vmatprep.subr.mxu0 0.0
    %3721 = vmatpush1.msra.mxu0 0.0
    %3722 = vmatprep.subr.mxu0 0.0
    %3723 = vmatpush1.msra.mxu0 0.0
    %3724 = vmatprep.subr.mxu0 0.0
    %3725 = vmatpush1.msra.mxu0 0.0
    %3726 = vmatprep.subr.mxu0 0.0
    %3727 = vmatpush1.msra.mxu0 0.0
    %3728 = vmatprep.subr.mxu0 0.0
    %3729 = vmatpush1.msra.mxu0 0.0
    %3730 = vmatprep.subr.mxu0 0.0
    %3731 = vmatpush1.msra.mxu0 0.0
    %3732 = vmatprep.subr.mxu0 0.0
    %3733 = vmatpush1.msra.mxu0 0.0
    %3734 = vmatprep.subr.mxu0 0.0
    %3735 = vmatpush1.msra.mxu0 0.0
    %3736 = vmatprep.subr.mxu0 0.0
    %3737 = vmatpush1.msra.mxu0 0.0
    %3738 = vmatprep.subr.mxu0 0.0
    %3739 = vmatpush1.msra.mxu0 0.0
    %3740 = vmatprep.subr.mxu0 0.0
    %3741 = vmatpush1.msra.mxu0 0.0
    %3742 = vmatprep.subr.mxu0 0.0
    %3743 = vmatpush1.msra.mxu0 0.0
    %3744 = vmatprep.subr.mxu0 0.0
    %3745 = vmatpush1.msra.mxu0 0.0
    %3746 = vmatprep.subr.mxu0 0.0
    %3747 = vmatpush1.msra.mxu0 0.0
    %3748 = vmatprep.subr.mxu0 0.0
    %3749 = vmatpush1.msra.mxu0 0.0
    %3750 = vmatprep.subr.mxu0 0.0
    %3751 = vmatpush1.msra.mxu0 0.0
    %3752 = vmatprep.subr.mxu0 0.0
    %3753 = vmatpush1.msra.mxu0 0.0
    %3754 = vmatprep.subr.mxu0 0.0
    %3755 = vmatpush1.msra.mxu0 0.0
    %3756 = vmatprep.subr.mxu0 0.0
    %3757 = vmatpush1.msra.mxu0 0.0
    %3758 = vmatprep.subr.mxu0 0.0
    %3759 = vmatpush1.msra.mxu0 0.0
    %3760 = vmatprep.subr.mxu0 0.0
    %3761 = vmatpush1.msra.mxu0 0.0
    %3762 = vmatprep.mubr.f32.mxu0 0.0
    %3763 = vmatmul.mubr.f32.gmra.mrb[0].mxu0 %v3693
    %v3764 = vpop.f32.mrb[0].mxu0
    %v3765 = vadd.f32 %v3690, %v3764
    %v3766 = vpop.f32.mrb[0].mxu0
    %3767 = vmatprep.mubr.f32.mxu0 0.0
    %3768 = vmatmul.mubr.f32.gmra.mrb[0].mxu0 %v3696
    %v3769 = vpop.f32.mrb[0].mxu0
    %v3770 = vadd.f32 %v3690, %v3769
    %v3771 = vpop.f32.mrb[0].mxu0
    %3772 = vdwg.mxu0
    %3773 = vst [vmem:[%s24] sm:$0xff] %v3765
    %3774 = vst [vmem:[%s24 + $0x8] sm:$0xff] %v3770
    // Predicated region
    $region98: #{decoder_forward.3} parent=1 // pred_check
      _
    $region99: #{decoder_forward.3} parent=1 // pred_check_branch
      %3776 = sbr.rel (0) target = $region101
    $region100: #{decoder_forward.3} parent=1 // pred_region
      _
    $region101: #{decoder_forward.3} parent=1 // pred_fallthru
      _
    // Predicated region
    $region102: #{decoder_forward.3} parent=1 // pred_check
      _
    $region103: #{decoder_forward.3} parent=1 // pred_check_branch
      %3778 = sbr.rel (0) target = $region105
    $region104: #{decoder_forward.3} parent=1 // pred_region
      %s3780 = ssub.s32 1024, 1024
      %3781 = vsyncadd [#allocation4], %s3780
      %s3782 = sshll.u32 [#allocation3], 4
      %s3783 = int_to_ptr.vmem [resolvable:$true] %s3782
      %3788 = dma.vmem_to_hbm [thread:$0]  %s3783, 1024, %s25, [#allocation4], 128, 128, 8
    $region105: #{decoder_forward.3} parent=1 // pred_fallthru
      _
    // Predicated region
    $region106: #{decoder_forward.3} parent=1 // pred_check
      _
    $region107: #{decoder_forward.3} parent=1 // pred_check_branch
      %3790 = sbr.rel (0) target = $region109
    $region108: #{decoder_forward.3} parent=1 // pred_region
      _
    $region109: #{decoder_forward.3} parent=1 // pred_fallthru
      _
    // Predicated region
    $region110: #{decoder_forward.3} parent=1 // pred_check
      _
    $region111: #{decoder_forward.3} parent=1 // pred_check_branch
      %3792 = sbr.rel (0) target = $region113
    $region112: #{decoder_forward.3} parent=1 // pred_region
      %3793 = dma.done [#allocation4], 1024
    $region113: #{decoder_forward.3} parent=1 // pred_fallthru
      _
    %3794 = vsyncpa [#allocation4], 1

// kernel: decoder_forward.2
$region0: #{decoder_forward.2}
  #allocation0 [shape = 'u32[]', space=smem, size = 0x4, offset = 0x4, fixed_abs, tag = 'smem constant byte address 0x4 - core index']
  #allocation1 [shape = 'u32[144,128]{1,0:T(1,128)}', space=vmem, size = 0x12000, scoped, tag = 'internal scratch']
  #allocation2 [shape = 'f32[16,32]{1,0:T(8,128)}', space=vmem, size = 0x2000, scoped, tag = 'scratch operand']
  %s0 = inlined_call_operand.vmem [shape: f32[16,32], index: 0, kind: input, shape index: {}]
  %s1 = inlined_call_operand.vmem [shape: f32[32,32], index: 1, kind: input, shape index: {}]
  %s2 = inlined_call_operand.vmem [shape: f32[2,8,8], index: 2, kind: input, shape index: {}]
  %s3 = inlined_call_operand.vmem [shape: f32[2,8,16], index: 3, kind: input, shape index: {}]
  %s4 = inlined_call_operand.vmem [shape: f32[32,96], index: 4, kind: input, shape index: {}]
  %s5 = inlined_call_operand.vmem [shape: f32[1,96], index: 5, kind: input, shape index: {}]
  %s6 = inlined_call_operand.vmem [shape: f32[32,32], index: 6, kind: input, shape index: {}]
  %s7 = inlined_call_operand.vmem [shape: f32[1,32], index: 7, kind: input, shape index: {}]
  %s8 = inlined_call_operand.vmem [shape: f32[1,32], index: 8, kind: input, shape index: {}]
  %s9 = inlined_call_operand.vmem [shape: f32[1,32], index: 9, kind: input, shape index: {}]
  %s10 = inlined_call_operand.vmem [shape: f32[32,96], index: 10, kind: input, shape index: {}]
  %s11 = inlined_call_operand.vmem [shape: f32[1,96], index: 11, kind: input, shape index: {}]
  %s12 = inlined_call_operand.vmem [shape: f32[32,32], index: 12, kind: input, shape index: {}]
  %s13 = inlined_call_operand.vmem [shape: f32[1,32], index: 13, kind: input, shape index: {}]
  %s14 = inlined_call_operand.vmem [shape: f32[1,32], index: 14, kind: input, shape index: {}]
  %s15 = inlined_call_operand.vmem [shape: f32[1,32], index: 15, kind: input, shape index: {}]
  %s16 = inlined_call_operand.vmem [shape: f32[32,64], index: 16, kind: input, shape index: {}]
  %s17 = inlined_call_operand.vmem [shape: f32[1,64], index: 17, kind: input, shape index: {}]
  %s18 = inlined_call_operand.vmem [shape: f32[64,32], index: 18, kind: input, shape index: {}]
  %s19 = inlined_call_operand.vmem [shape: f32[1,32], index: 19, kind: input, shape index: {}]
  %s20 = inlined_call_operand.vmem [shape: f32[1,32], index: 20, kind: input, shape index: {}]
  %s21 = inlined_call_operand.vmem [shape: f32[1,32], index: 21, kind: input, shape index: {}]
  %s22 = inlined_call_operand.vmem [shape: f32[16,32], index: 22, kind: output, shape index: {}]
  %s23 = sld [smem:[#allocation0]]
  $region98: #{decoder_forward.2} parent=0
    _
  %s25 = ssub.s32 1, %s23
  %s26 = scalar_select 0, %s25, %s23
  // Predicated region
  $region2: #{decoder_forward.2} parent=0 // pred_check
    _
  $region3: #{decoder_forward.2} parent=0 // pred_check_branch
    %28 = sbr.rel (0) target = $region5
  $region4: #{decoder_forward.2} parent=0 // pred_region
    _
  $region5: #{decoder_forward.2} parent=0 // pred_fallthru
    _
  // Predicated region
  $region6: #{decoder_forward.2} parent=0 // pred_check
    _
  $region7: #{decoder_forward.2} parent=0 // pred_check_branch
    %30 = sbr.rel (0) target = $region9
  $region8: #{decoder_forward.2} parent=0 // pred_region
    _
  $region9: #{decoder_forward.2} parent=0 // pred_fallthru
    _
  // Predicated region
  $region10: #{decoder_forward.2} parent=0 // pred_check
    _
  $region11: #{decoder_forward.2} parent=0 // pred_check_branch
    %32 = sbr.rel (0) target = $region13
  $region12: #{decoder_forward.2} parent=0 // pred_region
    _
  $region13: #{decoder_forward.2} parent=0 // pred_fallthru
    _
  // Predicated region
  $region14: #{decoder_forward.2} parent=0 // pred_check
    _
  $region15: #{decoder_forward.2} parent=0 // pred_check_branch
    %34 = sbr.rel (0) target = $region17
  $region16: #{decoder_forward.2} parent=0 // pred_region
    _
  $region17: #{decoder_forward.2} parent=0 // pred_fallthru
    _
  // Predicated region
  $region18: #{decoder_forward.2} parent=0 // pred_check
    _
  $region19: #{decoder_forward.2} parent=0 // pred_check_branch
    %36 = sbr.rel (0) target = $region21
  $region20: #{decoder_forward.2} parent=0 // pred_region
    _
  $region21: #{decoder_forward.2} parent=0 // pred_fallthru
    _
  // Predicated region
  $region22: #{decoder_forward.2} parent=0 // pred_check
    _
  $region23: #{decoder_forward.2} parent=0 // pred_check_branch
    %38 = sbr.rel (0) target = $region25
  $region24: #{decoder_forward.2} parent=0 // pred_region
    _
  $region25: #{decoder_forward.2} parent=0 // pred_fallthru
    _
  // Predicated region
  $region26: #{decoder_forward.2} parent=0 // pred_check
    _
  $region27: #{decoder_forward.2} parent=0 // pred_check_branch
    %40 = sbr.rel (0) target = $region29
  $region28: #{decoder_forward.2} parent=0 // pred_region
    _
  $region29: #{decoder_forward.2} parent=0 // pred_fallthru
    _
  // Predicated region
  $region30: #{decoder_forward.2} parent=0 // pred_check
    _
  $region31: #{decoder_forward.2} parent=0 // pred_check_branch
    %42 = sbr.rel (0) target = $region33
  $region32: #{decoder_forward.2} parent=0 // pred_region
    _
  $region33: #{decoder_forward.2} parent=0 // pred_fallthru
    _
  // Predicated region
  $region34: #{decoder_forward.2} parent=0 // pred_check
    _
  $region35: #{decoder_forward.2} parent=0 // pred_check_branch
    %44 = sbr.rel (0) target = $region37
  $region36: #{decoder_forward.2} parent=0 // pred_region
    _
  $region37: #{decoder_forward.2} parent=0 // pred_fallthru
    _
  // Predicated region
  $region38: #{decoder_forward.2} parent=0 // pred_check
    _
  $region39: #{decoder_forward.2} parent=0 // pred_check_branch
    %46 = sbr.rel (0) target = $region41
  $region40: #{decoder_forward.2} parent=0 // pred_region
    _
  $region41: #{decoder_forward.2} parent=0 // pred_fallthru
    _
  // Predicated region
  $region42: #{decoder_forward.2} parent=0 // pred_check
    _
  $region43: #{decoder_forward.2} parent=0 // pred_check_branch
    %48 = sbr.rel (0) target = $region45
  $region44: #{decoder_forward.2} parent=0 // pred_region
    _
  $region45: #{decoder_forward.2} parent=0 // pred_fallthru
    _
  // Predicated region
  $region46: #{decoder_forward.2} parent=0 // pred_check
    _
  $region47: #{decoder_forward.2} parent=0 // pred_check_branch
    %50 = sbr.rel (0) target = $region49
  $region48: #{decoder_forward.2} parent=0 // pred_region
    _
  $region49: #{decoder_forward.2} parent=0 // pred_fallthru
    _
  // Predicated region
  $region50: #{decoder_forward.2} parent=0 // pred_check
    _
  $region51: #{decoder_forward.2} parent=0 // pred_check_branch
    %52 = sbr.rel (0) target = $region53
  $region52: #{decoder_forward.2} parent=0 // pred_region
    _
  $region53: #{decoder_forward.2} parent=0 // pred_fallthru
    _
  // Predicated region
  $region54: #{decoder_forward.2} parent=0 // pred_check
    _
  $region55: #{decoder_forward.2} parent=0 // pred_check_branch
    %54 = sbr.rel (0) target = $region57
  $region56: #{decoder_forward.2} parent=0 // pred_region
    _
  $region57: #{decoder_forward.2} parent=0 // pred_fallthru
    _
  // Predicated region
  $region58: #{decoder_forward.2} parent=0 // pred_check
    _
  $region59: #{decoder_forward.2} parent=0 // pred_check_branch
    %56 = sbr.rel (0) target = $region61
  $region60: #{decoder_forward.2} parent=0 // pred_region
    _
  $region61: #{decoder_forward.2} parent=0 // pred_fallthru
    _
  // Predicated region
  $region62: #{decoder_forward.2} parent=0 // pred_check
    _
  $region63: #{decoder_forward.2} parent=0 // pred_check_branch
    %58 = sbr.rel (0) target = $region65
  $region64: #{decoder_forward.2} parent=0 // pred_region
    _
  $region65: #{decoder_forward.2} parent=0 // pred_fallthru
    _
  // Predicated region
  $region66: #{decoder_forward.2} parent=0 // pred_check
    _
  $region67: #{decoder_forward.2} parent=0 // pred_check_branch
    %60 = sbr.rel (0) target = $region69
  $region68: #{decoder_forward.2} parent=0 // pred_region
    _
  $region69: #{decoder_forward.2} parent=0 // pred_fallthru
    _
  // Predicated region
  $region70: #{decoder_forward.2} parent=0 // pred_check
    _
  $region71: #{decoder_forward.2} parent=0 // pred_check_branch
    %62 = sbr.rel (0) target = $region73
  $region72: #{decoder_forward.2} parent=0 // pred_region
    _
  $region73: #{decoder_forward.2} parent=0 // pred_fallthru
    _
  // Predicated region
  $region74: #{decoder_forward.2} parent=0 // pred_check
    _
  $region75: #{decoder_forward.2} parent=0 // pred_check_branch
    %64 = sbr.rel (0) target = $region77
  $region76: #{decoder_forward.2} parent=0 // pred_region
    _
  $region77: #{decoder_forward.2} parent=0 // pred_fallthru
    _
  // Predicated region
  $region78: #{decoder_forward.2} parent=0 // pred_check
    _
  $region79: #{decoder_forward.2} parent=0 // pred_check_branch
    %66 = sbr.rel (0) target = $region81
  $region80: #{decoder_forward.2} parent=0 // pred_region
    _
  $region81: #{decoder_forward.2} parent=0 // pred_fallthru
    _
  // Predicated region
  $region82: #{decoder_forward.2} parent=0 // pred_check
    _
  $region83: #{decoder_forward.2} parent=0 // pred_check_branch
    %68 = sbr.rel (0) target = $region85
  $region84: #{decoder_forward.2} parent=0 // pred_region
    _
  $region85: #{decoder_forward.2} parent=0 // pred_fallthru
    _
  // Predicated region
  $region86: #{decoder_forward.2} parent=0 // pred_check
    _
  $region87: #{decoder_forward.2} parent=0 // pred_check_branch
    %70 = sbr.rel (0) target = $region89
  $region88: #{decoder_forward.2} parent=0 // pred_region
    _
  $region89: #{decoder_forward.2} parent=0 // pred_fallthru
    _
  %v71 = vld [vmem:[%s0] sm:$0xff]
  %v72 = vld [vmem:[%s0 + $0x8] sm:$0xff]
  %v73 = vld [vmem:[%s1] sm:$0xff]
  %v74 = vld [vmem:[%s1 + $0x8] sm:$0xff]
  %v75 = vld [vmem:[%s1 + $0x10] sm:$0xff]
  %v76 = vld [vmem:[%s1 + $0x18] sm:$0xff]
  %v77 = vld [vmem:[%s2] sm:$0xff]
  %v78 = vld [vmem:[%s2 + $0x8] sm:$0xff]
  %v79 = vld [vmem:[%s3] sm:$0xff]
  %v80 = vld [vmem:[%s3 + $0x8] sm:$0xff]
  %v81 = vld [vmem:[%s4] sm:$0xff]
  %v82 = vld [vmem:[%s4 + $0x8] sm:$0xff]
  %v83 = vld [vmem:[%s4 + $0x10] sm:$0xff]
  %v84 = vld [vmem:[%s4 + $0x18] sm:$0xff]
  %v85 = vld [vmem:[%s5] sm:$0x1]
  %v87 = vlaneseq
  %v88 = vshrl.u32 %v87, 7
  %v89 = vsub.s32 0, %v88
  %v90 = vrot.slane %v85, %v89
  %vm92 = vcmask 261120
  %v94 = vsel %vm92, %v71, 0
  %v97 = vsel %vm92, %v72, 0
  %99 = vmatprep.subr.mxu0 0.0
  %100 = vmatpush1.msra.mxu0 %v81
  %101 = vmatprep.subr.mxu0 0.0
  %102 = vmatpush1.msra.mxu0 %v82
  %103 = vmatprep.subr.mxu0 0.0
  %104 = vmatpush1.msra.mxu0 %v83
  %105 = vmatprep.subr.mxu0 0.0
  %106 = vmatpush1.msra.mxu0 %v84
  %107 = vmatprep.subr.mxu0 0.0
  %108 = vmatpush1.msra.mxu0 0.0
  %109 = vmatprep.subr.mxu0 0.0
  %110 = vmatpush1.msra.mxu0 0.0
  %111 = vmatprep.subr.mxu0 0.0
  %112 = vmatpush1.msra.mxu0 0.0
  %113 = vmatprep.subr.mxu0 0.0
  %114 = vmatpush1.msra.mxu0 0.0
  %115 = vmatprep.subr.mxu0 0.0
  %116 = vmatpush1.msra.mxu0 0.0
  %117 = vmatprep.subr.mxu0 0.0
  %118 = vmatpush1.msra.mxu0 0.0
  %119 = vmatprep.subr.mxu0 0.0
  %120 = vmatpush1.msra.mxu0 0.0
  %121 = vmatprep.subr.mxu0 0.0
  %122 = vmatpush1.msra.mxu0 0.0
  %123 = vmatprep.subr.mxu0 0.0
  %124 = vmatpush1.msra.mxu0 0.0
  %125 = vmatprep.subr.mxu0 0.0
  %126 = vmatpush1.msra.mxu0 0.0
  %127 = vmatprep.subr.mxu0 0.0
  %128 = vmatpush1.msra.mxu0 0.0
  %129 = vmatprep.subr.mxu0 0.0
  %130 = vmatpush1.msra.mxu0 0.0
  %131 = vmatprep.subr.mxu0 0.0
  %132 = vmatpush1.msra.mxu0 0.0
  %133 = vmatprep.subr.mxu0 0.0
  %134 = vmatpush1.msra.mxu0 0.0
  %135 = vmatprep.subr.mxu0 0.0
  %136 = vmatpush1.msra.mxu0 0.0
  %137 = vmatprep.subr.mxu0 0.0
  %138 = vmatpush1.msra.mxu0 0.0
  %139 = vmatprep.subr.mxu0 0.0
  %140 = vmatpush1.msra.mxu0 0.0
  %141 = vmatprep.subr.mxu0 0.0
  %142 = vmatpush1.msra.mxu0 0.0
  %143 = vmatprep.subr.mxu0 0.0
  %144 = vmatpush1.msra.mxu0 0.0
  %145 = vmatprep.subr.mxu0 0.0
  %146 = vmatpush1.msra.mxu0 0.0
  %147 = vmatprep.subr.mxu0 0.0
  %148 = vmatpush1.msra.mxu0 0.0
  %149 = vmatprep.subr.mxu0 0.0
  %150 = vmatpush1.msra.mxu0 0.0
  %151 = vmatprep.subr.mxu0 0.0
  %152 = vmatpush1.msra.mxu0 0.0
  %153 = vmatprep.subr.mxu0 0.0
  %154 = vmatpush1.msra.mxu0 0.0
  %155 = vmatprep.subr.mxu0 0.0
  %156 = vmatpush1.msra.mxu0 0.0
  %157 = vmatprep.subr.mxu0 0.0
  %158 = vmatpush1.msra.mxu0 0.0
  %159 = vmatprep.subr.mxu0 0.0
  %160 = vmatpush1.msra.mxu0 0.0
  %161 = vmatprep.subr.mxu0 0.0
  %162 = vmatpush1.msra.mxu0 0.0
  %163 = vmatprep.mubr.f32.mxu0 0.0
  %164 = vmatmul.mubr.f32.gmra.mrb[0].mxu0 %v94
  %v165 = vpop.f32.mrb[0].mxu0
  %v166 = vadd.f32 %v90, %v165
  %v167 = vpop.f32.mrb[0].mxu0
  %168 = vmatprep.mubr.f32.mxu0 0.0
  %169 = vmatmul.mubr.f32.gmra.mrb[0].mxu0 %v97
  %v170 = vpop.f32.mrb[0].mxu0
  %v171 = vadd.f32 %v90, %v170
  %v172 = vpop.f32.mrb[0].mxu0
  %173 = vdwg.mxu0
  %175 = vrot.lane.b32.xlu0 %v166, 96
  %v176 = vpop.permute.xlu0 %175
  %vm177 = vcmask 64512
  %v178 = vsel %vm177, %v166, 0
  %v180 = vsel %vm177, %v176, 0
  %182 = vmatprep.subr.mxu0 0.0
  %183 = vmatpush1.xpose.msra.mxu0 %v180
  %184 = vmatprep.subr.mxu0 0.0
  %185 = vmatpush1.xpose.msra.mxu0 0.0
  %186 = vmatprep.subr.mxu0 0.0
  %187 = vmatpush1.xpose.msra.mxu0 0.0
  %188 = vmatprep.subr.mxu0 0.0
  %189 = vmatpush1.xpose.msra.mxu0 0.0
  %190 = vmatprep.subr.mxu0 0.0
  %191 = vmatpush1.xpose.msra.mxu0 0.0
  %192 = vmatprep.subr.mxu0 0.0
  %193 = vmatpush1.xpose.msra.mxu0 0.0
  %194 = vmatprep.subr.mxu0 0.0
  %195 = vmatpush1.xpose.msra.mxu0 0.0
  %196 = vmatprep.subr.mxu0 0.0
  %197 = vmatpush1.xpose.msra.mxu0 0.0
  %198 = vmatprep.subr.mxu0 0.0
  %199 = vmatpush1.xpose.msra.mxu0 0.0
  %200 = vmatprep.subr.mxu0 0.0
  %201 = vmatpush1.xpose.msra.mxu0 0.0
  %202 = vmatprep.subr.mxu0 0.0
  %203 = vmatpush1.xpose.msra.mxu0 0.0
  %204 = vmatprep.subr.mxu0 0.0
  %205 = vmatpush1.xpose.msra.mxu0 0.0
  %206 = vmatprep.subr.mxu0 0.0
  %207 = vmatpush1.xpose.msra.mxu0 0.0
  %208 = vmatprep.subr.mxu0 0.0
  %209 = vmatpush1.xpose.msra.mxu0 0.0
  %210 = vmatprep.subr.mxu0 0.0
  %211 = vmatpush1.xpose.msra.mxu0 0.0
  %212 = vmatprep.subr.mxu0 0.0
  %213 = vmatpush1.xpose.msra.mxu0 0.0
  %214 = vmatprep.subr.mxu0 0.0
  %215 = vmatpush1.xpose.msra.mxu0 0.0
  %216 = vmatprep.subr.mxu0 0.0
  %217 = vmatpush1.xpose.msra.mxu0 0.0
  %218 = vmatprep.subr.mxu0 0.0
  %219 = vmatpush1.xpose.msra.mxu0 0.0
  %220 = vmatprep.subr.mxu0 0.0
  %221 = vmatpush1.xpose.msra.mxu0 0.0
  %222 = vmatprep.subr.mxu0 0.0
  %223 = vmatpush1.xpose.msra.mxu0 0.0
  %224 = vmatprep.subr.mxu0 0.0
  %225 = vmatpush1.xpose.msra.mxu0 0.0
  %226 = vmatprep.subr.mxu0 0.0
  %227 = vmatpush1.xpose.msra.mxu0 0.0
  %228 = vmatprep.subr.mxu0 0.0
  %229 = vmatpush1.xpose.msra.mxu0 0.0
  %230 = vmatprep.subr.mxu0 0.0
  %231 = vmatpush1.xpose.msra.mxu0 0.0
  %232 = vmatprep.subr.mxu0 0.0
  %233 = vmatpush1.xpose.msra.mxu0 0.0
  %234 = vmatprep.subr.mxu0 0.0
  %235 = vmatpush1.xpose.msra.mxu0 0.0
  %236 = vmatprep.subr.mxu0 0.0
  %237 = vmatpush1.xpose.msra.mxu0 0.0
  %238 = vmatprep.subr.mxu0 0.0
  %239 = vmatpush1.xpose.msra.mxu0 0.0
  %240 = vmatprep.subr.mxu0 0.0
  %241 = vmatpush1.xpose.msra.mxu0 0.0
  %242 = vmatprep.subr.mxu0 0.0
  %243 = vmatpush1.xpose.msra.mxu0 0.0
  %244 = vmatprep.subr.mxu0 0.0
  %245 = vmatpush1.xpose.msra.mxu0 0.0
  %246 = vmatprep.mubr.f32.mxu0 0.0
  %247 = vmatmul.mubr.f32.gmra.mrb[0].mxu0 %v178
  %v248 = vpop.f32.mrb[0].mxu0
  %v249 = vadd.f32 %v77, %v248
  %v250 = vpop.f32.mrb[0].mxu0
  %251 = vdwg.mxu0
  %v252 = vsel %vm177, %v249, -inf
  %253 = vmax.xlane.f32.xlu0 %v252
  %v254 = vpop.xlane.xlu0 %253
  %v255 = vsub.f32 %v249, %v254
  %v256 = vmul.f32 %v255, 1.442695
  %v257 = vpow.pop %v256
  %v258 = vsel %vm177, %v257, 0.0
  %259 = vadd.xlane.f32.xlu0 %v258
  %v260 = vpop.xlane.xlu0 %259
  %v261 = vrcp.pop %v260
  %v262 = vmul.f32 %v257, %v261
  %263 = vrot.lane.b32.xlu0 %v166, 64
  %v264 = vpop.permute.xlu0 %263
  %v267 = vsel %vm177, %v262, 0
  %269 = vmatprep.subr.mxu0 0.0
  %270 = vmatpush1.msra.mxu0 %v264
  %271 = vmatprep.subr.mxu0 0.0
  %272 = vmatpush1.msra.mxu0 0.0
  %273 = vmatprep.subr.mxu0 0.0
  %274 = vmatpush1.msra.mxu0 0.0
  %275 = vmatprep.subr.mxu0 0.0
  %276 = vmatpush1.msra.mxu0 0.0
  %277 = vmatprep.subr.mxu0 0.0
  %278 = vmatpush1.msra.mxu0 0.0
  %279 = vmatprep.subr.mxu0 0.0
  %280 = vmatpush1.msra.mxu0 0.0
  %281 = vmatprep.subr.mxu0 0.0
  %282 = vmatpush1.msra.mxu0 0.0
  %283 = vmatprep.subr.mxu0 0.0
  %284 = vmatpush1.msra.mxu0 0.0
  %285 = vmatprep.subr.mxu0 0.0
  %286 = vmatpush1.msra.mxu0 0.0
  %287 = vmatprep.subr.mxu0 0.0
  %288 = vmatpush1.msra.mxu0 0.0
  %289 = vmatprep.subr.mxu0 0.0
  %290 = vmatpush1.msra.mxu0 0.0
  %291 = vmatprep.subr.mxu0 0.0
  %292 = vmatpush1.msra.mxu0 0.0
  %293 = vmatprep.subr.mxu0 0.0
  %294 = vmatpush1.msra.mxu0 0.0
  %295 = vmatprep.subr.mxu0 0.0
  %296 = vmatpush1.msra.mxu0 0.0
  %297 = vmatprep.subr.mxu0 0.0
  %298 = vmatpush1.msra.mxu0 0.0
  %299 = vmatprep.subr.mxu0 0.0
  %300 = vmatpush1.msra.mxu0 0.0
  %301 = vmatprep.subr.mxu0 0.0
  %302 = vmatpush1.msra.mxu0 0.0
  %303 = vmatprep.subr.mxu0 0.0
  %304 = vmatpush1.msra.mxu0 0.0
  %305 = vmatprep.subr.mxu0 0.0
  %306 = vmatpush1.msra.mxu0 0.0
  %307 = vmatprep.subr.mxu0 0.0
  %308 = vmatpush1.msra.mxu0 0.0
  %309 = vmatprep.subr.mxu0 0.0
  %310 = vmatpush1.msra.mxu0 0.0
  %311 = vmatprep.subr.mxu0 0.0
  %312 = vmatpush1.msra.mxu0 0.0
  %313 = vmatprep.subr.mxu0 0.0
  %314 = vmatpush1.msra.mxu0 0.0
  %315 = vmatprep.subr.mxu0 0.0
  %316 = vmatpush1.msra.mxu0 0.0
  %317 = vmatprep.subr.mxu0 0.0
  %318 = vmatpush1.msra.mxu0 0.0
  %319 = vmatprep.subr.mxu0 0.0
  %320 = vmatpush1.msra.mxu0 0.0
  %321 = vmatprep.subr.mxu0 0.0
  %322 = vmatpush1.msra.mxu0 0.0
  %323 = vmatprep.subr.mxu0 0.0
  %324 = vmatpush1.msra.mxu0 0.0
  %325 = vmatprep.subr.mxu0 0.0
  %326 = vmatpush1.msra.mxu0 0.0
  %327 = vmatprep.subr.mxu0 0.0
  %328 = vmatpush1.msra.mxu0 0.0
  %329 = vmatprep.subr.mxu0 0.0
  %330 = vmatpush1.msra.mxu0 0.0
  %331 = vmatprep.subr.mxu0 0.0
  %332 = vmatpush1.msra.mxu0 0.0
  %333 = vmatprep.mubr.f32.mxu0 0.0
  %334 = vmatmul.mubr.f32.gmra.mrb[0].mxu0 %v267
  %v335 = vpop.f32.mrb[0].mxu0
  %v336 = vadd.f32 0.0, %v335
  %v337 = vpop.f32.mrb[0].mxu0
  %338 = vdwg.mxu0
  %339 = vst.msk [vmem:[#allocation2] sm:$0xff] %vm177, %v336
  %340 = vrot.lane.b32.xlu0 %v166, 120
  %v341 = vpop.permute.xlu0 %340
  %342 = vrot.lane.b32.xlu0 %v166, 88
  %v343 = vpop.permute.xlu0 %342
  %v344 = vsel %vm177, %v341, 0
  %v346 = vsel %vm177, %v343, 0
  %348 = vmatprep.subr.mxu0 0.0
  %349 = vmatpush1.xpose.msra.mxu0 %v346
  %350 = vmatprep.subr.mxu0 0.0
  %351 = vmatpush1.xpose.msra.mxu0 0.0
  %352 = vmatprep.subr.mxu0 0.0
  %353 = vmatpush1.xpose.msra.mxu0 0.0
  %354 = vmatprep.subr.mxu0 0.0
  %355 = vmatpush1.xpose.msra.mxu0 0.0
  %356 = vmatprep.subr.mxu0 0.0
  %357 = vmatpush1.xpose.msra.mxu0 0.0
  %358 = vmatprep.subr.mxu0 0.0
  %359 = vmatpush1.xpose.msra.mxu0 0.0
  %360 = vmatprep.subr.mxu0 0.0
  %361 = vmatpush1.xpose.msra.mxu0 0.0
  %362 = vmatprep.subr.mxu0 0.0
  %363 = vmatpush1.xpose.msra.mxu0 0.0
  %364 = vmatprep.subr.mxu0 0.0
  %365 = vmatpush1.xpose.msra.mxu0 0.0
  %366 = vmatprep.subr.mxu0 0.0
  %367 = vmatpush1.xpose.msra.mxu0 0.0
  %368 = vmatprep.subr.mxu0 0.0
  %369 = vmatpush1.xpose.msra.mxu0 0.0
  %370 = vmatprep.subr.mxu0 0.0
  %371 = vmatpush1.xpose.msra.mxu0 0.0
  %372 = vmatprep.subr.mxu0 0.0
  %373 = vmatpush1.xpose.msra.mxu0 0.0
  %374 = vmatprep.subr.mxu0 0.0
  %375 = vmatpush1.xpose.msra.mxu0 0.0
  %376 = vmatprep.subr.mxu0 0.0
  %377 = vmatpush1.xpose.msra.mxu0 0.0
  %378 = vmatprep.subr.mxu0 0.0
  %379 = vmatpush1.xpose.msra.mxu0 0.0
  %380 = vmatprep.subr.mxu0 0.0
  %381 = vmatpush1.xpose.msra.mxu0 0.0
  %382 = vmatprep.subr.mxu0 0.0
  %383 = vmatpush1.xpose.msra.mxu0 0.0
  %384 = vmatprep.subr.mxu0 0.0
  %385 = vmatpush1.xpose.msra.mxu0 0.0
  %386 = vmatprep.subr.mxu0 0.0
  %387 = vmatpush1.xpose.msra.mxu0 0.0
  %388 = vmatprep.subr.mxu0 0.0
  %389 = vmatpush1.xpose.msra.mxu0 0.0
  %390 = vmatprep.subr.mxu0 0.0
  %391 = vmatpush1.xpose.msra.mxu0 0.0
  %392 = vmatprep.subr.mxu0 0.0
  %393 = vmatpush1.xpose.msra.mxu0 0.0
  %394 = vmatprep.subr.mxu0 0.0
  %395 = vmatpush1.xpose.msra.mxu0 0.0
  %396 = vmatprep.subr.mxu0 0.0
  %397 = vmatpush1.xpose.msra.mxu0 0.0
  %398 = vmatprep.subr.mxu0 0.0
  %399 = vmatpush1.xpose.msra.mxu0 0.0
  %400 = vmatprep.subr.mxu0 0.0
  %401 = vmatpush1.xpose.msra.mxu0 0.0
  %402 = vmatprep.subr.mxu0 0.0
  %403 = vmatpush1.xpose.msra.mxu0 0.0
  %404 = vmatprep.subr.mxu0 0.0
  %405 = vmatpush1.xpose.msra.mxu0 0.0
  %406 = vmatprep.subr.mxu0 0.0
  %407 = vmatpush1.xpose.msra.mxu0 0.0
  %408 = vmatprep.subr.mxu0 0.0
  %409 = vmatpush1.xpose.msra.mxu0 0.0
  %410 = vmatprep.subr.mxu0 0.0
  %411 = vmatpush1.xpose.msra.mxu0 0.0
  %412 = vmatprep.mubr.f32.mxu0 0.0
  %413 = vmatmul.mubr.f32.gmra.mrb[0].mxu0 %v344
  %v414 = vpop.f32.mrb[0].mxu0
  %v415 = vadd.f32 %v77, %v414
  %v416 = vpop.f32.mrb[0].mxu0
  %417 = vdwg.mxu0
  %v418 = vsel %vm177, %v415, -inf
  %419 = vmax.xlane.f32.xlu0 %v418
  %v420 = vpop.xlane.xlu0 %419
  %v421 = vsub.f32 %v415, %v420
  %v422 = vmul.f32 %v421, 1.442695
  %v423 = vpow.pop %v422
  %v424 = vsel %vm177, %v423, 0.0
  %425 = vadd.xlane.f32.xlu0 %v424
  %v426 = vpop.xlane.xlu0 %425
  %v427 = vrcp.pop %v426
  %v428 = vmul.f32 %v423, %v427
  %429 = vrot.lane.b32.xlu0 %v166, 56
  %v430 = vpop.permute.xlu0 %429
  %v433 = vsel %vm177, %v428, 0
  %435 = vmatprep.subr.mxu0 0.0
  %436 = vmatpush1.msra.mxu0 %v430
  %437 = vmatprep.subr.mxu0 0.0
  %438 = vmatpush1.msra.mxu0 0.0
  %439 = vmatprep.subr.mxu0 0.0
  %440 = vmatpush1.msra.mxu0 0.0
  %441 = vmatprep.subr.mxu0 0.0
  %442 = vmatpush1.msra.mxu0 0.0
  %443 = vmatprep.subr.mxu0 0.0
  %444 = vmatpush1.msra.mxu0 0.0
  %445 = vmatprep.subr.mxu0 0.0
  %446 = vmatpush1.msra.mxu0 0.0
  %447 = vmatprep.subr.mxu0 0.0
  %448 = vmatpush1.msra.mxu0 0.0
  %449 = vmatprep.subr.mxu0 0.0
  %450 = vmatpush1.msra.mxu0 0.0
  %451 = vmatprep.subr.mxu0 0.0
  %452 = vmatpush1.msra.mxu0 0.0
  %453 = vmatprep.subr.mxu0 0.0
  %454 = vmatpush1.msra.mxu0 0.0
  %455 = vmatprep.subr.mxu0 0.0
  %456 = vmatpush1.msra.mxu0 0.0
  %457 = vmatprep.subr.mxu0 0.0
  %458 = vmatpush1.msra.mxu0 0.0
  %459 = vmatprep.subr.mxu0 0.0
  %460 = vmatpush1.msra.mxu0 0.0
  %461 = vmatprep.subr.mxu0 0.0
  %462 = vmatpush1.msra.mxu0 0.0
  %463 = vmatprep.subr.mxu0 0.0
  %464 = vmatpush1.msra.mxu0 0.0
  %465 = vmatprep.subr.mxu0 0.0
  %466 = vmatpush1.msra.mxu0 0.0
  %467 = vmatprep.subr.mxu0 0.0
  %468 = vmatpush1.msra.mxu0 0.0
  %469 = vmatprep.subr.mxu0 0.0
  %470 = vmatpush1.msra.mxu0 0.0
  %471 = vmatprep.subr.mxu0 0.0
  %472 = vmatpush1.msra.mxu0 0.0
  %473 = vmatprep.subr.mxu0 0.0
  %474 = vmatpush1.msra.mxu0 0.0
  %475 = vmatprep.subr.mxu0 0.0
  %476 = vmatpush1.msra.mxu0 0.0
  %477 = vmatprep.subr.mxu0 0.0
  %478 = vmatpush1.msra.mxu0 0.0
  %479 = vmatprep.subr.mxu0 0.0
  %480 = vmatpush1.msra.mxu0 0.0
  %481 = vmatprep.subr.mxu0 0.0
  %482 = vmatpush1.msra.mxu0 0.0
  %483 = vmatprep.subr.mxu0 0.0
  %484 = vmatpush1.msra.mxu0 0.0
  %485 = vmatprep.subr.mxu0 0.0
  %486 = vmatpush1.msra.mxu0 0.0
  %487 = vmatprep.subr.mxu0 0.0
  %488 = vmatpush1.msra.mxu0 0.0
  %489 = vmatprep.subr.mxu0 0.0
  %490 = vmatpush1.msra.mxu0 0.0
  %491 = vmatprep.subr.mxu0 0.0
  %492 = vmatpush1.msra.mxu0 0.0
  %493 = vmatprep.subr.mxu0 0.0
  %494 = vmatpush1.msra.mxu0 0.0
  %495 = vmatprep.subr.mxu0 0.0
  %496 = vmatpush1.msra.mxu0 0.0
  %497 = vmatprep.subr.mxu0 0.0
  %498 = vmatpush1.msra.mxu0 0.0
  %499 = vmatprep.mubr.f32.mxu0 0.0
  %500 = vmatmul.mubr.f32.gmra.mrb[0].mxu0 %v433
  %v501 = vpop.f32.mrb[0].mxu0
  %v502 = vadd.f32 0.0, %v501
  %v503 = vpop.f32.mrb[0].mxu0
  %504 = vdwg.mxu0
  %506 = vrot.lane.b32.xlu0 %v502, 8
  %v507 = vpop.permute.xlu0 %506
  %vm509 = vcmask 130112
  %510 = vst.msk [vmem:[#allocation2] sm:$0xff] %vm509, %v507
  %511 = vrot.lane.b32.xlu0 %v166, 112
  %v512 = vpop.permute.xlu0 %511
  %513 = vrot.lane.b32.xlu0 %v166, 80
  %v514 = vpop.permute.xlu0 %513
  %v515 = vsel %vm177, %v512, 0
  %v517 = vsel %vm177, %v514, 0
  %519 = vmatprep.subr.mxu0 0.0
  %520 = vmatpush1.xpose.msra.mxu0 %v517
  %521 = vmatprep.subr.mxu0 0.0
  %522 = vmatpush1.xpose.msra.mxu0 0.0
  %523 = vmatprep.subr.mxu0 0.0
  %524 = vmatpush1.xpose.msra.mxu0 0.0
  %525 = vmatprep.subr.mxu0 0.0
  %526 = vmatpush1.xpose.msra.mxu0 0.0
  %527 = vmatprep.subr.mxu0 0.0
  %528 = vmatpush1.xpose.msra.mxu0 0.0
  %529 = vmatprep.subr.mxu0 0.0
  %530 = vmatpush1.xpose.msra.mxu0 0.0
  %531 = vmatprep.subr.mxu0 0.0
  %532 = vmatpush1.xpose.msra.mxu0 0.0
  %533 = vmatprep.subr.mxu0 0.0
  %534 = vmatpush1.xpose.msra.mxu0 0.0
  %535 = vmatprep.subr.mxu0 0.0
  %536 = vmatpush1.xpose.msra.mxu0 0.0
  %537 = vmatprep.subr.mxu0 0.0
  %538 = vmatpush1.xpose.msra.mxu0 0.0
  %539 = vmatprep.subr.mxu0 0.0
  %540 = vmatpush1.xpose.msra.mxu0 0.0
  %541 = vmatprep.subr.mxu0 0.0
  %542 = vmatpush1.xpose.msra.mxu0 0.0
  %543 = vmatprep.subr.mxu0 0.0
  %544 = vmatpush1.xpose.msra.mxu0 0.0
  %545 = vmatprep.subr.mxu0 0.0
  %546 = vmatpush1.xpose.msra.mxu0 0.0
  %547 = vmatprep.subr.mxu0 0.0
  %548 = vmatpush1.xpose.msra.mxu0 0.0
  %549 = vmatprep.subr.mxu0 0.0
  %550 = vmatpush1.xpose.msra.mxu0 0.0
  %551 = vmatprep.subr.mxu0 0.0
  %552 = vmatpush1.xpose.msra.mxu0 0.0
  %553 = vmatprep.subr.mxu0 0.0
  %554 = vmatpush1.xpose.msra.mxu0 0.0
  %555 = vmatprep.subr.mxu0 0.0
  %556 = vmatpush1.xpose.msra.mxu0 0.0
  %557 = vmatprep.subr.mxu0 0.0
  %558 = vmatpush1.xpose.msra.mxu0 0.0
  %559 = vmatprep.subr.mxu0 0.0
  %560 = vmatpush1.xpose.msra.mxu0 0.0
  %561 = vmatprep.subr.mxu0 0.0
  %562 = vmatpush1.xpose.msra.mxu0 0.0
  %563 = vmatprep.subr.mxu0 0.0
  %564 = vmatpush1.xpose.msra.mxu0 0.0
  %565 = vmatprep.subr.mxu0 0.0
  %566 = vmatpush1.xpose.msra.mxu0 0.0
  %567 = vmatprep.subr.mxu0 0.0
  %568 = vmatpush1.xpose.msra.mxu0 0.0
  %569 = vmatprep.subr.mxu0 0.0
  %570 = vmatpush1.xpose.msra.mxu0 0.0
  %571 = vmatprep.subr.mxu0 0.0
  %572 = vmatpush1.xpose.msra.mxu0 0.0
  %573 = vmatprep.subr.mxu0 0.0
  %574 = vmatpush1.xpose.msra.mxu0 0.0
  %575 = vmatprep.subr.mxu0 0.0
  %576 = vmatpush1.xpose.msra.mxu0 0.0
  %577 = vmatprep.subr.mxu0 0.0
  %578 = vmatpush1.xpose.msra.mxu0 0.0
  %579 = vmatprep.subr.mxu0 0.0
  %580 = vmatpush1.xpose.msra.mxu0 0.0
  %581 = vmatprep.subr.mxu0 0.0
  %582 = vmatpush1.xpose.msra.mxu0 0.0
  %583 = vmatprep.mubr.f32.mxu0 0.0
  %584 = vmatmul.mubr.f32.gmra.mrb[0].mxu0 %v515
  %v585 = vpop.f32.mrb[0].mxu0
  %v586 = vadd.f32 %v77, %v585
  %v587 = vpop.f32.mrb[0].mxu0
  %588 = vdwg.mxu0
  %v589 = vsel %vm177, %v586, -inf
  %590 = vmax.xlane.f32.xlu0 %v589
  %v591 = vpop.xlane.xlu0 %590
  %v592 = vsub.f32 %v586, %v591
  %v593 = vmul.f32 %v592, 1.442695
  %v594 = vpow.pop %v593
  %v595 = vsel %vm177, %v594, 0.0
  %596 = vadd.xlane.f32.xlu0 %v595
  %v597 = vpop.xlane.xlu0 %596
  %v598 = vrcp.pop %v597
  %v599 = vmul.f32 %v594, %v598
  %600 = vrot.lane.b32.xlu0 %v166, 48
  %v601 = vpop.permute.xlu0 %600
  %v604 = vsel %vm177, %v599, 0
  %606 = vmatprep.subr.mxu0 0.0
  %607 = vmatpush1.msra.mxu0 %v601
  %608 = vmatprep.subr.mxu0 0.0
  %609 = vmatpush1.msra.mxu0 0.0
  %610 = vmatprep.subr.mxu0 0.0
  %611 = vmatpush1.msra.mxu0 0.0
  %612 = vmatprep.subr.mxu0 0.0
  %613 = vmatpush1.msra.mxu0 0.0
  %614 = vmatprep.subr.mxu0 0.0
  %615 = vmatpush1.msra.mxu0 0.0
  %616 = vmatprep.subr.mxu0 0.0
  %617 = vmatpush1.msra.mxu0 0.0
  %618 = vmatprep.subr.mxu0 0.0
  %619 = vmatpush1.msra.mxu0 0.0
  %620 = vmatprep.subr.mxu0 0.0
  %621 = vmatpush1.msra.mxu0 0.0
  %622 = vmatprep.subr.mxu0 0.0
  %623 = vmatpush1.msra.mxu0 0.0
  %624 = vmatprep.subr.mxu0 0.0
  %625 = vmatpush1.msra.mxu0 0.0
  %626 = vmatprep.subr.mxu0 0.0
  %627 = vmatpush1.msra.mxu0 0.0
  %628 = vmatprep.subr.mxu0 0.0
  %629 = vmatpush1.msra.mxu0 0.0
  %630 = vmatprep.subr.mxu0 0.0
  %631 = vmatpush1.msra.mxu0 0.0
  %632 = vmatprep.subr.mxu0 0.0
  %633 = vmatpush1.msra.mxu0 0.0
  %634 = vmatprep.subr.mxu0 0.0
  %635 = vmatpush1.msra.mxu0 0.0
  %636 = vmatprep.subr.mxu0 0.0
  %637 = vmatpush1.msra.mxu0 0.0
  %638 = vmatprep.subr.mxu0 0.0
  %639 = vmatpush1.msra.mxu0 0.0
  %640 = vmatprep.subr.mxu0 0.0
  %641 = vmatpush1.msra.mxu0 0.0
  %642 = vmatprep.subr.mxu0 0.0
  %643 = vmatpush1.msra.mxu0 0.0
  %644 = vmatprep.subr.mxu0 0.0
  %645 = vmatpush1.msra.mxu0 0.0
  %646 = vmatprep.subr.mxu0 0.0
  %647 = vmatpush1.msra.mxu0 0.0
  %648 = vmatprep.subr.mxu0 0.0
  %649 = vmatpush1.msra.mxu0 0.0
  %650 = vmatprep.subr.mxu0 0.0
  %651 = vmatpush1.msra.mxu0 0.0
  %652 = vmatprep.subr.mxu0 0.0
  %653 = vmatpush1.msra.mxu0 0.0
  %654 = vmatprep.subr.mxu0 0.0
  %655 = vmatpush1.msra.mxu0 0.0
  %656 = vmatprep.subr.mxu0 0.0
  %657 = vmatpush1.msra.mxu0 0.0
  %658 = vmatprep.subr.mxu0 0.0
  %659 = vmatpush1.msra.mxu0 0.0
  %660 = vmatprep.subr.mxu0 0.0
  %661 = vmatpush1.msra.mxu0 0.0
  %662 = vmatprep.subr.mxu0 0.0
  %663 = vmatpush1.msra.mxu0 0.0
  %664 = vmatprep.subr.mxu0 0.0
  %665 = vmatpush1.msra.mxu0 0.0
  %666 = vmatprep.subr.mxu0 0.0
  %667 = vmatpush1.msra.mxu0 0.0
  %668 = vmatprep.subr.mxu0 0.0
  %669 = vmatpush1.msra.mxu0 0.0
  %670 = vmatprep.mubr.f32.mxu0 0.0
  %671 = vmatmul.mubr.f32.gmra.mrb[0].mxu0 %v604
  %v672 = vpop.f32.mrb[0].mxu0
  %v673 = vadd.f32 0.0, %v672
  %v674 = vpop.f32.mrb[0].mxu0
  %675 = vdwg.mxu0
  %677 = vrot.lane.b32.xlu0 %v673, 16
  %v678 = vpop.permute.xlu0 %677
  %vm680 = vcmask 195712
  %681 = vst.msk [vmem:[#allocation2] sm:$0xff] %vm680, %v678
  %682 = vrot.lane.b32.xlu0 %v166, 104
  %v683 = vpop.permute.xlu0 %682
  %684 = vrot.lane.b32.xlu0 %v166, 72
  %v685 = vpop.permute.xlu0 %684
  %v686 = vsel %vm177, %v683, 0
  %v688 = vsel %vm177, %v685, 0
  %690 = vmatprep.subr.mxu0 0.0
  %691 = vmatpush1.xpose.msra.mxu0 %v688
  %692 = vmatprep.subr.mxu0 0.0
  %693 = vmatpush1.xpose.msra.mxu0 0.0
  %694 = vmatprep.subr.mxu0 0.0
  %695 = vmatpush1.xpose.msra.mxu0 0.0
  %696 = vmatprep.subr.mxu0 0.0
  %697 = vmatpush1.xpose.msra.mxu0 0.0
  %698 = vmatprep.subr.mxu0 0.0
  %699 = vmatpush1.xpose.msra.mxu0 0.0
  %700 = vmatprep.subr.mxu0 0.0
  %701 = vmatpush1.xpose.msra.mxu0 0.0
  %702 = vmatprep.subr.mxu0 0.0
  %703 = vmatpush1.xpose.msra.mxu0 0.0
  %704 = vmatprep.subr.mxu0 0.0
  %705 = vmatpush1.xpose.msra.mxu0 0.0
  %706 = vmatprep.subr.mxu0 0.0
  %707 = vmatpush1.xpose.msra.mxu0 0.0
  %708 = vmatprep.subr.mxu0 0.0
  %709 = vmatpush1.xpose.msra.mxu0 0.0
  %710 = vmatprep.subr.mxu0 0.0
  %711 = vmatpush1.xpose.msra.mxu0 0.0
  %712 = vmatprep.subr.mxu0 0.0
  %713 = vmatpush1.xpose.msra.mxu0 0.0
  %714 = vmatprep.subr.mxu0 0.0
  %715 = vmatpush1.xpose.msra.mxu0 0.0
  %716 = vmatprep.subr.mxu0 0.0
  %717 = vmatpush1.xpose.msra.mxu0 0.0
  %718 = vmatprep.subr.mxu0 0.0
  %719 = vmatpush1.xpose.msra.mxu0 0.0
  %720 = vmatprep.subr.mxu0 0.0
  %721 = vmatpush1.xpose.msra.mxu0 0.0
  %722 = vmatprep.subr.mxu0 0.0
  %723 = vmatpush1.xpose.msra.mxu0 0.0
  %724 = vmatprep.subr.mxu0 0.0
  %725 = vmatpush1.xpose.msra.mxu0 0.0
  %726 = vmatprep.subr.mxu0 0.0
  %727 = vmatpush1.xpose.msra.mxu0 0.0
  %728 = vmatprep.subr.mxu0 0.0
  %729 = vmatpush1.xpose.msra.mxu0 0.0
  %730 = vmatprep.subr.mxu0 0.0
  %731 = vmatpush1.xpose.msra.mxu0 0.0
  %732 = vmatprep.subr.mxu0 0.0
  %733 = vmatpush1.xpose.msra.mxu0 0.0
  %734 = vmatprep.subr.mxu0 0.0
  %735 = vmatpush1.xpose.msra.mxu0 0.0
  %736 = vmatprep.subr.mxu0 0.0
  %737 = vmatpush1.xpose.msra.mxu0 0.0
  %738 = vmatprep.subr.mxu0 0.0
  %739 = vmatpush1.xpose.msra.mxu0 0.0
  %740 = vmatprep.subr.mxu0 0.0
  %741 = vmatpush1.xpose.msra.mxu0 0.0
  %742 = vmatprep.subr.mxu0 0.0
  %743 = vmatpush1.xpose.msra.mxu0 0.0
  %744 = vmatprep.subr.mxu0 0.0
  %745 = vmatpush1.xpose.msra.mxu0 0.0
  %746 = vmatprep.subr.mxu0 0.0
  %747 = vmatpush1.xpose.msra.mxu0 0.0
  %748 = vmatprep.subr.mxu0 0.0
  %749 = vmatpush1.xpose.msra.mxu0 0.0
  %750 = vmatprep.subr.mxu0 0.0
  %751 = vmatpush1.xpose.msra.mxu0 0.0
  %752 = vmatprep.subr.mxu0 0.0
  %753 = vmatpush1.xpose.msra.mxu0 0.0
  %754 = vmatprep.mubr.f32.mxu0 0.0
  %755 = vmatmul.mubr.f32.gmra.mrb[0].mxu0 %v686
  %v756 = vpop.f32.mrb[0].mxu0
  %v757 = vadd.f32 %v77, %v756
  %v758 = vpop.f32.mrb[0].mxu0
  %759 = vdwg.mxu0
  %v760 = vsel %vm177, %v757, -inf
  %761 = vmax.xlane.f32.xlu0 %v760
  %v762 = vpop.xlane.xlu0 %761
  %v763 = vsub.f32 %v757, %v762
  %v764 = vmul.f32 %v763, 1.442695
  %v765 = vpow.pop %v764
  %v766 = vsel %vm177, %v765, 0.0
  %767 = vadd.xlane.f32.xlu0 %v766
  %v768 = vpop.xlane.xlu0 %767
  %v769 = vrcp.pop %v768
  %v770 = vmul.f32 %v765, %v769
  %771 = vrot.lane.b32.xlu0 %v166, 40
  %v772 = vpop.permute.xlu0 %771
  %v775 = vsel %vm177, %v770, 0
  %777 = vmatprep.subr.mxu0 0.0
  %778 = vmatpush1.msra.mxu0 %v772
  %779 = vmatprep.subr.mxu0 0.0
  %780 = vmatpush1.msra.mxu0 0.0
  %781 = vmatprep.subr.mxu0 0.0
  %782 = vmatpush1.msra.mxu0 0.0
  %783 = vmatprep.subr.mxu0 0.0
  %784 = vmatpush1.msra.mxu0 0.0
  %785 = vmatprep.subr.mxu0 0.0
  %786 = vmatpush1.msra.mxu0 0.0
  %787 = vmatprep.subr.mxu0 0.0
  %788 = vmatpush1.msra.mxu0 0.0
  %789 = vmatprep.subr.mxu0 0.0
  %790 = vmatpush1.msra.mxu0 0.0
  %791 = vmatprep.subr.mxu0 0.0
  %792 = vmatpush1.msra.mxu0 0.0
  %793 = vmatprep.subr.mxu0 0.0
  %794 = vmatpush1.msra.mxu0 0.0
  %795 = vmatprep.subr.mxu0 0.0
  %796 = vmatpush1.msra.mxu0 0.0
  %797 = vmatprep.subr.mxu0 0.0
  %798 = vmatpush1.msra.mxu0 0.0
  %799 = vmatprep.subr.mxu0 0.0
  %800 = vmatpush1.msra.mxu0 0.0
  %801 = vmatprep.subr.mxu0 0.0
  %802 = vmatpush1.msra.mxu0 0.0
  %803 = vmatprep.subr.mxu0 0.0
  %804 = vmatpush1.msra.mxu0 0.0
  %805 = vmatprep.subr.mxu0 0.0
  %806 = vmatpush1.msra.mxu0 0.0
  %807 = vmatprep.subr.mxu0 0.0
  %808 = vmatpush1.msra.mxu0 0.0
  %809 = vmatprep.subr.mxu0 0.0
  %810 = vmatpush1.msra.mxu0 0.0
  %811 = vmatprep.subr.mxu0 0.0
  %812 = vmatpush1.msra.mxu0 0.0
  %813 = vmatprep.subr.mxu0 0.0
  %814 = vmatpush1.msra.mxu0 0.0
  %815 = vmatprep.subr.mxu0 0.0
  %816 = vmatpush1.msra.mxu0 0.0
  %817 = vmatprep.subr.mxu0 0.0
  %818 = vmatpush1.msra.mxu0 0.0
  %819 = vmatprep.subr.mxu0 0.0
  %820 = vmatpush1.msra.mxu0 0.0
  %821 = vmatprep.subr.mxu0 0.0
  %822 = vmatpush1.msra.mxu0 0.0
  %823 = vmatprep.subr.mxu0 0.0
  %824 = vmatpush1.msra.mxu0 0.0
  %825 = vmatprep.subr.mxu0 0.0
  %826 = vmatpush1.msra.mxu0 0.0
  %827 = vmatprep.subr.mxu0 0.0
  %828 = vmatpush1.msra.mxu0 0.0
  %829 = vmatprep.subr.mxu0 0.0
  %830 = vmatpush1.msra.mxu0 0.0
  %831 = vmatprep.subr.mxu0 0.0
  %832 = vmatpush1.msra.mxu0 0.0
  %833 = vmatprep.subr.mxu0 0.0
  %834 = vmatpush1.msra.mxu0 0.0
  %835 = vmatprep.subr.mxu0 0.0
  %836 = vmatpush1.msra.mxu0 0.0
  %837 = vmatprep.subr.mxu0 0.0
  %838 = vmatpush1.msra.mxu0 0.0
  %839 = vmatprep.subr.mxu0 0.0
  %840 = vmatpush1.msra.mxu0 0.0
  %841 = vmatprep.mubr.f32.mxu0 0.0
  %842 = vmatmul.mubr.f32.gmra.mrb[0].mxu0 %v775
  %v843 = vpop.f32.mrb[0].mxu0
  %v844 = vadd.f32 0.0, %v843
  %v845 = vpop.f32.mrb[0].mxu0
  %846 = vdwg.mxu0
  %848 = vrot.lane.b32.xlu0 %v844, 24
  %v849 = vpop.permute.xlu0 %848
  %vm851 = vcmask 261312
  %852 = vst.msk [vmem:[#allocation2] sm:$0xff] %vm851, %v849
  %854 = vrot.lane.b32.xlu0 %v171, 96
  %v855 = vpop.permute.xlu0 %854
  %v856 = vsel %vm177, %v171, 0
  %v858 = vsel %vm177, %v855, 0
  %860 = vmatprep.subr.mxu0 0.0
  %861 = vmatpush1.xpose.msra.mxu0 %v858
  %862 = vmatprep.subr.mxu0 0.0
  %863 = vmatpush1.xpose.msra.mxu0 0.0
  %864 = vmatprep.subr.mxu0 0.0
  %865 = vmatpush1.xpose.msra.mxu0 0.0
  %866 = vmatprep.subr.mxu0 0.0
  %867 = vmatpush1.xpose.msra.mxu0 0.0
  %868 = vmatprep.subr.mxu0 0.0
  %869 = vmatpush1.xpose.msra.mxu0 0.0
  %870 = vmatprep.subr.mxu0 0.0
  %871 = vmatpush1.xpose.msra.mxu0 0.0
  %872 = vmatprep.subr.mxu0 0.0
  %873 = vmatpush1.xpose.msra.mxu0 0.0
  %874 = vmatprep.subr.mxu0 0.0
  %875 = vmatpush1.xpose.msra.mxu0 0.0
  %876 = vmatprep.subr.mxu0 0.0
  %877 = vmatpush1.xpose.msra.mxu0 0.0
  %878 = vmatprep.subr.mxu0 0.0
  %879 = vmatpush1.xpose.msra.mxu0 0.0
  %880 = vmatprep.subr.mxu0 0.0
  %881 = vmatpush1.xpose.msra.mxu0 0.0
  %882 = vmatprep.subr.mxu0 0.0
  %883 = vmatpush1.xpose.msra.mxu0 0.0
  %884 = vmatprep.subr.mxu0 0.0
  %885 = vmatpush1.xpose.msra.mxu0 0.0
  %886 = vmatprep.subr.mxu0 0.0
  %887 = vmatpush1.xpose.msra.mxu0 0.0
  %888 = vmatprep.subr.mxu0 0.0
  %889 = vmatpush1.xpose.msra.mxu0 0.0
  %890 = vmatprep.subr.mxu0 0.0
  %891 = vmatpush1.xpose.msra.mxu0 0.0
  %892 = vmatprep.subr.mxu0 0.0
  %893 = vmatpush1.xpose.msra.mxu0 0.0
  %894 = vmatprep.subr.mxu0 0.0
  %895 = vmatpush1.xpose.msra.mxu0 0.0
  %896 = vmatprep.subr.mxu0 0.0
  %897 = vmatpush1.xpose.msra.mxu0 0.0
  %898 = vmatprep.subr.mxu0 0.0
  %899 = vmatpush1.xpose.msra.mxu0 0.0
  %900 = vmatprep.subr.mxu0 0.0
  %901 = vmatpush1.xpose.msra.mxu0 0.0
  %902 = vmatprep.subr.mxu0 0.0
  %903 = vmatpush1.xpose.msra.mxu0 0.0
  %904 = vmatprep.subr.mxu0 0.0
  %905 = vmatpush1.xpose.msra.mxu0 0.0
  %906 = vmatprep.subr.mxu0 0.0
  %907 = vmatpush1.xpose.msra.mxu0 0.0
  %908 = vmatprep.subr.mxu0 0.0
  %909 = vmatpush1.xpose.msra.mxu0 0.0
  %910 = vmatprep.subr.mxu0 0.0
  %911 = vmatpush1.xpose.msra.mxu0 0.0
  %912 = vmatprep.subr.mxu0 0.0
  %913 = vmatpush1.xpose.msra.mxu0 0.0
  %914 = vmatprep.subr.mxu0 0.0
  %915 = vmatpush1.xpose.msra.mxu0 0.0
  %916 = vmatprep.subr.mxu0 0.0
  %917 = vmatpush1.xpose.msra.mxu0 0.0
  %918 = vmatprep.subr.mxu0 0.0
  %919 = vmatpush1.xpose.msra.mxu0 0.0
  %920 = vmatprep.subr.mxu0 0.0
  %921 = vmatpush1.xpose.msra.mxu0 0.0
  %922 = vmatprep.subr.mxu0 0.0
  %923 = vmatpush1.xpose.msra.mxu0 0.0
  %924 = vmatprep.mubr.f32.mxu0 0.0
  %925 = vmatmul.mubr.f32.gmra.mrb[0].mxu0 %v856
  %v926 = vpop.f32.mrb[0].mxu0
  %v927 = vadd.f32 %v78, %v926
  %v928 = vpop.f32.mrb[0].mxu0
  %929 = vdwg.mxu0
  %v930 = vsel %vm177, %v927, -inf
  %931 = vmax.xlane.f32.xlu0 %v930
  %v932 = vpop.xlane.xlu0 %931
  %v933 = vsub.f32 %v927, %v932
  %v934 = vmul.f32 %v933, 1.442695
  %v935 = vpow.pop %v934
  %v936 = vsel %vm177, %v935, 0.0
  %937 = vadd.xlane.f32.xlu0 %v936
  %v938 = vpop.xlane.xlu0 %937
  %v939 = vrcp.pop %v938
  %v940 = vmul.f32 %v935, %v939
  %941 = vrot.lane.b32.xlu0 %v171, 64
  %v942 = vpop.permute.xlu0 %941
  %v945 = vsel %vm177, %v940, 0
  %947 = vmatprep.subr.mxu0 0.0
  %948 = vmatpush1.msra.mxu0 %v942
  %949 = vmatprep.subr.mxu0 0.0
  %950 = vmatpush1.msra.mxu0 0.0
  %951 = vmatprep.subr.mxu0 0.0
  %952 = vmatpush1.msra.mxu0 0.0
  %953 = vmatprep.subr.mxu0 0.0
  %954 = vmatpush1.msra.mxu0 0.0
  %955 = vmatprep.subr.mxu0 0.0
  %956 = vmatpush1.msra.mxu0 0.0
  %957 = vmatprep.subr.mxu0 0.0
  %958 = vmatpush1.msra.mxu0 0.0
  %959 = vmatprep.subr.mxu0 0.0
  %960 = vmatpush1.msra.mxu0 0.0
  %961 = vmatprep.subr.mxu0 0.0
  %962 = vmatpush1.msra.mxu0 0.0
  %963 = vmatprep.subr.mxu0 0.0
  %964 = vmatpush1.msra.mxu0 0.0
  %965 = vmatprep.subr.mxu0 0.0
  %966 = vmatpush1.msra.mxu0 0.0
  %967 = vmatprep.subr.mxu0 0.0
  %968 = vmatpush1.msra.mxu0 0.0
  %969 = vmatprep.subr.mxu0 0.0
  %970 = vmatpush1.msra.mxu0 0.0
  %971 = vmatprep.subr.mxu0 0.0
  %972 = vmatpush1.msra.mxu0 0.0
  %973 = vmatprep.subr.mxu0 0.0
  %974 = vmatpush1.msra.mxu0 0.0
  %975 = vmatprep.subr.mxu0 0.0
  %976 = vmatpush1.msra.mxu0 0.0
  %977 = vmatprep.subr.mxu0 0.0
  %978 = vmatpush1.msra.mxu0 0.0
  %979 = vmatprep.subr.mxu0 0.0
  %980 = vmatpush1.msra.mxu0 0.0
  %981 = vmatprep.subr.mxu0 0.0
  %982 = vmatpush1.msra.mxu0 0.0
  %983 = vmatprep.subr.mxu0 0.0
  %984 = vmatpush1.msra.mxu0 0.0
  %985 = vmatprep.subr.mxu0 0.0
  %986 = vmatpush1.msra.mxu0 0.0
  %987 = vmatprep.subr.mxu0 0.0
  %988 = vmatpush1.msra.mxu0 0.0
  %989 = vmatprep.subr.mxu0 0.0
  %990 = vmatpush1.msra.mxu0 0.0
  %991 = vmatprep.subr.mxu0 0.0
  %992 = vmatpush1.msra.mxu0 0.0
  %993 = vmatprep.subr.mxu0 0.0
  %994 = vmatpush1.msra.mxu0 0.0
  %995 = vmatprep.subr.mxu0 0.0
  %996 = vmatpush1.msra.mxu0 0.0
  %997 = vmatprep.subr.mxu0 0.0
  %998 = vmatpush1.msra.mxu0 0.0
  %999 = vmatprep.subr.mxu0 0.0
  %1000 = vmatpush1.msra.mxu0 0.0
  %1001 = vmatprep.subr.mxu0 0.0
  %1002 = vmatpush1.msra.mxu0 0.0
  %1003 = vmatprep.subr.mxu0 0.0
  %1004 = vmatpush1.msra.mxu0 0.0
  %1005 = vmatprep.subr.mxu0 0.0
  %1006 = vmatpush1.msra.mxu0 0.0
  %1007 = vmatprep.subr.mxu0 0.0
  %1008 = vmatpush1.msra.mxu0 0.0
  %1009 = vmatprep.subr.mxu0 0.0
  %1010 = vmatpush1.msra.mxu0 0.0
  %1011 = vmatprep.mubr.f32.mxu0 0.0
  %1012 = vmatmul.mubr.f32.gmra.mrb[0].mxu0 %v945
  %v1013 = vpop.f32.mrb[0].mxu0
  %v1014 = vadd.f32 0.0, %v1013
  %v1015 = vpop.f32.mrb[0].mxu0
  %1016 = vdwg.mxu0
  %1017 = vst.msk [vmem:[#allocation2 + $0x8] sm:$0xff] %vm177, %v1014
  %1018 = vrot.lane.b32.xlu0 %v171, 120
  %v1019 = vpop.permute.xlu0 %1018
  %1020 = vrot.lane.b32.xlu0 %v171, 88
  %v1021 = vpop.permute.xlu0 %1020
  %v1022 = vsel %vm177, %v1019, 0
  %v1024 = vsel %vm177, %v1021, 0
  %1026 = vmatprep.subr.mxu0 0.0
  %1027 = vmatpush1.xpose.msra.mxu0 %v1024
  %1028 = vmatprep.subr.mxu0 0.0
  %1029 = vmatpush1.xpose.msra.mxu0 0.0
  %1030 = vmatprep.subr.mxu0 0.0
  %1031 = vmatpush1.xpose.msra.mxu0 0.0
  %1032 = vmatprep.subr.mxu0 0.0
  %1033 = vmatpush1.xpose.msra.mxu0 0.0
  %1034 = vmatprep.subr.mxu0 0.0
  %1035 = vmatpush1.xpose.msra.mxu0 0.0
  %1036 = vmatprep.subr.mxu0 0.0
  %1037 = vmatpush1.xpose.msra.mxu0 0.0
  %1038 = vmatprep.subr.mxu0 0.0
  %1039 = vmatpush1.xpose.msra.mxu0 0.0
  %1040 = vmatprep.subr.mxu0 0.0
  %1041 = vmatpush1.xpose.msra.mxu0 0.0
  %1042 = vmatprep.subr.mxu0 0.0
  %1043 = vmatpush1.xpose.msra.mxu0 0.0
  %1044 = vmatprep.subr.mxu0 0.0
  %1045 = vmatpush1.xpose.msra.mxu0 0.0
  %1046 = vmatprep.subr.mxu0 0.0
  %1047 = vmatpush1.xpose.msra.mxu0 0.0
  %1048 = vmatprep.subr.mxu0 0.0
  %1049 = vmatpush1.xpose.msra.mxu0 0.0
  %1050 = vmatprep.subr.mxu0 0.0
  %1051 = vmatpush1.xpose.msra.mxu0 0.0
  %1052 = vmatprep.subr.mxu0 0.0
  %1053 = vmatpush1.xpose.msra.mxu0 0.0
  %1054 = vmatprep.subr.mxu0 0.0
  %1055 = vmatpush1.xpose.msra.mxu0 0.0
  %1056 = vmatprep.subr.mxu0 0.0
  %1057 = vmatpush1.xpose.msra.mxu0 0.0
  %1058 = vmatprep.subr.mxu0 0.0
  %1059 = vmatpush1.xpose.msra.mxu0 0.0
  %1060 = vmatprep.subr.mxu0 0.0
  %1061 = vmatpush1.xpose.msra.mxu0 0.0
  %1062 = vmatprep.subr.mxu0 0.0
  %1063 = vmatpush1.xpose.msra.mxu0 0.0
  %1064 = vmatprep.subr.mxu0 0.0
  %1065 = vmatpush1.xpose.msra.mxu0 0.0
  %1066 = vmatprep.subr.mxu0 0.0
  %1067 = vmatpush1.xpose.msra.mxu0 0.0
  %1068 = vmatprep.subr.mxu0 0.0
  %1069 = vmatpush1.xpose.msra.mxu0 0.0
  %1070 = vmatprep.subr.mxu0 0.0
  %1071 = vmatpush1.xpose.msra.mxu0 0.0
  %1072 = vmatprep.subr.mxu0 0.0
  %1073 = vmatpush1.xpose.msra.mxu0 0.0
  %1074 = vmatprep.subr.mxu0 0.0
  %1075 = vmatpush1.xpose.msra.mxu0 0.0
  %1076 = vmatprep.subr.mxu0 0.0
  %1077 = vmatpush1.xpose.msra.mxu0 0.0
  %1078 = vmatprep.subr.mxu0 0.0
  %1079 = vmatpush1.xpose.msra.mxu0 0.0
  %1080 = vmatprep.subr.mxu0 0.0
  %1081 = vmatpush1.xpose.msra.mxu0 0.0
  %1082 = vmatprep.subr.mxu0 0.0
  %1083 = vmatpush1.xpose.msra.mxu0 0.0
  %1084 = vmatprep.subr.mxu0 0.0
  %1085 = vmatpush1.xpose.msra.mxu0 0.0
  %1086 = vmatprep.subr.mxu0 0.0
  %1087 = vmatpush1.xpose.msra.mxu0 0.0
  %1088 = vmatprep.subr.mxu0 0.0
  %1089 = vmatpush1.xpose.msra.mxu0 0.0
  %1090 = vmatprep.mubr.f32.mxu0 0.0
  %1091 = vmatmul.mubr.f32.gmra.mrb[0].mxu0 %v1022
  %v1092 = vpop.f32.mrb[0].mxu0
  %v1093 = vadd.f32 %v78, %v1092
  %v1094 = vpop.f32.mrb[0].mxu0
  %1095 = vdwg.mxu0
  %v1096 = vsel %vm177, %v1093, -inf
  %1097 = vmax.xlane.f32.xlu0 %v1096
  %v1098 = vpop.xlane.xlu0 %1097
  %v1099 = vsub.f32 %v1093, %v1098
  %v1100 = vmul.f32 %v1099, 1.442695
  %v1101 = vpow.pop %v1100
  %v1102 = vsel %vm177, %v1101, 0.0
  %1103 = vadd.xlane.f32.xlu0 %v1102
  %v1104 = vpop.xlane.xlu0 %1103
  %v1105 = vrcp.pop %v1104
  %v1106 = vmul.f32 %v1101, %v1105
  %1107 = vrot.lane.b32.xlu0 %v171, 56
  %v1108 = vpop.permute.xlu0 %1107
  %v1111 = vsel %vm177, %v1106, 0
  %1113 = vmatprep.subr.mxu0 0.0
  %1114 = vmatpush1.msra.mxu0 %v1108
  %1115 = vmatprep.subr.mxu0 0.0
  %1116 = vmatpush1.msra.mxu0 0.0
  %1117 = vmatprep.subr.mxu0 0.0
  %1118 = vmatpush1.msra.mxu0 0.0
  %1119 = vmatprep.subr.mxu0 0.0
  %1120 = vmatpush1.msra.mxu0 0.0
  %1121 = vmatprep.subr.mxu0 0.0
  %1122 = vmatpush1.msra.mxu0 0.0
  %1123 = vmatprep.subr.mxu0 0.0
  %1124 = vmatpush1.msra.mxu0 0.0
  %1125 = vmatprep.subr.mxu0 0.0
  %1126 = vmatpush1.msra.mxu0 0.0
  %1127 = vmatprep.subr.mxu0 0.0
  %1128 = vmatpush1.msra.mxu0 0.0
  %1129 = vmatprep.subr.mxu0 0.0
  %1130 = vmatpush1.msra.mxu0 0.0
  %1131 = vmatprep.subr.mxu0 0.0
  %1132 = vmatpush1.msra.mxu0 0.0
  %1133 = vmatprep.subr.mxu0 0.0
  %1134 = vmatpush1.msra.mxu0 0.0
  %1135 = vmatprep.subr.mxu0 0.0
  %1136 = vmatpush1.msra.mxu0 0.0
  %1137 = vmatprep.subr.mxu0 0.0
  %1138 = vmatpush1.msra.mxu0 0.0
  %1139 = vmatprep.subr.mxu0 0.0
  %1140 = vmatpush1.msra.mxu0 0.0
  %1141 = vmatprep.subr.mxu0 0.0
  %1142 = vmatpush1.msra.mxu0 0.0
  %1143 = vmatprep.subr.mxu0 0.0
  %1144 = vmatpush1.msra.mxu0 0.0
  %1145 = vmatprep.subr.mxu0 0.0
  %1146 = vmatpush1.msra.mxu0 0.0
  %1147 = vmatprep.subr.mxu0 0.0
  %1148 = vmatpush1.msra.mxu0 0.0
  %1149 = vmatprep.subr.mxu0 0.0
  %1150 = vmatpush1.msra.mxu0 0.0
  %1151 = vmatprep.subr.mxu0 0.0
  %1152 = vmatpush1.msra.mxu0 0.0
  %1153 = vmatprep.subr.mxu0 0.0
  %1154 = vmatpush1.msra.mxu0 0.0
  %1155 = vmatprep.subr.mxu0 0.0
  %1156 = vmatpush1.msra.mxu0 0.0
  %1157 = vmatprep.subr.mxu0 0.0
  %1158 = vmatpush1.msra.mxu0 0.0
  %1159 = vmatprep.subr.mxu0 0.0
  %1160 = vmatpush1.msra.mxu0 0.0
  %1161 = vmatprep.subr.mxu0 0.0
  %1162 = vmatpush1.msra.mxu0 0.0
  %1163 = vmatprep.subr.mxu0 0.0
  %1164 = vmatpush1.msra.mxu0 0.0
  %1165 = vmatprep.subr.mxu0 0.0
  %1166 = vmatpush1.msra.mxu0 0.0
  %1167 = vmatprep.subr.mxu0 0.0
  %1168 = vmatpush1.msra.mxu0 0.0
  %1169 = vmatprep.subr.mxu0 0.0
  %1170 = vmatpush1.msra.mxu0 0.0
  %1171 = vmatprep.subr.mxu0 0.0
  %1172 = vmatpush1.msra.mxu0 0.0
  %1173 = vmatprep.subr.mxu0 0.0
  %1174 = vmatpush1.msra.mxu0 0.0
  %1175 = vmatprep.subr.mxu0 0.0
  %1176 = vmatpush1.msra.mxu0 0.0
  %1177 = vmatprep.mubr.f32.mxu0 0.0
  %1178 = vmatmul.mubr.f32.gmra.mrb[0].mxu0 %v1111
  %v1179 = vpop.f32.mrb[0].mxu0
  %v1180 = vadd.f32 0.0, %v1179
  %v1181 = vpop.f32.mrb[0].mxu0
  %1182 = vdwg.mxu0
  %1184 = vrot.lane.b32.xlu0 %v1180, 8
  %v1185 = vpop.permute.xlu0 %1184
  %1187 = vst.msk [vmem:[#allocation2 + $0x8] sm:$0xff] %vm509, %v1185
  %1188 = vrot.lane.b32.xlu0 %v171, 112
  %v1189 = vpop.permute.xlu0 %1188
  %1190 = vrot.lane.b32.xlu0 %v171, 80
  %v1191 = vpop.permute.xlu0 %1190
  %v1192 = vsel %vm177, %v1189, 0
  %v1194 = vsel %vm177, %v1191, 0
  %1196 = vmatprep.subr.mxu0 0.0
  %1197 = vmatpush1.xpose.msra.mxu0 %v1194
  %1198 = vmatprep.subr.mxu0 0.0
  %1199 = vmatpush1.xpose.msra.mxu0 0.0
  %1200 = vmatprep.subr.mxu0 0.0
  %1201 = vmatpush1.xpose.msra.mxu0 0.0
  %1202 = vmatprep.subr.mxu0 0.0
  %1203 = vmatpush1.xpose.msra.mxu0 0.0
  %1204 = vmatprep.subr.mxu0 0.0
  %1205 = vmatpush1.xpose.msra.mxu0 0.0
  %1206 = vmatprep.subr.mxu0 0.0
  %1207 = vmatpush1.xpose.msra.mxu0 0.0
  %1208 = vmatprep.subr.mxu0 0.0
  %1209 = vmatpush1.xpose.msra.mxu0 0.0
  %1210 = vmatprep.subr.mxu0 0.0
  %1211 = vmatpush1.xpose.msra.mxu0 0.0
  %1212 = vmatprep.subr.mxu0 0.0
  %1213 = vmatpush1.xpose.msra.mxu0 0.0
  %1214 = vmatprep.subr.mxu0 0.0
  %1215 = vmatpush1.xpose.msra.mxu0 0.0
  %1216 = vmatprep.subr.mxu0 0.0
  %1217 = vmatpush1.xpose.msra.mxu0 0.0
  %1218 = vmatprep.subr.mxu0 0.0
  %1219 = vmatpush1.xpose.msra.mxu0 0.0
  %1220 = vmatprep.subr.mxu0 0.0
  %1221 = vmatpush1.xpose.msra.mxu0 0.0
  %1222 = vmatprep.subr.mxu0 0.0
  %1223 = vmatpush1.xpose.msra.mxu0 0.0
  %1224 = vmatprep.subr.mxu0 0.0
  %1225 = vmatpush1.xpose.msra.mxu0 0.0
  %1226 = vmatprep.subr.mxu0 0.0
  %1227 = vmatpush1.xpose.msra.mxu0 0.0
  %1228 = vmatprep.subr.mxu0 0.0
  %1229 = vmatpush1.xpose.msra.mxu0 0.0
  %1230 = vmatprep.subr.mxu0 0.0
  %1231 = vmatpush1.xpose.msra.mxu0 0.0
  %1232 = vmatprep.subr.mxu0 0.0
  %1233 = vmatpush1.xpose.msra.mxu0 0.0
  %1234 = vmatprep.subr.mxu0 0.0
  %1235 = vmatpush1.xpose.msra.mxu0 0.0
  %1236 = vmatprep.subr.mxu0 0.0
  %1237 = vmatpush1.xpose.msra.mxu0 0.0
  %1238 = vmatprep.subr.mxu0 0.0
  %1239 = vmatpush1.xpose.msra.mxu0 0.0
  %1240 = vmatprep.subr.mxu0 0.0
  %1241 = vmatpush1.xpose.msra.mxu0 0.0
  %1242 = vmatprep.subr.mxu0 0.0
  %1243 = vmatpush1.xpose.msra.mxu0 0.0
  %1244 = vmatprep.subr.mxu0 0.0
  %1245 = vmatpush1.xpose.msra.mxu0 0.0
  %1246 = vmatprep.subr.mxu0 0.0
  %1247 = vmatpush1.xpose.msra.mxu0 0.0
  %1248 = vmatprep.subr.mxu0 0.0
  %1249 = vmatpush1.xpose.msra.mxu0 0.0
  %1250 = vmatprep.subr.mxu0 0.0
  %1251 = vmatpush1.xpose.msra.mxu0 0.0
  %1252 = vmatprep.subr.mxu0 0.0
  %1253 = vmatpush1.xpose.msra.mxu0 0.0
  %1254 = vmatprep.subr.mxu0 0.0
  %1255 = vmatpush1.xpose.msra.mxu0 0.0
  %1256 = vmatprep.subr.mxu0 0.0
  %1257 = vmatpush1.xpose.msra.mxu0 0.0
  %1258 = vmatprep.subr.mxu0 0.0
  %1259 = vmatpush1.xpose.msra.mxu0 0.0
  %1260 = vmatprep.mubr.f32.mxu0 0.0
  %1261 = vmatmul.mubr.f32.gmra.mrb[0].mxu0 %v1192
  %v1262 = vpop.f32.mrb[0].mxu0
  %v1263 = vadd.f32 %v78, %v1262
  %v1264 = vpop.f32.mrb[0].mxu0
  %1265 = vdwg.mxu0
  %v1266 = vsel %vm177, %v1263, -inf
  %1267 = vmax.xlane.f32.xlu0 %v1266
  %v1268 = vpop.xlane.xlu0 %1267
  %v1269 = vsub.f32 %v1263, %v1268
  %v1270 = vmul.f32 %v1269, 1.442695
  %v1271 = vpow.pop %v1270
  %v1272 = vsel %vm177, %v1271, 0.0
  %1273 = vadd.xlane.f32.xlu0 %v1272
  %v1274 = vpop.xlane.xlu0 %1273
  %v1275 = vrcp.pop %v1274
  %v1276 = vmul.f32 %v1271, %v1275
  %1277 = vrot.lane.b32.xlu0 %v171, 48
  %v1278 = vpop.permute.xlu0 %1277
  %v1281 = vsel %vm177, %v1276, 0
  %1283 = vmatprep.subr.mxu0 0.0
  %1284 = vmatpush1.msra.mxu0 %v1278
  %1285 = vmatprep.subr.mxu0 0.0
  %1286 = vmatpush1.msra.mxu0 0.0
  %1287 = vmatprep.subr.mxu0 0.0
  %1288 = vmatpush1.msra.mxu0 0.0
  %1289 = vmatprep.subr.mxu0 0.0
  %1290 = vmatpush1.msra.mxu0 0.0
  %1291 = vmatprep.subr.mxu0 0.0
  %1292 = vmatpush1.msra.mxu0 0.0
  %1293 = vmatprep.subr.mxu0 0.0
  %1294 = vmatpush1.msra.mxu0 0.0
  %1295 = vmatprep.subr.mxu0 0.0
  %1296 = vmatpush1.msra.mxu0 0.0
  %1297 = vmatprep.subr.mxu0 0.0
  %1298 = vmatpush1.msra.mxu0 0.0
  %1299 = vmatprep.subr.mxu0 0.0
  %1300 = vmatpush1.msra.mxu0 0.0
  %1301 = vmatprep.subr.mxu0 0.0
  %1302 = vmatpush1.msra.mxu0 0.0
  %1303 = vmatprep.subr.mxu0 0.0
  %1304 = vmatpush1.msra.mxu0 0.0
  %1305 = vmatprep.subr.mxu0 0.0
  %1306 = vmatpush1.msra.mxu0 0.0
  %1307 = vmatprep.subr.mxu0 0.0
  %1308 = vmatpush1.msra.mxu0 0.0
  %1309 = vmatprep.subr.mxu0 0.0
  %1310 = vmatpush1.msra.mxu0 0.0
  %1311 = vmatprep.subr.mxu0 0.0
  %1312 = vmatpush1.msra.mxu0 0.0
  %1313 = vmatprep.subr.mxu0 0.0
  %1314 = vmatpush1.msra.mxu0 0.0
  %1315 = vmatprep.subr.mxu0 0.0
  %1316 = vmatpush1.msra.mxu0 0.0
  %1317 = vmatprep.subr.mxu0 0.0
  %1318 = vmatpush1.msra.mxu0 0.0
  %1319 = vmatprep.subr.mxu0 0.0
  %1320 = vmatpush1.msra.mxu0 0.0
  %1321 = vmatprep.subr.mxu0 0.0
  %1322 = vmatpush1.msra.mxu0 0.0
  %1323 = vmatprep.subr.mxu0 0.0
  %1324 = vmatpush1.msra.mxu0 0.0
  %1325 = vmatprep.subr.mxu0 0.0
  %1326 = vmatpush1.msra.mxu0 0.0
  %1327 = vmatprep.subr.mxu0 0.0
  %1328 = vmatpush1.msra.mxu0 0.0
  %1329 = vmatprep.subr.mxu0 0.0
  %1330 = vmatpush1.msra.mxu0 0.0
  %1331 = vmatprep.subr.mxu0 0.0
  %1332 = vmatpush1.msra.mxu0 0.0
  %1333 = vmatprep.subr.mxu0 0.0
  %1334 = vmatpush1.msra.mxu0 0.0
  %1335 = vmatprep.subr.mxu0 0.0
  %1336 = vmatpush1.msra.mxu0 0.0
  %1337 = vmatprep.subr.mxu0 0.0
  %1338 = vmatpush1.msra.mxu0 0.0
  %1339 = vmatprep.subr.mxu0 0.0
  %1340 = vmatpush1.msra.mxu0 0.0
  %1341 = vmatprep.subr.mxu0 0.0
  %1342 = vmatpush1.msra.mxu0 0.0
  %1343 = vmatprep.subr.mxu0 0.0
  %1344 = vmatpush1.msra.mxu0 0.0
  %1345 = vmatprep.subr.mxu0 0.0
  %1346 = vmatpush1.msra.mxu0 0.0
  %1347 = vmatprep.mubr.f32.mxu0 0.0
  %1348 = vmatmul.mubr.f32.gmra.mrb[0].mxu0 %v1281
  %v1349 = vpop.f32.mrb[0].mxu0
  %v1350 = vadd.f32 0.0, %v1349
  %v1351 = vpop.f32.mrb[0].mxu0
  %1352 = vdwg.mxu0
  %1354 = vrot.lane.b32.xlu0 %v1350, 16
  %v1355 = vpop.permute.xlu0 %1354
  %1357 = vst.msk [vmem:[#allocation2 + $0x8] sm:$0xff] %vm680, %v1355
  %1358 = vrot.lane.b32.xlu0 %v171, 104
  %v1359 = vpop.permute.xlu0 %1358
  %1360 = vrot.lane.b32.xlu0 %v171, 72
  %v1361 = vpop.permute.xlu0 %1360
  %v1362 = vsel %vm177, %v1359, 0
  %v1364 = vsel %vm177, %v1361, 0
  %1366 = vmatprep.subr.mxu0 0.0
  %1367 = vmatpush1.xpose.msra.mxu0 %v1364
  %1368 = vmatprep.subr.mxu0 0.0
  %1369 = vmatpush1.xpose.msra.mxu0 0.0
  %1370 = vmatprep.subr.mxu0 0.0
  %1371 = vmatpush1.xpose.msra.mxu0 0.0
  %1372 = vmatprep.subr.mxu0 0.0
  %1373 = vmatpush1.xpose.msra.mxu0 0.0
  %1374 = vmatprep.subr.mxu0 0.0
  %1375 = vmatpush1.xpose.msra.mxu0 0.0
  %1376 = vmatprep.subr.mxu0 0.0
  %1377 = vmatpush1.xpose.msra.mxu0 0.0
  %1378 = vmatprep.subr.mxu0 0.0
  %1379 = vmatpush1.xpose.msra.mxu0 0.0
  %1380 = vmatprep.subr.mxu0 0.0
  %1381 = vmatpush1.xpose.msra.mxu0 0.0
  %1382 = vmatprep.subr.mxu0 0.0
  %1383 = vmatpush1.xpose.msra.mxu0 0.0
  %1384 = vmatprep.subr.mxu0 0.0
  %1385 = vmatpush1.xpose.msra.mxu0 0.0
  %1386 = vmatprep.subr.mxu0 0.0
  %1387 = vmatpush1.xpose.msra.mxu0 0.0
  %1388 = vmatprep.subr.mxu0 0.0
  %1389 = vmatpush1.xpose.msra.mxu0 0.0
  %1390 = vmatprep.subr.mxu0 0.0
  %1391 = vmatpush1.xpose.msra.mxu0 0.0
  %1392 = vmatprep.subr.mxu0 0.0
  %1393 = vmatpush1.xpose.msra.mxu0 0.0
  %1394 = vmatprep.subr.mxu0 0.0
  %1395 = vmatpush1.xpose.msra.mxu0 0.0
  %1396 = vmatprep.subr.mxu0 0.0
  %1397 = vmatpush1.xpose.msra.mxu0 0.0
  %1398 = vmatprep.subr.mxu0 0.0
  %1399 = vmatpush1.xpose.msra.mxu0 0.0
  %1400 = vmatprep.subr.mxu0 0.0
  %1401 = vmatpush1.xpose.msra.mxu0 0.0
  %1402 = vmatprep.subr.mxu0 0.0
  %1403 = vmatpush1.xpose.msra.mxu0 0.0
  %1404 = vmatprep.subr.mxu0 0.0
  %1405 = vmatpush1.xpose.msra.mxu0 0.0
  %1406 = vmatprep.subr.mxu0 0.0
  %1407 = vmatpush1.xpose.msra.mxu0 0.0
  %1408 = vmatprep.subr.mxu0 0.0
  %1409 = vmatpush1.xpose.msra.mxu0 0.0
  %1410 = vmatprep.subr.mxu0 0.0
  %1411 = vmatpush1.xpose.msra.mxu0 0.0
  %1412 = vmatprep.subr.mxu0 0.0
  %1413 = vmatpush1.xpose.msra.mxu0 0.0
  %1414 = vmatprep.subr.mxu0 0.0
  %1415 = vmatpush1.xpose.msra.mxu0 0.0
  %1416 = vmatprep.subr.mxu0 0.0
  %1417 = vmatpush1.xpose.msra.mxu0 0.0
  %1418 = vmatprep.subr.mxu0 0.0
  %1419 = vmatpush1.xpose.msra.mxu0 0.0
  %1420 = vmatprep.subr.mxu0 0.0
  %1421 = vmatpush1.xpose.msra.mxu0 0.0
  %1422 = vmatprep.subr.mxu0 0.0
  %1423 = vmatpush1.xpose.msra.mxu0 0.0
  %1424 = vmatprep.subr.mxu0 0.0
  %1425 = vmatpush1.xpose.msra.mxu0 0.0
  %1426 = vmatprep.subr.mxu0 0.0
  %1427 = vmatpush1.xpose.msra.mxu0 0.0
  %1428 = vmatprep.subr.mxu0 0.0
  %1429 = vmatpush1.xpose.msra.mxu0 0.0
  %1430 = vmatprep.mubr.f32.mxu0 0.0
  %1431 = vmatmul.mubr.f32.gmra.mrb[0].mxu0 %v1362
  %v1432 = vpop.f32.mrb[0].mxu0
  %v1433 = vadd.f32 %v78, %v1432
  %v1434 = vpop.f32.mrb[0].mxu0
  %1435 = vdwg.mxu0
  %v1436 = vsel %vm177, %v1433, -inf
  %1437 = vmax.xlane.f32.xlu0 %v1436
  %v1438 = vpop.xlane.xlu0 %1437
  %v1439 = vsub.f32 %v1433, %v1438
  %v1440 = vmul.f32 %v1439, 1.442695
  %v1441 = vpow.pop %v1440
  %v1442 = vsel %vm177, %v1441, 0.0
  %1443 = vadd.xlane.f32.xlu0 %v1442
  %v1444 = vpop.xlane.xlu0 %1443
  %v1445 = vrcp.pop %v1444
  %v1446 = vmul.f32 %v1441, %v1445
  %1447 = vrot.lane.b32.xlu0 %v171, 40
  %v1448 = vpop.permute.xlu0 %1447
  %v1451 = vsel %vm177, %v1446, 0
  %1453 = vmatprep.subr.mxu0 0.0
  %1454 = vmatpush1.msra.mxu0 %v1448
  %1455 = vmatprep.subr.mxu0 0.0
  %1456 = vmatpush1.msra.mxu0 0.0
  %1457 = vmatprep.subr.mxu0 0.0
  %1458 = vmatpush1.msra.mxu0 0.0
  %1459 = vmatprep.subr.mxu0 0.0
  %1460 = vmatpush1.msra.mxu0 0.0
  %1461 = vmatprep.subr.mxu0 0.0
  %1462 = vmatpush1.msra.mxu0 0.0
  %1463 = vmatprep.subr.mxu0 0.0
  %1464 = vmatpush1.msra.mxu0 0.0
  %1465 = vmatprep.subr.mxu0 0.0
  %1466 = vmatpush1.msra.mxu0 0.0
  %1467 = vmatprep.subr.mxu0 0.0
  %1468 = vmatpush1.msra.mxu0 0.0
  %1469 = vmatprep.subr.mxu0 0.0
  %1470 = vmatpush1.msra.mxu0 0.0
  %1471 = vmatprep.subr.mxu0 0.0
  %1472 = vmatpush1.msra.mxu0 0.0
  %1473 = vmatprep.subr.mxu0 0.0
  %1474 = vmatpush1.msra.mxu0 0.0
  %1475 = vmatprep.subr.mxu0 0.0
  %1476 = vmatpush1.msra.mxu0 0.0
  %1477 = vmatprep.subr.mxu0 0.0
  %1478 = vmatpush1.msra.mxu0 0.0
  %1479 = vmatprep.subr.mxu0 0.0
  %1480 = vmatpush1.msra.mxu0 0.0
  %1481 = vmatprep.subr.mxu0 0.0
  %1482 = vmatpush1.msra.mxu0 0.0
  %1483 = vmatprep.subr.mxu0 0.0
  %1484 = vmatpush1.msra.mxu0 0.0
  %1485 = vmatprep.subr.mxu0 0.0
  %1486 = vmatpush1.msra.mxu0 0.0
  %1487 = vmatprep.subr.mxu0 0.0
  %1488 = vmatpush1.msra.mxu0 0.0
  %1489 = vmatprep.subr.mxu0 0.0
  %1490 = vmatpush1.msra.mxu0 0.0
  %1491 = vmatprep.subr.mxu0 0.0
  %1492 = vmatpush1.msra.mxu0 0.0
  %1493 = vmatprep.subr.mxu0 0.0
  %1494 = vmatpush1.msra.mxu0 0.0
  %1495 = vmatprep.subr.mxu0 0.0
  %1496 = vmatpush1.msra.mxu0 0.0
  %1497 = vmatprep.subr.mxu0 0.0
  %1498 = vmatpush1.msra.mxu0 0.0
  %1499 = vmatprep.subr.mxu0 0.0
  %1500 = vmatpush1.msra.mxu0 0.0
  %1501 = vmatprep.subr.mxu0 0.0
  %1502 = vmatpush1.msra.mxu0 0.0
  %1503 = vmatprep.subr.mxu0 0.0
  %1504 = vmatpush1.msra.mxu0 0.0
  %1505 = vmatprep.subr.mxu0 0.0
  %1506 = vmatpush1.msra.mxu0 0.0
  %1507 = vmatprep.subr.mxu0 0.0
  %1508 = vmatpush1.msra.mxu0 0.0
  %1509 = vmatprep.subr.mxu0 0.0
  %1510 = vmatpush1.msra.mxu0 0.0
  %1511 = vmatprep.subr.mxu0 0.0
  %1512 = vmatpush1.msra.mxu0 0.0
  %1513 = vmatprep.subr.mxu0 0.0
  %1514 = vmatpush1.msra.mxu0 0.0
  %1515 = vmatprep.subr.mxu0 0.0
  %1516 = vmatpush1.msra.mxu0 0.0
  %1517 = vmatprep.mubr.f32.mxu0 0.0
  %1518 = vmatmul.mubr.f32.gmra.mrb[0].mxu0 %v1451
  %v1519 = vpop.f32.mrb[0].mxu0
  %v1520 = vadd.f32 0.0, %v1519
  %v1521 = vpop.f32.mrb[0].mxu0
  %1522 = vdwg.mxu0
  %1524 = vrot.lane.b32.xlu0 %v1520, 24
  %v1525 = vpop.permute.xlu0 %1524
  %1527 = vst.msk [vmem:[#allocation2 + $0x8] sm:$0xff] %vm851, %v1525
  %v1528 = vld [vmem:[#allocation2] sm:$0xff]
  %v1529 = vld [vmem:[#allocation2 + $0x8] sm:$0xff]
  %v1530 = vld [vmem:[%s6] sm:$0xff]
  %v1531 = vld [vmem:[%s6 + $0x8] sm:$0xff]
  %v1532 = vld [vmem:[%s6 + $0x10] sm:$0xff]
  %v1533 = vld [vmem:[%s6 + $0x18] sm:$0xff]
  %v1534 = vld [vmem:[%s7] sm:$0x1]
  %v1536 = vlaneseq
  %v1537 = vshrl.u32 %v1536, 7
  %v1538 = vsub.s32 0, %v1537
  %v1539 = vrot.slane %v1534, %v1538
  %v1542 = vsel %vm92, %v1528, 0
  %v1545 = vsel %vm92, %v1529, 0
  %1547 = vmatprep.subr.mxu0 0.0
  %1548 = vmatpush1.msra.mxu0 %v1530
  %1549 = vmatprep.subr.mxu0 0.0
  %1550 = vmatpush1.msra.mxu0 %v1531
  %1551 = vmatprep.subr.mxu0 0.0
  %1552 = vmatpush1.msra.mxu0 %v1532
  %1553 = vmatprep.subr.mxu0 0.0
  %1554 = vmatpush1.msra.mxu0 %v1533
  %1555 = vmatprep.subr.mxu0 0.0
  %1556 = vmatpush1.msra.mxu0 0.0
  %1557 = vmatprep.subr.mxu0 0.0
  %1558 = vmatpush1.msra.mxu0 0.0
  %1559 = vmatprep.subr.mxu0 0.0
  %1560 = vmatpush1.msra.mxu0 0.0
  %1561 = vmatprep.subr.mxu0 0.0
  %1562 = vmatpush1.msra.mxu0 0.0
  %1563 = vmatprep.subr.mxu0 0.0
  %1564 = vmatpush1.msra.mxu0 0.0
  %1565 = vmatprep.subr.mxu0 0.0
  %1566 = vmatpush1.msra.mxu0 0.0
  %1567 = vmatprep.subr.mxu0 0.0
  %1568 = vmatpush1.msra.mxu0 0.0
  %1569 = vmatprep.subr.mxu0 0.0
  %1570 = vmatpush1.msra.mxu0 0.0
  %1571 = vmatprep.subr.mxu0 0.0
  %1572 = vmatpush1.msra.mxu0 0.0
  %1573 = vmatprep.subr.mxu0 0.0
  %1574 = vmatpush1.msra.mxu0 0.0
  %1575 = vmatprep.subr.mxu0 0.0
  %1576 = vmatpush1.msra.mxu0 0.0
  %1577 = vmatprep.subr.mxu0 0.0
  %1578 = vmatpush1.msra.mxu0 0.0
  %1579 = vmatprep.subr.mxu0 0.0
  %1580 = vmatpush1.msra.mxu0 0.0
  %1581 = vmatprep.subr.mxu0 0.0
  %1582 = vmatpush1.msra.mxu0 0.0
  %1583 = vmatprep.subr.mxu0 0.0
  %1584 = vmatpush1.msra.mxu0 0.0
  %1585 = vmatprep.subr.mxu0 0.0
  %1586 = vmatpush1.msra.mxu0 0.0
  %1587 = vmatprep.subr.mxu0 0.0
  %1588 = vmatpush1.msra.mxu0 0.0
  %1589 = vmatprep.subr.mxu0 0.0
  %1590 = vmatpush1.msra.mxu0 0.0
  %1591 = vmatprep.subr.mxu0 0.0
  %1592 = vmatpush1.msra.mxu0 0.0
  %1593 = vmatprep.subr.mxu0 0.0
  %1594 = vmatpush1.msra.mxu0 0.0
  %1595 = vmatprep.subr.mxu0 0.0
  %1596 = vmatpush1.msra.mxu0 0.0
  %1597 = vmatprep.subr.mxu0 0.0
  %1598 = vmatpush1.msra.mxu0 0.0
  %1599 = vmatprep.subr.mxu0 0.0
  %1600 = vmatpush1.msra.mxu0 0.0
  %1601 = vmatprep.subr.mxu0 0.0
  %1602 = vmatpush1.msra.mxu0 0.0
  %1603 = vmatprep.subr.mxu0 0.0
  %1604 = vmatpush1.msra.mxu0 0.0
  %1605 = vmatprep.subr.mxu0 0.0
  %1606 = vmatpush1.msra.mxu0 0.0
  %1607 = vmatprep.subr.mxu0 0.0
  %1608 = vmatpush1.msra.mxu0 0.0
  %1609 = vmatprep.subr.mxu0 0.0
  %1610 = vmatpush1.msra.mxu0 0.0
  %1611 = vmatprep.mubr.f32.mxu0 0.0
  %1612 = vmatmul.mubr.f32.gmra.mrb[0].mxu0 %v1542
  %v1613 = vpop.f32.mrb[0].mxu0
  %v1614 = vadd.f32 %v1539, %v1613
  %v1615 = vpop.f32.mrb[0].mxu0
  %1616 = vmatprep.mubr.f32.mxu0 0.0
  %1617 = vmatmul.mubr.f32.gmra.mrb[0].mxu0 %v1545
  %v1618 = vpop.f32.mrb[0].mxu0
  %v1619 = vadd.f32 %v1539, %v1618
  %v1620 = vpop.f32.mrb[0].mxu0
  %1621 = vdwg.mxu0
  %v1622 = vadd.f32 %v71, %v1614
  %v1623 = vadd.f32 %v72, %v1619
  %v1624 = vld [vmem:[%s8] sm:$0x1]
  %v1625 = vld [vmem:[%s9] sm:$0x1]
  %v1626 = vsel %vm92, %v1622, 0.0
  %1627 = vadd.xlane.f32.xlu0 %v1626
  %v1628 = vpop.xlane.xlu0 %1627
  %v1629 = vsel %vm92, %v1623, 0.0
  %1630 = vadd.xlane.f32.xlu0 %v1629
  %v1631 = vpop.xlane.xlu0 %1630
  %v1632 = vrcp.pop 32.0
  %v1633 = vmul.f32 %v1628, %v1632
  %v1634 = vmul.f32 %v1631, %v1632
  %v1635 = vsub.f32 %v1622, %v1633
  %v1636 = vsub.f32 %v1623, %v1634
  %v1637 = vmul.f32 %v1635, %v1635
  %v1638 = vmul.f32 %v1636, %v1636
  %v1639 = vsel %vm92, %v1637, 0.0
  %1640 = vadd.xlane.f32.xlu0 %v1639
  %v1641 = vpop.xlane.xlu0 %1640
  %v1642 = vsel %vm92, %v1638, 0.0
  %1643 = vadd.xlane.f32.xlu0 %v1642
  %v1644 = vpop.xlane.xlu0 %1643
  %v1645 = vmul.f32 %v1641, %v1632
  %v1646 = vmul.f32 %v1644, %v1632
  %v1647 = vadd.f32 %v1645, 1e-05
  %v1648 = vadd.f32 %v1646, 1e-05
  %v1649 = vrsqrt.pop %v1647
  %v1650 = vrsqrt.pop %v1648
  %v1651 = vmul.f32 %v1635, %v1649
  %v1652 = vmul.f32 %v1636, %v1650
  %v1654 = vlaneseq
  %v1655 = vshrl.u32 %v1654, 7
  %v1656 = vsub.s32 0, %v1655
  %v1657 = vrot.slane %v1624, %v1656
  %v1659 = vmul.f32 %v1651, %v1657
  %v1660 = vmul.f32 %v1652, %v1657
  %v1662 = vlaneseq
  %v1663 = vshrl.u32 %v1662, 7
  %v1664 = vsub.s32 0, %v1663
  %v1665 = vrot.slane %v1625, %v1664
  %v1667 = vadd.f32 %v1659, %v1665
  %v1668 = vadd.f32 %v1660, %v1665
  %v1669 = vld [vmem:[%s10] sm:$0xff]
  %v1670 = vld [vmem:[%s10 + $0x8] sm:$0xff]
  %v1671 = vld [vmem:[%s10 + $0x10] sm:$0xff]
  %v1672 = vld [vmem:[%s10 + $0x18] sm:$0xff]
  %v1673 = vld [vmem:[%s11] sm:$0x1]
  %v1675 = vlaneseq
  %v1676 = vshrl.u32 %v1675, 7
  %v1677 = vsub.s32 0, %v1676
  %v1678 = vrot.slane %v1673, %v1677
  %v1681 = vsel %vm92, %v1667, 0
  %v1684 = vsel %vm92, %v1668, 0
  %1686 = vmatprep.subr.mxu0 0.0
  %1687 = vmatpush1.msra.mxu0 %v1669
  %1688 = vmatprep.subr.mxu0 0.0
  %1689 = vmatpush1.msra.mxu0 %v1670
  %1690 = vmatprep.subr.mxu0 0.0
  %1691 = vmatpush1.msra.mxu0 %v1671
  %1692 = vmatprep.subr.mxu0 0.0
  %1693 = vmatpush1.msra.mxu0 %v1672
  %1694 = vmatprep.subr.mxu0 0.0
  %1695 = vmatpush1.msra.mxu0 0.0
  %1696 = vmatprep.subr.mxu0 0.0
  %1697 = vmatpush1.msra.mxu0 0.0
  %1698 = vmatprep.subr.mxu0 0.0
  %1699 = vmatpush1.msra.mxu0 0.0
  %1700 = vmatprep.subr.mxu0 0.0
  %1701 = vmatpush1.msra.mxu0 0.0
  %1702 = vmatprep.subr.mxu0 0.0
  %1703 = vmatpush1.msra.mxu0 0.0
  %1704 = vmatprep.subr.mxu0 0.0
  %1705 = vmatpush1.msra.mxu0 0.0
  %1706 = vmatprep.subr.mxu0 0.0
  %1707 = vmatpush1.msra.mxu0 0.0
  %1708 = vmatprep.subr.mxu0 0.0
  %1709 = vmatpush1.msra.mxu0 0.0
  %1710 = vmatprep.subr.mxu0 0.0
  %1711 = vmatpush1.msra.mxu0 0.0
  %1712 = vmatprep.subr.mxu0 0.0
  %1713 = vmatpush1.msra.mxu0 0.0
  %1714 = vmatprep.subr.mxu0 0.0
  %1715 = vmatpush1.msra.mxu0 0.0
  %1716 = vmatprep.subr.mxu0 0.0
  %1717 = vmatpush1.msra.mxu0 0.0
  %1718 = vmatprep.subr.mxu0 0.0
  %1719 = vmatpush1.msra.mxu0 0.0
  %1720 = vmatprep.subr.mxu0 0.0
  %1721 = vmatpush1.msra.mxu0 0.0
  %1722 = vmatprep.subr.mxu0 0.0
  %1723 = vmatpush1.msra.mxu0 0.0
  %1724 = vmatprep.subr.mxu0 0.0
  %1725 = vmatpush1.msra.mxu0 0.0
  %1726 = vmatprep.subr.mxu0 0.0
  %1727 = vmatpush1.msra.mxu0 0.0
  %1728 = vmatprep.subr.mxu0 0.0
  %1729 = vmatpush1.msra.mxu0 0.0
  %1730 = vmatprep.subr.mxu0 0.0
  %1731 = vmatpush1.msra.mxu0 0.0
  %1732 = vmatprep.subr.mxu0 0.0
  %1733 = vmatpush1.msra.mxu0 0.0
  %1734 = vmatprep.subr.mxu0 0.0
  %1735 = vmatpush1.msra.mxu0 0.0
  %1736 = vmatprep.subr.mxu0 0.0
  %1737 = vmatpush1.msra.mxu0 0.0
  %1738 = vmatprep.subr.mxu0 0.0
  %1739 = vmatpush1.msra.mxu0 0.0
  %1740 = vmatprep.subr.mxu0 0.0
  %1741 = vmatpush1.msra.mxu0 0.0
  %1742 = vmatprep.subr.mxu0 0.0
  %1743 = vmatpush1.msra.mxu0 0.0
  %1744 = vmatprep.subr.mxu0 0.0
  %1745 = vmatpush1.msra.mxu0 0.0
  %1746 = vmatprep.subr.mxu0 0.0
  %1747 = vmatpush1.msra.mxu0 0.0
  %1748 = vmatprep.subr.mxu0 0.0
  %1749 = vmatpush1.msra.mxu0 0.0
  %1750 = vmatprep.mubr.f32.mxu0 0.0
  %1751 = vmatmul.mubr.f32.gmra.mrb[0].mxu0 %v1681
  %v1752 = vpop.f32.mrb[0].mxu0
  %v1753 = vadd.f32 %v1678, %v1752
  %v1754 = vpop.f32.mrb[0].mxu0
  %1755 = vmatprep.mubr.f32.mxu0 0.0
  %1756 = vmatmul.mubr.f32.gmra.mrb[0].mxu0 %v1684
  %v1757 = vpop.f32.mrb[0].mxu0
  %v1758 = vadd.f32 %v1678, %v1757
  %v1759 = vpop.f32.mrb[0].mxu0
  %1760 = vdwg.mxu0
  %1765 = vrot.lane.b32.xlu0 %v1669, 96
  %v1766 = vpop.permute.xlu0 %1765
  %1767 = vrot.lane.b32.xlu0 %v1670, 96
  %v1768 = vpop.permute.xlu0 %1767
  %1769 = vrot.lane.b32.xlu0 %v1671, 96
  %v1770 = vpop.permute.xlu0 %1769
  %1771 = vrot.lane.b32.xlu0 %v1672, 96
  %v1772 = vpop.permute.xlu0 %1771
  %1777 = vrot.lane.b32.xlu0 %v1678, 96
  %v1778 = vpop.permute.xlu0 %1777
  %v1781 = vsel %vm92, %v73, 0
  %v1784 = vsel %vm92, %v74, 0
  %v1787 = vsel %vm92, %v75, 0
  %v1790 = vsel %vm92, %v76, 0
  %1792 = vmatprep.subr.mxu0 0.0
  %1793 = vmatpush1.msra.mxu0 %v1766
  %1794 = vmatprep.subr.mxu0 0.0
  %1795 = vmatpush1.msra.mxu0 %v1768
  %1796 = vmatprep.subr.mxu0 0.0
  %1797 = vmatpush1.msra.mxu0 %v1770
  %1798 = vmatprep.subr.mxu0 0.0
  %1799 = vmatpush1.msra.mxu0 %v1772
  %1800 = vmatprep.subr.mxu0 0.0
  %1801 = vmatpush1.msra.mxu0 0.0
  %1802 = vmatprep.subr.mxu0 0.0
  %1803 = vmatpush1.msra.mxu0 0.0
  %1804 = vmatprep.subr.mxu0 0.0
  %1805 = vmatpush1.msra.mxu0 0.0
  %1806 = vmatprep.subr.mxu0 0.0
  %1807 = vmatpush1.msra.mxu0 0.0
  %1808 = vmatprep.subr.mxu0 0.0
  %1809 = vmatpush1.msra.mxu0 0.0
  %1810 = vmatprep.subr.mxu0 0.0
  %1811 = vmatpush1.msra.mxu0 0.0
  %1812 = vmatprep.subr.mxu0 0.0
  %1813 = vmatpush1.msra.mxu0 0.0
  %1814 = vmatprep.subr.mxu0 0.0
  %1815 = vmatpush1.msra.mxu0 0.0
  %1816 = vmatprep.subr.mxu0 0.0
  %1817 = vmatpush1.msra.mxu0 0.0
  %1818 = vmatprep.subr.mxu0 0.0
  %1819 = vmatpush1.msra.mxu0 0.0
  %1820 = vmatprep.subr.mxu0 0.0
  %1821 = vmatpush1.msra.mxu0 0.0
  %1822 = vmatprep.subr.mxu0 0.0
  %1823 = vmatpush1.msra.mxu0 0.0
  %1824 = vmatprep.subr.mxu0 0.0
  %1825 = vmatpush1.msra.mxu0 0.0
  %1826 = vmatprep.subr.mxu0 0.0
  %1827 = vmatpush1.msra.mxu0 0.0
  %1828 = vmatprep.subr.mxu0 0.0
  %1829 = vmatpush1.msra.mxu0 0.0
  %1830 = vmatprep.subr.mxu0 0.0
  %1831 = vmatpush1.msra.mxu0 0.0
  %1832 = vmatprep.subr.mxu0 0.0
  %1833 = vmatpush1.msra.mxu0 0.0
  %1834 = vmatprep.subr.mxu0 0.0
  %1835 = vmatpush1.msra.mxu0 0.0
  %1836 = vmatprep.subr.mxu0 0.0
  %1837 = vmatpush1.msra.mxu0 0.0
  %1838 = vmatprep.subr.mxu0 0.0
  %1839 = vmatpush1.msra.mxu0 0.0
  %1840 = vmatprep.subr.mxu0 0.0
  %1841 = vmatpush1.msra.mxu0 0.0
  %1842 = vmatprep.subr.mxu0 0.0
  %1843 = vmatpush1.msra.mxu0 0.0
  %1844 = vmatprep.subr.mxu0 0.0
  %1845 = vmatpush1.msra.mxu0 0.0
  %1846 = vmatprep.subr.mxu0 0.0
  %1847 = vmatpush1.msra.mxu0 0.0
  %1848 = vmatprep.subr.mxu0 0.0
  %1849 = vmatpush1.msra.mxu0 0.0
  %1850 = vmatprep.subr.mxu0 0.0
  %1851 = vmatpush1.msra.mxu0 0.0
  %1852 = vmatprep.subr.mxu0 0.0
  %1853 = vmatpush1.msra.mxu0 0.0
  %1854 = vmatprep.subr.mxu0 0.0
  %1855 = vmatpush1.msra.mxu0 0.0
  %1856 = vmatprep.mubr.f32.mxu0 0.0
  %1857 = vmatmul.mubr.f32.gmra.mrb[0].mxu0 %v1781
  %v1858 = vpop.f32.mrb[0].mxu0
  %v1859 = vadd.f32 %v1778, %v1858
  %v1860 = vpop.f32.mrb[0].mxu0
  %1861 = vmatprep.mubr.f32.mxu0 0.0
  %1862 = vmatmul.mubr.f32.gmra.mrb[0].mxu0 %v1784
  %v1863 = vpop.f32.mrb[0].mxu0
  %v1864 = vadd.f32 %v1778, %v1863
  %v1865 = vpop.f32.mrb[0].mxu0
  %1866 = vmatprep.mubr.f32.mxu0 0.0
  %1867 = vmatmul.mubr.f32.gmra.mrb[0].mxu0 %v1787
  %v1868 = vpop.f32.mrb[0].mxu0
  %v1869 = vadd.f32 %v1778, %v1868
  %v1870 = vpop.f32.mrb[0].mxu0
  %1871 = vmatprep.mubr.f32.mxu0 0.0
  %1872 = vmatmul.mubr.f32.gmra.mrb[0].mxu0 %v1790
  %v1873 = vpop.f32.mrb[0].mxu0
  %v1874 = vadd.f32 %v1778, %v1873
  %v1875 = vpop.f32.mrb[0].mxu0
  %1876 = vdwg.mxu0
  %v1878 = vsel %vm177, %v1753, 0
  %v1881 = vsel %vm177, %v1859, 0
  %v1884 = vsel %vm177, %v1864, 0
  %1886 = vmatprep.subr.mxu0 0.0
  %1887 = vmatpush1.xpose.msra.mxu0 %v1881
  %1888 = vmatprep.subr.mxu0 0.0
  %1889 = vmatpush1.xpose.msra.mxu0 %v1884
  %1890 = vmatprep.subr.mxu0 0.0
  %1891 = vmatpush1.xpose.msra.mxu0 0.0
  %1892 = vmatprep.subr.mxu0 0.0
  %1893 = vmatpush1.xpose.msra.mxu0 0.0
  %1894 = vmatprep.subr.mxu0 0.0
  %1895 = vmatpush1.xpose.msra.mxu0 0.0
  %1896 = vmatprep.subr.mxu0 0.0
  %1897 = vmatpush1.xpose.msra.mxu0 0.0
  %1898 = vmatprep.subr.mxu0 0.0
  %1899 = vmatpush1.xpose.msra.mxu0 0.0
  %1900 = vmatprep.subr.mxu0 0.0
  %1901 = vmatpush1.xpose.msra.mxu0 0.0
  %1902 = vmatprep.subr.mxu0 0.0
  %1903 = vmatpush1.xpose.msra.mxu0 0.0
  %1904 = vmatprep.subr.mxu0 0.0
  %1905 = vmatpush1.xpose.msra.mxu0 0.0
  %1906 = vmatprep.subr.mxu0 0.0
  %1907 = vmatpush1.xpose.msra.mxu0 0.0
  %1908 = vmatprep.subr.mxu0 0.0
  %1909 = vmatpush1.xpose.msra.mxu0 0.0
  %1910 = vmatprep.subr.mxu0 0.0
  %1911 = vmatpush1.xpose.msra.mxu0 0.0
  %1912 = vmatprep.subr.mxu0 0.0
  %1913 = vmatpush1.xpose.msra.mxu0 0.0
  %1914 = vmatprep.subr.mxu0 0.0
  %1915 = vmatpush1.xpose.msra.mxu0 0.0
  %1916 = vmatprep.subr.mxu0 0.0
  %1917 = vmatpush1.xpose.msra.mxu0 0.0
  %1918 = vmatprep.subr.mxu0 0.0
  %1919 = vmatpush1.xpose.msra.mxu0 0.0
  %1920 = vmatprep.subr.mxu0 0.0
  %1921 = vmatpush1.xpose.msra.mxu0 0.0
  %1922 = vmatprep.subr.mxu0 0.0
  %1923 = vmatpush1.xpose.msra.mxu0 0.0
  %1924 = vmatprep.subr.mxu0 0.0
  %1925 = vmatpush1.xpose.msra.mxu0 0.0
  %1926 = vmatprep.subr.mxu0 0.0
  %1927 = vmatpush1.xpose.msra.mxu0 0.0
  %1928 = vmatprep.subr.mxu0 0.0
  %1929 = vmatpush1.xpose.msra.mxu0 0.0
  %1930 = vmatprep.subr.mxu0 0.0
  %1931 = vmatpush1.xpose.msra.mxu0 0.0
  %1932 = vmatprep.subr.mxu0 0.0
  %1933 = vmatpush1.xpose.msra.mxu0 0.0
  %1934 = vmatprep.subr.mxu0 0.0
  %1935 = vmatpush1.xpose.msra.mxu0 0.0
  %1936 = vmatprep.subr.mxu0 0.0
  %1937 = vmatpush1.xpose.msra.mxu0 0.0
  %1938 = vmatprep.subr.mxu0 0.0
  %1939 = vmatpush1.xpose.msra.mxu0 0.0
  %1940 = vmatprep.subr.mxu0 0.0
  %1941 = vmatpush1.xpose.msra.mxu0 0.0
  %1942 = vmatprep.subr.mxu0 0.0
  %1943 = vmatpush1.xpose.msra.mxu0 0.0
  %1944 = vmatprep.subr.mxu0 0.0
  %1945 = vmatpush1.xpose.msra.mxu0 0.0
  %1946 = vmatprep.subr.mxu0 0.0
  %1947 = vmatpush1.xpose.msra.mxu0 0.0
  %1948 = vmatprep.subr.mxu0 0.0
  %1949 = vmatpush1.xpose.msra.mxu0 0.0
  %1950 = vmatprep.mubr.f32.mxu0 0.0
  %1951 = vmatmul.mubr.f32.gmra.mrb[0].mxu0 %v1878
  %v1952 = vpop.f32.mrb[0].mxu0
  %v1953 = vadd.f32 %v79, %v1952
  %v1954 = vpop.f32.mrb[0].mxu0
  %1955 = vdwg.mxu0
  %vm1956 = vcmask 130048
  %v1957 = vsel %vm1956, %v1953, -inf
  %1958 = vmax.xlane.f32.xlu0 %v1957
  %v1959 = vpop.xlane.xlu0 %1958
  %v1960 = vsub.f32 %v1953, %v1959
  %v1961 = vmul.f32 %v1960, 1.442695
  %v1962 = vpow.pop %v1961
  %v1963 = vsel %vm1956, %v1962, 0.0
  %1964 = vadd.xlane.f32.xlu0 %v1963
  %v1965 = vpop.xlane.xlu0 %1964
  %v1966 = vrcp.pop %v1965
  %v1967 = vmul.f32 %v1962, %v1966
  %1968 = vrot.lane.b32.xlu0 %v1859, 96
  %v1969 = vpop.permute.xlu0 %1968
  %1970 = vrot.lane.b32.xlu0 %v1864, 96
  %v1971 = vpop.permute.xlu0 %1970
  %v1975 = vsel %vm1956, %v1967, 0
  %1977 = vmatprep.subr.mxu0 0.0
  %1978 = vmatpush1.msra.mxu0 %v1969
  %1979 = vmatprep.subr.mxu0 0.0
  %1980 = vmatpush1.msra.mxu0 %v1971
  %1981 = vmatprep.subr.mxu0 0.0
  %1982 = vmatpush1.msra.mxu0 0.0
  %1983 = vmatprep.subr.mxu0 0.0
  %1984 = vmatpush1.msra.mxu0 0.0
  %1985 = vmatprep.subr.mxu0 0.0
  %1986 = vmatpush1.msra.mxu0 0.0
  %1987 = vmatprep.subr.mxu0 0.0
  %1988 = vmatpush1.msra.mxu0 0.0
  %1989 = vmatprep.subr.mxu0 0.0
  %1990 = vmatpush1.msra.mxu0 0.0
  %1991 = vmatprep.subr.mxu0 0.0
  %1992 = vmatpush1.msra.mxu0 0.0
  %1993 = vmatprep.subr.mxu0 0.0
  %1994 = vmatpush1.msra.mxu0 0.0
  %1995 = vmatprep.subr.mxu0 0.0
  %1996 = vmatpush1.msra.mxu0 0.0
  %1997 = vmatprep.subr.mxu0 0.0
  %1998 = vmatpush1.msra.mxu0 0.0
  %1999 = vmatprep.subr.mxu0 0.0
  %2000 = vmatpush1.msra.mxu0 0.0
  %2001 = vmatprep.subr.mxu0 0.0
  %2002 = vmatpush1.msra.mxu0 0.0
  %2003 = vmatprep.subr.mxu0 0.0
  %2004 = vmatpush1.msra.mxu0 0.0
  %2005 = vmatprep.subr.mxu0 0.0
  %2006 = vmatpush1.msra.mxu0 0.0
  %2007 = vmatprep.subr.mxu0 0.0
  %2008 = vmatpush1.msra.mxu0 0.0
  %2009 = vmatprep.subr.mxu0 0.0
  %2010 = vmatpush1.msra.mxu0 0.0
  %2011 = vmatprep.subr.mxu0 0.0
  %2012 = vmatpush1.msra.mxu0 0.0
  %2013 = vmatprep.subr.mxu0 0.0
  %2014 = vmatpush1.msra.mxu0 0.0
  %2015 = vmatprep.subr.mxu0 0.0
  %2016 = vmatpush1.msra.mxu0 0.0
  %2017 = vmatprep.subr.mxu0 0.0
  %2018 = vmatpush1.msra.mxu0 0.0
  %2019 = vmatprep.subr.mxu0 0.0
  %2020 = vmatpush1.msra.mxu0 0.0
  %2021 = vmatprep.subr.mxu0 0.0
  %2022 = vmatpush1.msra.mxu0 0.0
  %2023 = vmatprep.subr.mxu0 0.0
  %2024 = vmatpush1.msra.mxu0 0.0
  %2025 = vmatprep.subr.mxu0 0.0
  %2026 = vmatpush1.msra.mxu0 0.0
  %2027 = vmatprep.subr.mxu0 0.0
  %2028 = vmatpush1.msra.mxu0 0.0
  %2029 = vmatprep.subr.mxu0 0.0
  %2030 = vmatpush1.msra.mxu0 0.0
  %2031 = vmatprep.subr.mxu0 0.0
  %2032 = vmatpush1.msra.mxu0 0.0
  %2033 = vmatprep.subr.mxu0 0.0
  %2034 = vmatpush1.msra.mxu0 0.0
  %2035 = vmatprep.subr.mxu0 0.0
  %2036 = vmatpush1.msra.mxu0 0.0
  %2037 = vmatprep.subr.mxu0 0.0
  %2038 = vmatpush1.msra.mxu0 0.0
  %2039 = vmatprep.subr.mxu0 0.0
  %2040 = vmatpush1.msra.mxu0 0.0
  %2041 = vmatprep.mubr.f32.mxu0 0.0
  %2042 = vmatmul.mubr.f32.gmra.mrb[0].mxu0 %v1975
  %v2043 = vpop.f32.mrb[0].mxu0
  %v2044 = vadd.f32 0.0, %v2043
  %v2045 = vpop.f32.mrb[0].mxu0
  %2046 = vdwg.mxu0
  %2047 = vst.msk [vmem:[#allocation2] sm:$0xff] %vm177, %v2044
  %2048 = vrot.lane.b32.xlu0 %v1753, 120
  %v2049 = vpop.permute.xlu0 %2048
  %2050 = vrot.lane.b32.xlu0 %v1859, 120
  %v2051 = vpop.permute.xlu0 %2050
  %2052 = vrot.lane.b32.xlu0 %v1864, 120
  %v2053 = vpop.permute.xlu0 %2052
  %v2054 = vsel %vm177, %v2049, 0
  %v2056 = vsel %vm177, %v2051, 0
  %v2058 = vsel %vm177, %v2053, 0
  %2060 = vmatprep.subr.mxu0 0.0
  %2061 = vmatpush1.xpose.msra.mxu0 %v2056
  %2062 = vmatprep.subr.mxu0 0.0
  %2063 = vmatpush1.xpose.msra.mxu0 %v2058
  %2064 = vmatprep.subr.mxu0 0.0
  %2065 = vmatpush1.xpose.msra.mxu0 0.0
  %2066 = vmatprep.subr.mxu0 0.0
  %2067 = vmatpush1.xpose.msra.mxu0 0.0
  %2068 = vmatprep.subr.mxu0 0.0
  %2069 = vmatpush1.xpose.msra.mxu0 0.0
  %2070 = vmatprep.subr.mxu0 0.0
  %2071 = vmatpush1.xpose.msra.mxu0 0.0
  %2072 = vmatprep.subr.mxu0 0.0
  %2073 = vmatpush1.xpose.msra.mxu0 0.0
  %2074 = vmatprep.subr.mxu0 0.0
  %2075 = vmatpush1.xpose.msra.mxu0 0.0
  %2076 = vmatprep.subr.mxu0 0.0
  %2077 = vmatpush1.xpose.msra.mxu0 0.0
  %2078 = vmatprep.subr.mxu0 0.0
  %2079 = vmatpush1.xpose.msra.mxu0 0.0
  %2080 = vmatprep.subr.mxu0 0.0
  %2081 = vmatpush1.xpose.msra.mxu0 0.0
  %2082 = vmatprep.subr.mxu0 0.0
  %2083 = vmatpush1.xpose.msra.mxu0 0.0
  %2084 = vmatprep.subr.mxu0 0.0
  %2085 = vmatpush1.xpose.msra.mxu0 0.0
  %2086 = vmatprep.subr.mxu0 0.0
  %2087 = vmatpush1.xpose.msra.mxu0 0.0
  %2088 = vmatprep.subr.mxu0 0.0
  %2089 = vmatpush1.xpose.msra.mxu0 0.0
  %2090 = vmatprep.subr.mxu0 0.0
  %2091 = vmatpush1.xpose.msra.mxu0 0.0
  %2092 = vmatprep.subr.mxu0 0.0
  %2093 = vmatpush1.xpose.msra.mxu0 0.0
  %2094 = vmatprep.subr.mxu0 0.0
  %2095 = vmatpush1.xpose.msra.mxu0 0.0
  %2096 = vmatprep.subr.mxu0 0.0
  %2097 = vmatpush1.xpose.msra.mxu0 0.0
  %2098 = vmatprep.subr.mxu0 0.0
  %2099 = vmatpush1.xpose.msra.mxu0 0.0
  %2100 = vmatprep.subr.mxu0 0.0
  %2101 = vmatpush1.xpose.msra.mxu0 0.0
  %2102 = vmatprep.subr.mxu0 0.0
  %2103 = vmatpush1.xpose.msra.mxu0 0.0
  %2104 = vmatprep.subr.mxu0 0.0
  %2105 = vmatpush1.xpose.msra.mxu0 0.0
  %2106 = vmatprep.subr.mxu0 0.0
  %2107 = vmatpush1.xpose.msra.mxu0 0.0
  %2108 = vmatprep.subr.mxu0 0.0
  %2109 = vmatpush1.xpose.msra.mxu0 0.0
  %2110 = vmatprep.subr.mxu0 0.0
  %2111 = vmatpush1.xpose.msra.mxu0 0.0
  %2112 = vmatprep.subr.mxu0 0.0
  %2113 = vmatpush1.xpose.msra.mxu0 0.0
  %2114 = vmatprep.subr.mxu0 0.0
  %2115 = vmatpush1.xpose.msra.mxu0 0.0
  %2116 = vmatprep.subr.mxu0 0.0
  %2117 = vmatpush1.xpose.msra.mxu0 0.0
  %2118 = vmatprep.subr.mxu0 0.0
  %2119 = vmatpush1.xpose.msra.mxu0 0.0
  %2120 = vmatprep.subr.mxu0 0.0
  %2121 = vmatpush1.xpose.msra.mxu0 0.0
  %2122 = vmatprep.subr.mxu0 0.0
  %2123 = vmatpush1.xpose.msra.mxu0 0.0
  %2124 = vmatprep.mubr.f32.mxu0 0.0
  %2125 = vmatmul.mubr.f32.gmra.mrb[0].mxu0 %v2054
  %v2126 = vpop.f32.mrb[0].mxu0
  %v2127 = vadd.f32 %v79, %v2126
  %v2128 = vpop.f32.mrb[0].mxu0
  %2129 = vdwg.mxu0
  %v2130 = vsel %vm1956, %v2127, -inf
  %2131 = vmax.xlane.f32.xlu0 %v2130
  %v2132 = vpop.xlane.xlu0 %2131
  %v2133 = vsub.f32 %v2127, %v2132
  %v2134 = vmul.f32 %v2133, 1.442695
  %v2135 = vpow.pop %v2134
  %v2136 = vsel %vm1956, %v2135, 0.0
  %2137 = vadd.xlane.f32.xlu0 %v2136
  %v2138 = vpop.xlane.xlu0 %2137
  %v2139 = vrcp.pop %v2138
  %v2140 = vmul.f32 %v2135, %v2139
  %2141 = vrot.lane.b32.xlu0 %v1859, 88
  %v2142 = vpop.permute.xlu0 %2141
  %2143 = vrot.lane.b32.xlu0 %v1864, 88
  %v2144 = vpop.permute.xlu0 %2143
  %v2148 = vsel %vm1956, %v2140, 0
  %2150 = vmatprep.subr.mxu0 0.0
  %2151 = vmatpush1.msra.mxu0 %v2142
  %2152 = vmatprep.subr.mxu0 0.0
  %2153 = vmatpush1.msra.mxu0 %v2144
  %2154 = vmatprep.subr.mxu0 0.0
  %2155 = vmatpush1.msra.mxu0 0.0
  %2156 = vmatprep.subr.mxu0 0.0
  %2157 = vmatpush1.msra.mxu0 0.0
  %2158 = vmatprep.subr.mxu0 0.0
  %2159 = vmatpush1.msra.mxu0 0.0
  %2160 = vmatprep.subr.mxu0 0.0
  %2161 = vmatpush1.msra.mxu0 0.0
  %2162 = vmatprep.subr.mxu0 0.0
  %2163 = vmatpush1.msra.mxu0 0.0
  %2164 = vmatprep.subr.mxu0 0.0
  %2165 = vmatpush1.msra.mxu0 0.0
  %2166 = vmatprep.subr.mxu0 0.0
  %2167 = vmatpush1.msra.mxu0 0.0
  %2168 = vmatprep.subr.mxu0 0.0
  %2169 = vmatpush1.msra.mxu0 0.0
  %2170 = vmatprep.subr.mxu0 0.0
  %2171 = vmatpush1.msra.mxu0 0.0
  %2172 = vmatprep.subr.mxu0 0.0
  %2173 = vmatpush1.msra.mxu0 0.0
  %2174 = vmatprep.subr.mxu0 0.0
  %2175 = vmatpush1.msra.mxu0 0.0
  %2176 = vmatprep.subr.mxu0 0.0
  %2177 = vmatpush1.msra.mxu0 0.0
  %2178 = vmatprep.subr.mxu0 0.0
  %2179 = vmatpush1.msra.mxu0 0.0
  %2180 = vmatprep.subr.mxu0 0.0
  %2181 = vmatpush1.msra.mxu0 0.0
  %2182 = vmatprep.subr.mxu0 0.0
  %2183 = vmatpush1.msra.mxu0 0.0
  %2184 = vmatprep.subr.mxu0 0.0
  %2185 = vmatpush1.msra.mxu0 0.0
  %2186 = vmatprep.subr.mxu0 0.0
  %2187 = vmatpush1.msra.mxu0 0.0
  %2188 = vmatprep.subr.mxu0 0.0
  %2189 = vmatpush1.msra.mxu0 0.0
  %2190 = vmatprep.subr.mxu0 0.0
  %2191 = vmatpush1.msra.mxu0 0.0
  %2192 = vmatprep.subr.mxu0 0.0
  %2193 = vmatpush1.msra.mxu0 0.0
  %2194 = vmatprep.subr.mxu0 0.0
  %2195 = vmatpush1.msra.mxu0 0.0
  %2196 = vmatprep.subr.mxu0 0.0
  %2197 = vmatpush1.msra.mxu0 0.0
  %2198 = vmatprep.subr.mxu0 0.0
  %2199 = vmatpush1.msra.mxu0 0.0
  %2200 = vmatprep.subr.mxu0 0.0
  %2201 = vmatpush1.msra.mxu0 0.0
  %2202 = vmatprep.subr.mxu0 0.0
  %2203 = vmatpush1.msra.mxu0 0.0
  %2204 = vmatprep.subr.mxu0 0.0
  %2205 = vmatpush1.msra.mxu0 0.0
  %2206 = vmatprep.subr.mxu0 0.0
  %2207 = vmatpush1.msra.mxu0 0.0
  %2208 = vmatprep.subr.mxu0 0.0
  %2209 = vmatpush1.msra.mxu0 0.0
  %2210 = vmatprep.subr.mxu0 0.0
  %2211 = vmatpush1.msra.mxu0 0.0
  %2212 = vmatprep.subr.mxu0 0.0
  %2213 = vmatpush1.msra.mxu0 0.0
  %2214 = vmatprep.mubr.f32.mxu0 0.0
  %2215 = vmatmul.mubr.f32.gmra.mrb[0].mxu0 %v2148
  %v2216 = vpop.f32.mrb[0].mxu0
  %v2217 = vadd.f32 0.0, %v2216
  %v2218 = vpop.f32.mrb[0].mxu0
  %2219 = vdwg.mxu0
  %2221 = vrot.lane.b32.xlu0 %v2217, 8
  %v2222 = vpop.permute.xlu0 %2221
  %2224 = vst.msk [vmem:[#allocation2] sm:$0xff] %vm509, %v2222
  %2225 = vrot.lane.b32.xlu0 %v1753, 112
  %v2226 = vpop.permute.xlu0 %2225
  %2227 = vrot.lane.b32.xlu0 %v1859, 112
  %v2228 = vpop.permute.xlu0 %2227
  %2229 = vrot.lane.b32.xlu0 %v1864, 112
  %v2230 = vpop.permute.xlu0 %2229
  %v2231 = vsel %vm177, %v2226, 0
  %v2233 = vsel %vm177, %v2228, 0
  %v2235 = vsel %vm177, %v2230, 0
  %2237 = vmatprep.subr.mxu0 0.0
  %2238 = vmatpush1.xpose.msra.mxu0 %v2233
  %2239 = vmatprep.subr.mxu0 0.0
  %2240 = vmatpush1.xpose.msra.mxu0 %v2235
  %2241 = vmatprep.subr.mxu0 0.0
  %2242 = vmatpush1.xpose.msra.mxu0 0.0
  %2243 = vmatprep.subr.mxu0 0.0
  %2244 = vmatpush1.xpose.msra.mxu0 0.0
  %2245 = vmatprep.subr.mxu0 0.0
  %2246 = vmatpush1.xpose.msra.mxu0 0.0
  %2247 = vmatprep.subr.mxu0 0.0
  %2248 = vmatpush1.xpose.msra.mxu0 0.0
  %2249 = vmatprep.subr.mxu0 0.0
  %2250 = vmatpush1.xpose.msra.mxu0 0.0
  %2251 = vmatprep.subr.mxu0 0.0
  %2252 = vmatpush1.xpose.msra.mxu0 0.0
  %2253 = vmatprep.subr.mxu0 0.0
  %2254 = vmatpush1.xpose.msra.mxu0 0.0
  %2255 = vmatprep.subr.mxu0 0.0
  %2256 = vmatpush1.xpose.msra.mxu0 0.0
  %2257 = vmatprep.subr.mxu0 0.0
  %2258 = vmatpush1.xpose.msra.mxu0 0.0
  %2259 = vmatprep.subr.mxu0 0.0
  %2260 = vmatpush1.xpose.msra.mxu0 0.0
  %2261 = vmatprep.subr.mxu0 0.0
  %2262 = vmatpush1.xpose.msra.mxu0 0.0
  %2263 = vmatprep.subr.mxu0 0.0
  %2264 = vmatpush1.xpose.msra.mxu0 0.0
  %2265 = vmatprep.subr.mxu0 0.0
  %2266 = vmatpush1.xpose.msra.mxu0 0.0
  %2267 = vmatprep.subr.mxu0 0.0
  %2268 = vmatpush1.xpose.msra.mxu0 0.0
  %2269 = vmatprep.subr.mxu0 0.0
  %2270 = vmatpush1.xpose.msra.mxu0 0.0
  %2271 = vmatprep.subr.mxu0 0.0
  %2272 = vmatpush1.xpose.msra.mxu0 0.0
  %2273 = vmatprep.subr.mxu0 0.0
  %2274 = vmatpush1.xpose.msra.mxu0 0.0
  %2275 = vmatprep.subr.mxu0 0.0
  %2276 = vmatpush1.xpose.msra.mxu0 0.0
  %2277 = vmatprep.subr.mxu0 0.0
  %2278 = vmatpush1.xpose.msra.mxu0 0.0
  %2279 = vmatprep.subr.mxu0 0.0
  %2280 = vmatpush1.xpose.msra.mxu0 0.0
  %2281 = vmatprep.subr.mxu0 0.0
  %2282 = vmatpush1.xpose.msra.mxu0 0.0
  %2283 = vmatprep.subr.mxu0 0.0
  %2284 = vmatpush1.xpose.msra.mxu0 0.0
  %2285 = vmatprep.subr.mxu0 0.0
  %2286 = vmatpush1.xpose.msra.mxu0 0.0
  %2287 = vmatprep.subr.mxu0 0.0
  %2288 = vmatpush1.xpose.msra.mxu0 0.0
  %2289 = vmatprep.subr.mxu0 0.0
  %2290 = vmatpush1.xpose.msra.mxu0 0.0
  %2291 = vmatprep.subr.mxu0 0.0
  %2292 = vmatpush1.xpose.msra.mxu0 0.0
  %2293 = vmatprep.subr.mxu0 0.0
  %2294 = vmatpush1.xpose.msra.mxu0 0.0
  %2295 = vmatprep.subr.mxu0 0.0
  %2296 = vmatpush1.xpose.msra.mxu0 0.0
  %2297 = vmatprep.subr.mxu0 0.0
  %2298 = vmatpush1.xpose.msra.mxu0 0.0
  %2299 = vmatprep.subr.mxu0 0.0
  %2300 = vmatpush1.xpose.msra.mxu0 0.0
  %2301 = vmatprep.mubr.f32.mxu0 0.0
  %2302 = vmatmul.mubr.f32.gmra.mrb[0].mxu0 %v2231
  %v2303 = vpop.f32.mrb[0].mxu0
  %v2304 = vadd.f32 %v79, %v2303
  %v2305 = vpop.f32.mrb[0].mxu0
  %2306 = vdwg.mxu0
  %v2307 = vsel %vm1956, %v2304, -inf
  %2308 = vmax.xlane.f32.xlu0 %v2307
  %v2309 = vpop.xlane.xlu0 %2308
  %v2310 = vsub.f32 %v2304, %v2309
  %v2311 = vmul.f32 %v2310, 1.442695
  %v2312 = vpow.pop %v2311
  %v2313 = vsel %vm1956, %v2312, 0.0
  %2314 = vadd.xlane.f32.xlu0 %v2313
  %v2315 = vpop.xlane.xlu0 %2314
  %v2316 = vrcp.pop %v2315
  %v2317 = vmul.f32 %v2312, %v2316
  %2318 = vrot.lane.b32.xlu0 %v1859, 80
  %v2319 = vpop.permute.xlu0 %2318
  %2320 = vrot.lane.b32.xlu0 %v1864, 80
  %v2321 = vpop.permute.xlu0 %2320
  %v2325 = vsel %vm1956, %v2317, 0
  %2327 = vmatprep.subr.mxu0 0.0
  %2328 = vmatpush1.msra.mxu0 %v2319
  %2329 = vmatprep.subr.mxu0 0.0
  %2330 = vmatpush1.msra.mxu0 %v2321
  %2331 = vmatprep.subr.mxu0 0.0
  %2332 = vmatpush1.msra.mxu0 0.0
  %2333 = vmatprep.subr.mxu0 0.0
  %2334 = vmatpush1.msra.mxu0 0.0
  %2335 = vmatprep.subr.mxu0 0.0
  %2336 = vmatpush1.msra.mxu0 0.0
  %2337 = vmatprep.subr.mxu0 0.0
  %2338 = vmatpush1.msra.mxu0 0.0
  %2339 = vmatprep.subr.mxu0 0.0
  %2340 = vmatpush1.msra.mxu0 0.0
  %2341 = vmatprep.subr.mxu0 0.0
  %2342 = vmatpush1.msra.mxu0 0.0
  %2343 = vmatprep.subr.mxu0 0.0
  %2344 = vmatpush1.msra.mxu0 0.0
  %2345 = vmatprep.subr.mxu0 0.0
  %2346 = vmatpush1.msra.mxu0 0.0
  %2347 = vmatprep.subr.mxu0 0.0
  %2348 = vmatpush1.msra.mxu0 0.0
  %2349 = vmatprep.subr.mxu0 0.0
  %2350 = vmatpush1.msra.mxu0 0.0
  %2351 = vmatprep.subr.mxu0 0.0
  %2352 = vmatpush1.msra.mxu0 0.0
  %2353 = vmatprep.subr.mxu0 0.0
  %2354 = vmatpush1.msra.mxu0 0.0
  %2355 = vmatprep.subr.mxu0 0.0
  %2356 = vmatpush1.msra.mxu0 0.0
  %2357 = vmatprep.subr.mxu0 0.0
  %2358 = vmatpush1.msra.mxu0 0.0
  %2359 = vmatprep.subr.mxu0 0.0
  %2360 = vmatpush1.msra.mxu0 0.0
  %2361 = vmatprep.subr.mxu0 0.0
  %2362 = vmatpush1.msra.mxu0 0.0
  %2363 = vmatprep.subr.mxu0 0.0
  %2364 = vmatpush1.msra.mxu0 0.0
  %2365 = vmatprep.subr.mxu0 0.0
  %2366 = vmatpush1.msra.mxu0 0.0
  %2367 = vmatprep.subr.mxu0 0.0
  %2368 = vmatpush1.msra.mxu0 0.0
  %2369 = vmatprep.subr.mxu0 0.0
  %2370 = vmatpush1.msra.mxu0 0.0
  %2371 = vmatprep.subr.mxu0 0.0
  %2372 = vmatpush1.msra.mxu0 0.0
  %2373 = vmatprep.subr.mxu0 0.0
  %2374 = vmatpush1.msra.mxu0 0.0
  %2375 = vmatprep.subr.mxu0 0.0
  %2376 = vmatpush1.msra.mxu0 0.0
  %2377 = vmatprep.subr.mxu0 0.0
  %2378 = vmatpush1.msra.mxu0 0.0
  %2379 = vmatprep.subr.mxu0 0.0
  %2380 = vmatpush1.msra.mxu0 0.0
  %2381 = vmatprep.subr.mxu0 0.0
  %2382 = vmatpush1.msra.mxu0 0.0
  %2383 = vmatprep.subr.mxu0 0.0
  %2384 = vmatpush1.msra.mxu0 0.0
  %2385 = vmatprep.subr.mxu0 0.0
  %2386 = vmatpush1.msra.mxu0 0.0
  %2387 = vmatprep.subr.mxu0 0.0
  %2388 = vmatpush1.msra.mxu0 0.0
  %2389 = vmatprep.subr.mxu0 0.0
  %2390 = vmatpush1.msra.mxu0 0.0
  %2391 = vmatprep.mubr.f32.mxu0 0.0
  %2392 = vmatmul.mubr.f32.gmra.mrb[0].mxu0 %v2325
  %v2393 = vpop.f32.mrb[0].mxu0
  %v2394 = vadd.f32 0.0, %v2393
  %v2395 = vpop.f32.mrb[0].mxu0
  %2396 = vdwg.mxu0
  %2398 = vrot.lane.b32.xlu0 %v2394, 16
  %v2399 = vpop.permute.xlu0 %2398
  %2401 = vst.msk [vmem:[#allocation2] sm:$0xff] %vm680, %v2399
  %2402 = vrot.lane.b32.xlu0 %v1753, 104
  %v2403 = vpop.permute.xlu0 %2402
  %2404 = vrot.lane.b32.xlu0 %v1859, 104
  %v2405 = vpop.permute.xlu0 %2404
  %2406 = vrot.lane.b32.xlu0 %v1864, 104
  %v2407 = vpop.permute.xlu0 %2406
  %v2408 = vsel %vm177, %v2403, 0
  %v2410 = vsel %vm177, %v2405, 0
  %v2412 = vsel %vm177, %v2407, 0
  %2414 = vmatprep.subr.mxu0 0.0
  %2415 = vmatpush1.xpose.msra.mxu0 %v2410
  %2416 = vmatprep.subr.mxu0 0.0
  %2417 = vmatpush1.xpose.msra.mxu0 %v2412
  %2418 = vmatprep.subr.mxu0 0.0
  %2419 = vmatpush1.xpose.msra.mxu0 0.0
  %2420 = vmatprep.subr.mxu0 0.0
  %2421 = vmatpush1.xpose.msra.mxu0 0.0
  %2422 = vmatprep.subr.mxu0 0.0
  %2423 = vmatpush1.xpose.msra.mxu0 0.0
  %2424 = vmatprep.subr.mxu0 0.0
  %2425 = vmatpush1.xpose.msra.mxu0 0.0
  %2426 = vmatprep.subr.mxu0 0.0
  %2427 = vmatpush1.xpose.msra.mxu0 0.0
  %2428 = vmatprep.subr.mxu0 0.0
  %2429 = vmatpush1.xpose.msra.mxu0 0.0
  %2430 = vmatprep.subr.mxu0 0.0
  %2431 = vmatpush1.xpose.msra.mxu0 0.0
  %2432 = vmatprep.subr.mxu0 0.0
  %2433 = vmatpush1.xpose.msra.mxu0 0.0
  %2434 = vmatprep.subr.mxu0 0.0
  %2435 = vmatpush1.xpose.msra.mxu0 0.0
  %2436 = vmatprep.subr.mxu0 0.0
  %2437 = vmatpush1.xpose.msra.mxu0 0.0
  %2438 = vmatprep.subr.mxu0 0.0
  %2439 = vmatpush1.xpose.msra.mxu0 0.0
  %2440 = vmatprep.subr.mxu0 0.0
  %2441 = vmatpush1.xpose.msra.mxu0 0.0
  %2442 = vmatprep.subr.mxu0 0.0
  %2443 = vmatpush1.xpose.msra.mxu0 0.0
  %2444 = vmatprep.subr.mxu0 0.0
  %2445 = vmatpush1.xpose.msra.mxu0 0.0
  %2446 = vmatprep.subr.mxu0 0.0
  %2447 = vmatpush1.xpose.msra.mxu0 0.0
  %2448 = vmatprep.subr.mxu0 0.0
  %2449 = vmatpush1.xpose.msra.mxu0 0.0
  %2450 = vmatprep.subr.mxu0 0.0
  %2451 = vmatpush1.xpose.msra.mxu0 0.0
  %2452 = vmatprep.subr.mxu0 0.0
  %2453 = vmatpush1.xpose.msra.mxu0 0.0
  %2454 = vmatprep.subr.mxu0 0.0
  %2455 = vmatpush1.xpose.msra.mxu0 0.0
  %2456 = vmatprep.subr.mxu0 0.0
  %2457 = vmatpush1.xpose.msra.mxu0 0.0
  %2458 = vmatprep.subr.mxu0 0.0
  %2459 = vmatpush1.xpose.msra.mxu0 0.0
  %2460 = vmatprep.subr.mxu0 0.0
  %2461 = vmatpush1.xpose.msra.mxu0 0.0
  %2462 = vmatprep.subr.mxu0 0.0
  %2463 = vmatpush1.xpose.msra.mxu0 0.0
  %2464 = vmatprep.subr.mxu0 0.0
  %2465 = vmatpush1.xpose.msra.mxu0 0.0
  %2466 = vmatprep.subr.mxu0 0.0
  %2467 = vmatpush1.xpose.msra.mxu0 0.0
  %2468 = vmatprep.subr.mxu0 0.0
  %2469 = vmatpush1.xpose.msra.mxu0 0.0
  %2470 = vmatprep.subr.mxu0 0.0
  %2471 = vmatpush1.xpose.msra.mxu0 0.0
  %2472 = vmatprep.subr.mxu0 0.0
  %2473 = vmatpush1.xpose.msra.mxu0 0.0
  %2474 = vmatprep.subr.mxu0 0.0
  %2475 = vmatpush1.xpose.msra.mxu0 0.0
  %2476 = vmatprep.subr.mxu0 0.0
  %2477 = vmatpush1.xpose.msra.mxu0 0.0
  %2478 = vmatprep.mubr.f32.mxu0 0.0
  %2479 = vmatmul.mubr.f32.gmra.mrb[0].mxu0 %v2408
  %v2480 = vpop.f32.mrb[0].mxu0
  %v2481 = vadd.f32 %v79, %v2480
  %v2482 = vpop.f32.mrb[0].mxu0
  %2483 = vdwg.mxu0
  %v2484 = vsel %vm1956, %v2481, -inf
  %2485 = vmax.xlane.f32.xlu0 %v2484
  %v2486 = vpop.xlane.xlu0 %2485
  %v2487 = vsub.f32 %v2481, %v2486
  %v2488 = vmul.f32 %v2487, 1.442695
  %v2489 = vpow.pop %v2488
  %v2490 = vsel %vm1956, %v2489, 0.0
  %2491 = vadd.xlane.f32.xlu0 %v2490
  %v2492 = vpop.xlane.xlu0 %2491
  %v2493 = vrcp.pop %v2492
  %v2494 = vmul.f32 %v2489, %v2493
  %2495 = vrot.lane.b32.xlu0 %v1859, 72
  %v2496 = vpop.permute.xlu0 %2495
  %2497 = vrot.lane.b32.xlu0 %v1864, 72
  %v2498 = vpop.permute.xlu0 %2497
  %v2502 = vsel %vm1956, %v2494, 0
  %2504 = vmatprep.subr.mxu0 0.0
  %2505 = vmatpush1.msra.mxu0 %v2496
  %2506 = vmatprep.subr.mxu0 0.0
  %2507 = vmatpush1.msra.mxu0 %v2498
  %2508 = vmatprep.subr.mxu0 0.0
  %2509 = vmatpush1.msra.mxu0 0.0
  %2510 = vmatprep.subr.mxu0 0.0
  %2511 = vmatpush1.msra.mxu0 0.0
  %2512 = vmatprep.subr.mxu0 0.0
  %2513 = vmatpush1.msra.mxu0 0.0
  %2514 = vmatprep.subr.mxu0 0.0
  %2515 = vmatpush1.msra.mxu0 0.0
  %2516 = vmatprep.subr.mxu0 0.0
  %2517 = vmatpush1.msra.mxu0 0.0
  %2518 = vmatprep.subr.mxu0 0.0
  %2519 = vmatpush1.msra.mxu0 0.0
  %2520 = vmatprep.subr.mxu0 0.0
  %2521 = vmatpush1.msra.mxu0 0.0
  %2522 = vmatprep.subr.mxu0 0.0
  %2523 = vmatpush1.msra.mxu0 0.0
  %2524 = vmatprep.subr.mxu0 0.0
  %2525 = vmatpush1.msra.mxu0 0.0
  %2526 = vmatprep.subr.mxu0 0.0
  %2527 = vmatpush1.msra.mxu0 0.0
  %2528 = vmatprep.subr.mxu0 0.0
  %2529 = vmatpush1.msra.mxu0 0.0
  %2530 = vmatprep.subr.mxu0 0.0
  %2531 = vmatpush1.msra.mxu0 0.0
  %2532 = vmatprep.subr.mxu0 0.0
  %2533 = vmatpush1.msra.mxu0 0.0
  %2534 = vmatprep.subr.mxu0 0.0
  %2535 = vmatpush1.msra.mxu0 0.0
  %2536 = vmatprep.subr.mxu0 0.0
  %2537 = vmatpush1.msra.mxu0 0.0
  %2538 = vmatprep.subr.mxu0 0.0
  %2539 = vmatpush1.msra.mxu0 0.0
  %2540 = vmatprep.subr.mxu0 0.0
  %2541 = vmatpush1.msra.mxu0 0.0
  %2542 = vmatprep.subr.mxu0 0.0
  %2543 = vmatpush1.msra.mxu0 0.0
  %2544 = vmatprep.subr.mxu0 0.0
  %2545 = vmatpush1.msra.mxu0 0.0
  %2546 = vmatprep.subr.mxu0 0.0
  %2547 = vmatpush1.msra.mxu0 0.0
  %2548 = vmatprep.subr.mxu0 0.0
  %2549 = vmatpush1.msra.mxu0 0.0
  %2550 = vmatprep.subr.mxu0 0.0
  %2551 = vmatpush1.msra.mxu0 0.0
  %2552 = vmatprep.subr.mxu0 0.0
  %2553 = vmatpush1.msra.mxu0 0.0
  %2554 = vmatprep.subr.mxu0 0.0
  %2555 = vmatpush1.msra.mxu0 0.0
  %2556 = vmatprep.subr.mxu0 0.0
  %2557 = vmatpush1.msra.mxu0 0.0
  %2558 = vmatprep.subr.mxu0 0.0
  %2559 = vmatpush1.msra.mxu0 0.0
  %2560 = vmatprep.subr.mxu0 0.0
  %2561 = vmatpush1.msra.mxu0 0.0
  %2562 = vmatprep.subr.mxu0 0.0
  %2563 = vmatpush1.msra.mxu0 0.0
  %2564 = vmatprep.subr.mxu0 0.0
  %2565 = vmatpush1.msra.mxu0 0.0
  %2566 = vmatprep.subr.mxu0 0.0
  %2567 = vmatpush1.msra.mxu0 0.0
  %2568 = vmatprep.mubr.f32.mxu0 0.0
  %2569 = vmatmul.mubr.f32.gmra.mrb[0].mxu0 %v2502
  %v2570 = vpop.f32.mrb[0].mxu0
  %v2571 = vadd.f32 0.0, %v2570
  %v2572 = vpop.f32.mrb[0].mxu0
  %2573 = vdwg.mxu0
  %2575 = vrot.lane.b32.xlu0 %v2571, 24
  %v2576 = vpop.permute.xlu0 %2575
  %2578 = vst.msk [vmem:[#allocation2] sm:$0xff] %vm851, %v2576
  %v2580 = vsel %vm177, %v1758, 0
  %v2583 = vsel %vm177, %v1869, 0
  %v2586 = vsel %vm177, %v1874, 0
  %2588 = vmatprep.subr.mxu0 0.0
  %2589 = vmatpush1.xpose.msra.mxu0 %v2583
  %2590 = vmatprep.subr.mxu0 0.0
  %2591 = vmatpush1.xpose.msra.mxu0 %v2586
  %2592 = vmatprep.subr.mxu0 0.0
  %2593 = vmatpush1.xpose.msra.mxu0 0.0
  %2594 = vmatprep.subr.mxu0 0.0
  %2595 = vmatpush1.xpose.msra.mxu0 0.0
  %2596 = vmatprep.subr.mxu0 0.0
  %2597 = vmatpush1.xpose.msra.mxu0 0.0
  %2598 = vmatprep.subr.mxu0 0.0
  %2599 = vmatpush1.xpose.msra.mxu0 0.0
  %2600 = vmatprep.subr.mxu0 0.0
  %2601 = vmatpush1.xpose.msra.mxu0 0.0
  %2602 = vmatprep.subr.mxu0 0.0
  %2603 = vmatpush1.xpose.msra.mxu0 0.0
  %2604 = vmatprep.subr.mxu0 0.0
  %2605 = vmatpush1.xpose.msra.mxu0 0.0
  %2606 = vmatprep.subr.mxu0 0.0
  %2607 = vmatpush1.xpose.msra.mxu0 0.0
  %2608 = vmatprep.subr.mxu0 0.0
  %2609 = vmatpush1.xpose.msra.mxu0 0.0
  %2610 = vmatprep.subr.mxu0 0.0
  %2611 = vmatpush1.xpose.msra.mxu0 0.0
  %2612 = vmatprep.subr.mxu0 0.0
  %2613 = vmatpush1.xpose.msra.mxu0 0.0
  %2614 = vmatprep.subr.mxu0 0.0
  %2615 = vmatpush1.xpose.msra.mxu0 0.0
  %2616 = vmatprep.subr.mxu0 0.0
  %2617 = vmatpush1.xpose.msra.mxu0 0.0
  %2618 = vmatprep.subr.mxu0 0.0
  %2619 = vmatpush1.xpose.msra.mxu0 0.0
  %2620 = vmatprep.subr.mxu0 0.0
  %2621 = vmatpush1.xpose.msra.mxu0 0.0
  %2622 = vmatprep.subr.mxu0 0.0
  %2623 = vmatpush1.xpose.msra.mxu0 0.0
  %2624 = vmatprep.subr.mxu0 0.0
  %2625 = vmatpush1.xpose.msra.mxu0 0.0
  %2626 = vmatprep.subr.mxu0 0.0
  %2627 = vmatpush1.xpose.msra.mxu0 0.0
  %2628 = vmatprep.subr.mxu0 0.0
  %2629 = vmatpush1.xpose.msra.mxu0 0.0
  %2630 = vmatprep.subr.mxu0 0.0
  %2631 = vmatpush1.xpose.msra.mxu0 0.0
  %2632 = vmatprep.subr.mxu0 0.0
  %2633 = vmatpush1.xpose.msra.mxu0 0.0
  %2634 = vmatprep.subr.mxu0 0.0
  %2635 = vmatpush1.xpose.msra.mxu0 0.0
  %2636 = vmatprep.subr.mxu0 0.0
  %2637 = vmatpush1.xpose.msra.mxu0 0.0
  %2638 = vmatprep.subr.mxu0 0.0
  %2639 = vmatpush1.xpose.msra.mxu0 0.0
  %2640 = vmatprep.subr.mxu0 0.0
  %2641 = vmatpush1.xpose.msra.mxu0 0.0
  %2642 = vmatprep.subr.mxu0 0.0
  %2643 = vmatpush1.xpose.msra.mxu0 0.0
  %2644 = vmatprep.subr.mxu0 0.0
  %2645 = vmatpush1.xpose.msra.mxu0 0.0
  %2646 = vmatprep.subr.mxu0 0.0
  %2647 = vmatpush1.xpose.msra.mxu0 0.0
  %2648 = vmatprep.subr.mxu0 0.0
  %2649 = vmatpush1.xpose.msra.mxu0 0.0
  %2650 = vmatprep.subr.mxu0 0.0
  %2651 = vmatpush1.xpose.msra.mxu0 0.0
  %2652 = vmatprep.mubr.f32.mxu0 0.0
  %2653 = vmatmul.mubr.f32.gmra.mrb[0].mxu0 %v2580
  %v2654 = vpop.f32.mrb[0].mxu0
  %v2655 = vadd.f32 %v80, %v2654
  %v2656 = vpop.f32.mrb[0].mxu0
  %2657 = vdwg.mxu0
  %v2658 = vsel %vm1956, %v2655, -inf
  %2659 = vmax.xlane.f32.xlu0 %v2658
  %v2660 = vpop.xlane.xlu0 %2659
  %v2661 = vsub.f32 %v2655, %v2660
  %v2662 = vmul.f32 %v2661, 1.442695
  %v2663 = vpow.pop %v2662
  %v2664 = vsel %vm1956, %v2663, 0.0
  %2665 = vadd.xlane.f32.xlu0 %v2664
  %v2666 = vpop.xlane.xlu0 %2665
  %v2667 = vrcp.pop %v2666
  %v2668 = vmul.f32 %v2663, %v2667
  %2669 = vrot.lane.b32.xlu0 %v1869, 96
  %v2670 = vpop.permute.xlu0 %2669
  %2671 = vrot.lane.b32.xlu0 %v1874, 96
  %v2672 = vpop.permute.xlu0 %2671
  %v2676 = vsel %vm1956, %v2668, 0
  %2678 = vmatprep.subr.mxu0 0.0
  %2679 = vmatpush1.msra.mxu0 %v2670
  %2680 = vmatprep.subr.mxu0 0.0
  %2681 = vmatpush1.msra.mxu0 %v2672
  %2682 = vmatprep.subr.mxu0 0.0
  %2683 = vmatpush1.msra.mxu0 0.0
  %2684 = vmatprep.subr.mxu0 0.0
  %2685 = vmatpush1.msra.mxu0 0.0
  %2686 = vmatprep.subr.mxu0 0.0
  %2687 = vmatpush1.msra.mxu0 0.0
  %2688 = vmatprep.subr.mxu0 0.0
  %2689 = vmatpush1.msra.mxu0 0.0
  %2690 = vmatprep.subr.mxu0 0.0
  %2691 = vmatpush1.msra.mxu0 0.0
  %2692 = vmatprep.subr.mxu0 0.0
  %2693 = vmatpush1.msra.mxu0 0.0
  %2694 = vmatprep.subr.mxu0 0.0
  %2695 = vmatpush1.msra.mxu0 0.0
  %2696 = vmatprep.subr.mxu0 0.0
  %2697 = vmatpush1.msra.mxu0 0.0
  %2698 = vmatprep.subr.mxu0 0.0
  %2699 = vmatpush1.msra.mxu0 0.0
  %2700 = vmatprep.subr.mxu0 0.0
  %2701 = vmatpush1.msra.mxu0 0.0
  %2702 = vmatprep.subr.mxu0 0.0
  %2703 = vmatpush1.msra.mxu0 0.0
  %2704 = vmatprep.subr.mxu0 0.0
  %2705 = vmatpush1.msra.mxu0 0.0
  %2706 = vmatprep.subr.mxu0 0.0
  %2707 = vmatpush1.msra.mxu0 0.0
  %2708 = vmatprep.subr.mxu0 0.0
  %2709 = vmatpush1.msra.mxu0 0.0
  %2710 = vmatprep.subr.mxu0 0.0
  %2711 = vmatpush1.msra.mxu0 0.0
  %2712 = vmatprep.subr.mxu0 0.0
  %2713 = vmatpush1.msra.mxu0 0.0
  %2714 = vmatprep.subr.mxu0 0.0
  %2715 = vmatpush1.msra.mxu0 0.0
  %2716 = vmatprep.subr.mxu0 0.0
  %2717 = vmatpush1.msra.mxu0 0.0
  %2718 = vmatprep.subr.mxu0 0.0
  %2719 = vmatpush1.msra.mxu0 0.0
  %2720 = vmatprep.subr.mxu0 0.0
  %2721 = vmatpush1.msra.mxu0 0.0
  %2722 = vmatprep.subr.mxu0 0.0
  %2723 = vmatpush1.msra.mxu0 0.0
  %2724 = vmatprep.subr.mxu0 0.0
  %2725 = vmatpush1.msra.mxu0 0.0
  %2726 = vmatprep.subr.mxu0 0.0
  %2727 = vmatpush1.msra.mxu0 0.0
  %2728 = vmatprep.subr.mxu0 0.0
  %2729 = vmatpush1.msra.mxu0 0.0
  %2730 = vmatprep.subr.mxu0 0.0
  %2731 = vmatpush1.msra.mxu0 0.0
  %2732 = vmatprep.subr.mxu0 0.0
  %2733 = vmatpush1.msra.mxu0 0.0
  %2734 = vmatprep.subr.mxu0 0.0
  %2735 = vmatpush1.msra.mxu0 0.0
  %2736 = vmatprep.subr.mxu0 0.0
  %2737 = vmatpush1.msra.mxu0 0.0
  %2738 = vmatprep.subr.mxu0 0.0
  %2739 = vmatpush1.msra.mxu0 0.0
  %2740 = vmatprep.subr.mxu0 0.0
  %2741 = vmatpush1.msra.mxu0 0.0
  %2742 = vmatprep.mubr.f32.mxu0 0.0
  %2743 = vmatmul.mubr.f32.gmra.mrb[0].mxu0 %v2676
  %v2744 = vpop.f32.mrb[0].mxu0
  %v2745 = vadd.f32 0.0, %v2744
  %v2746 = vpop.f32.mrb[0].mxu0
  %2747 = vdwg.mxu0
  %2748 = vst.msk [vmem:[#allocation2 + $0x8] sm:$0xff] %vm177, %v2745
  %2749 = vrot.lane.b32.xlu0 %v1758, 120
  %v2750 = vpop.permute.xlu0 %2749
  %2751 = vrot.lane.b32.xlu0 %v1869, 120
  %v2752 = vpop.permute.xlu0 %2751
  %2753 = vrot.lane.b32.xlu0 %v1874, 120
  %v2754 = vpop.permute.xlu0 %2753
  %v2755 = vsel %vm177, %v2750, 0
  %v2757 = vsel %vm177, %v2752, 0
  %v2759 = vsel %vm177, %v2754, 0
  %2761 = vmatprep.subr.mxu0 0.0
  %2762 = vmatpush1.xpose.msra.mxu0 %v2757
  %2763 = vmatprep.subr.mxu0 0.0
  %2764 = vmatpush1.xpose.msra.mxu0 %v2759
  %2765 = vmatprep.subr.mxu0 0.0
  %2766 = vmatpush1.xpose.msra.mxu0 0.0
  %2767 = vmatprep.subr.mxu0 0.0
  %2768 = vmatpush1.xpose.msra.mxu0 0.0
  %2769 = vmatprep.subr.mxu0 0.0
  %2770 = vmatpush1.xpose.msra.mxu0 0.0
  %2771 = vmatprep.subr.mxu0 0.0
  %2772 = vmatpush1.xpose.msra.mxu0 0.0
  %2773 = vmatprep.subr.mxu0 0.0
  %2774 = vmatpush1.xpose.msra.mxu0 0.0
  %2775 = vmatprep.subr.mxu0 0.0
  %2776 = vmatpush1.xpose.msra.mxu0 0.0
  %2777 = vmatprep.subr.mxu0 0.0
  %2778 = vmatpush1.xpose.msra.mxu0 0.0
  %2779 = vmatprep.subr.mxu0 0.0
  %2780 = vmatpush1.xpose.msra.mxu0 0.0
  %2781 = vmatprep.subr.mxu0 0.0
  %2782 = vmatpush1.xpose.msra.mxu0 0.0
  %2783 = vmatprep.subr.mxu0 0.0
  %2784 = vmatpush1.xpose.msra.mxu0 0.0
  %2785 = vmatprep.subr.mxu0 0.0
  %2786 = vmatpush1.xpose.msra.mxu0 0.0
  %2787 = vmatprep.subr.mxu0 0.0
  %2788 = vmatpush1.xpose.msra.mxu0 0.0
  %2789 = vmatprep.subr.mxu0 0.0
  %2790 = vmatpush1.xpose.msra.mxu0 0.0
  %2791 = vmatprep.subr.mxu0 0.0
  %2792 = vmatpush1.xpose.msra.mxu0 0.0
  %2793 = vmatprep.subr.mxu0 0.0
  %2794 = vmatpush1.xpose.msra.mxu0 0.0
  %2795 = vmatprep.subr.mxu0 0.0
  %2796 = vmatpush1.xpose.msra.mxu0 0.0
  %2797 = vmatprep.subr.mxu0 0.0
  %2798 = vmatpush1.xpose.msra.mxu0 0.0
  %2799 = vmatprep.subr.mxu0 0.0
  %2800 = vmatpush1.xpose.msra.mxu0 0.0
  %2801 = vmatprep.subr.mxu0 0.0
  %2802 = vmatpush1.xpose.msra.mxu0 0.0
  %2803 = vmatprep.subr.mxu0 0.0
  %2804 = vmatpush1.xpose.msra.mxu0 0.0
  %2805 = vmatprep.subr.mxu0 0.0
  %2806 = vmatpush1.xpose.msra.mxu0 0.0
  %2807 = vmatprep.subr.mxu0 0.0
  %2808 = vmatpush1.xpose.msra.mxu0 0.0
  %2809 = vmatprep.subr.mxu0 0.0
  %2810 = vmatpush1.xpose.msra.mxu0 0.0
  %2811 = vmatprep.subr.mxu0 0.0
  %2812 = vmatpush1.xpose.msra.mxu0 0.0
  %2813 = vmatprep.subr.mxu0 0.0
  %2814 = vmatpush1.xpose.msra.mxu0 0.0
  %2815 = vmatprep.subr.mxu0 0.0
  %2816 = vmatpush1.xpose.msra.mxu0 0.0
  %2817 = vmatprep.subr.mxu0 0.0
  %2818 = vmatpush1.xpose.msra.mxu0 0.0
  %2819 = vmatprep.subr.mxu0 0.0
  %2820 = vmatpush1.xpose.msra.mxu0 0.0
  %2821 = vmatprep.subr.mxu0 0.0
  %2822 = vmatpush1.xpose.msra.mxu0 0.0
  %2823 = vmatprep.subr.mxu0 0.0
  %2824 = vmatpush1.xpose.msra.mxu0 0.0
  %2825 = vmatprep.mubr.f32.mxu0 0.0
  %2826 = vmatmul.mubr.f32.gmra.mrb[0].mxu0 %v2755
  %v2827 = vpop.f32.mrb[0].mxu0
  %v2828 = vadd.f32 %v80, %v2827
  %v2829 = vpop.f32.mrb[0].mxu0
  %2830 = vdwg.mxu0
  %v2831 = vsel %vm1956, %v2828, -inf
  %2832 = vmax.xlane.f32.xlu0 %v2831
  %v2833 = vpop.xlane.xlu0 %2832
  %v2834 = vsub.f32 %v2828, %v2833
  %v2835 = vmul.f32 %v2834, 1.442695
  %v2836 = vpow.pop %v2835
  %v2837 = vsel %vm1956, %v2836, 0.0
  %2838 = vadd.xlane.f32.xlu0 %v2837
  %v2839 = vpop.xlane.xlu0 %2838
  %v2840 = vrcp.pop %v2839
  %v2841 = vmul.f32 %v2836, %v2840
  %2842 = vrot.lane.b32.xlu0 %v1869, 88
  %v2843 = vpop.permute.xlu0 %2842
  %2844 = vrot.lane.b32.xlu0 %v1874, 88
  %v2845 = vpop.permute.xlu0 %2844
  %v2849 = vsel %vm1956, %v2841, 0
  %2851 = vmatprep.subr.mxu0 0.0
  %2852 = vmatpush1.msra.mxu0 %v2843
  %2853 = vmatprep.subr.mxu0 0.0
  %2854 = vmatpush1.msra.mxu0 %v2845
  %2855 = vmatprep.subr.mxu0 0.0
  %2856 = vmatpush1.msra.mxu0 0.0
  %2857 = vmatprep.subr.mxu0 0.0
  %2858 = vmatpush1.msra.mxu0 0.0
  %2859 = vmatprep.subr.mxu0 0.0
  %2860 = vmatpush1.msra.mxu0 0.0
  %2861 = vmatprep.subr.mxu0 0.0
  %2862 = vmatpush1.msra.mxu0 0.0
  %2863 = vmatprep.subr.mxu0 0.0
  %2864 = vmatpush1.msra.mxu0 0.0
  %2865 = vmatprep.subr.mxu0 0.0
  %2866 = vmatpush1.msra.mxu0 0.0
  %2867 = vmatprep.subr.mxu0 0.0
  %2868 = vmatpush1.msra.mxu0 0.0
  %2869 = vmatprep.subr.mxu0 0.0
  %2870 = vmatpush1.msra.mxu0 0.0
  %2871 = vmatprep.subr.mxu0 0.0
  %2872 = vmatpush1.msra.mxu0 0.0
  %2873 = vmatprep.subr.mxu0 0.0
  %2874 = vmatpush1.msra.mxu0 0.0
  %2875 = vmatprep.subr.mxu0 0.0
  %2876 = vmatpush1.msra.mxu0 0.0
  %2877 = vmatprep.subr.mxu0 0.0
  %2878 = vmatpush1.msra.mxu0 0.0
  %2879 = vmatprep.subr.mxu0 0.0
  %2880 = vmatpush1.msra.mxu0 0.0
  %2881 = vmatprep.subr.mxu0 0.0
  %2882 = vmatpush1.msra.mxu0 0.0
  %2883 = vmatprep.subr.mxu0 0.0
  %2884 = vmatpush1.msra.mxu0 0.0
  %2885 = vmatprep.subr.mxu0 0.0
  %2886 = vmatpush1.msra.mxu0 0.0
  %2887 = vmatprep.subr.mxu0 0.0
  %2888 = vmatpush1.msra.mxu0 0.0
  %2889 = vmatprep.subr.mxu0 0.0
  %2890 = vmatpush1.msra.mxu0 0.0
  %2891 = vmatprep.subr.mxu0 0.0
  %2892 = vmatpush1.msra.mxu0 0.0
  %2893 = vmatprep.subr.mxu0 0.0
  %2894 = vmatpush1.msra.mxu0 0.0
  %2895 = vmatprep.subr.mxu0 0.0
  %2896 = vmatpush1.msra.mxu0 0.0
  %2897 = vmatprep.subr.mxu0 0.0
  %2898 = vmatpush1.msra.mxu0 0.0
  %2899 = vmatprep.subr.mxu0 0.0
  %2900 = vmatpush1.msra.mxu0 0.0
  %2901 = vmatprep.subr.mxu0 0.0
  %2902 = vmatpush1.msra.mxu0 0.0
  %2903 = vmatprep.subr.mxu0 0.0
  %2904 = vmatpush1.msra.mxu0 0.0
  %2905 = vmatprep.subr.mxu0 0.0
  %2906 = vmatpush1.msra.mxu0 0.0
  %2907 = vmatprep.subr.mxu0 0.0
  %2908 = vmatpush1.msra.mxu0 0.0
  %2909 = vmatprep.subr.mxu0 0.0
  %2910 = vmatpush1.msra.mxu0 0.0
  %2911 = vmatprep.subr.mxu0 0.0
  %2912 = vmatpush1.msra.mxu0 0.0
  %2913 = vmatprep.subr.mxu0 0.0
  %2914 = vmatpush1.msra.mxu0 0.0
  %2915 = vmatprep.mubr.f32.mxu0 0.0
  %2916 = vmatmul.mubr.f32.gmra.mrb[0].mxu0 %v2849
  %v2917 = vpop.f32.mrb[0].mxu0
  %v2918 = vadd.f32 0.0, %v2917
  %v2919 = vpop.f32.mrb[0].mxu0
  %2920 = vdwg.mxu0
  %2922 = vrot.lane.b32.xlu0 %v2918, 8
  %v2923 = vpop.permute.xlu0 %2922
  %2925 = vst.msk [vmem:[#allocation2 + $0x8] sm:$0xff] %vm509, %v2923
  %2926 = vrot.lane.b32.xlu0 %v1758, 112
  %v2927 = vpop.permute.xlu0 %2926
  %2928 = vrot.lane.b32.xlu0 %v1869, 112
  %v2929 = vpop.permute.xlu0 %2928
  %2930 = vrot.lane.b32.xlu0 %v1874, 112
  %v2931 = vpop.permute.xlu0 %2930
  %v2932 = vsel %vm177, %v2927, 0
  %v2934 = vsel %vm177, %v2929, 0
  %v2936 = vsel %vm177, %v2931, 0
  %2938 = vmatprep.subr.mxu0 0.0
  %2939 = vmatpush1.xpose.msra.mxu0 %v2934
  %2940 = vmatprep.subr.mxu0 0.0
  %2941 = vmatpush1.xpose.msra.mxu0 %v2936
  %2942 = vmatprep.subr.mxu0 0.0
  %2943 = vmatpush1.xpose.msra.mxu0 0.0
  %2944 = vmatprep.subr.mxu0 0.0
  %2945 = vmatpush1.xpose.msra.mxu0 0.0
  %2946 = vmatprep.subr.mxu0 0.0
  %2947 = vmatpush1.xpose.msra.mxu0 0.0
  %2948 = vmatprep.subr.mxu0 0.0
  %2949 = vmatpush1.xpose.msra.mxu0 0.0
  %2950 = vmatprep.subr.mxu0 0.0
  %2951 = vmatpush1.xpose.msra.mxu0 0.0
  %2952 = vmatprep.subr.mxu0 0.0
  %2953 = vmatpush1.xpose.msra.mxu0 0.0
  %2954 = vmatprep.subr.mxu0 0.0
  %2955 = vmatpush1.xpose.msra.mxu0 0.0
  %2956 = vmatprep.subr.mxu0 0.0
  %2957 = vmatpush1.xpose.msra.mxu0 0.0
  %2958 = vmatprep.subr.mxu0 0.0
  %2959 = vmatpush1.xpose.msra.mxu0 0.0
  %2960 = vmatprep.subr.mxu0 0.0
  %2961 = vmatpush1.xpose.msra.mxu0 0.0
  %2962 = vmatprep.subr.mxu0 0.0
  %2963 = vmatpush1.xpose.msra.mxu0 0.0
  %2964 = vmatprep.subr.mxu0 0.0
  %2965 = vmatpush1.xpose.msra.mxu0 0.0
  %2966 = vmatprep.subr.mxu0 0.0
  %2967 = vmatpush1.xpose.msra.mxu0 0.0
  %2968 = vmatprep.subr.mxu0 0.0
  %2969 = vmatpush1.xpose.msra.mxu0 0.0
  %2970 = vmatprep.subr.mxu0 0.0
  %2971 = vmatpush1.xpose.msra.mxu0 0.0
  %2972 = vmatprep.subr.mxu0 0.0
  %2973 = vmatpush1.xpose.msra.mxu0 0.0
  %2974 = vmatprep.subr.mxu0 0.0
  %2975 = vmatpush1.xpose.msra.mxu0 0.0
  %2976 = vmatprep.subr.mxu0 0.0
  %2977 = vmatpush1.xpose.msra.mxu0 0.0
  %2978 = vmatprep.subr.mxu0 0.0
  %2979 = vmatpush1.xpose.msra.mxu0 0.0
  %2980 = vmatprep.subr.mxu0 0.0
  %2981 = vmatpush1.xpose.msra.mxu0 0.0
  %2982 = vmatprep.subr.mxu0 0.0
  %2983 = vmatpush1.xpose.msra.mxu0 0.0
  %2984 = vmatprep.subr.mxu0 0.0
  %2985 = vmatpush1.xpose.msra.mxu0 0.0
  %2986 = vmatprep.subr.mxu0 0.0
  %2987 = vmatpush1.xpose.msra.mxu0 0.0
  %2988 = vmatprep.subr.mxu0 0.0
  %2989 = vmatpush1.xpose.msra.mxu0 0.0
  %2990 = vmatprep.subr.mxu0 0.0
  %2991 = vmatpush1.xpose.msra.mxu0 0.0
  %2992 = vmatprep.subr.mxu0 0.0
  %2993 = vmatpush1.xpose.msra.mxu0 0.0
  %2994 = vmatprep.subr.mxu0 0.0
  %2995 = vmatpush1.xpose.msra.mxu0 0.0
  %2996 = vmatprep.subr.mxu0 0.0
  %2997 = vmatpush1.xpose.msra.mxu0 0.0
  %2998 = vmatprep.subr.mxu0 0.0
  %2999 = vmatpush1.xpose.msra.mxu0 0.0
  %3000 = vmatprep.subr.mxu0 0.0
  %3001 = vmatpush1.xpose.msra.mxu0 0.0
  %3002 = vmatprep.mubr.f32.mxu0 0.0
  %3003 = vmatmul.mubr.f32.gmra.mrb[0].mxu0 %v2932
  %v3004 = vpop.f32.mrb[0].mxu0
  %v3005 = vadd.f32 %v80, %v3004
  %v3006 = vpop.f32.mrb[0].mxu0
  %3007 = vdwg.mxu0
  %v3008 = vsel %vm1956, %v3005, -inf
  %3009 = vmax.xlane.f32.xlu0 %v3008
  %v3010 = vpop.xlane.xlu0 %3009
  %v3011 = vsub.f32 %v3005, %v3010
  %v3012 = vmul.f32 %v3011, 1.442695
  %v3013 = vpow.pop %v3012
  %v3014 = vsel %vm1956, %v3013, 0.0
  %3015 = vadd.xlane.f32.xlu0 %v3014
  %v3016 = vpop.xlane.xlu0 %3015
  %v3017 = vrcp.pop %v3016
  %v3018 = vmul.f32 %v3013, %v3017
  %3019 = vrot.lane.b32.xlu0 %v1869, 80
  %v3020 = vpop.permute.xlu0 %3019
  %3021 = vrot.lane.b32.xlu0 %v1874, 80
  %v3022 = vpop.permute.xlu0 %3021
  %v3026 = vsel %vm1956, %v3018, 0
  %3028 = vmatprep.subr.mxu0 0.0
  %3029 = vmatpush1.msra.mxu0 %v3020
  %3030 = vmatprep.subr.mxu0 0.0
  %3031 = vmatpush1.msra.mxu0 %v3022
  %3032 = vmatprep.subr.mxu0 0.0
  %3033 = vmatpush1.msra.mxu0 0.0
  %3034 = vmatprep.subr.mxu0 0.0
  %3035 = vmatpush1.msra.mxu0 0.0
  %3036 = vmatprep.subr.mxu0 0.0
  %3037 = vmatpush1.msra.mxu0 0.0
  %3038 = vmatprep.subr.mxu0 0.0
  %3039 = vmatpush1.msra.mxu0 0.0
  %3040 = vmatprep.subr.mxu0 0.0
  %3041 = vmatpush1.msra.mxu0 0.0
  %3042 = vmatprep.subr.mxu0 0.0
  %3043 = vmatpush1.msra.mxu0 0.0
  %3044 = vmatprep.subr.mxu0 0.0
  %3045 = vmatpush1.msra.mxu0 0.0
  %3046 = vmatprep.subr.mxu0 0.0
  %3047 = vmatpush1.msra.mxu0 0.0
  %3048 = vmatprep.subr.mxu0 0.0
  %3049 = vmatpush1.msra.mxu0 0.0
  %3050 = vmatprep.subr.mxu0 0.0
  %3051 = vmatpush1.msra.mxu0 0.0
  %3052 = vmatprep.subr.mxu0 0.0
  %3053 = vmatpush1.msra.mxu0 0.0
  %3054 = vmatprep.subr.mxu0 0.0
  %3055 = vmatpush1.msra.mxu0 0.0
  %3056 = vmatprep.subr.mxu0 0.0
  %3057 = vmatpush1.msra.mxu0 0.0
  %3058 = vmatprep.subr.mxu0 0.0
  %3059 = vmatpush1.msra.mxu0 0.0
  %3060 = vmatprep.subr.mxu0 0.0
  %3061 = vmatpush1.msra.mxu0 0.0
  %3062 = vmatprep.subr.mxu0 0.0
  %3063 = vmatpush1.msra.mxu0 0.0
  %3064 = vmatprep.subr.mxu0 0.0
  %3065 = vmatpush1.msra.mxu0 0.0
  %3066 = vmatprep.subr.mxu0 0.0
  %3067 = vmatpush1.msra.mxu0 0.0
  %3068 = vmatprep.subr.mxu0 0.0
  %3069 = vmatpush1.msra.mxu0 0.0
  %3070 = vmatprep.subr.mxu0 0.0
  %3071 = vmatpush1.msra.mxu0 0.0
  %3072 = vmatprep.subr.mxu0 0.0
  %3073 = vmatpush1.msra.mxu0 0.0
  %3074 = vmatprep.subr.mxu0 0.0
  %3075 = vmatpush1.msra.mxu0 0.0
  %3076 = vmatprep.subr.mxu0 0.0
  %3077 = vmatpush1.msra.mxu0 0.0
  %3078 = vmatprep.subr.mxu0 0.0
  %3079 = vmatpush1.msra.mxu0 0.0
  %3080 = vmatprep.subr.mxu0 0.0
  %3081 = vmatpush1.msra.mxu0 0.0
  %3082 = vmatprep.subr.mxu0 0.0
  %3083 = vmatpush1.msra.mxu0 0.0
  %3084 = vmatprep.subr.mxu0 0.0
  %3085 = vmatpush1.msra.mxu0 0.0
  %3086 = vmatprep.subr.mxu0 0.0
  %3087 = vmatpush1.msra.mxu0 0.0
  %3088 = vmatprep.subr.mxu0 0.0
  %3089 = vmatpush1.msra.mxu0 0.0
  %3090 = vmatprep.subr.mxu0 0.0
  %3091 = vmatpush1.msra.mxu0 0.0
  %3092 = vmatprep.mubr.f32.mxu0 0.0
  %3093 = vmatmul.mubr.f32.gmra.mrb[0].mxu0 %v3026
  %v3094 = vpop.f32.mrb[0].mxu0
  %v3095 = vadd.f32 0.0, %v3094
  %v3096 = vpop.f32.mrb[0].mxu0
  %3097 = vdwg.mxu0
  %3099 = vrot.lane.b32.xlu0 %v3095, 16
  %v3100 = vpop.permute.xlu0 %3099
  %3102 = vst.msk [vmem:[#allocation2 + $0x8] sm:$0xff] %vm680, %v3100
  %3103 = vrot.lane.b32.xlu0 %v1758, 104
  %v3104 = vpop.permute.xlu0 %3103
  %3105 = vrot.lane.b32.xlu0 %v1869, 104
  %v3106 = vpop.permute.xlu0 %3105
  %3107 = vrot.lane.b32.xlu0 %v1874, 104
  %v3108 = vpop.permute.xlu0 %3107
  %v3109 = vsel %vm177, %v3104, 0
  %v3111 = vsel %vm177, %v3106, 0
  %v3113 = vsel %vm177, %v3108, 0
  %3115 = vmatprep.subr.mxu0 0.0
  %3116 = vmatpush1.xpose.msra.mxu0 %v3111
  %3117 = vmatprep.subr.mxu0 0.0
  %3118 = vmatpush1.xpose.msra.mxu0 %v3113
  %3119 = vmatprep.subr.mxu0 0.0
  %3120 = vmatpush1.xpose.msra.mxu0 0.0
  %3121 = vmatprep.subr.mxu0 0.0
  %3122 = vmatpush1.xpose.msra.mxu0 0.0
  %3123 = vmatprep.subr.mxu0 0.0
  %3124 = vmatpush1.xpose.msra.mxu0 0.0
  %3125 = vmatprep.subr.mxu0 0.0
  %3126 = vmatpush1.xpose.msra.mxu0 0.0
  %3127 = vmatprep.subr.mxu0 0.0
  %3128 = vmatpush1.xpose.msra.mxu0 0.0
  %3129 = vmatprep.subr.mxu0 0.0
  %3130 = vmatpush1.xpose.msra.mxu0 0.0
  %3131 = vmatprep.subr.mxu0 0.0
  %3132 = vmatpush1.xpose.msra.mxu0 0.0
  %3133 = vmatprep.subr.mxu0 0.0
  %3134 = vmatpush1.xpose.msra.mxu0 0.0
  %3135 = vmatprep.subr.mxu0 0.0
  %3136 = vmatpush1.xpose.msra.mxu0 0.0
  %3137 = vmatprep.subr.mxu0 0.0
  %3138 = vmatpush1.xpose.msra.mxu0 0.0
  %3139 = vmatprep.subr.mxu0 0.0
  %3140 = vmatpush1.xpose.msra.mxu0 0.0
  %3141 = vmatprep.subr.mxu0 0.0
  %3142 = vmatpush1.xpose.msra.mxu0 0.0
  %3143 = vmatprep.subr.mxu0 0.0
  %3144 = vmatpush1.xpose.msra.mxu0 0.0
  %3145 = vmatprep.subr.mxu0 0.0
  %3146 = vmatpush1.xpose.msra.mxu0 0.0
  %3147 = vmatprep.subr.mxu0 0.0
  %3148 = vmatpush1.xpose.msra.mxu0 0.0
  %3149 = vmatprep.subr.mxu0 0.0
  %3150 = vmatpush1.xpose.msra.mxu0 0.0
  %3151 = vmatprep.subr.mxu0 0.0
  %3152 = vmatpush1.xpose.msra.mxu0 0.0
  %3153 = vmatprep.subr.mxu0 0.0
  %3154 = vmatpush1.xpose.msra.mxu0 0.0
  %3155 = vmatprep.subr.mxu0 0.0
  %3156 = vmatpush1.xpose.msra.mxu0 0.0
  %3157 = vmatprep.subr.mxu0 0.0
  %3158 = vmatpush1.xpose.msra.mxu0 0.0
  %3159 = vmatprep.subr.mxu0 0.0
  %3160 = vmatpush1.xpose.msra.mxu0 0.0
  %3161 = vmatprep.subr.mxu0 0.0
  %3162 = vmatpush1.xpose.msra.mxu0 0.0
  %3163 = vmatprep.subr.mxu0 0.0
  %3164 = vmatpush1.xpose.msra.mxu0 0.0
  %3165 = vmatprep.subr.mxu0 0.0
  %3166 = vmatpush1.xpose.msra.mxu0 0.0
  %3167 = vmatprep.subr.mxu0 0.0
  %3168 = vmatpush1.xpose.msra.mxu0 0.0
  %3169 = vmatprep.subr.mxu0 0.0
  %3170 = vmatpush1.xpose.msra.mxu0 0.0
  %3171 = vmatprep.subr.mxu0 0.0
  %3172 = vmatpush1.xpose.msra.mxu0 0.0
  %3173 = vmatprep.subr.mxu0 0.0
  %3174 = vmatpush1.xpose.msra.mxu0 0.0
  %3175 = vmatprep.subr.mxu0 0.0
  %3176 = vmatpush1.xpose.msra.mxu0 0.0
  %3177 = vmatprep.subr.mxu0 0.0
  %3178 = vmatpush1.xpose.msra.mxu0 0.0
  %3179 = vmatprep.mubr.f32.mxu0 0.0
  %3180 = vmatmul.mubr.f32.gmra.mrb[0].mxu0 %v3109
  %v3181 = vpop.f32.mrb[0].mxu0
  %v3182 = vadd.f32 %v80, %v3181
  %v3183 = vpop.f32.mrb[0].mxu0
  %3184 = vdwg.mxu0
  %v3185 = vsel %vm1956, %v3182, -inf
  %3186 = vmax.xlane.f32.xlu0 %v3185
  %v3187 = vpop.xlane.xlu0 %3186
  %v3188 = vsub.f32 %v3182, %v3187
  %v3189 = vmul.f32 %v3188, 1.442695
  %v3190 = vpow.pop %v3189
  %v3191 = vsel %vm1956, %v3190, 0.0
  %3192 = vadd.xlane.f32.xlu0 %v3191
  %v3193 = vpop.xlane.xlu0 %3192
  %v3194 = vrcp.pop %v3193
  %v3195 = vmul.f32 %v3190, %v3194
  %3196 = vrot.lane.b32.xlu0 %v1869, 72
  %v3197 = vpop.permute.xlu0 %3196
  %3198 = vrot.lane.b32.xlu0 %v1874, 72
  %v3199 = vpop.permute.xlu0 %3198
  %v3203 = vsel %vm1956, %v3195, 0
  %3205 = vmatprep.subr.mxu0 0.0
  %3206 = vmatpush1.msra.mxu0 %v3197
  %3207 = vmatprep.subr.mxu0 0.0
  %3208 = vmatpush1.msra.mxu0 %v3199
  %3209 = vmatprep.subr.mxu0 0.0
  %3210 = vmatpush1.msra.mxu0 0.0
  %3211 = vmatprep.subr.mxu0 0.0
  %3212 = vmatpush1.msra.mxu0 0.0
  %3213 = vmatprep.subr.mxu0 0.0
  %3214 = vmatpush1.msra.mxu0 0.0
  %3215 = vmatprep.subr.mxu0 0.0
  %3216 = vmatpush1.msra.mxu0 0.0
  %3217 = vmatprep.subr.mxu0 0.0
  %3218 = vmatpush1.msra.mxu0 0.0
  %3219 = vmatprep.subr.mxu0 0.0
  %3220 = vmatpush1.msra.mxu0 0.0
  %3221 = vmatprep.subr.mxu0 0.0
  %3222 = vmatpush1.msra.mxu0 0.0
  %3223 = vmatprep.subr.mxu0 0.0
  %3224 = vmatpush1.msra.mxu0 0.0
  %3225 = vmatprep.subr.mxu0 0.0
  %3226 = vmatpush1.msra.mxu0 0.0
  %3227 = vmatprep.subr.mxu0 0.0
  %3228 = vmatpush1.msra.mxu0 0.0
  %3229 = vmatprep.subr.mxu0 0.0
  %3230 = vmatpush1.msra.mxu0 0.0
  %3231 = vmatprep.subr.mxu0 0.0
  %3232 = vmatpush1.msra.mxu0 0.0
  %3233 = vmatprep.subr.mxu0 0.0
  %3234 = vmatpush1.msra.mxu0 0.0
  %3235 = vmatprep.subr.mxu0 0.0
  %3236 = vmatpush1.msra.mxu0 0.0
  %3237 = vmatprep.subr.mxu0 0.0
  %3238 = vmatpush1.msra.mxu0 0.0
  %3239 = vmatprep.subr.mxu0 0.0
  %3240 = vmatpush1.msra.mxu0 0.0
  %3241 = vmatprep.subr.mxu0 0.0
  %3242 = vmatpush1.msra.mxu0 0.0
  %3243 = vmatprep.subr.mxu0 0.0
  %3244 = vmatpush1.msra.mxu0 0.0
  %3245 = vmatprep.subr.mxu0 0.0
  %3246 = vmatpush1.msra.mxu0 0.0
  %3247 = vmatprep.subr.mxu0 0.0
  %3248 = vmatpush1.msra.mxu0 0.0
  %3249 = vmatprep.subr.mxu0 0.0
  %3250 = vmatpush1.msra.mxu0 0.0
  %3251 = vmatprep.subr.mxu0 0.0
  %3252 = vmatpush1.msra.mxu0 0.0
  %3253 = vmatprep.subr.mxu0 0.0
  %3254 = vmatpush1.msra.mxu0 0.0
  %3255 = vmatprep.subr.mxu0 0.0
  %3256 = vmatpush1.msra.mxu0 0.0
  %3257 = vmatprep.subr.mxu0 0.0
  %3258 = vmatpush1.msra.mxu0 0.0
  %3259 = vmatprep.subr.mxu0 0.0
  %3260 = vmatpush1.msra.mxu0 0.0
  %3261 = vmatprep.subr.mxu0 0.0
  %3262 = vmatpush1.msra.mxu0 0.0
  %3263 = vmatprep.subr.mxu0 0.0
  %3264 = vmatpush1.msra.mxu0 0.0
  %3265 = vmatprep.subr.mxu0 0.0
  %3266 = vmatpush1.msra.mxu0 0.0
  %3267 = vmatprep.subr.mxu0 0.0
  %3268 = vmatpush1.msra.mxu0 0.0
  %3269 = vmatprep.mubr.f32.mxu0 0.0
  %3270 = vmatmul.mubr.f32.gmra.mrb[0].mxu0 %v3203
  %v3271 = vpop.f32.mrb[0].mxu0
  %v3272 = vadd.f32 0.0, %v3271
  %v3273 = vpop.f32.mrb[0].mxu0
  %3274 = vdwg.mxu0
  %3276 = vrot.lane.b32.xlu0 %v3272, 24
  %v3277 = vpop.permute.xlu0 %3276
  %3279 = vst.msk [vmem:[#allocation2 + $0x8] sm:$0xff] %vm851, %v3277
  %v3280 = vld [vmem:[#allocation2] sm:$0xff]
  %v3281 = vld [vmem:[#allocation2 + $0x8] sm:$0xff]
  %v3282 = vld [vmem:[%s12] sm:$0xff]
  %v3283 = vld [vmem:[%s12 + $0x8] sm:$0xff]
  %v3284 = vld [vmem:[%s12 + $0x10] sm:$0xff]
  %v3285 = vld [vmem:[%s12 + $0x18] sm:$0xff]
  %v3286 = vld [vmem:[%s13] sm:$0x1]
  %v3288 = vlaneseq
  %v3289 = vshrl.u32 %v3288, 7
  %v3290 = vsub.s32 0, %v3289
  %v3291 = vrot.slane %v3286, %v3290
  %v3294 = vsel %vm92, %v3280, 0
  %v3297 = vsel %vm92, %v3281, 0
  %3299 = vmatprep.subr.mxu0 0.0
  %3300 = vmatpush1.msra.mxu0 %v3282
  %3301 = vmatprep.subr.mxu0 0.0
  %3302 = vmatpush1.msra.mxu0 %v3283
  %3303 = vmatprep.subr.mxu0 0.0
  %3304 = vmatpush1.msra.mxu0 %v3284
  %3305 = vmatprep.subr.mxu0 0.0
  %3306 = vmatpush1.msra.mxu0 %v3285
  %3307 = vmatprep.subr.mxu0 0.0
  %3308 = vmatpush1.msra.mxu0 0.0
  %3309 = vmatprep.subr.mxu0 0.0
  %3310 = vmatpush1.msra.mxu0 0.0
  %3311 = vmatprep.subr.mxu0 0.0
  %3312 = vmatpush1.msra.mxu0 0.0
  %3313 = vmatprep.subr.mxu0 0.0
  %3314 = vmatpush1.msra.mxu0 0.0
  %3315 = vmatprep.subr.mxu0 0.0
  %3316 = vmatpush1.msra.mxu0 0.0
  %3317 = vmatprep.subr.mxu0 0.0
  %3318 = vmatpush1.msra.mxu0 0.0
  %3319 = vmatprep.subr.mxu0 0.0
  %3320 = vmatpush1.msra.mxu0 0.0
  %3321 = vmatprep.subr.mxu0 0.0
  %3322 = vmatpush1.msra.mxu0 0.0
  %3323 = vmatprep.subr.mxu0 0.0
  %3324 = vmatpush1.msra.mxu0 0.0
  %3325 = vmatprep.subr.mxu0 0.0
  %3326 = vmatpush1.msra.mxu0 0.0
  %3327 = vmatprep.subr.mxu0 0.0
  %3328 = vmatpush1.msra.mxu0 0.0
  %3329 = vmatprep.subr.mxu0 0.0
  %3330 = vmatpush1.msra.mxu0 0.0
  %3331 = vmatprep.subr.mxu0 0.0
  %3332 = vmatpush1.msra.mxu0 0.0
  %3333 = vmatprep.subr.mxu0 0.0
  %3334 = vmatpush1.msra.mxu0 0.0
  %3335 = vmatprep.subr.mxu0 0.0
  %3336 = vmatpush1.msra.mxu0 0.0
  %3337 = vmatprep.subr.mxu0 0.0
  %3338 = vmatpush1.msra.mxu0 0.0
  %3339 = vmatprep.subr.mxu0 0.0
  %3340 = vmatpush1.msra.mxu0 0.0
  %3341 = vmatprep.subr.mxu0 0.0
  %3342 = vmatpush1.msra.mxu0 0.0
  %3343 = vmatprep.subr.mxu0 0.0
  %3344 = vmatpush1.msra.mxu0 0.0
  %3345 = vmatprep.subr.mxu0 0.0
  %3346 = vmatpush1.msra.mxu0 0.0
  %3347 = vmatprep.subr.mxu0 0.0
  %3348 = vmatpush1.msra.mxu0 0.0
  %3349 = vmatprep.subr.mxu0 0.0
  %3350 = vmatpush1.msra.mxu0 0.0
  %3351 = vmatprep.subr.mxu0 0.0
  %3352 = vmatpush1.msra.mxu0 0.0
  %3353 = vmatprep.subr.mxu0 0.0
  %3354 = vmatpush1.msra.mxu0 0.0
  %3355 = vmatprep.subr.mxu0 0.0
  %3356 = vmatpush1.msra.mxu0 0.0
  %3357 = vmatprep.subr.mxu0 0.0
  %3358 = vmatpush1.msra.mxu0 0.0
  %3359 = vmatprep.subr.mxu0 0.0
  %3360 = vmatpush1.msra.mxu0 0.0
  %3361 = vmatprep.subr.mxu0 0.0
  %3362 = vmatpush1.msra.mxu0 0.0
  %3363 = vmatprep.mubr.f32.mxu0 0.0
  %3364 = vmatmul.mubr.f32.gmra.mrb[0].mxu0 %v3294
  %v3365 = vpop.f32.mrb[0].mxu0
  %v3366 = vadd.f32 %v3291, %v3365
  %v3367 = vpop.f32.mrb[0].mxu0
  %3368 = vmatprep.mubr.f32.mxu0 0.0
  %3369 = vmatmul.mubr.f32.gmra.mrb[0].mxu0 %v3297
  %v3370 = vpop.f32.mrb[0].mxu0
  %v3371 = vadd.f32 %v3291, %v3370
  %v3372 = vpop.f32.mrb[0].mxu0
  %3373 = vdwg.mxu0
  %v3374 = vadd.f32 %v1667, %v3366
  %v3375 = vadd.f32 %v1668, %v3371
  %v3376 = vld [vmem:[%s14] sm:$0x1]
  %v3377 = vld [vmem:[%s15] sm:$0x1]
  %v3378 = vsel %vm92, %v3374, 0.0
  %3379 = vadd.xlane.f32.xlu0 %v3378
  %v3380 = vpop.xlane.xlu0 %3379
  %v3381 = vsel %vm92, %v3375, 0.0
  %3382 = vadd.xlane.f32.xlu0 %v3381
  %v3383 = vpop.xlane.xlu0 %3382
  %v3384 = vmul.f32 %v3380, %v1632
  %v3385 = vmul.f32 %v3383, %v1632
  %v3386 = vsub.f32 %v3374, %v3384
  %v3387 = vsub.f32 %v3375, %v3385
  %v3388 = vmul.f32 %v3386, %v3386
  %v3389 = vmul.f32 %v3387, %v3387
  %v3390 = vsel %vm92, %v3388, 0.0
  %3391 = vadd.xlane.f32.xlu0 %v3390
  %v3392 = vpop.xlane.xlu0 %3391
  %v3393 = vsel %vm92, %v3389, 0.0
  %3394 = vadd.xlane.f32.xlu0 %v3393
  %v3395 = vpop.xlane.xlu0 %3394
  %v3396 = vmul.f32 %v3392, %v1632
  %v3397 = vmul.f32 %v3395, %v1632
  %v3398 = vadd.f32 %v3396, 1e-05
  %v3399 = vadd.f32 %v3397, 1e-05
  %v3400 = vrsqrt.pop %v3398
  %v3401 = vrsqrt.pop %v3399
  %v3402 = vmul.f32 %v3386, %v3400
  %v3403 = vmul.f32 %v3387, %v3401
  %v3405 = vlaneseq
  %v3406 = vshrl.u32 %v3405, 7
  %v3407 = vsub.s32 0, %v3406
  %v3408 = vrot.slane %v3376, %v3407
  %v3410 = vmul.f32 %v3402, %v3408
  %v3411 = vmul.f32 %v3403, %v3408
  %v3413 = vlaneseq
  %v3414 = vshrl.u32 %v3413, 7
  %v3415 = vsub.s32 0, %v3414
  %v3416 = vrot.slane %v3377, %v3415
  %v3418 = vadd.f32 %v3410, %v3416
  %v3419 = vadd.f32 %v3411, %v3416
  %v3420 = vld [vmem:[%s16] sm:$0xff]
  %v3421 = vld [vmem:[%s16 + $0x8] sm:$0xff]
  %v3422 = vld [vmem:[%s16 + $0x10] sm:$0xff]
  %v3423 = vld [vmem:[%s16 + $0x18] sm:$0xff]
  %v3424 = vld [vmem:[%s17] sm:$0x1]
  %v3426 = vlaneseq
  %v3427 = vshrl.u32 %v3426, 7
  %v3428 = vsub.s32 0, %v3427
  %v3429 = vrot.slane %v3424, %v3428
  %v3432 = vsel %vm92, %v3418, 0
  %v3435 = vsel %vm92, %v3419, 0
  %3437 = vmatprep.subr.mxu0 0.0
  %3438 = vmatpush1.msra.mxu0 %v3420
  %3439 = vmatprep.subr.mxu0 0.0
  %3440 = vmatpush1.msra.mxu0 %v3421
  %3441 = vmatprep.subr.mxu0 0.0
  %3442 = vmatpush1.msra.mxu0 %v3422
  %3443 = vmatprep.subr.mxu0 0.0
  %3444 = vmatpush1.msra.mxu0 %v3423
  %3445 = vmatprep.subr.mxu0 0.0
  %3446 = vmatpush1.msra.mxu0 0.0
  %3447 = vmatprep.subr.mxu0 0.0
  %3448 = vmatpush1.msra.mxu0 0.0
  %3449 = vmatprep.subr.mxu0 0.0
  %3450 = vmatpush1.msra.mxu0 0.0
  %3451 = vmatprep.subr.mxu0 0.0
  %3452 = vmatpush1.msra.mxu0 0.0
  %3453 = vmatprep.subr.mxu0 0.0
  %3454 = vmatpush1.msra.mxu0 0.0
  %3455 = vmatprep.subr.mxu0 0.0
  %3456 = vmatpush1.msra.mxu0 0.0
  %3457 = vmatprep.subr.mxu0 0.0
  %3458 = vmatpush1.msra.mxu0 0.0
  %3459 = vmatprep.subr.mxu0 0.0
  %3460 = vmatpush1.msra.mxu0 0.0
  %3461 = vmatprep.subr.mxu0 0.0
  %3462 = vmatpush1.msra.mxu0 0.0
  %3463 = vmatprep.subr.mxu0 0.0
  %3464 = vmatpush1.msra.mxu0 0.0
  %3465 = vmatprep.subr.mxu0 0.0
  %3466 = vmatpush1.msra.mxu0 0.0
  %3467 = vmatprep.subr.mxu0 0.0
  %3468 = vmatpush1.msra.mxu0 0.0
  %3469 = vmatprep.subr.mxu0 0.0
  %3470 = vmatpush1.msra.mxu0 0.0
  %3471 = vmatprep.subr.mxu0 0.0
  %3472 = vmatpush1.msra.mxu0 0.0
  %3473 = vmatprep.subr.mxu0 0.0
  %3474 = vmatpush1.msra.mxu0 0.0
  %3475 = vmatprep.subr.mxu0 0.0
  %3476 = vmatpush1.msra.mxu0 0.0
  %3477 = vmatprep.subr.mxu0 0.0
  %3478 = vmatpush1.msra.mxu0 0.0
  %3479 = vmatprep.subr.mxu0 0.0
  %3480 = vmatpush1.msra.mxu0 0.0
  %3481 = vmatprep.subr.mxu0 0.0
  %3482 = vmatpush1.msra.mxu0 0.0
  %3483 = vmatprep.subr.mxu0 0.0
  %3484 = vmatpush1.msra.mxu0 0.0
  %3485 = vmatprep.subr.mxu0 0.0
  %3486 = vmatpush1.msra.mxu0 0.0
  %3487 = vmatprep.subr.mxu0 0.0
  %3488 = vmatpush1.msra.mxu0 0.0
  %3489 = vmatprep.subr.mxu0 0.0
  %3490 = vmatpush1.msra.mxu0 0.0
  %3491 = vmatprep.subr.mxu0 0.0
  %3492 = vmatpush1.msra.mxu0 0.0
  %3493 = vmatprep.subr.mxu0 0.0
  %3494 = vmatpush1.msra.mxu0 0.0
  %3495 = vmatprep.subr.mxu0 0.0
  %3496 = vmatpush1.msra.mxu0 0.0
  %3497 = vmatprep.subr.mxu0 0.0
  %3498 = vmatpush1.msra.mxu0 0.0
  %3499 = vmatprep.subr.mxu0 0.0
  %3500 = vmatpush1.msra.mxu0 0.0
  %3501 = vmatprep.mubr.f32.mxu0 0.0
  %3502 = vmatmul.mubr.f32.gmra.mrb[0].mxu0 %v3432
  %v3503 = vpop.f32.mrb[0].mxu0
  %v3504 = vadd.f32 %v3429, %v3503
  %v3505 = vpop.f32.mrb[0].mxu0
  %3506 = vmatprep.mubr.f32.mxu0 0.0
  %3507 = vmatmul.mubr.f32.gmra.mrb[0].mxu0 %v3435
  %v3508 = vpop.f32.mrb[0].mxu0
  %v3509 = vadd.f32 %v3429, %v3508
  %v3510 = vpop.f32.mrb[0].mxu0
  %3511 = vdwg.mxu0
  %v3512 = vmax.f32 %v3504, 0.0
  %v3513 = vmax.f32 %v3509, 0.0
  %v3514 = vld [vmem:[%s18] sm:$0xff]
  %v3515 = vld [vmem:[%s18 + $0x8] sm:$0xff]
  %v3516 = vld [vmem:[%s18 + $0x10] sm:$0xff]
  %v3517 = vld [vmem:[%s18 + $0x18] sm:$0xff]
  %v3518 = vld [vmem:[%s18 + $0x20] sm:$0xff]
  %v3519 = vld [vmem:[%s18 + $0x28] sm:$0xff]
  %v3520 = vld [vmem:[%s18 + $0x30] sm:$0xff]
  %v3521 = vld [vmem:[%s18 + $0x38] sm:$0xff]
  %v3522 = vld [vmem:[%s19] sm:$0x1]
  %v3524 = vlaneseq
  %v3525 = vshrl.u32 %v3524, 7
  %v3526 = vsub.s32 0, %v3525
  %v3527 = vrot.slane %v3522, %v3526
  %vm3529 = vcmask 523264
  %v3531 = vsel %vm3529, %v3512, 0
  %v3534 = vsel %vm3529, %v3513, 0
  %3536 = vmatprep.subr.mxu0 0.0
  %3537 = vmatpush1.msra.mxu0 %v3514
  %3538 = vmatprep.subr.mxu0 0.0
  %3539 = vmatpush1.msra.mxu0 %v3515
  %3540 = vmatprep.subr.mxu0 0.0
  %3541 = vmatpush1.msra.mxu0 %v3516
  %3542 = vmatprep.subr.mxu0 0.0
  %3543 = vmatpush1.msra.mxu0 %v3517
  %3544 = vmatprep.subr.mxu0 0.0
  %3545 = vmatpush1.msra.mxu0 %v3518
  %3546 = vmatprep.subr.mxu0 0.0
  %3547 = vmatpush1.msra.mxu0 %v3519
  %3548 = vmatprep.subr.mxu0 0.0
  %3549 = vmatpush1.msra.mxu0 %v3520
  %3550 = vmatprep.subr.mxu0 0.0
  %3551 = vmatpush1.msra.mxu0 %v3521
  %3552 = vmatprep.subr.mxu0 0.0
  %3553 = vmatpush1.msra.mxu0 0.0
  %3554 = vmatprep.subr.mxu0 0.0
  %3555 = vmatpush1.msra.mxu0 0.0
  %3556 = vmatprep.subr.mxu0 0.0
  %3557 = vmatpush1.msra.mxu0 0.0
  %3558 = vmatprep.subr.mxu0 0.0
  %3559 = vmatpush1.msra.mxu0 0.0
  %3560 = vmatprep.subr.mxu0 0.0
  %3561 = vmatpush1.msra.mxu0 0.0
  %3562 = vmatprep.subr.mxu0 0.0
  %3563 = vmatpush1.msra.mxu0 0.0
  %3564 = vmatprep.subr.mxu0 0.0
  %3565 = vmatpush1.msra.mxu0 0.0
  %3566 = vmatprep.subr.mxu0 0.0
  %3567 = vmatpush1.msra.mxu0 0.0
  %3568 = vmatprep.subr.mxu0 0.0
  %3569 = vmatpush1.msra.mxu0 0.0
  %3570 = vmatprep.subr.mxu0 0.0
  %3571 = vmatpush1.msra.mxu0 0.0
  %3572 = vmatprep.subr.mxu0 0.0
  %3573 = vmatpush1.msra.mxu0 0.0
  %3574 = vmatprep.subr.mxu0 0.0
  %3575 = vmatpush1.msra.mxu0 0.0
  %3576 = vmatprep.subr.mxu0 0.0
  %3577 = vmatpush1.msra.mxu0 0.0
  %3578 = vmatprep.subr.mxu0 0.0
  %3579 = vmatpush1.msra.mxu0 0.0
  %3580 = vmatprep.subr.mxu0 0.0
  %3581 = vmatpush1.msra.mxu0 0.0
  %3582 = vmatprep.subr.mxu0 0.0
  %3583 = vmatpush1.msra.mxu0 0.0
  %3584 = vmatprep.subr.mxu0 0.0
  %3585 = vmatpush1.msra.mxu0 0.0
  %3586 = vmatprep.subr.mxu0 0.0
  %3587 = vmatpush1.msra.mxu0 0.0
  %3588 = vmatprep.subr.mxu0 0.0
  %3589 = vmatpush1.msra.mxu0 0.0
  %3590 = vmatprep.subr.mxu0 0.0
  %3591 = vmatpush1.msra.mxu0 0.0
  %3592 = vmatprep.subr.mxu0 0.0
  %3593 = vmatpush1.msra.mxu0 0.0
  %3594 = vmatprep.subr.mxu0 0.0
  %3595 = vmatpush1.msra.mxu0 0.0
  %3596 = vmatprep.subr.mxu0 0.0
  %3597 = vmatpush1.msra.mxu0 0.0
  %3598 = vmatprep.subr.mxu0 0.0
  %3599 = vmatpush1.msra.mxu0 0.0
  %3600 = vmatprep.mubr.f32.mxu0 0.0
  %3601 = vmatmul.mubr.f32.gmra.mrb[0].mxu0 %v3531
  %v3602 = vpop.f32.mrb[0].mxu0
  %v3603 = vadd.f32 %v3527, %v3602
  %v3604 = vpop.f32.mrb[0].mxu0
  %3605 = vmatprep.mubr.f32.mxu0 0.0
  %3606 = vmatmul.mubr.f32.gmra.mrb[0].mxu0 %v3534
  %v3607 = vpop.f32.mrb[0].mxu0
  %v3608 = vadd.f32 %v3527, %v3607
  %v3609 = vpop.f32.mrb[0].mxu0
  %3610 = vdwg.mxu0
  %v3611 = vadd.f32 %v3418, %v3603
  %v3612 = vadd.f32 %v3419, %v3608
  %v3613 = vld [vmem:[%s20] sm:$0x1]
  %v3614 = vld [vmem:[%s21] sm:$0x1]
  %v3615 = vsel %vm92, %v3611, 0.0
  %3616 = vadd.xlane.f32.xlu0 %v3615
  %v3617 = vpop.xlane.xlu0 %3616
  %v3618 = vsel %vm92, %v3612, 0.0
  %3619 = vadd.xlane.f32.xlu0 %v3618
  %v3620 = vpop.xlane.xlu0 %3619
  %v3621 = vmul.f32 %v3617, %v1632
  %v3622 = vmul.f32 %v3620, %v1632
  %v3623 = vsub.f32 %v3611, %v3621
  %v3624 = vsub.f32 %v3612, %v3622
  %v3625 = vmul.f32 %v3623, %v3623
  %v3626 = vmul.f32 %v3624, %v3624
  %v3627 = vsel %vm92, %v3625, 0.0
  %3628 = vadd.xlane.f32.xlu0 %v3627
  %v3629 = vpop.xlane.xlu0 %3628
  %v3630 = vsel %vm92, %v3626, 0.0
  %3631 = vadd.xlane.f32.xlu0 %v3630
  %v3632 = vpop.xlane.xlu0 %3631
  %v3633 = vmul.f32 %v3629, %v1632
  %v3634 = vmul.f32 %v3632, %v1632
  %v3635 = vadd.f32 %v3633, 1e-05
  %v3636 = vadd.f32 %v3634, 1e-05
  %v3637 = vrsqrt.pop %v3635
  %v3638 = vrsqrt.pop %v3636
  %v3639 = vmul.f32 %v3623, %v3637
  %v3640 = vmul.f32 %v3624, %v3638
  %v3642 = vlaneseq
  %v3643 = vshrl.u32 %v3642, 7
  %v3644 = vsub.s32 0, %v3643
  %v3645 = vrot.slane %v3613, %v3644
  %v3647 = vmul.f32 %v3639, %v3645
  %v3648 = vmul.f32 %v3640, %v3645
  %v3650 = vlaneseq
  %v3651 = vshrl.u32 %v3650, 7
  %v3652 = vsub.s32 0, %v3651
  %v3653 = vrot.slane %v3614, %v3652
  %v3655 = vadd.f32 %v3647, %v3653
  %v3656 = vadd.f32 %v3648, %v3653
  %3657 = vst.msk [vmem:[%s22] sm:$0xff] %vm92, %v3655
  %3658 = vst.msk [vmem:[%s22 + $0x8] sm:$0xff] %vm92, %v3656
  // Predicated region
  $region90: #{decoder_forward.2} parent=0 // pred_check
    _
  $region91: #{decoder_forward.2} parent=0 // pred_check_branch
    %3660 = sbr.rel (0) target = $region93
  $region92: #{decoder_forward.2} parent=0 // pred_region
    _
  $region93: #{decoder_forward.2} parent=0 // pred_fallthru
    _
  // Predicated region
  $region94: #{decoder_forward.2} parent=0 // pred_check
    _
  $region95: #{decoder_forward.2} parent=0 // pred_check_branch
    %3662 = sbr.rel (0) target = $region97
  $region96: #{decoder_forward.2} parent=0 // pred_region
    _
  $region97: #{decoder_forward.2} parent=0 // pred_fallthru
    _

</llo_original>
